<compile_context>
chip_gen: v7x
topology: tpu7x:2x2x1
jax: 0.10.0
libtpu: 0.0.40
codegen_flags: <defaults>
</compile_context>

<pallas_src>
import functools

import jax
import jax.numpy as jnp
from jax.experimental import pallas as pl
from jax.experimental.pallas import tpu as pltpu

IN_FEATURES = 32 * 32
WIDTH = 512
NUM_CLASSES = 10
PADDED_CLASSES = 128          # lane-dense output (avoid 10-wide masked stores)
P_DROP = 0.5

_SALT_L1 = 0x7F4A7C15
_SALT_L2 = 0x2545F491
_GOLD_I32 = -1640531527       # 0x9E3779B9 reinterpreted as signed int32


def _round_up(n, m):
    return ((n + m - 1) // m) * m


def _cdiv(a, b):
    return -(-a // b)


def _hash_bits(shape, row_offset, seed_i32, salt):
    """Portable counter-based 32-bit hash (murmur3 finalizer) -> uniform uint32 bits.

    Only used when the TPU hardware PRNG is unavailable (e.g. interpret mode). Note the
    TPU-PRNG and this fallback produce different dropout masks (expected).
    """
    rows = jax.lax.broadcasted_iota(jnp.int32, shape, 0) + row_offset
    cols = jax.lax.broadcasted_iota(jnp.int32, shape, 1)
    mixed = (rows * shape[-1] + cols) ^ (seed_i32 * jnp.int32(_GOLD_I32)) ^ jnp.int32(salt)
    z = jax.lax.bitcast_convert_type(mixed, jnp.uint32)
    z = z ^ (z >> 16)
    z = z * jnp.uint32(0x85EBCA6B)
    z = z ^ (z >> 13)
    z = z * jnp.uint32(0xC2B2AE35)
    z = z ^ (z >> 16)
    return z


def mlp3_kernel(seed_ref, x_ref, w1_ref, b1_ref, w2_ref, b2_ref, w3_ref, b3_ref,
                out_ref, *, training, p_drop, tile_b, tpu_native):
    x = x_ref[...].astype(jnp.bfloat16)        # cast in-kernel (cheap, hidden under MXU)

    keep1 = keep2 = None
    if training:
        def draw_bits(salt):
            if tpu_native:
                b = pltpu.prng_random_bits((tile_b, WIDTH))
                return b if b.dtype == jnp.uint32 else pltpu.bitcast(b, jnp.uint32)
            return _hash_bits((tile_b, WIDTH), pl.program_id(0) * tile_b,
                              seed_ref[0], salt)

        if tpu_native:
            # Per-tile seed so batch tiles get independent dropout streams.
            pltpu.prng_seed(seed_ref[0] + pl.program_id(0))
        bits = draw_bits(_SALT_L1)
        if p_drop == 0.5:
            # One draw serves both dropout layers: independent bits of the same word.
            keep1 = (bits & jnp.uint32(1 << 31)) != jnp.uint32(0)
            keep2 = (bits & jnp.uint32(1 << 15)) != jnp.uint32(0)
        else:
            thresh = jnp.uint32(min(int(p_drop * (1 << 32)), (1 << 32) - 1))
            keep1 = bits >= thresh
            keep2 = draw_bits(_SALT_L2) >= thresh

    # fc1 -> dropout+relu (fused select, bf16 elementwise; dropout scale folded into w2)
    h = jnp.dot(x, w1_ref[...], preferred_element_type=jnp.float32) + b1_ref[...]
    h = h.astype(jnp.bfloat16)
    if training:
        h = jnp.where(keep1 & (h > 0), h, 0)
    else:
        h = jnp.maximum(h, 0)

    # fc2 -> dropout+relu (scale folded into w3)
    h = jnp.dot(h, w2_ref[...], preferred_element_type=jnp.float32) + b2_ref[...]
    h = h.astype(jnp.bfloat16)
    if training:
        h = jnp.where(keep2 & (h > 0), h, 0)
    else:
        h = jnp.maximum(h, 0)

    # fc3 (padded to 128 lanes; pad columns have bias -1e30 so exp() -> 0) -> softmax
    logits = jnp.dot(h, w3_ref[...], preferred_element_type=jnp.float32) + b3_ref[...]
    m = jnp.max(logits, axis=-1, keepdims=True)
    e = jnp.exp(logits - m)
    denom = jnp.sum(e, axis=-1, keepdims=True)
    if tpu_native:
        p_out = e * pl.reciprocal(denom, approx=True)    # EUP slot, ~free
    else:
        p_out = e / denom
    out_ref[...] = p_out.astype(out_ref.dtype)


def _vmem_limit_bytes():
    """Scoped-VMEM budget: half of physical capacity, capped at 64 MiB."""
    cap = 64 << 20
    try:
        info = pltpu.get_tpu_info()
        cap = int(getattr(info, "vmem_capacity_bytes", cap))
    except Exception:
        pass
    return max(16 << 20, min(cap // 2, 64 << 20))


def _choose_tile(batch, tile_b, x_itemsize, vmem_limit):
    """Adaptive batch tile: minimal padding, VMEM-budget cap, >=2 steps when possible."""
    q = 16  # sublane quantum covering f32 (8) and packed bf16 (16) blocks
    b_min = _round_up(max(batch, 1), q)

    # Per-row VMEM: 2x x-block + 2x bf16 out-block + ~f32/bf16 intermediates.
    per_row = 2 * IN_FEATURES * x_itemsize + 2 * PADDED_CLASSES * 2 + 14 * 1024
    resident = 4 << 20                       # weights + compiler slack
    tb_cap = max(q, ((vmem_limit - resident) // per_row) // q * q)

    max_tb = min(max(q, _round_up(tile_b, q)), tb_cap)
    n_steps = _cdiv(b_min, max_tb)
    if n_steps == 1 and b_min >= 512:
        n_steps = 2                          # keep both v7x TensorCores busy
    tb = _round_up(_cdiv(b_min, n_steps), q)
    return tb, n_steps


def mlp3_forward(x, params, *, seed=0, training=True, tile_b=1024):
    """x: (B, 1, 32, 32) or anything flattening to (B, 1024). Returns (B, 10) f32 softmax."""
    x2 = x.reshape(-1, IN_FEATURES)          # keep native dtype; cast to bf16 in-kernel
    B = x2.shape[0]

    on_tpu = jax.default_backend() == "tpu"
    vmem_limit = _vmem_limit_bytes() if on_tpu else (64 << 20)
    tb, n_steps = _choose_tile(B, tile_b, x2.dtype.itemsize, vmem_limit)
    Bp = tb * n_steps
    if Bp != B:
        x2 = jnp.pad(x2, ((0, Bp - B), (0, 0)))

    # Dropout scale is folded into the training weight variants; eval uses unscaled.
    w2 = params["w2_train"] if training else params["w2_eval"]
    w3 = params["w3_train"] if training else params["w3_eval"]

    seed_arr = jnp.array([seed], dtype=jnp.int32)
    kernel = functools.partial(mlp3_kernel, training=training, p_drop=P_DROP,
                               tile_b=tb, tpu_native=on_tpu)

    def build(single_buffer_weights):
        const = lambda i: (0, 0)             # weights/biases VMEM-resident across steps
        if single_buffer_weights:
            wspec = lambda shape: pl.BlockSpec(shape, const,
                                               pipeline_mode=pl.Buffered(1))
        else:
            wspec = lambda shape: pl.BlockSpec(shape, const)

        extra = {}
        if on_tpu:
            extra["compiler_params"] = pltpu.CompilerParams(
                dimension_semantics=("parallel",),
                vmem_limit_bytes=vmem_limit)

        return pl.pallas_call(
            kernel,
            grid=(n_steps,),
            out_shape=jax.ShapeDtypeStruct((Bp, PADDED_CLASSES), jnp.bfloat16),
            in_specs=[
                pl.BlockSpec(memory_space=pltpu.MemorySpace.SMEM),        # seed
                pl.BlockSpec((tb, IN_FEATURES), lambda i: (i, 0)),        # x tile
                wspec((IN_FEATURES, WIDTH)),                              # w1 (bf16)
                wspec((1, WIDTH)),                                        # b1 (f32)
                wspec((WIDTH, WIDTH)),                                    # w2 (bf16)
                wspec((1, WIDTH)),                                        # b2 (f32)
                wspec((WIDTH, PADDED_CLASSES)),                           # w3 padded
                wspec((1, PADDED_CLASSES)),                               # b3 padded
            ],
            out_specs=pl.BlockSpec((tb, PADDED_CLASSES), lambda i: (i, 0)),
            **extra,
        )

    args = (seed_arr, x2, params["w1"], params["b1"], w2, params["b2"], w3, params["b3"])
    try:
        out = build(True)(*args)
    except Exception:
        # Fallback if this jax build rejects single-buffered pipeline_mode.
        out = build(False)(*args)

    return out[:B, :NUM_CLASSES].astype(jnp.float32)


def init_params(key):
    """Torch-style nn.Linear init: W (out,in), b (out,), U(-1/sqrt(fan_in), +)."""
    def linear(k, fan_in, fan_out):
        kw, kb = jax.random.split(k)
        bound = 1.0 / float(fan_in) ** 0.5
        w = jax.random.uniform(kw, (fan_out, fan_in), jnp.float32, -bound, bound)
        b = jax.random.uniform(kb, (fan_out,), jnp.float32, -bound, bound)
        return w, b

    k1, k2, k3 = jax.random.split(key, 3)
    w1, b1 = linear(k1, IN_FEATURES, WIDTH)
    w2, b2 = linear(k2, WIDTH, WIDTH)
    w3, b3 = linear(k3, WIDTH, NUM_CLASSES)
    return (w1, b1, w2, b2, w3, b3)


def pack_params(raw_params, p=P_DROP):
    """One-time prep: transpose to (in,out), cast to bf16, pad fc3 to 128 lanes,
    and pre-fold the dropout scale 1/(1-p) into the *training* w2/w3 variants
    (eval variants stay unscaled)."""
    w1, b1, w2, b2, w3, b3 = raw_params
    scale = 1.0 / (1.0 - p)
    w3p = jnp.zeros((WIDTH, PADDED_CLASSES), jnp.float32).at[:, :NUM_CLASSES].set(w3.T)
    b3p = jnp.full((1, PADDED_CLASSES), -1e30, jnp.float32).at[0, :NUM_CLASSES].set(b3)
    return dict(
        w1=w1.T.astype(jnp.bfloat16),
        b1=b1.reshape(1, -1).astype(jnp.float32),
        w2_eval=w2.T.astype(jnp.bfloat16),
        w2_train=(w2.T * scale).astype(jnp.bfloat16),
        b2=b2.reshape(1, -1).astype(jnp.float32),
        w3_eval=w3p.astype(jnp.bfloat16),
        w3_train=(w3p * scale).astype(jnp.bfloat16),
        b3=b3p,
    )


def mlp3_reference_eval(x, raw_params):
    """Pure-JAX eval-mode (dropout=identity) reference with matching bf16 matmuls."""
    w1, b1, w2, b2, w3, b3 = raw_params

    def mm(a, w):
        return jnp.dot(a.astype(jnp.bfloat16), w.T.astype(jnp.bfloat16),
                       preferred_element_type=jnp.float32)

    h = mm(x.reshape(-1, IN_FEATURES), w1) + b1
    h = jnp.maximum(h, 0.0)
    h = mm(h, w2) + b2
    h = jnp.maximum(h, 0.0)
    logits = mm(h, w3) + b3
    return jax.nn.softmax(logits, axis=1)


if __name__ == "__main__":
    key = jax.random.PRNGKey(0)
    kx, kp = jax.random.split(key)

    # Small NCHW input, as the torch module expects before view(-1, 32*32).
    x = jax.random.normal(kx, (8, 1, 32, 32), dtype=jnp.float32)
    raw = init_params(kp)
    params = pack_params(raw)

    # Training-mode forward (nn.Module default: dropout active).
    out_train = jax.block_until_ready(mlp3_forward(x, params, seed=123, training=True))
    assert out_train.shape == (8, NUM_CLASSES)
    assert bool(jnp.all(jnp.isfinite(out_train)))
    assert bool(jnp.allclose(jnp.sum(out_train, axis=1), 1.0, atol=1e-2))

    # Eval-mode forward cross-checked against a pure-JAX reference.
    # Tolerance covers bf16 matmul inputs, bf16 output store, approx reciprocal.
    out_eval = jax.block_until_ready(mlp3_forward(x, params, training=False))
    ref_eval = mlp3_reference_eval(x, raw)
    assert out_eval.shape == ref_eval.shape
    assert bool(jnp.allclose(out_eval, ref_eval, atol=2e-2, rtol=2e-2))

    print("KERNEL_OK")
</pallas_src>

<mosaic_0001>
module attributes {stable_mosaic.version = 11 : i64} {
  func.func @mlp3_kernel(%arg0: i32, %arg1: memref<1xi32, #tpu.memory_space<smem>>, %arg2: memref<16x1024xf32, #tpu.memory_space<vmem>>, %arg3: memref<1024x512xbf16, #tpu.memory_space<vmem>>, %arg4: memref<1x512xf32, #tpu.memory_space<vmem>>, %arg5: memref<512x512xbf16, #tpu.memory_space<vmem>>, %arg6: memref<1x512xf32, #tpu.memory_space<vmem>>, %arg7: memref<512x128xbf16, #tpu.memory_space<vmem>>, %arg8: memref<1x128xf32, #tpu.memory_space<vmem>>, %arg9: memref<16x128xbf16, #tpu.memory_space<vmem>>) attributes {dimension_semantics = [#tpu.dimension_semantics<arbitrary>], iteration_bounds = array<i64: 1>, scalar_prefetch = 0 : i64, scratch_operands = 0 : i64, tpu.core_type = #tpu.core_type<tc>, window_params = [{transform_indices = @transform_0, window_bounds = array<i64: 1>}, {transform_indices = @transform_1, window_bounds = array<i64: 16, 1024>}, {pipeline_mode = #tpu.pipeline_mode<synchronous>, transform_indices = @transform_2, window_bounds = array<i64: 1024, 512>}, {pipeline_mode = #tpu.pipeline_mode<synchronous>, transform_indices = @transform_3, window_bounds = array<i64: 1, 512>}, {pipeline_mode = #tpu.pipeline_mode<synchronous>, transform_indices = @transform_4, window_bounds = array<i64: 512, 512>}, {pipeline_mode = #tpu.pipeline_mode<synchronous>, transform_indices = @transform_5, window_bounds = array<i64: 1, 512>}, {pipeline_mode = #tpu.pipeline_mode<synchronous>, transform_indices = @transform_6, window_bounds = array<i64: 512, 128>}, {pipeline_mode = #tpu.pipeline_mode<synchronous>, transform_indices = @transform_7, window_bounds = array<i64: 1, 128>}, {transform_indices = @transform_8, window_bounds = array<i64: 16, 128>}]} {
    %c0 = arith.constant 0 : index
    %c0_0 = arith.constant 0 : index
    %0 = vector.load %arg2[%c0, %c0_0] : memref<16x1024xf32, #tpu.memory_space<vmem>>, vector<16x1024xf32>
    %1 = arith.truncf %0 : vector<16x1024xf32> to vector<16x1024xbf16>
    %c16_i32 = arith.constant 16 : i32
    %2 = arith.muli %arg0, %c16_i32 : i32
    %c0_1 = arith.constant 0 : index
    %3 = memref.load %arg1[%c0_1] : memref<1xi32, #tpu.memory_space<smem>>
    %4 = tpu.iota {dimensions = array<i32: 0>} : vector<16x512xi32>
    %5 = vector.broadcast %2 : i32 to vector<16x512xi32>
    %6 = arith.addi %4, %5 : vector<16x512xi32>
    %7 = tpu.iota {dimensions = array<i32: 1>} : vector<16x512xi32>
    %c512_i32 = arith.constant 512 : i32
    %8 = vector.broadcast %c512_i32 : i32 to vector<16x512xi32>
    %9 = arith.muli %6, %8 : vector<16x512xi32>
    %10 = arith.addi %9, %7 : vector<16x512xi32>
    %c-1640531527_i32 = arith.constant -1640531527 : i32
    %11 = arith.muli %3, %c-1640531527_i32 : i32
    %12 = vector.broadcast %11 : i32 to vector<16x512xi32>
    %13 = arith.xori %10, %12 : vector<16x512xi32>
    %c2135587861_i32 = arith.constant 2135587861 : i32
    %14 = vector.broadcast %c2135587861_i32 : i32 to vector<16x512xi32>
    %15 = arith.xori %13, %14 : vector<16x512xi32>
    %16 = tpu.bitcast %15 : vector<16x512xi32> -> vector<16x512xi32>
    %c16_i32_2 = arith.constant 16 : i32
    %17 = vector.broadcast %c16_i32_2 : i32 to vector<16x512xi32>
    %18 = arith.shrui %16, %17 : vector<16x512xi32>
    %19 = arith.xori %16, %18 : vector<16x512xi32>
    %c-2048144789_i32 = arith.constant -2048144789 : i32
    %20 = vector.broadcast %c-2048144789_i32 : i32 to vector<16x512xi32>
    %21 = arith.muli %19, %20 : vector<16x512xi32>
    %c13_i32 = arith.constant 13 : i32
    %22 = vector.broadcast %c13_i32 : i32 to vector<16x512xi32>
    %23 = arith.shrui %21, %22 : vector<16x512xi32>
    %24 = arith.xori %21, %23 : vector<16x512xi32>
    %c-1028477387_i32 = arith.constant -1028477387 : i32
    %25 = vector.broadcast %c-1028477387_i32 : i32 to vector<16x512xi32>
    %26 = arith.muli %24, %25 : vector<16x512xi32>
    %c16_i32_3 = arith.constant 16 : i32
    %27 = vector.broadcast %c16_i32_3 : i32 to vector<16x512xi32>
    %28 = arith.shrui %26, %27 : vector<16x512xi32>
    %29 = arith.xori %26, %28 : vector<16x512xi32>
    %c-2147483648_i32 = arith.constant -2147483648 : i32
    %30 = vector.broadcast %c-2147483648_i32 : i32 to vector<16x512xi32>
    %31 = arith.andi %29, %30 : vector<16x512xi32>
    %c0_i32 = arith.constant 0 : i32
    %32 = vector.broadcast %c0_i32 : i32 to vector<16x512xi32>
    %33 = arith.cmpi ne, %31, %32 : vector<16x512xi32>
    %c32768_i32 = arith.constant 32768 : i32
    %34 = vector.broadcast %c32768_i32 : i32 to vector<16x512xi32>
    %35 = arith.andi %29, %34 : vector<16x512xi32>
    %c0_i32_4 = arith.constant 0 : i32
    %36 = vector.broadcast %c0_i32_4 : i32 to vector<16x512xi32>
    %37 = arith.cmpi ne, %35, %36 : vector<16x512xi32>
    %c0_5 = arith.constant 0 : index
    %c0_6 = arith.constant 0 : index
    %38 = vector.load %arg3[%c0_5, %c0_6] : memref<1024x512xbf16, #tpu.memory_space<vmem>>, vector<1024x512xbf16>
    %cst = arith.constant dense<0.000000e+00> : vector<16x512xf32>
    %39 = tpu.matmul %1, %38, %cst {dimension_numbers = #tpu.dot_dimension_numbers<[1], [0], [0], [1], [0, 0, 1, 1], [], []>} : vector<16x1024xbf16>, vector<1024x512xbf16>, vector<16x512xf32> -> vector<16x512xf32>
    %c0_7 = arith.constant 0 : index
    %c0_8 = arith.constant 0 : index
    %40 = vector.load %arg4[%c0_7, %c0_8] : memref<1x512xf32, #tpu.memory_space<vmem>>, vector<1x512xf32>
    %41 = vector.broadcast %40 : vector<1x512xf32> to vector<16x512xf32>
    %42 = arith.addf %39, %41 : vector<16x512xf32>
    %43 = arith.truncf %42 : vector<16x512xf32> to vector<16x512xbf16>
    %cst_9 = arith.constant 0.000000e+00 : bf16
    %44 = vector.broadcast %cst_9 : bf16 to vector<16x512xbf16>
    %45 = arith.cmpf ogt, %43, %44 : vector<16x512xbf16>
    %46 = arith.andi %33, %45 : vector<16x512xi1>
    %c0_i32_10 = arith.constant 0 : i32
    %47 = arith.sitofp %c0_i32_10 : i32 to bf16
    %48 = vector.broadcast %47 : bf16 to vector<16x512xbf16>
    %49 = arith.select %46, %43, %48 : vector<16x512xi1>, vector<16x512xbf16>
    %c0_11 = arith.constant 0 : index
    %c0_12 = arith.constant 0 : index
    %50 = vector.load %arg5[%c0_11, %c0_12] : memref<512x512xbf16, #tpu.memory_space<vmem>>, vector<512x512xbf16>
    %cst_13 = arith.constant dense<0.000000e+00> : vector<16x512xf32>
    %51 = tpu.matmul %49, %50, %cst_13 {dimension_numbers = #tpu.dot_dimension_numbers<[1], [0], [0], [1], [0, 0, 1, 1], [], []>} : vector<16x512xbf16>, vector<512x512xbf16>, vector<16x512xf32> -> vector<16x512xf32>
    %c0_14 = arith.constant 0 : index
    %c0_15 = arith.constant 0 : index
    %52 = vector.load %arg6[%c0_14, %c0_15] : memref<1x512xf32, #tpu.memory_space<vmem>>, vector<1x512xf32>
    %53 = vector.broadcast %52 : vector<1x512xf32> to vector<16x512xf32>
    %54 = arith.addf %51, %53 : vector<16x512xf32>
    %55 = arith.truncf %54 : vector<16x512xf32> to vector<16x512xbf16>
    %cst_16 = arith.constant 0.000000e+00 : bf16
    %56 = vector.broadcast %cst_16 : bf16 to vector<16x512xbf16>
    %57 = arith.cmpf ogt, %55, %56 : vector<16x512xbf16>
    %58 = arith.andi %37, %57 : vector<16x512xi1>
    %c0_i32_17 = arith.constant 0 : i32
    %59 = arith.sitofp %c0_i32_17 : i32 to bf16
    %60 = vector.broadcast %59 : bf16 to vector<16x512xbf16>
    %61 = arith.select %58, %55, %60 : vector<16x512xi1>, vector<16x512xbf16>
    %c0_18 = arith.constant 0 : index
    %c0_19 = arith.constant 0 : index
    %62 = vector.load %arg7[%c0_18, %c0_19] : memref<512x128xbf16, #tpu.memory_space<vmem>>, vector<512x128xbf16>
    %cst_20 = arith.constant dense<0.000000e+00> : vector<16x128xf32>
    %63 = tpu.matmul %61, %62, %cst_20 {dimension_numbers = #tpu.dot_dimension_numbers<[1], [0], [0], [1], [0, 0, 1, 1], [], []>} : vector<16x512xbf16>, vector<512x128xbf16>, vector<16x128xf32> -> vector<16x128xf32>
    %c0_21 = arith.constant 0 : index
    %c0_22 = arith.constant 0 : index
    %64 = vector.load %arg8[%c0_21, %c0_22] : memref<1x128xf32, #tpu.memory_space<vmem>>, vector<1x128xf32>
    %65 = vector.broadcast %64 : vector<1x128xf32> to vector<16x128xf32>
    %66 = arith.addf %63, %65 : vector<16x128xf32>
    %cst_23 = arith.constant dense<0xFF800000> : vector<16xf32>
    %67 = vector.multi_reduction <maximumf>, %66, %cst_23 [1] : vector<16x128xf32> to vector<16xf32>
    %68 = vector.shape_cast %67 : vector<16xf32> to vector<16x1xf32>
    %69 = vector.broadcast %68 : vector<16x1xf32> to vector<16x128xf32>
    %70 = arith.subf %66, %69 : vector<16x128xf32>
    %71 = math.exp %70 : vector<16x128xf32>
    %cst_24 = arith.constant dense<0.000000e+00> : vector<16xf32>
    %72 = vector.multi_reduction <add>, %71, %cst_24 [1] : vector<16x128xf32> to vector<16xf32>
    %73 = vector.shape_cast %72 : vector<16xf32> to vector<16x1xf32>
    %74 = vector.broadcast %73 : vector<16x1xf32> to vector<16x128xf32>
    %75 = arith.divf %71, %74 : vector<16x128xf32>
    %76 = arith.truncf %75 : vector<16x128xf32> to vector<16x128xbf16>
    %c0_25 = arith.constant 0 : index
    %c0_26 = arith.constant 0 : index
    %77 = vector.load %arg9[%c0_25, %c0_26] : memref<16x128xbf16, #tpu.memory_space<vmem>>, vector<16x128xbf16>
    tpu.vector_store %arg9[%c0_25, %c0_26], %76 {strides = array<i32>} : memref<16x128xbf16, #tpu.memory_space<vmem>>, vector<16x128xbf16>,
    return
  }
  func.func @transform_0(%arg0: i32) -> i32 {
    %c0_i32 = arith.constant 0 : i32
    %c0_i32_0 = arith.constant 0 : i32
    return %c0_i32 : i32
  }
  func.func @transform_1(%arg0: i32) -> (i32, i32) {
    %c0_i32 = arith.constant 0 : i32
    %c0_i32_0 = arith.constant 0 : i32
    return %arg0, %c0_i32 : i32, i32
  }
  func.func @transform_2(%arg0: i32) -> (i32, i32) {
    %c0_i32 = arith.constant 0 : i32
    %c0_i32_0 = arith.constant 0 : i32
    %c0_i32_1 = arith.constant 0 : i32
    return %c0_i32, %c0_i32_0 : i32, i32
  }
  func.func @transform_3(%arg0: i32) -> (i32, i32) {
    %c0_i32 = arith.constant 0 : i32
    %c0_i32_0 = arith.constant 0 : i32
    %c0_i32_1 = arith.constant 0 : i32
    return %c0_i32, %c0_i32_0 : i32, i32
  }
  func.func @transform_4(%arg0: i32) -> (i32, i32) {
    %c0_i32 = arith.constant 0 : i32
    %c0_i32_0 = arith.constant 0 : i32
    %c0_i32_1 = arith.constant 0 : i32
    return %c0_i32, %c0_i32_0 : i32, i32
  }
  func.func @transform_5(%arg0: i32) -> (i32, i32) {
    %c0_i32 = arith.constant 0 : i32
    %c0_i32_0 = arith.constant 0 : i32
    %c0_i32_1 = arith.constant 0 : i32
    return %c0_i32, %c0_i32_0 : i32, i32
  }
  func.func @transform_6(%arg0: i32) -> (i32, i32) {
    %c0_i32 = arith.constant 0 : i32
    %c0_i32_0 = arith.constant 0 : i32
    %c0_i32_1 = arith.constant 0 : i32
    return %c0_i32, %c0_i32_0 : i32, i32
  }
  func.func @transform_7(%arg0: i32) -> (i32, i32) {
    %c0_i32 = arith.constant 0 : i32
    %c0_i32_0 = arith.constant 0 : i32
    %c0_i32_1 = arith.constant 0 : i32
    return %c0_i32, %c0_i32_0 : i32, i32
  }
  func.func @transform_8(%arg0: i32) -> (i32, i32) {
    %c0_i32 = arith.constant 0 : i32
    %c0_i32_0 = arith.constant 0 : i32
    return %arg0, %c0_i32 : i32, i32
  }
}

module attributes {stable_mosaic.version = 11 : i64} {
  func.func @mlp3_kernel(%arg0: i32, %arg1: memref<1xi32, #tpu.memory_space<smem>>, %arg2: memref<16x1024xf32, #tpu.memory_space<vmem>>, %arg3: memref<1024x512xbf16, #tpu.memory_space<vmem>>, %arg4: memref<1x512xf32, #tpu.memory_space<vmem>>, %arg5: memref<512x512xbf16, #tpu.memory_space<vmem>>, %arg6: memref<1x512xf32, #tpu.memory_space<vmem>>, %arg7: memref<512x128xbf16, #tpu.memory_space<vmem>>, %arg8: memref<1x128xf32, #tpu.memory_space<vmem>>, %arg9: memref<16x128xbf16, #tpu.memory_space<vmem>>) attributes {dimension_semantics = [#tpu.dimension_semantics<arbitrary>], iteration_bounds = array<i64: 1>, scalar_prefetch = 0 : i64, scratch_operands = 0 : i64, tpu.core_type = #tpu.core_type<tc>, window_params = [{transform_indices = @transform_0, window_bounds = array<i64: 1>}, {transform_indices = @transform_1, window_bounds = array<i64: 16, 1024>}, {pipeline_mode = #tpu.pipeline_mode<synchronous>, transform_indices = @transform_2, window_bounds = array<i64: 1024, 512>}, {pipeline_mode = #tpu.pipeline_mode<synchronous>, transform_indices = @transform_3, window_bounds = array<i64: 1, 512>}, {pipeline_mode = #tpu.pipeline_mode<synchronous>, transform_indices = @transform_4, window_bounds = array<i64: 512, 512>}, {pipeline_mode = #tpu.pipeline_mode<synchronous>, transform_indices = @transform_5, window_bounds = array<i64: 1, 512>}, {pipeline_mode = #tpu.pipeline_mode<synchronous>, transform_indices = @transform_6, window_bounds = array<i64: 512, 128>}, {pipeline_mode = #tpu.pipeline_mode<synchronous>, transform_indices = @transform_7, window_bounds = array<i64: 1, 128>}, {transform_indices = @transform_8, window_bounds = array<i64: 16, 128>}]} {
    %c0 = arith.constant 0 : index
    %c0_0 = arith.constant 0 : index
    %0 = vector.load %arg2[%c0, %c0_0] : memref<16x1024xf32, #tpu.memory_space<vmem>>, vector<16x1024xf32>
    %1 = arith.truncf %0 : vector<16x1024xf32> to vector<16x1024xbf16>
    %c16_i32 = arith.constant 16 : i32
    %2 = arith.muli %arg0, %c16_i32 : i32
    %c0_1 = arith.constant 0 : index
    %3 = memref.load %arg1[%c0_1] : memref<1xi32, #tpu.memory_space<smem>>
    %4 = tpu.iota {dimensions = array<i32: 0>} : vector<16x512xi32>
    %5 = vector.broadcast %2 : i32 to vector<16x512xi32>
    %6 = arith.addi %4, %5 : vector<16x512xi32>
    %7 = tpu.iota {dimensions = array<i32: 1>} : vector<16x512xi32>
    %c512_i32 = arith.constant 512 : i32
    %8 = vector.broadcast %c512_i32 : i32 to vector<16x512xi32>
    %9 = arith.muli %6, %8 : vector<16x512xi32>
    %10 = arith.addi %9, %7 : vector<16x512xi32>
    %c-1640531527_i32 = arith.constant -1640531527 : i32
    %11 = arith.muli %3, %c-1640531527_i32 : i32
    %12 = vector.broadcast %11 : i32 to vector<16x512xi32>
    %13 = arith.xori %10, %12 : vector<16x512xi32>
    %c2135587861_i32 = arith.constant 2135587861 : i32
    %14 = vector.broadcast %c2135587861_i32 : i32 to vector<16x512xi32>
    %15 = arith.xori %13, %14 : vector<16x512xi32>
    %16 = tpu.bitcast %15 : vector<16x512xi32> -> vector<16x512xi32>
    %c16_i32_2 = arith.constant 16 : i32
    %17 = vector.broadcast %c16_i32_2 : i32 to vector<16x512xi32>
    %18 = arith.shrui %16, %17 : vector<16x512xi32>
    %19 = arith.xori %16, %18 : vector<16x512xi32>
    %c-2048144789_i32 = arith.constant -2048144789 : i32
    %20 = vector.broadcast %c-2048144789_i32 : i32 to vector<16x512xi32>
    %21 = arith.muli %19, %20 : vector<16x512xi32>
    %c13_i32 = arith.constant 13 : i32
    %22 = vector.broadcast %c13_i32 : i32 to vector<16x512xi32>
    %23 = arith.shrui %21, %22 : vector<16x512xi32>
    %24 = arith.xori %21, %23 : vector<16x512xi32>
    %c-1028477387_i32 = arith.constant -1028477387 : i32
    %25 = vector.broadcast %c-1028477387_i32 : i32 to vector<16x512xi32>
    %26 = arith.muli %24, %25 : vector<16x512xi32>
    %c16_i32_3 = arith.constant 16 : i32
    %27 = vector.broadcast %c16_i32_3 : i32 to vector<16x512xi32>
    %28 = arith.shrui %26, %27 : vector<16x512xi32>
    %29 = arith.xori %26, %28 : vector<16x512xi32>
    %c-2147483648_i32 = arith.constant -2147483648 : i32
    %30 = vector.broadcast %c-2147483648_i32 : i32 to vector<16x512xi32>
    %31 = arith.andi %29, %30 : vector<16x512xi32>
    %c0_i32 = arith.constant 0 : i32
    %32 = vector.broadcast %c0_i32 : i32 to vector<16x512xi32>
    %33 = arith.cmpi ne, %31, %32 : vector<16x512xi32>
    %c32768_i32 = arith.constant 32768 : i32
    %34 = vector.broadcast %c32768_i32 : i32 to vector<16x512xi32>
    %35 = arith.andi %29, %34 : vector<16x512xi32>
    %c0_i32_4 = arith.constant 0 : i32
    %36 = vector.broadcast %c0_i32_4 : i32 to vector<16x512xi32>
    %37 = arith.cmpi ne, %35, %36 : vector<16x512xi32>
    %c0_5 = arith.constant 0 : index
    %c0_6 = arith.constant 0 : index
    %38 = vector.load %arg3[%c0_5, %c0_6] : memref<1024x512xbf16, #tpu.memory_space<vmem>>, vector<1024x512xbf16>
    %cst = arith.constant dense<0.000000e+00> : vector<16x512xf32>
    %39 = tpu.matmul %1, %38, %cst {dimension_numbers = #tpu.dot_dimension_numbers<[1], [0], [0], [1], [0, 0, 1, 1], [], []>} : vector<16x1024xbf16>, vector<1024x512xbf16>, vector<16x512xf32> -> vector<16x512xf32>
    %c0_7 = arith.constant 0 : index
    %c0_8 = arith.constant 0 : index
    %40 = vector.load %arg4[%c0_7, %c0_8] : memref<1x512xf32, #tpu.memory_space<vmem>>, vector<1x512xf32>
    %41 = vector.broadcast %40 : vector<1x512xf32> to vector<16x512xf32>
    %42 = arith.addf %39, %41 : vector<16x512xf32>
    %43 = arith.truncf %42 : vector<16x512xf32> to vector<16x512xbf16>
    %cst_9 = arith.constant 0.000000e+00 : bf16
    %44 = vector.broadcast %cst_9 : bf16 to vector<16x512xbf16>
    %45 = arith.cmpf ogt, %43, %44 : vector<16x512xbf16>
    %46 = arith.andi %33, %45 : vector<16x512xi1>
    %c0_i32_10 = arith.constant 0 : i32
    %47 = arith.sitofp %c0_i32_10 : i32 to bf16
    %48 = vector.broadcast %47 : bf16 to vector<16x512xbf16>
    %49 = arith.select %46, %43, %48 : vector<16x512xi1>, vector<16x512xbf16>
    %c0_11 = arith.constant 0 : index
    %c0_12 = arith.constant 0 : index
    %50 = vector.load %arg5[%c0_11, %c0_12] : memref<512x512xbf16, #tpu.memory_space<vmem>>, vector<512x512xbf16>
    %cst_13 = arith.constant dense<0.000000e+00> : vector<16x512xf32>
    %51 = tpu.matmul %49, %50, %cst_13 {dimension_numbers = #tpu.dot_dimension_numbers<[1], [0], [0], [1], [0, 0, 1, 1], [], []>} : vector<16x512xbf16>, vector<512x512xbf16>, vector<16x512xf32> -> vector<16x512xf32>
    %c0_14 = arith.constant 0 : index
    %c0_15 = arith.constant 0 : index
    %52 = vector.load %arg6[%c0_14, %c0_15] : memref<1x512xf32, #tpu.memory_space<vmem>>, vector<1x512xf32>
    %53 = vector.broadcast %52 : vector<1x512xf32> to vector<16x512xf32>
    %54 = arith.addf %51, %53 : vector<16x512xf32>
    %55 = arith.truncf %54 : vector<16x512xf32> to vector<16x512xbf16>
    %cst_16 = arith.constant 0.000000e+00 : bf16
    %56 = vector.broadcast %cst_16 : bf16 to vector<16x512xbf16>
    %57 = arith.cmpf ogt, %55, %56 : vector<16x512xbf16>
    %58 = arith.andi %37, %57 : vector<16x512xi1>
    %c0_i32_17 = arith.constant 0 : i32
    %59 = arith.sitofp %c0_i32_17 : i32 to bf16
    %60 = vector.broadcast %59 : bf16 to vector<16x512xbf16>
    %61 = arith.select %58, %55, %60 : vector<16x512xi1>, vector<16x512xbf16>
    %c0_18 = arith.constant 0 : index
    %c0_19 = arith.constant 0 : index
    %62 = vector.load %arg7[%c0_18, %c0_19] : memref<512x128xbf16, #tpu.memory_space<vmem>>, vector<512x128xbf16>
    %cst_20 = arith.constant dense<0.000000e+00> : vector<16x128xf32>
    %63 = tpu.matmul %61, %62, %cst_20 {dimension_numbers = #tpu.dot_dimension_numbers<[1], [0], [0], [1], [0, 0, 1, 1], [], []>} : vector<16x512xbf16>, vector<512x128xbf16>, vector<16x128xf32> -> vector<16x128xf32>
    %c0_21 = arith.constant 0 : index
    %c0_22 = arith.constant 0 : index
    %64 = vector.load %arg8[%c0_21, %c0_22] : memref<1x128xf32, #tpu.memory_space<vmem>>, vector<1x128xf32>
    %65 = vector.broadcast %64 : vector<1x128xf32> to vector<16x128xf32>
    %66 = arith.addf %63, %65 : vector<16x128xf32>
    %cst_23 = arith.constant dense<0xFF800000> : vector<16xf32>
    %67 = vector.multi_reduction <maximumf>, %66, %cst_23 [1] : vector<16x128xf32> to vector<16xf32>
    %68 = vector.shape_cast %67 : vector<16xf32> to vector<16x1xf32>
    %69 = vector.broadcast %68 : vector<16x1xf32> to vector<16x128xf32>
    %70 = arith.subf %66, %69 : vector<16x128xf32>
    %71 = math.exp %70 : vector<16x128xf32>
    %cst_24 = arith.constant dense<0.000000e+00> : vector<16xf32>
    %72 = vector.multi_reduction <add>, %71, %cst_24 [1] : vector<16x128xf32> to vector<16xf32>
    %73 = vector.shape_cast %72 : vector<16xf32> to vector<16x1xf32>
    %74 = vector.broadcast %73 : vector<16x1xf32> to vector<16x128xf32>
    %75 = arith.divf %71, %74 : vector<16x128xf32>
    %76 = arith.truncf %75 : vector<16x128xf32> to vector<16x128xbf16>
    %c0_25 = arith.constant 0 : index
    %c0_26 = arith.constant 0 : index
    %77 = vector.load %arg9[%c0_25, %c0_26] : memref<16x128xbf16, #tpu.memory_space<vmem>>, vector<16x128xbf16>
    tpu.vector_store %arg9[%c0_25, %c0_26], %76 {strides = array<i32>} : memref<16x128xbf16, #tpu.memory_space<vmem>>, vector<16x128xbf16>,
    return
  }
  func.func @transform_0(%arg0: i32) -> i32 {
    %c0_i32 = arith.constant 0 : i32
    %c0_i32_0 = arith.constant 0 : i32
    return %c0_i32 : i32
  }
  func.func @transform_1(%arg0: i32) -> (i32, i32) {
    %c0_i32 = arith.constant 0 : i32
    %c0_i32_0 = arith.constant 0 : i32
    return %arg0, %c0_i32 : i32, i32
  }
  func.func @transform_2(%arg0: i32) -> (i32, i32) {
    %c0_i32 = arith.constant 0 : i32
    %c0_i32_0 = arith.constant 0 : i32
    %c0_i32_1 = arith.constant 0 : i32
    return %c0_i32, %c0_i32_0 : i32, i32
  }
  func.func @transform_3(%arg0: i32) -> (i32, i32) {
    %c0_i32 = arith.constant 0 : i32
    %c0_i32_0 = arith.constant 0 : i32
    %c0_i32_1 = arith.constant 0 : i32
    return %c0_i32, %c0_i32_0 : i32, i32
  }
  func.func @transform_4(%arg0: i32) -> (i32, i32) {
    %c0_i32 = arith.constant 0 : i32
    %c0_i32_0 = arith.constant 0 : i32
    %c0_i32_1 = arith.constant 0 : i32
    return %c0_i32, %c0_i32_0 : i32, i32
  }
  func.func @transform_5(%arg0: i32) -> (i32, i32) {
    %c0_i32 = arith.constant 0 : i32
    %c0_i32_0 = arith.constant 0 : i32
    %c0_i32_1 = arith.constant 0 : i32
    return %c0_i32, %c0_i32_0 : i32, i32
  }
  func.func @transform_6(%arg0: i32) -> (i32, i32) {
    %c0_i32 = arith.constant 0 : i32
    %c0_i32_0 = arith.constant 0 : i32
    %c0_i32_1 = arith.constant 0 : i32
    return %c0_i32, %c0_i32_0 : i32, i32
  }
  func.func @transform_7(%arg0: i32) -> (i32, i32) {
    %c0_i32 = arith.constant 0 : i32
    %c0_i32_0 = arith.constant 0 : i32
    %c0_i32_1 = arith.constant 0 : i32
    return %c0_i32, %c0_i32_0 : i32, i32
  }
  func.func @transform_8(%arg0: i32) -> (i32, i32) {
    %c0_i32 = arith.constant 0 : i32
    %c0_i32_0 = arith.constant 0 : i32
    return %arg0, %c0_i32 : i32, i32
  }
}

</mosaic_0001>

<llo_original>
// kernel: tpu_custom_call.1
$region0: #{tpu_custom_call.1}
  #allocation0 [shape = 'u32[]', space=smem, size = 0x4, offset = 0x4, fixed_abs, tag = 'smem constant byte address 0x4 - core index']
  #allocation1 [shape = 'u32[144,128]{1,0:T(1,128)}', space=vmem, size = 0x12000, scoped, tag = 'internal scratch']
  #allocation2 [shape = 's32[1]{0:T(128)S(6)}', space=smem, size = 0x200, scoped, tag = 'scoped memory for tpu_custom_call.1']
  %s0 = inlined_call_operand.<no memory space> [shape: s32[1], index: 0, kind: input, shape index: {}]
  %s1 = inlined_call_operand.hbm [shape: f32[16,1024], index: 1, kind: input, shape index: {}]
  %s2 = inlined_call_operand.hbm [shape: bf16[1024,512], index: 2, kind: input, shape index: {}]
  %s3 = inlined_call_operand.vmem [shape: f32[1,512], index: 3, kind: input, shape index: {}]
  %s4 = inlined_call_operand.hbm [shape: bf16[512,512], index: 4, kind: input, shape index: {}]
  %s5 = inlined_call_operand.vmem [shape: f32[1,512], index: 5, kind: input, shape index: {}]
  %s6 = inlined_call_operand.hbm [shape: bf16[512,128], index: 6, kind: input, shape index: {}]
  %s7 = inlined_call_operand.vmem [shape: f32[1,128], index: 7, kind: input, shape index: {}]
  %s8 = inlined_call_operand.hbm [shape: bf16[16,128], index: 8, kind: output, shape index: {}]
  %s9 = sld [smem:[#allocation0]]
  $region58: #{tpu_custom_call.1} parent=0
    _
  %s11 = ssub.s32 1, %s9
  %s12 = scalar_select 0, %s11, %s9
  %13 = sst [smem:[#allocation2]] %s0
  $region1: #{tpu_custom_call.1} parent=0
    #allocation3 [shape = 'u8[65536]{0}', space=vmem, size = 0x10000, scoped, tag = 'input window, operand 1, single buffered']
    #allocation4 [shape = 's32[1]{0}', space=sflag, size = 0x4, scoped, tag = 'scoped memory for tpu_custom_call.1']
    #allocation5 [shape = 's32[1]{0}', space=sflag, size = 0x4, scoped, tag = 'scoped memory for tpu_custom_call.1']
    #allocation6 [shape = 'u8[1048576]{0}', space=vmem, size = 0x100000, scoped, tag = 'input window, operand 2, single buffered']
    #allocation7 [shape = 's32[1]{0}', space=sflag, size = 0x4, scoped, tag = 'scoped memory for tpu_custom_call.1']
    #allocation8 [shape = 'u8[524288]{0}', space=vmem, size = 0x80000, scoped, tag = 'input window, operand 4, single buffered']
    #allocation9 [shape = 'u8[131072]{0}', space=vmem, size = 0x20000, scoped, tag = 'input window, operand 6, single buffered']
    #allocation10 [shape = 's32[1]{0}', space=sflag, size = 0x4, scoped, tag = 'scoped memory for tpu_custom_call.1']
    #allocation11 [shape = 'u8[4096]{0}', space=vmem, size = 0x1000, scoped, tag = 'output window, operand 0, single buffered']
    %14 = vsyncpa [#allocation4], 0
    %15 = vsyncpa [#allocation7], 0
    %16 = vsyncpa [#allocation10], 0
    %17 = vsyncpa [#allocation5], 0
    // Predicated region
    $region2: #{tpu_custom_call.1} parent=1 // pred_check
      _
    $region3: #{tpu_custom_call.1} parent=1 // pred_check_branch
      %19 = sbr.rel (0) target = $region5
    $region4: #{tpu_custom_call.1} parent=1 // pred_region
      _
    $region5: #{tpu_custom_call.1} parent=1 // pred_fallthru
      _
    // Predicated region
    $region6: #{tpu_custom_call.1} parent=1 // pred_check
      _
    $region7: #{tpu_custom_call.1} parent=1 // pred_check_branch
      %21 = sbr.rel (0) target = $region9
    $region8: #{tpu_custom_call.1} parent=1 // pred_region
      %s23 = ssub.s32 2048, 2048
      %24 = vsyncadd [#allocation4], %s23
      %s25 = sshll.u32 [#allocation3], 4
      %s26 = int_to_ptr.vmem [resolvable:$true] %s25
      %31 = dma.hbm_to_vmem [thread:$0]  %s1, 2048, %s26, [#allocation4], 1024, 1024, 64
    $region9: #{tpu_custom_call.1} parent=1 // pred_fallthru
      _
    // Predicated region
    $region10: #{tpu_custom_call.1} parent=1 // pred_check
      _
    $region11: #{tpu_custom_call.1} parent=1 // pred_check_branch
      %33 = sbr.rel (0) target = $region13
    $region12: #{tpu_custom_call.1} parent=1 // pred_region
      %s35 = ssub.s32 32768, 32768
      %36 = vsyncadd [#allocation7], %s35
      %s37 = sshll.u32 [#allocation6], 4
      %s38 = int_to_ptr.vmem [resolvable:$true] %s37
      %43 = dma.hbm_to_vmem [thread:$0]  %s2, 32768, %s38, [#allocation7], 256, 256, 16
    $region13: #{tpu_custom_call.1} parent=1 // pred_fallthru
      _
    // Predicated region
    $region14: #{tpu_custom_call.1} parent=1 // pred_check
      _
    $region15: #{tpu_custom_call.1} parent=1 // pred_check_branch
      %45 = sbr.rel (0) target = $region17
    $region16: #{tpu_custom_call.1} parent=1 // pred_region
      _
    $region17: #{tpu_custom_call.1} parent=1 // pred_fallthru
      _
    // Predicated region
    $region18: #{tpu_custom_call.1} parent=1 // pred_check
      _
    $region19: #{tpu_custom_call.1} parent=1 // pred_check_branch
      %47 = sbr.rel (0) target = $region21
    $region20: #{tpu_custom_call.1} parent=1 // pred_region
      %s49 = ssub.s32 16384, 16384
      %50 = vsyncadd [#allocation7], %s49
      %s51 = sshll.u32 [#allocation8], 4
      %s52 = int_to_ptr.vmem [resolvable:$true] %s51
      %57 = dma.hbm_to_vmem [thread:$0]  %s4, 16384, %s52, [#allocation7], 256, 256, 16
    $region21: #{tpu_custom_call.1} parent=1 // pred_fallthru
      _
    // Predicated region
    $region22: #{tpu_custom_call.1} parent=1 // pred_check
      _
    $region23: #{tpu_custom_call.1} parent=1 // pred_check_branch
      %59 = sbr.rel (0) target = $region25
    $region24: #{tpu_custom_call.1} parent=1 // pred_region
      _
    $region25: #{tpu_custom_call.1} parent=1 // pred_fallthru
      _
    // Predicated region
    $region26: #{tpu_custom_call.1} parent=1 // pred_check
      _
    $region27: #{tpu_custom_call.1} parent=1 // pred_check_branch
      %61 = sbr.rel (0) target = $region29
    $region28: #{tpu_custom_call.1} parent=1 // pred_region
      %s63 = ssub.s32 4096, 4096
      %64 = vsyncadd [#allocation10], %s63
      %s65 = sshll.u32 [#allocation9], 4
      %s66 = int_to_ptr.vmem [resolvable:$true] %s65
      %71 = dma.hbm_to_vmem [thread:$0]  %s6, 4096, %s66, [#allocation10], 64, 64, 4
    $region29: #{tpu_custom_call.1} parent=1 // pred_fallthru
      _
    // Predicated region
    $region30: #{tpu_custom_call.1} parent=1 // pred_check
      _
    $region31: #{tpu_custom_call.1} parent=1 // pred_check_branch
      %73 = sbr.rel (0) target = $region33
    $region32: #{tpu_custom_call.1} parent=1 // pred_region
      _
    $region33: #{tpu_custom_call.1} parent=1 // pred_fallthru
      _
    // Predicated region
    $region34: #{tpu_custom_call.1} parent=1 // pred_check
      _
    $region35: #{tpu_custom_call.1} parent=1 // pred_check_branch
      %75 = sbr.rel (0) target = $region37
    $region36: #{tpu_custom_call.1} parent=1 // pred_region
      %76 = dma.done [#allocation4], 2048
    $region37: #{tpu_custom_call.1} parent=1 // pred_fallthru
      _
    // Predicated region
    $region38: #{tpu_custom_call.1} parent=1 // pred_check
      _
    $region39: #{tpu_custom_call.1} parent=1 // pred_check_branch
      %78 = sbr.rel (0) target = $region41
    $region40: #{tpu_custom_call.1} parent=1 // pred_region
      %79 = dma.done [#allocation7], 32768
    $region41: #{tpu_custom_call.1} parent=1 // pred_fallthru
      _
    // Predicated region
    $region42: #{tpu_custom_call.1} parent=1 // pred_check
      _
    $region43: #{tpu_custom_call.1} parent=1 // pred_check_branch
      %81 = sbr.rel (0) target = $region45
    $region44: #{tpu_custom_call.1} parent=1 // pred_region
      %82 = dma.done [#allocation7], 16384
    $region45: #{tpu_custom_call.1} parent=1 // pred_fallthru
      _
    // Predicated region
    $region46: #{tpu_custom_call.1} parent=1 // pred_check
      _
    $region47: #{tpu_custom_call.1} parent=1 // pred_check_branch
      %84 = sbr.rel (0) target = $region49
    $region48: #{tpu_custom_call.1} parent=1 // pred_region
      %85 = dma.done [#allocation10], 4096
    $region49: #{tpu_custom_call.1} parent=1 // pred_fallthru
      _
    %v89 = vld [vmem:[#allocation3] sm:$0xff]
    %v90 = vld [vmem:[#allocation3 + $0x8] sm:$0xff]
    %v91 = vld [vmem:[#allocation3 + $0x10] sm:$0xff]
    %v92 = vld [vmem:[#allocation3 + $0x18] sm:$0xff]
    %v93 = vld [vmem:[#allocation3 + $0x20] sm:$0xff]
    %v94 = vld [vmem:[#allocation3 + $0x28] sm:$0xff]
    %v95 = vld [vmem:[#allocation3 + $0x30] sm:$0xff]
    %v96 = vld [vmem:[#allocation3 + $0x38] sm:$0xff]
    %v97 = vld [vmem:[#allocation3 + $0x40] sm:$0xff]
    %v98 = vld [vmem:[#allocation3 + $0x48] sm:$0xff]
    %v99 = vld [vmem:[#allocation3 + $0x50] sm:$0xff]
    %v100 = vld [vmem:[#allocation3 + $0x58] sm:$0xff]
    %v101 = vld [vmem:[#allocation3 + $0x60] sm:$0xff]
    %v102 = vld [vmem:[#allocation3 + $0x68] sm:$0xff]
    %v103 = vld [vmem:[#allocation3 + $0x70] sm:$0xff]
    %v104 = vld [vmem:[#allocation3 + $0x78] sm:$0xff]
    %v105 = vpack.c.bf16 %v97, %v89
    %v106 = vpack.c.bf16 %v98, %v90
    %v107 = vpack.c.bf16 %v99, %v91
    %v108 = vpack.c.bf16 %v100, %v92
    %v109 = vpack.c.bf16 %v101, %v93
    %v110 = vpack.c.bf16 %v102, %v94
    %v111 = vpack.c.bf16 %v103, %v95
    %v112 = vpack.c.bf16 %v104, %v96
    %s113 = smul.u32 0, 16
    %s114 = sld [smem:[#allocation2]]
    %v115 = vlaneseq
    %v116 = vshrl.u32 %v115, 7
    %v117 = vadd.s32 %v116, 8
    %v118 = vstv %s113
    %v119 = vadd.s32 %v116, %v118
    %v120 = vadd.s32 %v117, %v118
    %v121 = vlaneseq
    %v122 = vand.u32 %v121, 127
    %v123 = vadd.s32 %v122, 128
    %v124 = vadd.s32 %v122, 256
    %v125 = vadd.s32 %v122, 384
    %v126 = vmul.u32 %v119, 512
    %v127 = vmul.u32 %v120, 512
    %v128 = vadd.s32 %v126, %v122
    %v129 = vadd.s32 %v126, %v123
    %v130 = vadd.s32 %v126, %v124
    %v131 = vadd.s32 %v126, %v125
    %v132 = vadd.s32 %v127, %v122
    %v133 = vadd.s32 %v127, %v123
    %v134 = vadd.s32 %v127, %v124
    %v135 = vadd.s32 %v127, %v125
    %s136 = smul.u32 %s114, 2654435769
    %v137 = vstv %s136
    %v138 = vxor.u32 %v128, %v137
    %v139 = vxor.u32 %v129, %v137
    %v140 = vxor.u32 %v130, %v137
    %v141 = vxor.u32 %v131, %v137
    %v142 = vxor.u32 %v132, %v137
    %v143 = vxor.u32 %v133, %v137
    %v144 = vxor.u32 %v134, %v137
    %v145 = vxor.u32 %v135, %v137
    %v146 = vxor.u32 %v138, 2135587861
    %v147 = vxor.u32 %v139, 2135587861
    %v148 = vxor.u32 %v140, 2135587861
    %v149 = vxor.u32 %v141, 2135587861
    %v150 = vxor.u32 %v142, 2135587861
    %v151 = vxor.u32 %v143, 2135587861
    %v152 = vxor.u32 %v144, 2135587861
    %v153 = vxor.u32 %v145, 2135587861
    %v154 = vshrl.u32 %v146, 16
    %v155 = vshrl.u32 %v147, 16
    %v156 = vshrl.u32 %v148, 16
    %v157 = vshrl.u32 %v149, 16
    %v158 = vshrl.u32 %v150, 16
    %v159 = vshrl.u32 %v151, 16
    %v160 = vshrl.u32 %v152, 16
    %v161 = vshrl.u32 %v153, 16
    %v162 = vxor.u32 %v146, %v154
    %v163 = vxor.u32 %v147, %v155
    %v164 = vxor.u32 %v148, %v156
    %v165 = vxor.u32 %v149, %v157
    %v166 = vxor.u32 %v150, %v158
    %v167 = vxor.u32 %v151, %v159
    %v168 = vxor.u32 %v152, %v160
    %v169 = vxor.u32 %v153, %v161
    %v170 = vmul.u32 %v162, 2246822507
    %v171 = vmul.u32 %v163, 2246822507
    %v172 = vmul.u32 %v164, 2246822507
    %v173 = vmul.u32 %v165, 2246822507
    %v174 = vmul.u32 %v166, 2246822507
    %v175 = vmul.u32 %v167, 2246822507
    %v176 = vmul.u32 %v168, 2246822507
    %v177 = vmul.u32 %v169, 2246822507
    %v178 = vshrl.u32 %v170, 13
    %v179 = vshrl.u32 %v171, 13
    %v180 = vshrl.u32 %v172, 13
    %v181 = vshrl.u32 %v173, 13
    %v182 = vshrl.u32 %v174, 13
    %v183 = vshrl.u32 %v175, 13
    %v184 = vshrl.u32 %v176, 13
    %v185 = vshrl.u32 %v177, 13
    %v186 = vxor.u32 %v170, %v178
    %v187 = vxor.u32 %v171, %v179
    %v188 = vxor.u32 %v172, %v180
    %v189 = vxor.u32 %v173, %v181
    %v190 = vxor.u32 %v174, %v182
    %v191 = vxor.u32 %v175, %v183
    %v192 = vxor.u32 %v176, %v184
    %v193 = vxor.u32 %v177, %v185
    %v194 = vmul.u32 %v186, 3266489909
    %v195 = vmul.u32 %v187, 3266489909
    %v196 = vmul.u32 %v188, 3266489909
    %v197 = vmul.u32 %v189, 3266489909
    %v198 = vmul.u32 %v190, 3266489909
    %v199 = vmul.u32 %v191, 3266489909
    %v200 = vmul.u32 %v192, 3266489909
    %v201 = vmul.u32 %v193, 3266489909
    %v202 = vshrl.u32 %v194, 16
    %v203 = vshrl.u32 %v195, 16
    %v204 = vshrl.u32 %v196, 16
    %v205 = vshrl.u32 %v197, 16
    %v206 = vshrl.u32 %v198, 16
    %v207 = vshrl.u32 %v199, 16
    %v208 = vshrl.u32 %v200, 16
    %v209 = vshrl.u32 %v201, 16
    %v210 = vxor.u32 %v194, %v202
    %v211 = vxor.u32 %v195, %v203
    %v212 = vxor.u32 %v196, %v204
    %v213 = vxor.u32 %v197, %v205
    %v214 = vxor.u32 %v198, %v206
    %v215 = vxor.u32 %v199, %v207
    %v216 = vxor.u32 %v200, %v208
    %v217 = vxor.u32 %v201, %v209
    %v218 = vand.u32 %v210, 2147483648
    %v219 = vand.u32 %v211, 2147483648
    %v220 = vand.u32 %v212, 2147483648
    %v221 = vand.u32 %v213, 2147483648
    %v222 = vand.u32 %v214, 2147483648
    %v223 = vand.u32 %v215, 2147483648
    %v224 = vand.u32 %v216, 2147483648
    %v225 = vand.u32 %v217, 2147483648
    %vm226 = vcmp.ne.s32.totalorder %v218, 0
    %vm227 = vcmp.ne.s32.totalorder %v219, 0
    %vm228 = vcmp.ne.s32.totalorder %v220, 0
    %vm229 = vcmp.ne.s32.totalorder %v221, 0
    %vm230 = vcmp.ne.s32.totalorder %v222, 0
    %vm231 = vcmp.ne.s32.totalorder %v223, 0
    %vm232 = vcmp.ne.s32.totalorder %v224, 0
    %vm233 = vcmp.ne.s32.totalorder %v225, 0
    %v234 = vand.u32 %v210, 32768
    %v235 = vand.u32 %v211, 32768
    %v236 = vand.u32 %v212, 32768
    %v237 = vand.u32 %v213, 32768
    %v238 = vand.u32 %v214, 32768
    %v239 = vand.u32 %v215, 32768
    %v240 = vand.u32 %v216, 32768
    %v241 = vand.u32 %v217, 32768
    %vm242 = vcmp.ne.s32.totalorder %v234, 0
    %vm243 = vcmp.ne.s32.totalorder %v235, 0
    %vm244 = vcmp.ne.s32.totalorder %v236, 0
    %vm245 = vcmp.ne.s32.totalorder %v237, 0
    %vm246 = vcmp.ne.s32.totalorder %v238, 0
    %vm247 = vcmp.ne.s32.totalorder %v239, 0
    %vm248 = vcmp.ne.s32.totalorder %v240, 0
    %vm249 = vcmp.ne.s32.totalorder %v241, 0
    %v250 = vld [vmem:[#allocation6] sm:$0xff]
    %v251 = vld [vmem:[#allocation6 + $0x8] sm:$0xff]
    %v252 = vld [vmem:[#allocation6 + $0x10] sm:$0xff]
    %v253 = vld [vmem:[#allocation6 + $0x18] sm:$0xff]
    %v254 = vld [vmem:[#allocation6 + $0x20] sm:$0xff]
    %v255 = vld [vmem:[#allocation6 + $0x28] sm:$0xff]
    %v256 = vld [vmem:[#allocation6 + $0x30] sm:$0xff]
    %v257 = vld [vmem:[#allocation6 + $0x38] sm:$0xff]
    %v258 = vld [vmem:[#allocation6 + $0x40] sm:$0xff]
    %v259 = vld [vmem:[#allocation6 + $0x48] sm:$0xff]
    %v260 = vld [vmem:[#allocation6 + $0x50] sm:$0xff]
    %v261 = vld [vmem:[#allocation6 + $0x58] sm:$0xff]
    %v262 = vld [vmem:[#allocation6 + $0x60] sm:$0xff]
    %v263 = vld [vmem:[#allocation6 + $0x68] sm:$0xff]
    %v264 = vld [vmem:[#allocation6 + $0x70] sm:$0xff]
    %v265 = vld [vmem:[#allocation6 + $0x78] sm:$0xff]
    %v266 = vld [vmem:[#allocation6 + $0x80] sm:$0xff]
    %v267 = vld [vmem:[#allocation6 + $0x88] sm:$0xff]
    %v268 = vld [vmem:[#allocation6 + $0x90] sm:$0xff]
    %v269 = vld [vmem:[#allocation6 + $0x98] sm:$0xff]
    %v270 = vld [vmem:[#allocation6 + $0xa0] sm:$0xff]
    %v271 = vld [vmem:[#allocation6 + $0xa8] sm:$0xff]
    %v272 = vld [vmem:[#allocation6 + $0xb0] sm:$0xff]
    %v273 = vld [vmem:[#allocation6 + $0xb8] sm:$0xff]
    %v274 = vld [vmem:[#allocation6 + $0xc0] sm:$0xff]
    %v275 = vld [vmem:[#allocation6 + $0xc8] sm:$0xff]
    %v276 = vld [vmem:[#allocation6 + $0xd0] sm:$0xff]
    %v277 = vld [vmem:[#allocation6 + $0xd8] sm:$0xff]
    %v278 = vld [vmem:[#allocation6 + $0xe0] sm:$0xff]
    %v279 = vld [vmem:[#allocation6 + $0xe8] sm:$0xff]
    %v280 = vld [vmem:[#allocation6 + $0xf0] sm:$0xff]
    %v281 = vld [vmem:[#allocation6 + $0xf8] sm:$0xff]
    %v282 = vld [vmem:[#allocation6 + $0x100] sm:$0xff]
    %v283 = vld [vmem:[#allocation6 + $0x108] sm:$0xff]
    %v284 = vld [vmem:[#allocation6 + $0x110] sm:$0xff]
    %v285 = vld [vmem:[#allocation6 + $0x118] sm:$0xff]
    %v286 = vld [vmem:[#allocation6 + $0x120] sm:$0xff]
    %v287 = vld [vmem:[#allocation6 + $0x128] sm:$0xff]
    %v288 = vld [vmem:[#allocation6 + $0x130] sm:$0xff]
    %v289 = vld [vmem:[#allocation6 + $0x138] sm:$0xff]
    %v290 = vld [vmem:[#allocation6 + $0x140] sm:$0xff]
    %v291 = vld [vmem:[#allocation6 + $0x148] sm:$0xff]
    %v292 = vld [vmem:[#allocation6 + $0x150] sm:$0xff]
    %v293 = vld [vmem:[#allocation6 + $0x158] sm:$0xff]
    %v294 = vld [vmem:[#allocation6 + $0x160] sm:$0xff]
    %v295 = vld [vmem:[#allocation6 + $0x168] sm:$0xff]
    %v296 = vld [vmem:[#allocation6 + $0x170] sm:$0xff]
    %v297 = vld [vmem:[#allocation6 + $0x178] sm:$0xff]
    %v298 = vld [vmem:[#allocation6 + $0x180] sm:$0xff]
    %v299 = vld [vmem:[#allocation6 + $0x188] sm:$0xff]
    %v300 = vld [vmem:[#allocation6 + $0x190] sm:$0xff]
    %v301 = vld [vmem:[#allocation6 + $0x198] sm:$0xff]
    %v302 = vld [vmem:[#allocation6 + $0x1a0] sm:$0xff]
    %v303 = vld [vmem:[#allocation6 + $0x1a8] sm:$0xff]
    %v304 = vld [vmem:[#allocation6 + $0x1b0] sm:$0xff]
    %v305 = vld [vmem:[#allocation6 + $0x1b8] sm:$0xff]
    %v306 = vld [vmem:[#allocation6 + $0x1c0] sm:$0xff]
    %v307 = vld [vmem:[#allocation6 + $0x1c8] sm:$0xff]
    %v308 = vld [vmem:[#allocation6 + $0x1d0] sm:$0xff]
    %v309 = vld [vmem:[#allocation6 + $0x1d8] sm:$0xff]
    %v310 = vld [vmem:[#allocation6 + $0x1e0] sm:$0xff]
    %v311 = vld [vmem:[#allocation6 + $0x1e8] sm:$0xff]
    %v312 = vld [vmem:[#allocation6 + $0x1f0] sm:$0xff]
    %v313 = vld [vmem:[#allocation6 + $0x1f8] sm:$0xff]
    %v314 = vld [vmem:[#allocation6 + $0x200] sm:$0xff]
    %v315 = vld [vmem:[#allocation6 + $0x208] sm:$0xff]
    %v316 = vld [vmem:[#allocation6 + $0x210] sm:$0xff]
    %v317 = vld [vmem:[#allocation6 + $0x218] sm:$0xff]
    %v318 = vld [vmem:[#allocation6 + $0x220] sm:$0xff]
    %v319 = vld [vmem:[#allocation6 + $0x228] sm:$0xff]
    %v320 = vld [vmem:[#allocation6 + $0x230] sm:$0xff]
    %v321 = vld [vmem:[#allocation6 + $0x238] sm:$0xff]
    %v322 = vld [vmem:[#allocation6 + $0x240] sm:$0xff]
    %v323 = vld [vmem:[#allocation6 + $0x248] sm:$0xff]
    %v324 = vld [vmem:[#allocation6 + $0x250] sm:$0xff]
    %v325 = vld [vmem:[#allocation6 + $0x258] sm:$0xff]
    %v326 = vld [vmem:[#allocation6 + $0x260] sm:$0xff]
    %v327 = vld [vmem:[#allocation6 + $0x268] sm:$0xff]
    %v328 = vld [vmem:[#allocation6 + $0x270] sm:$0xff]
    %v329 = vld [vmem:[#allocation6 + $0x278] sm:$0xff]
    %v330 = vld [vmem:[#allocation6 + $0x280] sm:$0xff]
    %v331 = vld [vmem:[#allocation6 + $0x288] sm:$0xff]
    %v332 = vld [vmem:[#allocation6 + $0x290] sm:$0xff]
    %v333 = vld [vmem:[#allocation6 + $0x298] sm:$0xff]
    %v334 = vld [vmem:[#allocation6 + $0x2a0] sm:$0xff]
    %v335 = vld [vmem:[#allocation6 + $0x2a8] sm:$0xff]
    %v336 = vld [vmem:[#allocation6 + $0x2b0] sm:$0xff]
    %v337 = vld [vmem:[#allocation6 + $0x2b8] sm:$0xff]
    %v338 = vld [vmem:[#allocation6 + $0x2c0] sm:$0xff]
    %v339 = vld [vmem:[#allocation6 + $0x2c8] sm:$0xff]
    %v340 = vld [vmem:[#allocation6 + $0x2d0] sm:$0xff]
    %v341 = vld [vmem:[#allocation6 + $0x2d8] sm:$0xff]
    %v342 = vld [vmem:[#allocation6 + $0x2e0] sm:$0xff]
    %v343 = vld [vmem:[#allocation6 + $0x2e8] sm:$0xff]
    %v344 = vld [vmem:[#allocation6 + $0x2f0] sm:$0xff]
    %v345 = vld [vmem:[#allocation6 + $0x2f8] sm:$0xff]
    %v346 = vld [vmem:[#allocation6 + $0x300] sm:$0xff]
    %v347 = vld [vmem:[#allocation6 + $0x308] sm:$0xff]
    %v348 = vld [vmem:[#allocation6 + $0x310] sm:$0xff]
    %v349 = vld [vmem:[#allocation6 + $0x318] sm:$0xff]
    %v350 = vld [vmem:[#allocation6 + $0x320] sm:$0xff]
    %v351 = vld [vmem:[#allocation6 + $0x328] sm:$0xff]
    %v352 = vld [vmem:[#allocation6 + $0x330] sm:$0xff]
    %v353 = vld [vmem:[#allocation6 + $0x338] sm:$0xff]
    %v354 = vld [vmem:[#allocation6 + $0x340] sm:$0xff]
    %v355 = vld [vmem:[#allocation6 + $0x348] sm:$0xff]
    %v356 = vld [vmem:[#allocation6 + $0x350] sm:$0xff]
    %v357 = vld [vmem:[#allocation6 + $0x358] sm:$0xff]
    %v358 = vld [vmem:[#allocation6 + $0x360] sm:$0xff]
    %v359 = vld [vmem:[#allocation6 + $0x368] sm:$0xff]
    %v360 = vld [vmem:[#allocation6 + $0x370] sm:$0xff]
    %v361 = vld [vmem:[#allocation6 + $0x378] sm:$0xff]
    %v362 = vld [vmem:[#allocation6 + $0x380] sm:$0xff]
    %v363 = vld [vmem:[#allocation6 + $0x388] sm:$0xff]
    %v364 = vld [vmem:[#allocation6 + $0x390] sm:$0xff]
    %v365 = vld [vmem:[#allocation6 + $0x398] sm:$0xff]
    %v366 = vld [vmem:[#allocation6 + $0x3a0] sm:$0xff]
    %v367 = vld [vmem:[#allocation6 + $0x3a8] sm:$0xff]
    %v368 = vld [vmem:[#allocation6 + $0x3b0] sm:$0xff]
    %v369 = vld [vmem:[#allocation6 + $0x3b8] sm:$0xff]
    %v370 = vld [vmem:[#allocation6 + $0x3c0] sm:$0xff]
    %v371 = vld [vmem:[#allocation6 + $0x3c8] sm:$0xff]
    %v372 = vld [vmem:[#allocation6 + $0x3d0] sm:$0xff]
    %v373 = vld [vmem:[#allocation6 + $0x3d8] sm:$0xff]
    %v374 = vld [vmem:[#allocation6 + $0x3e0] sm:$0xff]
    %v375 = vld [vmem:[#allocation6 + $0x3e8] sm:$0xff]
    %v376 = vld [vmem:[#allocation6 + $0x3f0] sm:$0xff]
    %v377 = vld [vmem:[#allocation6 + $0x3f8] sm:$0xff]
    %v378 = vld [vmem:[#allocation6 + $0x400] sm:$0xff]
    %v379 = vld [vmem:[#allocation6 + $0x408] sm:$0xff]
    %v380 = vld [vmem:[#allocation6 + $0x410] sm:$0xff]
    %v381 = vld [vmem:[#allocation6 + $0x418] sm:$0xff]
    %v382 = vld [vmem:[#allocation6 + $0x420] sm:$0xff]
    %v383 = vld [vmem:[#allocation6 + $0x428] sm:$0xff]
    %v384 = vld [vmem:[#allocation6 + $0x430] sm:$0xff]
    %v385 = vld [vmem:[#allocation6 + $0x438] sm:$0xff]
    %v386 = vld [vmem:[#allocation6 + $0x440] sm:$0xff]
    %v387 = vld [vmem:[#allocation6 + $0x448] sm:$0xff]
    %v388 = vld [vmem:[#allocation6 + $0x450] sm:$0xff]
    %v389 = vld [vmem:[#allocation6 + $0x458] sm:$0xff]
    %v390 = vld [vmem:[#allocation6 + $0x460] sm:$0xff]
    %v391 = vld [vmem:[#allocation6 + $0x468] sm:$0xff]
    %v392 = vld [vmem:[#allocation6 + $0x470] sm:$0xff]
    %v393 = vld [vmem:[#allocation6 + $0x478] sm:$0xff]
    %v394 = vld [vmem:[#allocation6 + $0x480] sm:$0xff]
    %v395 = vld [vmem:[#allocation6 + $0x488] sm:$0xff]
    %v396 = vld [vmem:[#allocation6 + $0x490] sm:$0xff]
    %v397 = vld [vmem:[#allocation6 + $0x498] sm:$0xff]
    %v398 = vld [vmem:[#allocation6 + $0x4a0] sm:$0xff]
    %v399 = vld [vmem:[#allocation6 + $0x4a8] sm:$0xff]
    %v400 = vld [vmem:[#allocation6 + $0x4b0] sm:$0xff]
    %v401 = vld [vmem:[#allocation6 + $0x4b8] sm:$0xff]
    %v402 = vld [vmem:[#allocation6 + $0x4c0] sm:$0xff]
    %v403 = vld [vmem:[#allocation6 + $0x4c8] sm:$0xff]
    %v404 = vld [vmem:[#allocation6 + $0x4d0] sm:$0xff]
    %v405 = vld [vmem:[#allocation6 + $0x4d8] sm:$0xff]
    %v406 = vld [vmem:[#allocation6 + $0x4e0] sm:$0xff]
    %v407 = vld [vmem:[#allocation6 + $0x4e8] sm:$0xff]
    %v408 = vld [vmem:[#allocation6 + $0x4f0] sm:$0xff]
    %v409 = vld [vmem:[#allocation6 + $0x4f8] sm:$0xff]
    %v410 = vld [vmem:[#allocation6 + $0x500] sm:$0xff]
    %v411 = vld [vmem:[#allocation6 + $0x508] sm:$0xff]
    %v412 = vld [vmem:[#allocation6 + $0x510] sm:$0xff]
    %v413 = vld [vmem:[#allocation6 + $0x518] sm:$0xff]
    %v414 = vld [vmem:[#allocation6 + $0x520] sm:$0xff]
    %v415 = vld [vmem:[#allocation6 + $0x528] sm:$0xff]
    %v416 = vld [vmem:[#allocation6 + $0x530] sm:$0xff]
    %v417 = vld [vmem:[#allocation6 + $0x538] sm:$0xff]
    %v418 = vld [vmem:[#allocation6 + $0x540] sm:$0xff]
    %v419 = vld [vmem:[#allocation6 + $0x548] sm:$0xff]
    %v420 = vld [vmem:[#allocation6 + $0x550] sm:$0xff]
    %v421 = vld [vmem:[#allocation6 + $0x558] sm:$0xff]
    %v422 = vld [vmem:[#allocation6 + $0x560] sm:$0xff]
    %v423 = vld [vmem:[#allocation6 + $0x568] sm:$0xff]
    %v424 = vld [vmem:[#allocation6 + $0x570] sm:$0xff]
    %v425 = vld [vmem:[#allocation6 + $0x578] sm:$0xff]
    %v426 = vld [vmem:[#allocation6 + $0x580] sm:$0xff]
    %v427 = vld [vmem:[#allocation6 + $0x588] sm:$0xff]
    %v428 = vld [vmem:[#allocation6 + $0x590] sm:$0xff]
    %v429 = vld [vmem:[#allocation6 + $0x598] sm:$0xff]
    %v430 = vld [vmem:[#allocation6 + $0x5a0] sm:$0xff]
    %v431 = vld [vmem:[#allocation6 + $0x5a8] sm:$0xff]
    %v432 = vld [vmem:[#allocation6 + $0x5b0] sm:$0xff]
    %v433 = vld [vmem:[#allocation6 + $0x5b8] sm:$0xff]
    %v434 = vld [vmem:[#allocation6 + $0x5c0] sm:$0xff]
    %v435 = vld [vmem:[#allocation6 + $0x5c8] sm:$0xff]
    %v436 = vld [vmem:[#allocation6 + $0x5d0] sm:$0xff]
    %v437 = vld [vmem:[#allocation6 + $0x5d8] sm:$0xff]
    %v438 = vld [vmem:[#allocation6 + $0x5e0] sm:$0xff]
    %v439 = vld [vmem:[#allocation6 + $0x5e8] sm:$0xff]
    %v440 = vld [vmem:[#allocation6 + $0x5f0] sm:$0xff]
    %v441 = vld [vmem:[#allocation6 + $0x5f8] sm:$0xff]
    %v442 = vld [vmem:[#allocation6 + $0x600] sm:$0xff]
    %v443 = vld [vmem:[#allocation6 + $0x608] sm:$0xff]
    %v444 = vld [vmem:[#allocation6 + $0x610] sm:$0xff]
    %v445 = vld [vmem:[#allocation6 + $0x618] sm:$0xff]
    %v446 = vld [vmem:[#allocation6 + $0x620] sm:$0xff]
    %v447 = vld [vmem:[#allocation6 + $0x628] sm:$0xff]
    %v448 = vld [vmem:[#allocation6 + $0x630] sm:$0xff]
    %v449 = vld [vmem:[#allocation6 + $0x638] sm:$0xff]
    %v450 = vld [vmem:[#allocation6 + $0x640] sm:$0xff]
    %v451 = vld [vmem:[#allocation6 + $0x648] sm:$0xff]
    %v452 = vld [vmem:[#allocation6 + $0x650] sm:$0xff]
    %v453 = vld [vmem:[#allocation6 + $0x658] sm:$0xff]
    %v454 = vld [vmem:[#allocation6 + $0x660] sm:$0xff]
    %v455 = vld [vmem:[#allocation6 + $0x668] sm:$0xff]
    %v456 = vld [vmem:[#allocation6 + $0x670] sm:$0xff]
    %v457 = vld [vmem:[#allocation6 + $0x678] sm:$0xff]
    %v458 = vld [vmem:[#allocation6 + $0x680] sm:$0xff]
    %v459 = vld [vmem:[#allocation6 + $0x688] sm:$0xff]
    %v460 = vld [vmem:[#allocation6 + $0x690] sm:$0xff]
    %v461 = vld [vmem:[#allocation6 + $0x698] sm:$0xff]
    %v462 = vld [vmem:[#allocation6 + $0x6a0] sm:$0xff]
    %v463 = vld [vmem:[#allocation6 + $0x6a8] sm:$0xff]
    %v464 = vld [vmem:[#allocation6 + $0x6b0] sm:$0xff]
    %v465 = vld [vmem:[#allocation6 + $0x6b8] sm:$0xff]
    %v466 = vld [vmem:[#allocation6 + $0x6c0] sm:$0xff]
    %v467 = vld [vmem:[#allocation6 + $0x6c8] sm:$0xff]
    %v468 = vld [vmem:[#allocation6 + $0x6d0] sm:$0xff]
    %v469 = vld [vmem:[#allocation6 + $0x6d8] sm:$0xff]
    %v470 = vld [vmem:[#allocation6 + $0x6e0] sm:$0xff]
    %v471 = vld [vmem:[#allocation6 + $0x6e8] sm:$0xff]
    %v472 = vld [vmem:[#allocation6 + $0x6f0] sm:$0xff]
    %v473 = vld [vmem:[#allocation6 + $0x6f8] sm:$0xff]
    %v474 = vld [vmem:[#allocation6 + $0x700] sm:$0xff]
    %v475 = vld [vmem:[#allocation6 + $0x708] sm:$0xff]
    %v476 = vld [vmem:[#allocation6 + $0x710] sm:$0xff]
    %v477 = vld [vmem:[#allocation6 + $0x718] sm:$0xff]
    %v478 = vld [vmem:[#allocation6 + $0x720] sm:$0xff]
    %v479 = vld [vmem:[#allocation6 + $0x728] sm:$0xff]
    %v480 = vld [vmem:[#allocation6 + $0x730] sm:$0xff]
    %v481 = vld [vmem:[#allocation6 + $0x738] sm:$0xff]
    %v482 = vld [vmem:[#allocation6 + $0x740] sm:$0xff]
    %v483 = vld [vmem:[#allocation6 + $0x748] sm:$0xff]
    %v484 = vld [vmem:[#allocation6 + $0x750] sm:$0xff]
    %v485 = vld [vmem:[#allocation6 + $0x758] sm:$0xff]
    %v486 = vld [vmem:[#allocation6 + $0x760] sm:$0xff]
    %v487 = vld [vmem:[#allocation6 + $0x768] sm:$0xff]
    %v488 = vld [vmem:[#allocation6 + $0x770] sm:$0xff]
    %v489 = vld [vmem:[#allocation6 + $0x778] sm:$0xff]
    %v490 = vld [vmem:[#allocation6 + $0x780] sm:$0xff]
    %v491 = vld [vmem:[#allocation6 + $0x788] sm:$0xff]
    %v492 = vld [vmem:[#allocation6 + $0x790] sm:$0xff]
    %v493 = vld [vmem:[#allocation6 + $0x798] sm:$0xff]
    %v494 = vld [vmem:[#allocation6 + $0x7a0] sm:$0xff]
    %v495 = vld [vmem:[#allocation6 + $0x7a8] sm:$0xff]
    %v496 = vld [vmem:[#allocation6 + $0x7b0] sm:$0xff]
    %v497 = vld [vmem:[#allocation6 + $0x7b8] sm:$0xff]
    %v498 = vld [vmem:[#allocation6 + $0x7c0] sm:$0xff]
    %v499 = vld [vmem:[#allocation6 + $0x7c8] sm:$0xff]
    %v500 = vld [vmem:[#allocation6 + $0x7d0] sm:$0xff]
    %v501 = vld [vmem:[#allocation6 + $0x7d8] sm:$0xff]
    %v502 = vld [vmem:[#allocation6 + $0x7e0] sm:$0xff]
    %v503 = vld [vmem:[#allocation6 + $0x7e8] sm:$0xff]
    %v504 = vld [vmem:[#allocation6 + $0x7f0] sm:$0xff]
    %v505 = vld [vmem:[#allocation6 + $0x7f8] sm:$0xff]
    %v506 = vld [vmem:[%s3] sm:$0xf]
    %v508 = vlaneseq
    %v509 = vshrl.u32 %v508, 7
    %v510 = vsub.s32 0, %v509
    %v511 = vrot.slane %v506, %v510
    %v512 = vlaneseq
    %v513 = vshrl.u32 %v512, 7
    %v514 = vsub.s32 1, %v513
    %v515 = vrot.slane %v506, %v514
    %v516 = vlaneseq
    %v517 = vshrl.u32 %v516, 7
    %v518 = vsub.s32 2, %v517
    %v519 = vrot.slane %v506, %v518
    %v520 = vlaneseq
    %v521 = vshrl.u32 %v520, 7
    %v522 = vsub.s32 3, %v521
    %v523 = vrot.slane %v506, %v522
    %v784 = vunpack.c.l.b16 %v250
    %v785 = vunpack.c.h.b16 %v250
    %v786 = vunpack.c.l.b16 %v251
    %v787 = vunpack.c.h.b16 %v251
    %v788 = vunpack.c.l.b16 %v252
    %v789 = vunpack.c.h.b16 %v252
    %v790 = vunpack.c.l.b16 %v253
    %v791 = vunpack.c.h.b16 %v253
    %v792 = vunpack.c.l.b16 %v254
    %v793 = vunpack.c.h.b16 %v254
    %v794 = vunpack.c.l.b16 %v255
    %v795 = vunpack.c.h.b16 %v255
    %v796 = vunpack.c.l.b16 %v256
    %v797 = vunpack.c.h.b16 %v256
    %v798 = vunpack.c.l.b16 %v257
    %v799 = vunpack.c.h.b16 %v257
    %v800 = vunpack.c.l.b16 %v258
    %v801 = vunpack.c.h.b16 %v258
    %v802 = vunpack.c.l.b16 %v259
    %v803 = vunpack.c.h.b16 %v259
    %v804 = vunpack.c.l.b16 %v260
    %v805 = vunpack.c.h.b16 %v260
    %v806 = vunpack.c.l.b16 %v261
    %v807 = vunpack.c.h.b16 %v261
    %v808 = vunpack.c.l.b16 %v262
    %v809 = vunpack.c.h.b16 %v262
    %v810 = vunpack.c.l.b16 %v263
    %v811 = vunpack.c.h.b16 %v263
    %v812 = vunpack.c.l.b16 %v264
    %v813 = vunpack.c.h.b16 %v264
    %v814 = vunpack.c.l.b16 %v265
    %v815 = vunpack.c.h.b16 %v265
    %v816 = vunpack.c.l.b16 %v266
    %v817 = vunpack.c.h.b16 %v266
    %v818 = vunpack.c.l.b16 %v267
    %v819 = vunpack.c.h.b16 %v267
    %v820 = vunpack.c.l.b16 %v268
    %v821 = vunpack.c.h.b16 %v268
    %v822 = vunpack.c.l.b16 %v269
    %v823 = vunpack.c.h.b16 %v269
    %v824 = vunpack.c.l.b16 %v270
    %v825 = vunpack.c.h.b16 %v270
    %v826 = vunpack.c.l.b16 %v271
    %v827 = vunpack.c.h.b16 %v271
    %v828 = vunpack.c.l.b16 %v272
    %v829 = vunpack.c.h.b16 %v272
    %v830 = vunpack.c.l.b16 %v273
    %v831 = vunpack.c.h.b16 %v273
    %v832 = vunpack.c.l.b16 %v274
    %v833 = vunpack.c.h.b16 %v274
    %v834 = vunpack.c.l.b16 %v275
    %v835 = vunpack.c.h.b16 %v275
    %v836 = vunpack.c.l.b16 %v276
    %v837 = vunpack.c.h.b16 %v276
    %v838 = vunpack.c.l.b16 %v277
    %v839 = vunpack.c.h.b16 %v277
    %v840 = vunpack.c.l.b16 %v278
    %v841 = vunpack.c.h.b16 %v278
    %v842 = vunpack.c.l.b16 %v279
    %v843 = vunpack.c.h.b16 %v279
    %v844 = vunpack.c.l.b16 %v280
    %v845 = vunpack.c.h.b16 %v280
    %v846 = vunpack.c.l.b16 %v281
    %v847 = vunpack.c.h.b16 %v281
    %v848 = vunpack.c.l.b16 %v282
    %v849 = vunpack.c.h.b16 %v282
    %v850 = vunpack.c.l.b16 %v283
    %v851 = vunpack.c.h.b16 %v283
    %v852 = vunpack.c.l.b16 %v284
    %v853 = vunpack.c.h.b16 %v284
    %v854 = vunpack.c.l.b16 %v285
    %v855 = vunpack.c.h.b16 %v285
    %v856 = vunpack.c.l.b16 %v286
    %v857 = vunpack.c.h.b16 %v286
    %v858 = vunpack.c.l.b16 %v287
    %v859 = vunpack.c.h.b16 %v287
    %v860 = vunpack.c.l.b16 %v288
    %v861 = vunpack.c.h.b16 %v288
    %v862 = vunpack.c.l.b16 %v289
    %v863 = vunpack.c.h.b16 %v289
    %v864 = vunpack.c.l.b16 %v290
    %v865 = vunpack.c.h.b16 %v290
    %v866 = vunpack.c.l.b16 %v291
    %v867 = vunpack.c.h.b16 %v291
    %v868 = vunpack.c.l.b16 %v292
    %v869 = vunpack.c.h.b16 %v292
    %v870 = vunpack.c.l.b16 %v293
    %v871 = vunpack.c.h.b16 %v293
    %v872 = vunpack.c.l.b16 %v294
    %v873 = vunpack.c.h.b16 %v294
    %v874 = vunpack.c.l.b16 %v295
    %v875 = vunpack.c.h.b16 %v295
    %v876 = vunpack.c.l.b16 %v296
    %v877 = vunpack.c.h.b16 %v296
    %v878 = vunpack.c.l.b16 %v297
    %v879 = vunpack.c.h.b16 %v297
    %v880 = vunpack.c.l.b16 %v298
    %v881 = vunpack.c.h.b16 %v298
    %v882 = vunpack.c.l.b16 %v299
    %v883 = vunpack.c.h.b16 %v299
    %v884 = vunpack.c.l.b16 %v300
    %v885 = vunpack.c.h.b16 %v300
    %v886 = vunpack.c.l.b16 %v301
    %v887 = vunpack.c.h.b16 %v301
    %v888 = vunpack.c.l.b16 %v302
    %v889 = vunpack.c.h.b16 %v302
    %v890 = vunpack.c.l.b16 %v303
    %v891 = vunpack.c.h.b16 %v303
    %v892 = vunpack.c.l.b16 %v304
    %v893 = vunpack.c.h.b16 %v304
    %v894 = vunpack.c.l.b16 %v305
    %v895 = vunpack.c.h.b16 %v305
    %v896 = vunpack.c.l.b16 %v306
    %v897 = vunpack.c.h.b16 %v306
    %v898 = vunpack.c.l.b16 %v307
    %v899 = vunpack.c.h.b16 %v307
    %v900 = vunpack.c.l.b16 %v308
    %v901 = vunpack.c.h.b16 %v308
    %v902 = vunpack.c.l.b16 %v309
    %v903 = vunpack.c.h.b16 %v309
    %v904 = vunpack.c.l.b16 %v310
    %v905 = vunpack.c.h.b16 %v310
    %v906 = vunpack.c.l.b16 %v311
    %v907 = vunpack.c.h.b16 %v311
    %v908 = vunpack.c.l.b16 %v312
    %v909 = vunpack.c.h.b16 %v312
    %v910 = vunpack.c.l.b16 %v313
    %v911 = vunpack.c.h.b16 %v313
    %v912 = vunpack.c.l.b16 %v314
    %v913 = vunpack.c.h.b16 %v314
    %v914 = vunpack.c.l.b16 %v315
    %v915 = vunpack.c.h.b16 %v315
    %v916 = vunpack.c.l.b16 %v316
    %v917 = vunpack.c.h.b16 %v316
    %v918 = vunpack.c.l.b16 %v317
    %v919 = vunpack.c.h.b16 %v317
    %v920 = vunpack.c.l.b16 %v318
    %v921 = vunpack.c.h.b16 %v318
    %v922 = vunpack.c.l.b16 %v319
    %v923 = vunpack.c.h.b16 %v319
    %v924 = vunpack.c.l.b16 %v320
    %v925 = vunpack.c.h.b16 %v320
    %v926 = vunpack.c.l.b16 %v321
    %v927 = vunpack.c.h.b16 %v321
    %v928 = vunpack.c.l.b16 %v322
    %v929 = vunpack.c.h.b16 %v322
    %v930 = vunpack.c.l.b16 %v323
    %v931 = vunpack.c.h.b16 %v323
    %v932 = vunpack.c.l.b16 %v324
    %v933 = vunpack.c.h.b16 %v324
    %v934 = vunpack.c.l.b16 %v325
    %v935 = vunpack.c.h.b16 %v325
    %v936 = vunpack.c.l.b16 %v326
    %v937 = vunpack.c.h.b16 %v326
    %v938 = vunpack.c.l.b16 %v327
    %v939 = vunpack.c.h.b16 %v327
    %v940 = vunpack.c.l.b16 %v328
    %v941 = vunpack.c.h.b16 %v328
    %v942 = vunpack.c.l.b16 %v329
    %v943 = vunpack.c.h.b16 %v329
    %v944 = vunpack.c.l.b16 %v330
    %v945 = vunpack.c.h.b16 %v330
    %v946 = vunpack.c.l.b16 %v331
    %v947 = vunpack.c.h.b16 %v331
    %v948 = vunpack.c.l.b16 %v332
    %v949 = vunpack.c.h.b16 %v332
    %v950 = vunpack.c.l.b16 %v333
    %v951 = vunpack.c.h.b16 %v333
    %v952 = vunpack.c.l.b16 %v334
    %v953 = vunpack.c.h.b16 %v334
    %v954 = vunpack.c.l.b16 %v335
    %v955 = vunpack.c.h.b16 %v335
    %v956 = vunpack.c.l.b16 %v336
    %v957 = vunpack.c.h.b16 %v336
    %v958 = vunpack.c.l.b16 %v337
    %v959 = vunpack.c.h.b16 %v337
    %v960 = vunpack.c.l.b16 %v338
    %v961 = vunpack.c.h.b16 %v338
    %v962 = vunpack.c.l.b16 %v339
    %v963 = vunpack.c.h.b16 %v339
    %v964 = vunpack.c.l.b16 %v340
    %v965 = vunpack.c.h.b16 %v340
    %v966 = vunpack.c.l.b16 %v341
    %v967 = vunpack.c.h.b16 %v341
    %v968 = vunpack.c.l.b16 %v342
    %v969 = vunpack.c.h.b16 %v342
    %v970 = vunpack.c.l.b16 %v343
    %v971 = vunpack.c.h.b16 %v343
    %v972 = vunpack.c.l.b16 %v344
    %v973 = vunpack.c.h.b16 %v344
    %v974 = vunpack.c.l.b16 %v345
    %v975 = vunpack.c.h.b16 %v345
    %v976 = vunpack.c.l.b16 %v346
    %v977 = vunpack.c.h.b16 %v346
    %v978 = vunpack.c.l.b16 %v347
    %v979 = vunpack.c.h.b16 %v347
    %v980 = vunpack.c.l.b16 %v348
    %v981 = vunpack.c.h.b16 %v348
    %v982 = vunpack.c.l.b16 %v349
    %v983 = vunpack.c.h.b16 %v349
    %v984 = vunpack.c.l.b16 %v350
    %v985 = vunpack.c.h.b16 %v350
    %v986 = vunpack.c.l.b16 %v351
    %v987 = vunpack.c.h.b16 %v351
    %v988 = vunpack.c.l.b16 %v352
    %v989 = vunpack.c.h.b16 %v352
    %v990 = vunpack.c.l.b16 %v353
    %v991 = vunpack.c.h.b16 %v353
    %v992 = vunpack.c.l.b16 %v354
    %v993 = vunpack.c.h.b16 %v354
    %v994 = vunpack.c.l.b16 %v355
    %v995 = vunpack.c.h.b16 %v355
    %v996 = vunpack.c.l.b16 %v356
    %v997 = vunpack.c.h.b16 %v356
    %v998 = vunpack.c.l.b16 %v357
    %v999 = vunpack.c.h.b16 %v357
    %v1000 = vunpack.c.l.b16 %v358
    %v1001 = vunpack.c.h.b16 %v358
    %v1002 = vunpack.c.l.b16 %v359
    %v1003 = vunpack.c.h.b16 %v359
    %v1004 = vunpack.c.l.b16 %v360
    %v1005 = vunpack.c.h.b16 %v360
    %v1006 = vunpack.c.l.b16 %v361
    %v1007 = vunpack.c.h.b16 %v361
    %v1008 = vunpack.c.l.b16 %v362
    %v1009 = vunpack.c.h.b16 %v362
    %v1010 = vunpack.c.l.b16 %v363
    %v1011 = vunpack.c.h.b16 %v363
    %v1012 = vunpack.c.l.b16 %v364
    %v1013 = vunpack.c.h.b16 %v364
    %v1014 = vunpack.c.l.b16 %v365
    %v1015 = vunpack.c.h.b16 %v365
    %v1016 = vunpack.c.l.b16 %v366
    %v1017 = vunpack.c.h.b16 %v366
    %v1018 = vunpack.c.l.b16 %v367
    %v1019 = vunpack.c.h.b16 %v367
    %v1020 = vunpack.c.l.b16 %v368
    %v1021 = vunpack.c.h.b16 %v368
    %v1022 = vunpack.c.l.b16 %v369
    %v1023 = vunpack.c.h.b16 %v369
    %v1024 = vunpack.c.l.b16 %v370
    %v1025 = vunpack.c.h.b16 %v370
    %v1026 = vunpack.c.l.b16 %v371
    %v1027 = vunpack.c.h.b16 %v371
    %v1028 = vunpack.c.l.b16 %v372
    %v1029 = vunpack.c.h.b16 %v372
    %v1030 = vunpack.c.l.b16 %v373
    %v1031 = vunpack.c.h.b16 %v373
    %v1032 = vunpack.c.l.b16 %v374
    %v1033 = vunpack.c.h.b16 %v374
    %v1034 = vunpack.c.l.b16 %v375
    %v1035 = vunpack.c.h.b16 %v375
    %v1036 = vunpack.c.l.b16 %v376
    %v1037 = vunpack.c.h.b16 %v376
    %v1038 = vunpack.c.l.b16 %v377
    %v1039 = vunpack.c.h.b16 %v377
    %v1040 = vunpack.c.l.b16 %v378
    %v1041 = vunpack.c.h.b16 %v378
    %v1042 = vunpack.c.l.b16 %v379
    %v1043 = vunpack.c.h.b16 %v379
    %v1044 = vunpack.c.l.b16 %v380
    %v1045 = vunpack.c.h.b16 %v380
    %v1046 = vunpack.c.l.b16 %v381
    %v1047 = vunpack.c.h.b16 %v381
    %v1048 = vunpack.c.l.b16 %v382
    %v1049 = vunpack.c.h.b16 %v382
    %v1050 = vunpack.c.l.b16 %v383
    %v1051 = vunpack.c.h.b16 %v383
    %v1052 = vunpack.c.l.b16 %v384
    %v1053 = vunpack.c.h.b16 %v384
    %v1054 = vunpack.c.l.b16 %v385
    %v1055 = vunpack.c.h.b16 %v385
    %v1056 = vunpack.c.l.b16 %v386
    %v1057 = vunpack.c.h.b16 %v386
    %v1058 = vunpack.c.l.b16 %v387
    %v1059 = vunpack.c.h.b16 %v387
    %v1060 = vunpack.c.l.b16 %v388
    %v1061 = vunpack.c.h.b16 %v388
    %v1062 = vunpack.c.l.b16 %v389
    %v1063 = vunpack.c.h.b16 %v389
    %v1064 = vunpack.c.l.b16 %v390
    %v1065 = vunpack.c.h.b16 %v390
    %v1066 = vunpack.c.l.b16 %v391
    %v1067 = vunpack.c.h.b16 %v391
    %v1068 = vunpack.c.l.b16 %v392
    %v1069 = vunpack.c.h.b16 %v392
    %v1070 = vunpack.c.l.b16 %v393
    %v1071 = vunpack.c.h.b16 %v393
    %v1072 = vunpack.c.l.b16 %v394
    %v1073 = vunpack.c.h.b16 %v394
    %v1074 = vunpack.c.l.b16 %v395
    %v1075 = vunpack.c.h.b16 %v395
    %v1076 = vunpack.c.l.b16 %v396
    %v1077 = vunpack.c.h.b16 %v396
    %v1078 = vunpack.c.l.b16 %v397
    %v1079 = vunpack.c.h.b16 %v397
    %v1080 = vunpack.c.l.b16 %v398
    %v1081 = vunpack.c.h.b16 %v398
    %v1082 = vunpack.c.l.b16 %v399
    %v1083 = vunpack.c.h.b16 %v399
    %v1084 = vunpack.c.l.b16 %v400
    %v1085 = vunpack.c.h.b16 %v400
    %v1086 = vunpack.c.l.b16 %v401
    %v1087 = vunpack.c.h.b16 %v401
    %v1088 = vunpack.c.l.b16 %v402
    %v1089 = vunpack.c.h.b16 %v402
    %v1090 = vunpack.c.l.b16 %v403
    %v1091 = vunpack.c.h.b16 %v403
    %v1092 = vunpack.c.l.b16 %v404
    %v1093 = vunpack.c.h.b16 %v404
    %v1094 = vunpack.c.l.b16 %v405
    %v1095 = vunpack.c.h.b16 %v405
    %v1096 = vunpack.c.l.b16 %v406
    %v1097 = vunpack.c.h.b16 %v406
    %v1098 = vunpack.c.l.b16 %v407
    %v1099 = vunpack.c.h.b16 %v407
    %v1100 = vunpack.c.l.b16 %v408
    %v1101 = vunpack.c.h.b16 %v408
    %v1102 = vunpack.c.l.b16 %v409
    %v1103 = vunpack.c.h.b16 %v409
    %v1104 = vunpack.c.l.b16 %v410
    %v1105 = vunpack.c.h.b16 %v410
    %v1106 = vunpack.c.l.b16 %v411
    %v1107 = vunpack.c.h.b16 %v411
    %v1108 = vunpack.c.l.b16 %v412
    %v1109 = vunpack.c.h.b16 %v412
    %v1110 = vunpack.c.l.b16 %v413
    %v1111 = vunpack.c.h.b16 %v413
    %v1112 = vunpack.c.l.b16 %v414
    %v1113 = vunpack.c.h.b16 %v414
    %v1114 = vunpack.c.l.b16 %v415
    %v1115 = vunpack.c.h.b16 %v415
    %v1116 = vunpack.c.l.b16 %v416
    %v1117 = vunpack.c.h.b16 %v416
    %v1118 = vunpack.c.l.b16 %v417
    %v1119 = vunpack.c.h.b16 %v417
    %v1120 = vunpack.c.l.b16 %v418
    %v1121 = vunpack.c.h.b16 %v418
    %v1122 = vunpack.c.l.b16 %v419
    %v1123 = vunpack.c.h.b16 %v419
    %v1124 = vunpack.c.l.b16 %v420
    %v1125 = vunpack.c.h.b16 %v420
    %v1126 = vunpack.c.l.b16 %v421
    %v1127 = vunpack.c.h.b16 %v421
    %v1128 = vunpack.c.l.b16 %v422
    %v1129 = vunpack.c.h.b16 %v422
    %v1130 = vunpack.c.l.b16 %v423
    %v1131 = vunpack.c.h.b16 %v423
    %v1132 = vunpack.c.l.b16 %v424
    %v1133 = vunpack.c.h.b16 %v424
    %v1134 = vunpack.c.l.b16 %v425
    %v1135 = vunpack.c.h.b16 %v425
    %v1136 = vunpack.c.l.b16 %v426
    %v1137 = vunpack.c.h.b16 %v426
    %v1138 = vunpack.c.l.b16 %v427
    %v1139 = vunpack.c.h.b16 %v427
    %v1140 = vunpack.c.l.b16 %v428
    %v1141 = vunpack.c.h.b16 %v428
    %v1142 = vunpack.c.l.b16 %v429
    %v1143 = vunpack.c.h.b16 %v429
    %v1144 = vunpack.c.l.b16 %v430
    %v1145 = vunpack.c.h.b16 %v430
    %v1146 = vunpack.c.l.b16 %v431
    %v1147 = vunpack.c.h.b16 %v431
    %v1148 = vunpack.c.l.b16 %v432
    %v1149 = vunpack.c.h.b16 %v432
    %v1150 = vunpack.c.l.b16 %v433
    %v1151 = vunpack.c.h.b16 %v433
    %v1152 = vunpack.c.l.b16 %v434
    %v1153 = vunpack.c.h.b16 %v434
    %v1154 = vunpack.c.l.b16 %v435
    %v1155 = vunpack.c.h.b16 %v435
    %v1156 = vunpack.c.l.b16 %v436
    %v1157 = vunpack.c.h.b16 %v436
    %v1158 = vunpack.c.l.b16 %v437
    %v1159 = vunpack.c.h.b16 %v437
    %v1160 = vunpack.c.l.b16 %v438
    %v1161 = vunpack.c.h.b16 %v438
    %v1162 = vunpack.c.l.b16 %v439
    %v1163 = vunpack.c.h.b16 %v439
    %v1164 = vunpack.c.l.b16 %v440
    %v1165 = vunpack.c.h.b16 %v440
    %v1166 = vunpack.c.l.b16 %v441
    %v1167 = vunpack.c.h.b16 %v441
    %v1168 = vunpack.c.l.b16 %v442
    %v1169 = vunpack.c.h.b16 %v442
    %v1170 = vunpack.c.l.b16 %v443
    %v1171 = vunpack.c.h.b16 %v443
    %v1172 = vunpack.c.l.b16 %v444
    %v1173 = vunpack.c.h.b16 %v444
    %v1174 = vunpack.c.l.b16 %v445
    %v1175 = vunpack.c.h.b16 %v445
    %v1176 = vunpack.c.l.b16 %v446
    %v1177 = vunpack.c.h.b16 %v446
    %v1178 = vunpack.c.l.b16 %v447
    %v1179 = vunpack.c.h.b16 %v447
    %v1180 = vunpack.c.l.b16 %v448
    %v1181 = vunpack.c.h.b16 %v448
    %v1182 = vunpack.c.l.b16 %v449
    %v1183 = vunpack.c.h.b16 %v449
    %v1184 = vunpack.c.l.b16 %v450
    %v1185 = vunpack.c.h.b16 %v450
    %v1186 = vunpack.c.l.b16 %v451
    %v1187 = vunpack.c.h.b16 %v451
    %v1188 = vunpack.c.l.b16 %v452
    %v1189 = vunpack.c.h.b16 %v452
    %v1190 = vunpack.c.l.b16 %v453
    %v1191 = vunpack.c.h.b16 %v453
    %v1192 = vunpack.c.l.b16 %v454
    %v1193 = vunpack.c.h.b16 %v454
    %v1194 = vunpack.c.l.b16 %v455
    %v1195 = vunpack.c.h.b16 %v455
    %v1196 = vunpack.c.l.b16 %v456
    %v1197 = vunpack.c.h.b16 %v456
    %v1198 = vunpack.c.l.b16 %v457
    %v1199 = vunpack.c.h.b16 %v457
    %v1200 = vunpack.c.l.b16 %v458
    %v1201 = vunpack.c.h.b16 %v458
    %v1202 = vunpack.c.l.b16 %v459
    %v1203 = vunpack.c.h.b16 %v459
    %v1204 = vunpack.c.l.b16 %v460
    %v1205 = vunpack.c.h.b16 %v460
    %v1206 = vunpack.c.l.b16 %v461
    %v1207 = vunpack.c.h.b16 %v461
    %v1208 = vunpack.c.l.b16 %v462
    %v1209 = vunpack.c.h.b16 %v462
    %v1210 = vunpack.c.l.b16 %v463
    %v1211 = vunpack.c.h.b16 %v463
    %v1212 = vunpack.c.l.b16 %v464
    %v1213 = vunpack.c.h.b16 %v464
    %v1214 = vunpack.c.l.b16 %v465
    %v1215 = vunpack.c.h.b16 %v465
    %v1216 = vunpack.c.l.b16 %v466
    %v1217 = vunpack.c.h.b16 %v466
    %v1218 = vunpack.c.l.b16 %v467
    %v1219 = vunpack.c.h.b16 %v467
    %v1220 = vunpack.c.l.b16 %v468
    %v1221 = vunpack.c.h.b16 %v468
    %v1222 = vunpack.c.l.b16 %v469
    %v1223 = vunpack.c.h.b16 %v469
    %v1224 = vunpack.c.l.b16 %v470
    %v1225 = vunpack.c.h.b16 %v470
    %v1226 = vunpack.c.l.b16 %v471
    %v1227 = vunpack.c.h.b16 %v471
    %v1228 = vunpack.c.l.b16 %v472
    %v1229 = vunpack.c.h.b16 %v472
    %v1230 = vunpack.c.l.b16 %v473
    %v1231 = vunpack.c.h.b16 %v473
    %v1232 = vunpack.c.l.b16 %v474
    %v1233 = vunpack.c.h.b16 %v474
    %v1234 = vunpack.c.l.b16 %v475
    %v1235 = vunpack.c.h.b16 %v475
    %v1236 = vunpack.c.l.b16 %v476
    %v1237 = vunpack.c.h.b16 %v476
    %v1238 = vunpack.c.l.b16 %v477
    %v1239 = vunpack.c.h.b16 %v477
    %v1240 = vunpack.c.l.b16 %v478
    %v1241 = vunpack.c.h.b16 %v478
    %v1242 = vunpack.c.l.b16 %v479
    %v1243 = vunpack.c.h.b16 %v479
    %v1244 = vunpack.c.l.b16 %v480
    %v1245 = vunpack.c.h.b16 %v480
    %v1246 = vunpack.c.l.b16 %v481
    %v1247 = vunpack.c.h.b16 %v481
    %v1248 = vunpack.c.l.b16 %v482
    %v1249 = vunpack.c.h.b16 %v482
    %v1250 = vunpack.c.l.b16 %v483
    %v1251 = vunpack.c.h.b16 %v483
    %v1252 = vunpack.c.l.b16 %v484
    %v1253 = vunpack.c.h.b16 %v484
    %v1254 = vunpack.c.l.b16 %v485
    %v1255 = vunpack.c.h.b16 %v485
    %v1256 = vunpack.c.l.b16 %v486
    %v1257 = vunpack.c.h.b16 %v486
    %v1258 = vunpack.c.l.b16 %v487
    %v1259 = vunpack.c.h.b16 %v487
    %v1260 = vunpack.c.l.b16 %v488
    %v1261 = vunpack.c.h.b16 %v488
    %v1262 = vunpack.c.l.b16 %v489
    %v1263 = vunpack.c.h.b16 %v489
    %v1264 = vunpack.c.l.b16 %v490
    %v1265 = vunpack.c.h.b16 %v490
    %v1266 = vunpack.c.l.b16 %v491
    %v1267 = vunpack.c.h.b16 %v491
    %v1268 = vunpack.c.l.b16 %v492
    %v1269 = vunpack.c.h.b16 %v492
    %v1270 = vunpack.c.l.b16 %v493
    %v1271 = vunpack.c.h.b16 %v493
    %v1272 = vunpack.c.l.b16 %v494
    %v1273 = vunpack.c.h.b16 %v494
    %v1274 = vunpack.c.l.b16 %v495
    %v1275 = vunpack.c.h.b16 %v495
    %v1276 = vunpack.c.l.b16 %v496
    %v1277 = vunpack.c.h.b16 %v496
    %v1278 = vunpack.c.l.b16 %v497
    %v1279 = vunpack.c.h.b16 %v497
    %v1280 = vunpack.c.l.b16 %v498
    %v1281 = vunpack.c.h.b16 %v498
    %v1282 = vunpack.c.l.b16 %v499
    %v1283 = vunpack.c.h.b16 %v499
    %v1284 = vunpack.c.l.b16 %v500
    %v1285 = vunpack.c.h.b16 %v500
    %v1286 = vunpack.c.l.b16 %v501
    %v1287 = vunpack.c.h.b16 %v501
    %v1288 = vunpack.c.l.b16 %v502
    %v1289 = vunpack.c.h.b16 %v502
    %v1290 = vunpack.c.l.b16 %v503
    %v1291 = vunpack.c.h.b16 %v503
    %v1292 = vunpack.c.l.b16 %v504
    %v1293 = vunpack.c.h.b16 %v504
    %v1294 = vunpack.c.l.b16 %v505
    %v1295 = vunpack.c.h.b16 %v505
    %v1296 = vpack.c.b16 %v788, %v784
    %v1297 = vpack.c.b16 %v789, %v785
    %v1298 = vpack.c.b16 %v790, %v786
    %v1299 = vpack.c.b16 %v791, %v787
    %v1300 = vpack.c.b16 %v796, %v792
    %v1301 = vpack.c.b16 %v797, %v793
    %v1302 = vpack.c.b16 %v798, %v794
    %v1303 = vpack.c.b16 %v799, %v795
    %v1304 = vpack.c.b16 %v804, %v800
    %v1305 = vpack.c.b16 %v805, %v801
    %v1306 = vpack.c.b16 %v806, %v802
    %v1307 = vpack.c.b16 %v807, %v803
    %v1308 = vpack.c.b16 %v812, %v808
    %v1309 = vpack.c.b16 %v813, %v809
    %v1310 = vpack.c.b16 %v814, %v810
    %v1311 = vpack.c.b16 %v815, %v811
    %v1312 = vpack.c.b16 %v820, %v816
    %v1313 = vpack.c.b16 %v821, %v817
    %v1314 = vpack.c.b16 %v822, %v818
    %v1315 = vpack.c.b16 %v823, %v819
    %v1316 = vpack.c.b16 %v828, %v824
    %v1317 = vpack.c.b16 %v829, %v825
    %v1318 = vpack.c.b16 %v830, %v826
    %v1319 = vpack.c.b16 %v831, %v827
    %v1320 = vpack.c.b16 %v836, %v832
    %v1321 = vpack.c.b16 %v837, %v833
    %v1322 = vpack.c.b16 %v838, %v834
    %v1323 = vpack.c.b16 %v839, %v835
    %v1324 = vpack.c.b16 %v844, %v840
    %v1325 = vpack.c.b16 %v845, %v841
    %v1326 = vpack.c.b16 %v846, %v842
    %v1327 = vpack.c.b16 %v847, %v843
    %v1328 = vpack.c.b16 %v852, %v848
    %v1329 = vpack.c.b16 %v853, %v849
    %v1330 = vpack.c.b16 %v854, %v850
    %v1331 = vpack.c.b16 %v855, %v851
    %v1332 = vpack.c.b16 %v860, %v856
    %v1333 = vpack.c.b16 %v861, %v857
    %v1334 = vpack.c.b16 %v862, %v858
    %v1335 = vpack.c.b16 %v863, %v859
    %v1336 = vpack.c.b16 %v868, %v864
    %v1337 = vpack.c.b16 %v869, %v865
    %v1338 = vpack.c.b16 %v870, %v866
    %v1339 = vpack.c.b16 %v871, %v867
    %v1340 = vpack.c.b16 %v876, %v872
    %v1341 = vpack.c.b16 %v877, %v873
    %v1342 = vpack.c.b16 %v878, %v874
    %v1343 = vpack.c.b16 %v879, %v875
    %v1344 = vpack.c.b16 %v884, %v880
    %v1345 = vpack.c.b16 %v885, %v881
    %v1346 = vpack.c.b16 %v886, %v882
    %v1347 = vpack.c.b16 %v887, %v883
    %v1348 = vpack.c.b16 %v892, %v888
    %v1349 = vpack.c.b16 %v893, %v889
    %v1350 = vpack.c.b16 %v894, %v890
    %v1351 = vpack.c.b16 %v895, %v891
    %v1352 = vpack.c.b16 %v900, %v896
    %v1353 = vpack.c.b16 %v901, %v897
    %v1354 = vpack.c.b16 %v902, %v898
    %v1355 = vpack.c.b16 %v903, %v899
    %v1356 = vpack.c.b16 %v908, %v904
    %v1357 = vpack.c.b16 %v909, %v905
    %v1358 = vpack.c.b16 %v910, %v906
    %v1359 = vpack.c.b16 %v911, %v907
    %v1360 = vpack.c.b16 %v916, %v912
    %v1361 = vpack.c.b16 %v917, %v913
    %v1362 = vpack.c.b16 %v918, %v914
    %v1363 = vpack.c.b16 %v919, %v915
    %v1364 = vpack.c.b16 %v924, %v920
    %v1365 = vpack.c.b16 %v925, %v921
    %v1366 = vpack.c.b16 %v926, %v922
    %v1367 = vpack.c.b16 %v927, %v923
    %v1368 = vpack.c.b16 %v932, %v928
    %v1369 = vpack.c.b16 %v933, %v929
    %v1370 = vpack.c.b16 %v934, %v930
    %v1371 = vpack.c.b16 %v935, %v931
    %v1372 = vpack.c.b16 %v940, %v936
    %v1373 = vpack.c.b16 %v941, %v937
    %v1374 = vpack.c.b16 %v942, %v938
    %v1375 = vpack.c.b16 %v943, %v939
    %v1376 = vpack.c.b16 %v948, %v944
    %v1377 = vpack.c.b16 %v949, %v945
    %v1378 = vpack.c.b16 %v950, %v946
    %v1379 = vpack.c.b16 %v951, %v947
    %v1380 = vpack.c.b16 %v956, %v952
    %v1381 = vpack.c.b16 %v957, %v953
    %v1382 = vpack.c.b16 %v958, %v954
    %v1383 = vpack.c.b16 %v959, %v955
    %v1384 = vpack.c.b16 %v964, %v960
    %v1385 = vpack.c.b16 %v965, %v961
    %v1386 = vpack.c.b16 %v966, %v962
    %v1387 = vpack.c.b16 %v967, %v963
    %v1388 = vpack.c.b16 %v972, %v968
    %v1389 = vpack.c.b16 %v973, %v969
    %v1390 = vpack.c.b16 %v974, %v970
    %v1391 = vpack.c.b16 %v975, %v971
    %v1392 = vpack.c.b16 %v980, %v976
    %v1393 = vpack.c.b16 %v981, %v977
    %v1394 = vpack.c.b16 %v982, %v978
    %v1395 = vpack.c.b16 %v983, %v979
    %v1396 = vpack.c.b16 %v988, %v984
    %v1397 = vpack.c.b16 %v989, %v985
    %v1398 = vpack.c.b16 %v990, %v986
    %v1399 = vpack.c.b16 %v991, %v987
    %v1400 = vpack.c.b16 %v996, %v992
    %v1401 = vpack.c.b16 %v997, %v993
    %v1402 = vpack.c.b16 %v998, %v994
    %v1403 = vpack.c.b16 %v999, %v995
    %v1404 = vpack.c.b16 %v1004, %v1000
    %v1405 = vpack.c.b16 %v1005, %v1001
    %v1406 = vpack.c.b16 %v1006, %v1002
    %v1407 = vpack.c.b16 %v1007, %v1003
    %v1408 = vpack.c.b16 %v1012, %v1008
    %v1409 = vpack.c.b16 %v1013, %v1009
    %v1410 = vpack.c.b16 %v1014, %v1010
    %v1411 = vpack.c.b16 %v1015, %v1011
    %v1412 = vpack.c.b16 %v1020, %v1016
    %v1413 = vpack.c.b16 %v1021, %v1017
    %v1414 = vpack.c.b16 %v1022, %v1018
    %v1415 = vpack.c.b16 %v1023, %v1019
    %v1416 = vpack.c.b16 %v1028, %v1024
    %v1417 = vpack.c.b16 %v1029, %v1025
    %v1418 = vpack.c.b16 %v1030, %v1026
    %v1419 = vpack.c.b16 %v1031, %v1027
    %v1420 = vpack.c.b16 %v1036, %v1032
    %v1421 = vpack.c.b16 %v1037, %v1033
    %v1422 = vpack.c.b16 %v1038, %v1034
    %v1423 = vpack.c.b16 %v1039, %v1035
    %v1424 = vpack.c.b16 %v1044, %v1040
    %v1425 = vpack.c.b16 %v1045, %v1041
    %v1426 = vpack.c.b16 %v1046, %v1042
    %v1427 = vpack.c.b16 %v1047, %v1043
    %v1428 = vpack.c.b16 %v1052, %v1048
    %v1429 = vpack.c.b16 %v1053, %v1049
    %v1430 = vpack.c.b16 %v1054, %v1050
    %v1431 = vpack.c.b16 %v1055, %v1051
    %v1432 = vpack.c.b16 %v1060, %v1056
    %v1433 = vpack.c.b16 %v1061, %v1057
    %v1434 = vpack.c.b16 %v1062, %v1058
    %v1435 = vpack.c.b16 %v1063, %v1059
    %v1436 = vpack.c.b16 %v1068, %v1064
    %v1437 = vpack.c.b16 %v1069, %v1065
    %v1438 = vpack.c.b16 %v1070, %v1066
    %v1439 = vpack.c.b16 %v1071, %v1067
    %v1440 = vpack.c.b16 %v1076, %v1072
    %v1441 = vpack.c.b16 %v1077, %v1073
    %v1442 = vpack.c.b16 %v1078, %v1074
    %v1443 = vpack.c.b16 %v1079, %v1075
    %v1444 = vpack.c.b16 %v1084, %v1080
    %v1445 = vpack.c.b16 %v1085, %v1081
    %v1446 = vpack.c.b16 %v1086, %v1082
    %v1447 = vpack.c.b16 %v1087, %v1083
    %v1448 = vpack.c.b16 %v1092, %v1088
    %v1449 = vpack.c.b16 %v1093, %v1089
    %v1450 = vpack.c.b16 %v1094, %v1090
    %v1451 = vpack.c.b16 %v1095, %v1091
    %v1452 = vpack.c.b16 %v1100, %v1096
    %v1453 = vpack.c.b16 %v1101, %v1097
    %v1454 = vpack.c.b16 %v1102, %v1098
    %v1455 = vpack.c.b16 %v1103, %v1099
    %v1456 = vpack.c.b16 %v1108, %v1104
    %v1457 = vpack.c.b16 %v1109, %v1105
    %v1458 = vpack.c.b16 %v1110, %v1106
    %v1459 = vpack.c.b16 %v1111, %v1107
    %v1460 = vpack.c.b16 %v1116, %v1112
    %v1461 = vpack.c.b16 %v1117, %v1113
    %v1462 = vpack.c.b16 %v1118, %v1114
    %v1463 = vpack.c.b16 %v1119, %v1115
    %v1464 = vpack.c.b16 %v1124, %v1120
    %v1465 = vpack.c.b16 %v1125, %v1121
    %v1466 = vpack.c.b16 %v1126, %v1122
    %v1467 = vpack.c.b16 %v1127, %v1123
    %v1468 = vpack.c.b16 %v1132, %v1128
    %v1469 = vpack.c.b16 %v1133, %v1129
    %v1470 = vpack.c.b16 %v1134, %v1130
    %v1471 = vpack.c.b16 %v1135, %v1131
    %v1472 = vpack.c.b16 %v1140, %v1136
    %v1473 = vpack.c.b16 %v1141, %v1137
    %v1474 = vpack.c.b16 %v1142, %v1138
    %v1475 = vpack.c.b16 %v1143, %v1139
    %v1476 = vpack.c.b16 %v1148, %v1144
    %v1477 = vpack.c.b16 %v1149, %v1145
    %v1478 = vpack.c.b16 %v1150, %v1146
    %v1479 = vpack.c.b16 %v1151, %v1147
    %v1480 = vpack.c.b16 %v1156, %v1152
    %v1481 = vpack.c.b16 %v1157, %v1153
    %v1482 = vpack.c.b16 %v1158, %v1154
    %v1483 = vpack.c.b16 %v1159, %v1155
    %v1484 = vpack.c.b16 %v1164, %v1160
    %v1485 = vpack.c.b16 %v1165, %v1161
    %v1486 = vpack.c.b16 %v1166, %v1162
    %v1487 = vpack.c.b16 %v1167, %v1163
    %v1488 = vpack.c.b16 %v1172, %v1168
    %v1489 = vpack.c.b16 %v1173, %v1169
    %v1490 = vpack.c.b16 %v1174, %v1170
    %v1491 = vpack.c.b16 %v1175, %v1171
    %v1492 = vpack.c.b16 %v1180, %v1176
    %v1493 = vpack.c.b16 %v1181, %v1177
    %v1494 = vpack.c.b16 %v1182, %v1178
    %v1495 = vpack.c.b16 %v1183, %v1179
    %v1496 = vpack.c.b16 %v1188, %v1184
    %v1497 = vpack.c.b16 %v1189, %v1185
    %v1498 = vpack.c.b16 %v1190, %v1186
    %v1499 = vpack.c.b16 %v1191, %v1187
    %v1500 = vpack.c.b16 %v1196, %v1192
    %v1501 = vpack.c.b16 %v1197, %v1193
    %v1502 = vpack.c.b16 %v1198, %v1194
    %v1503 = vpack.c.b16 %v1199, %v1195
    %v1504 = vpack.c.b16 %v1204, %v1200
    %v1505 = vpack.c.b16 %v1205, %v1201
    %v1506 = vpack.c.b16 %v1206, %v1202
    %v1507 = vpack.c.b16 %v1207, %v1203
    %v1508 = vpack.c.b16 %v1212, %v1208
    %v1509 = vpack.c.b16 %v1213, %v1209
    %v1510 = vpack.c.b16 %v1214, %v1210
    %v1511 = vpack.c.b16 %v1215, %v1211
    %v1512 = vpack.c.b16 %v1220, %v1216
    %v1513 = vpack.c.b16 %v1221, %v1217
    %v1514 = vpack.c.b16 %v1222, %v1218
    %v1515 = vpack.c.b16 %v1223, %v1219
    %v1516 = vpack.c.b16 %v1228, %v1224
    %v1517 = vpack.c.b16 %v1229, %v1225
    %v1518 = vpack.c.b16 %v1230, %v1226
    %v1519 = vpack.c.b16 %v1231, %v1227
    %v1520 = vpack.c.b16 %v1236, %v1232
    %v1521 = vpack.c.b16 %v1237, %v1233
    %v1522 = vpack.c.b16 %v1238, %v1234
    %v1523 = vpack.c.b16 %v1239, %v1235
    %v1524 = vpack.c.b16 %v1244, %v1240
    %v1525 = vpack.c.b16 %v1245, %v1241
    %v1526 = vpack.c.b16 %v1246, %v1242
    %v1527 = vpack.c.b16 %v1247, %v1243
    %v1528 = vpack.c.b16 %v1252, %v1248
    %v1529 = vpack.c.b16 %v1253, %v1249
    %v1530 = vpack.c.b16 %v1254, %v1250
    %v1531 = vpack.c.b16 %v1255, %v1251
    %v1532 = vpack.c.b16 %v1260, %v1256
    %v1533 = vpack.c.b16 %v1261, %v1257
    %v1534 = vpack.c.b16 %v1262, %v1258
    %v1535 = vpack.c.b16 %v1263, %v1259
    %v1536 = vpack.c.b16 %v1268, %v1264
    %v1537 = vpack.c.b16 %v1269, %v1265
    %v1538 = vpack.c.b16 %v1270, %v1266
    %v1539 = vpack.c.b16 %v1271, %v1267
    %v1540 = vpack.c.b16 %v1276, %v1272
    %v1541 = vpack.c.b16 %v1277, %v1273
    %v1542 = vpack.c.b16 %v1278, %v1274
    %v1543 = vpack.c.b16 %v1279, %v1275
    %v1544 = vpack.c.b16 %v1284, %v1280
    %v1545 = vpack.c.b16 %v1285, %v1281
    %v1546 = vpack.c.b16 %v1286, %v1282
    %v1547 = vpack.c.b16 %v1287, %v1283
    %v1548 = vpack.c.b16 %v1292, %v1288
    %v1549 = vpack.c.b16 %v1293, %v1289
    %v1550 = vpack.c.b16 %v1294, %v1290
    %v1551 = vpack.c.b16 %v1295, %v1291
    %1808 = vmatprep.subr.bf16.mxu0 %v1297
    %1809 = vmatpush1.bf16.msra.mxu0 %v1296
    %1810 = vmatprep.subr.bf16.mxu0 %v1301
    %1811 = vmatpush1.bf16.msra.mxu0 %v1300
    %1812 = vmatprep.subr.bf16.mxu0 %v1305
    %1813 = vmatpush1.bf16.msra.mxu0 %v1304
    %1814 = vmatprep.subr.bf16.mxu0 %v1309
    %1815 = vmatpush1.bf16.msra.mxu0 %v1308
    %1816 = vmatprep.subr.bf16.mxu0 %v1313
    %1817 = vmatpush1.bf16.msra.mxu0 %v1312
    %1818 = vmatprep.subr.bf16.mxu0 %v1317
    %1819 = vmatpush1.bf16.msra.mxu0 %v1316
    %1820 = vmatprep.subr.bf16.mxu0 %v1321
    %1821 = vmatpush1.bf16.msra.mxu0 %v1320
    %1822 = vmatprep.subr.bf16.mxu0 %v1325
    %1823 = vmatpush1.bf16.msra.mxu0 %v1324
    %1824 = vmatprep.subr.bf16.mxu0 %v1329
    %1825 = vmatpush1.bf16.msra.mxu0 %v1328
    %1826 = vmatprep.subr.bf16.mxu0 %v1333
    %1827 = vmatpush1.bf16.msra.mxu0 %v1332
    %1828 = vmatprep.subr.bf16.mxu0 %v1337
    %1829 = vmatpush1.bf16.msra.mxu0 %v1336
    %1830 = vmatprep.subr.bf16.mxu0 %v1341
    %1831 = vmatpush1.bf16.msra.mxu0 %v1340
    %1832 = vmatprep.subr.bf16.mxu0 %v1345
    %1833 = vmatpush1.bf16.msra.mxu0 %v1344
    %1834 = vmatprep.subr.bf16.mxu0 %v1349
    %1835 = vmatpush1.bf16.msra.mxu0 %v1348
    %1836 = vmatprep.subr.bf16.mxu0 %v1353
    %1837 = vmatpush1.bf16.msra.mxu0 %v1352
    %1838 = vmatprep.subr.bf16.mxu0 %v1357
    %1839 = vmatpush1.bf16.msra.mxu0 %v1356
    %1840 = vmatprep.mubr.bf16.mxu0 %v106
    %1841 = vmatmul.mubr.bf16.gmra.mrb[0].mxu0 %v105
    %v1842 = vpop.f32.mrb[0].mxu0
    %v1843 = vadd.f32 %v511, %v1842
    %v1844 = vpop.f32.mrb[0].mxu0
    %v1845 = vadd.f32 %v515, %v1844
    %v1846 = vpop.f32.mrb[0].mxu0
    %v1847 = vadd.f32 %v511, %v1846
    %v1848 = vpop.f32.mrb[0].mxu0
    %v1849 = vadd.f32 %v515, %v1848
    %1850 = vdwg.mxu0
    %1851 = vmatprep.subr.bf16.mxu0 %v1361
    %1852 = vmatpush1.bf16.msra.mxu0 %v1360
    %1853 = vmatprep.subr.bf16.mxu0 %v1365
    %1854 = vmatpush1.bf16.msra.mxu0 %v1364
    %1855 = vmatprep.subr.bf16.mxu0 %v1369
    %1856 = vmatpush1.bf16.msra.mxu0 %v1368
    %1857 = vmatprep.subr.bf16.mxu0 %v1373
    %1858 = vmatpush1.bf16.msra.mxu0 %v1372
    %1859 = vmatprep.subr.bf16.mxu0 %v1377
    %1860 = vmatpush1.bf16.msra.mxu0 %v1376
    %1861 = vmatprep.subr.bf16.mxu0 %v1381
    %1862 = vmatpush1.bf16.msra.mxu0 %v1380
    %1863 = vmatprep.subr.bf16.mxu0 %v1385
    %1864 = vmatpush1.bf16.msra.mxu0 %v1384
    %1865 = vmatprep.subr.bf16.mxu0 %v1389
    %1866 = vmatpush1.bf16.msra.mxu0 %v1388
    %1867 = vmatprep.subr.bf16.mxu0 %v1393
    %1868 = vmatpush1.bf16.msra.mxu0 %v1392
    %1869 = vmatprep.subr.bf16.mxu0 %v1397
    %1870 = vmatpush1.bf16.msra.mxu0 %v1396
    %1871 = vmatprep.subr.bf16.mxu0 %v1401
    %1872 = vmatpush1.bf16.msra.mxu0 %v1400
    %1873 = vmatprep.subr.bf16.mxu0 %v1405
    %1874 = vmatpush1.bf16.msra.mxu0 %v1404
    %1875 = vmatprep.subr.bf16.mxu0 %v1409
    %1876 = vmatpush1.bf16.msra.mxu0 %v1408
    %1877 = vmatprep.subr.bf16.mxu0 %v1413
    %1878 = vmatpush1.bf16.msra.mxu0 %v1412
    %1879 = vmatprep.subr.bf16.mxu0 %v1417
    %1880 = vmatpush1.bf16.msra.mxu0 %v1416
    %1881 = vmatprep.subr.bf16.mxu0 %v1421
    %1882 = vmatpush1.bf16.msra.mxu0 %v1420
    %1883 = vmatprep.mubr.bf16.mxu0 %v108
    %1884 = vmatmul.mubr.bf16.gmra.mrb[0].mxu0 %v107
    %v1885 = vpop.f32.mrb[0].mxu0
    %v1886 = vadd.f32 %v1843, %v1885
    %v1887 = vpop.f32.mrb[0].mxu0
    %v1888 = vadd.f32 %v1845, %v1887
    %v1889 = vpop.f32.mrb[0].mxu0
    %v1890 = vadd.f32 %v1847, %v1889
    %v1891 = vpop.f32.mrb[0].mxu0
    %v1892 = vadd.f32 %v1849, %v1891
    %1893 = vdwg.mxu0
    %1894 = vmatprep.subr.bf16.mxu0 %v1425
    %1895 = vmatpush1.bf16.msra.mxu0 %v1424
    %1896 = vmatprep.subr.bf16.mxu0 %v1429
    %1897 = vmatpush1.bf16.msra.mxu0 %v1428
    %1898 = vmatprep.subr.bf16.mxu0 %v1433
    %1899 = vmatpush1.bf16.msra.mxu0 %v1432
    %1900 = vmatprep.subr.bf16.mxu0 %v1437
    %1901 = vmatpush1.bf16.msra.mxu0 %v1436
    %1902 = vmatprep.subr.bf16.mxu0 %v1441
    %1903 = vmatpush1.bf16.msra.mxu0 %v1440
    %1904 = vmatprep.subr.bf16.mxu0 %v1445
    %1905 = vmatpush1.bf16.msra.mxu0 %v1444
    %1906 = vmatprep.subr.bf16.mxu0 %v1449
    %1907 = vmatpush1.bf16.msra.mxu0 %v1448
    %1908 = vmatprep.subr.bf16.mxu0 %v1453
    %1909 = vmatpush1.bf16.msra.mxu0 %v1452
    %1910 = vmatprep.subr.bf16.mxu0 %v1457
    %1911 = vmatpush1.bf16.msra.mxu0 %v1456
    %1912 = vmatprep.subr.bf16.mxu0 %v1461
    %1913 = vmatpush1.bf16.msra.mxu0 %v1460
    %1914 = vmatprep.subr.bf16.mxu0 %v1465
    %1915 = vmatpush1.bf16.msra.mxu0 %v1464
    %1916 = vmatprep.subr.bf16.mxu0 %v1469
    %1917 = vmatpush1.bf16.msra.mxu0 %v1468
    %1918 = vmatprep.subr.bf16.mxu0 %v1473
    %1919 = vmatpush1.bf16.msra.mxu0 %v1472
    %1920 = vmatprep.subr.bf16.mxu0 %v1477
    %1921 = vmatpush1.bf16.msra.mxu0 %v1476
    %1922 = vmatprep.subr.bf16.mxu0 %v1481
    %1923 = vmatpush1.bf16.msra.mxu0 %v1480
    %1924 = vmatprep.subr.bf16.mxu0 %v1485
    %1925 = vmatpush1.bf16.msra.mxu0 %v1484
    %1926 = vmatprep.mubr.bf16.mxu0 %v110
    %1927 = vmatmul.mubr.bf16.gmra.mrb[0].mxu0 %v109
    %v1928 = vpop.f32.mrb[0].mxu0
    %v1929 = vadd.f32 %v1886, %v1928
    %v1930 = vpop.f32.mrb[0].mxu0
    %v1931 = vadd.f32 %v1888, %v1930
    %v1932 = vpop.f32.mrb[0].mxu0
    %v1933 = vadd.f32 %v1890, %v1932
    %v1934 = vpop.f32.mrb[0].mxu0
    %v1935 = vadd.f32 %v1892, %v1934
    %1936 = vdwg.mxu0
    %1937 = vmatprep.subr.bf16.mxu0 %v1489
    %1938 = vmatpush1.bf16.msra.mxu0 %v1488
    %1939 = vmatprep.subr.bf16.mxu0 %v1493
    %1940 = vmatpush1.bf16.msra.mxu0 %v1492
    %1941 = vmatprep.subr.bf16.mxu0 %v1497
    %1942 = vmatpush1.bf16.msra.mxu0 %v1496
    %1943 = vmatprep.subr.bf16.mxu0 %v1501
    %1944 = vmatpush1.bf16.msra.mxu0 %v1500
    %1945 = vmatprep.subr.bf16.mxu0 %v1505
    %1946 = vmatpush1.bf16.msra.mxu0 %v1504
    %1947 = vmatprep.subr.bf16.mxu0 %v1509
    %1948 = vmatpush1.bf16.msra.mxu0 %v1508
    %1949 = vmatprep.subr.bf16.mxu0 %v1513
    %1950 = vmatpush1.bf16.msra.mxu0 %v1512
    %1951 = vmatprep.subr.bf16.mxu0 %v1517
    %1952 = vmatpush1.bf16.msra.mxu0 %v1516
    %1953 = vmatprep.subr.bf16.mxu0 %v1521
    %1954 = vmatpush1.bf16.msra.mxu0 %v1520
    %1955 = vmatprep.subr.bf16.mxu0 %v1525
    %1956 = vmatpush1.bf16.msra.mxu0 %v1524
    %1957 = vmatprep.subr.bf16.mxu0 %v1529
    %1958 = vmatpush1.bf16.msra.mxu0 %v1528
    %1959 = vmatprep.subr.bf16.mxu0 %v1533
    %1960 = vmatpush1.bf16.msra.mxu0 %v1532
    %1961 = vmatprep.subr.bf16.mxu0 %v1537
    %1962 = vmatpush1.bf16.msra.mxu0 %v1536
    %1963 = vmatprep.subr.bf16.mxu0 %v1541
    %1964 = vmatpush1.bf16.msra.mxu0 %v1540
    %1965 = vmatprep.subr.bf16.mxu0 %v1545
    %1966 = vmatpush1.bf16.msra.mxu0 %v1544
    %1967 = vmatprep.subr.bf16.mxu0 %v1549
    %1968 = vmatpush1.bf16.msra.mxu0 %v1548
    %1969 = vmatprep.mubr.bf16.mxu0 %v112
    %1970 = vmatmul.mubr.bf16.gmra.mrb[0].mxu0 %v111
    %v1971 = vpop.f32.mrb[0].mxu0
    %v1972 = vadd.f32 %v1929, %v1971
    %v1973 = vpop.f32.mrb[0].mxu0
    %v1974 = vadd.f32 %v1931, %v1973
    %v1975 = vpop.f32.mrb[0].mxu0
    %v1976 = vadd.f32 %v1933, %v1975
    %v1977 = vpop.f32.mrb[0].mxu0
    %v1978 = vadd.f32 %v1935, %v1977
    %1979 = vdwg.mxu0
    %1980 = vmatprep.subr.bf16.mxu0 %v1299
    %1981 = vmatpush1.bf16.msra.mxu0 %v1298
    %1982 = vmatprep.subr.bf16.mxu0 %v1303
    %1983 = vmatpush1.bf16.msra.mxu0 %v1302
    %1984 = vmatprep.subr.bf16.mxu0 %v1307
    %1985 = vmatpush1.bf16.msra.mxu0 %v1306
    %1986 = vmatprep.subr.bf16.mxu0 %v1311
    %1987 = vmatpush1.bf16.msra.mxu0 %v1310
    %1988 = vmatprep.subr.bf16.mxu0 %v1315
    %1989 = vmatpush1.bf16.msra.mxu0 %v1314
    %1990 = vmatprep.subr.bf16.mxu0 %v1319
    %1991 = vmatpush1.bf16.msra.mxu0 %v1318
    %1992 = vmatprep.subr.bf16.mxu0 %v1323
    %1993 = vmatpush1.bf16.msra.mxu0 %v1322
    %1994 = vmatprep.subr.bf16.mxu0 %v1327
    %1995 = vmatpush1.bf16.msra.mxu0 %v1326
    %1996 = vmatprep.subr.bf16.mxu0 %v1331
    %1997 = vmatpush1.bf16.msra.mxu0 %v1330
    %1998 = vmatprep.subr.bf16.mxu0 %v1335
    %1999 = vmatpush1.bf16.msra.mxu0 %v1334
    %2000 = vmatprep.subr.bf16.mxu0 %v1339
    %2001 = vmatpush1.bf16.msra.mxu0 %v1338
    %2002 = vmatprep.subr.bf16.mxu0 %v1343
    %2003 = vmatpush1.bf16.msra.mxu0 %v1342
    %2004 = vmatprep.subr.bf16.mxu0 %v1347
    %2005 = vmatpush1.bf16.msra.mxu0 %v1346
    %2006 = vmatprep.subr.bf16.mxu0 %v1351
    %2007 = vmatpush1.bf16.msra.mxu0 %v1350
    %2008 = vmatprep.subr.bf16.mxu0 %v1355
    %2009 = vmatpush1.bf16.msra.mxu0 %v1354
    %2010 = vmatprep.subr.bf16.mxu0 %v1359
    %2011 = vmatpush1.bf16.msra.mxu0 %v1358
    %2012 = vmatprep.mubr.bf16.mxu0 %v106
    %2013 = vmatmul.mubr.bf16.gmra.mrb[0].mxu0 %v105
    %v2014 = vpop.f32.mrb[0].mxu0
    %v2015 = vadd.f32 %v519, %v2014
    %v2016 = vpop.f32.mrb[0].mxu0
    %v2017 = vadd.f32 %v523, %v2016
    %v2018 = vpop.f32.mrb[0].mxu0
    %v2019 = vadd.f32 %v519, %v2018
    %v2020 = vpop.f32.mrb[0].mxu0
    %v2021 = vadd.f32 %v523, %v2020
    %2022 = vdwg.mxu0
    %2023 = vmatprep.subr.bf16.mxu0 %v1363
    %2024 = vmatpush1.bf16.msra.mxu0 %v1362
    %2025 = vmatprep.subr.bf16.mxu0 %v1367
    %2026 = vmatpush1.bf16.msra.mxu0 %v1366
    %2027 = vmatprep.subr.bf16.mxu0 %v1371
    %2028 = vmatpush1.bf16.msra.mxu0 %v1370
    %2029 = vmatprep.subr.bf16.mxu0 %v1375
    %2030 = vmatpush1.bf16.msra.mxu0 %v1374
    %2031 = vmatprep.subr.bf16.mxu0 %v1379
    %2032 = vmatpush1.bf16.msra.mxu0 %v1378
    %2033 = vmatprep.subr.bf16.mxu0 %v1383
    %2034 = vmatpush1.bf16.msra.mxu0 %v1382
    %2035 = vmatprep.subr.bf16.mxu0 %v1387
    %2036 = vmatpush1.bf16.msra.mxu0 %v1386
    %2037 = vmatprep.subr.bf16.mxu0 %v1391
    %2038 = vmatpush1.bf16.msra.mxu0 %v1390
    %2039 = vmatprep.subr.bf16.mxu0 %v1395
    %2040 = vmatpush1.bf16.msra.mxu0 %v1394
    %2041 = vmatprep.subr.bf16.mxu0 %v1399
    %2042 = vmatpush1.bf16.msra.mxu0 %v1398
    %2043 = vmatprep.subr.bf16.mxu0 %v1403
    %2044 = vmatpush1.bf16.msra.mxu0 %v1402
    %2045 = vmatprep.subr.bf16.mxu0 %v1407
    %2046 = vmatpush1.bf16.msra.mxu0 %v1406
    %2047 = vmatprep.subr.bf16.mxu0 %v1411
    %2048 = vmatpush1.bf16.msra.mxu0 %v1410
    %2049 = vmatprep.subr.bf16.mxu0 %v1415
    %2050 = vmatpush1.bf16.msra.mxu0 %v1414
    %2051 = vmatprep.subr.bf16.mxu0 %v1419
    %2052 = vmatpush1.bf16.msra.mxu0 %v1418
    %2053 = vmatprep.subr.bf16.mxu0 %v1423
    %2054 = vmatpush1.bf16.msra.mxu0 %v1422
    %2055 = vmatprep.mubr.bf16.mxu0 %v108
    %2056 = vmatmul.mubr.bf16.gmra.mrb[0].mxu0 %v107
    %v2057 = vpop.f32.mrb[0].mxu0
    %v2058 = vadd.f32 %v2015, %v2057
    %v2059 = vpop.f32.mrb[0].mxu0
    %v2060 = vadd.f32 %v2017, %v2059
    %v2061 = vpop.f32.mrb[0].mxu0
    %v2062 = vadd.f32 %v2019, %v2061
    %v2063 = vpop.f32.mrb[0].mxu0
    %v2064 = vadd.f32 %v2021, %v2063
    %2065 = vdwg.mxu0
    %2066 = vmatprep.subr.bf16.mxu0 %v1427
    %2067 = vmatpush1.bf16.msra.mxu0 %v1426
    %2068 = vmatprep.subr.bf16.mxu0 %v1431
    %2069 = vmatpush1.bf16.msra.mxu0 %v1430
    %2070 = vmatprep.subr.bf16.mxu0 %v1435
    %2071 = vmatpush1.bf16.msra.mxu0 %v1434
    %2072 = vmatprep.subr.bf16.mxu0 %v1439
    %2073 = vmatpush1.bf16.msra.mxu0 %v1438
    %2074 = vmatprep.subr.bf16.mxu0 %v1443
    %2075 = vmatpush1.bf16.msra.mxu0 %v1442
    %2076 = vmatprep.subr.bf16.mxu0 %v1447
    %2077 = vmatpush1.bf16.msra.mxu0 %v1446
    %2078 = vmatprep.subr.bf16.mxu0 %v1451
    %2079 = vmatpush1.bf16.msra.mxu0 %v1450
    %2080 = vmatprep.subr.bf16.mxu0 %v1455
    %2081 = vmatpush1.bf16.msra.mxu0 %v1454
    %2082 = vmatprep.subr.bf16.mxu0 %v1459
    %2083 = vmatpush1.bf16.msra.mxu0 %v1458
    %2084 = vmatprep.subr.bf16.mxu0 %v1463
    %2085 = vmatpush1.bf16.msra.mxu0 %v1462
    %2086 = vmatprep.subr.bf16.mxu0 %v1467
    %2087 = vmatpush1.bf16.msra.mxu0 %v1466
    %2088 = vmatprep.subr.bf16.mxu0 %v1471
    %2089 = vmatpush1.bf16.msra.mxu0 %v1470
    %2090 = vmatprep.subr.bf16.mxu0 %v1475
    %2091 = vmatpush1.bf16.msra.mxu0 %v1474
    %2092 = vmatprep.subr.bf16.mxu0 %v1479
    %2093 = vmatpush1.bf16.msra.mxu0 %v1478
    %2094 = vmatprep.subr.bf16.mxu0 %v1483
    %2095 = vmatpush1.bf16.msra.mxu0 %v1482
    %2096 = vmatprep.subr.bf16.mxu0 %v1487
    %2097 = vmatpush1.bf16.msra.mxu0 %v1486
    %2098 = vmatprep.mubr.bf16.mxu0 %v110
    %2099 = vmatmul.mubr.bf16.gmra.mrb[0].mxu0 %v109
    %v2100 = vpop.f32.mrb[0].mxu0
    %v2101 = vadd.f32 %v2058, %v2100
    %v2102 = vpop.f32.mrb[0].mxu0
    %v2103 = vadd.f32 %v2060, %v2102
    %v2104 = vpop.f32.mrb[0].mxu0
    %v2105 = vadd.f32 %v2062, %v2104
    %v2106 = vpop.f32.mrb[0].mxu0
    %v2107 = vadd.f32 %v2064, %v2106
    %2108 = vdwg.mxu0
    %2109 = vmatprep.subr.bf16.mxu0 %v1491
    %2110 = vmatpush1.bf16.msra.mxu0 %v1490
    %2111 = vmatprep.subr.bf16.mxu0 %v1495
    %2112 = vmatpush1.bf16.msra.mxu0 %v1494
    %2113 = vmatprep.subr.bf16.mxu0 %v1499
    %2114 = vmatpush1.bf16.msra.mxu0 %v1498
    %2115 = vmatprep.subr.bf16.mxu0 %v1503
    %2116 = vmatpush1.bf16.msra.mxu0 %v1502
    %2117 = vmatprep.subr.bf16.mxu0 %v1507
    %2118 = vmatpush1.bf16.msra.mxu0 %v1506
    %2119 = vmatprep.subr.bf16.mxu0 %v1511
    %2120 = vmatpush1.bf16.msra.mxu0 %v1510
    %2121 = vmatprep.subr.bf16.mxu0 %v1515
    %2122 = vmatpush1.bf16.msra.mxu0 %v1514
    %2123 = vmatprep.subr.bf16.mxu0 %v1519
    %2124 = vmatpush1.bf16.msra.mxu0 %v1518
    %2125 = vmatprep.subr.bf16.mxu0 %v1523
    %2126 = vmatpush1.bf16.msra.mxu0 %v1522
    %2127 = vmatprep.subr.bf16.mxu0 %v1527
    %2128 = vmatpush1.bf16.msra.mxu0 %v1526
    %2129 = vmatprep.subr.bf16.mxu0 %v1531
    %2130 = vmatpush1.bf16.msra.mxu0 %v1530
    %2131 = vmatprep.subr.bf16.mxu0 %v1535
    %2132 = vmatpush1.bf16.msra.mxu0 %v1534
    %2133 = vmatprep.subr.bf16.mxu0 %v1539
    %2134 = vmatpush1.bf16.msra.mxu0 %v1538
    %2135 = vmatprep.subr.bf16.mxu0 %v1543
    %2136 = vmatpush1.bf16.msra.mxu0 %v1542
    %2137 = vmatprep.subr.bf16.mxu0 %v1547
    %2138 = vmatpush1.bf16.msra.mxu0 %v1546
    %2139 = vmatprep.subr.bf16.mxu0 %v1551
    %2140 = vmatpush1.bf16.msra.mxu0 %v1550
    %2141 = vmatprep.mubr.bf16.mxu0 %v112
    %2142 = vmatmul.mubr.bf16.gmra.mrb[0].mxu0 %v111
    %v2143 = vpop.f32.mrb[0].mxu0
    %v2144 = vadd.f32 %v2101, %v2143
    %v2145 = vpop.f32.mrb[0].mxu0
    %v2146 = vadd.f32 %v2103, %v2145
    %v2147 = vpop.f32.mrb[0].mxu0
    %v2148 = vadd.f32 %v2105, %v2147
    %v2149 = vpop.f32.mrb[0].mxu0
    %v2150 = vadd.f32 %v2107, %v2149
    %2151 = vdwg.mxu0
    %v2152 = vpack.c.bf16 %v1976, %v1972
    %v2153 = vpack.c.bf16 %v1978, %v1974
    %v2154 = vpack.c.bf16 %v2148, %v2144
    %v2155 = vpack.c.bf16 %v2150, %v2146
    %vm2156 = vcmp.gt.bf16.partialorder %v2152, 0
    %vm2157 = vcmp.gt.bf16.partialorder %v2153, 0
    %vm2158 = vcmp.gt.bf16.partialorder %v2154, 0
    %vm2159 = vcmp.gt.bf16.partialorder %v2155, 0
    %v2160 = vsel %vm2156, 65537, 0
    %v2161 = vsel %vm2157, 65537, 0
    %v2162 = vsel %vm2158, 65537, 0
    %v2163 = vsel %vm2159, 65537, 0
    %v2164 = vunpack.c.l.b16 %v2160
    %v2165 = vunpack.c.l.b16 %v2161
    %v2166 = vunpack.c.l.b16 %v2162
    %v2167 = vunpack.c.l.b16 %v2163
    %v2168 = vunpack.c.h.b16 %v2160
    %v2169 = vunpack.c.h.b16 %v2161
    %v2170 = vunpack.c.h.b16 %v2162
    %v2171 = vunpack.c.h.b16 %v2163
    %v2172 = vpack.c.b16 %v2165, %v2164
    %v2173 = vpack.c.b16 %v2167, %v2166
    %v2174 = vpack.c.b16 %v2169, %v2168
    %v2175 = vpack.c.b16 %v2171, %v2170
    %vm2176 = vcmp.ne.s16.totalorder %v2172, 0
    %vm2177 = vcmp.ne.s16.totalorder %v2173, 0
    %vm2178 = vcmp.ne.s16.totalorder %v2174, 0
    %vm2179 = vcmp.ne.s16.totalorder %v2175, 0
    %v2180 = vsel %vm2176, 65537, 0
    %v2181 = vsel %vm2177, 65537, 0
    %v2182 = vsel %vm2178, 65537, 0
    %v2183 = vsel %vm2179, 65537, 0
    %v2184 = vunpack.c.l.b16 %v2180
    %v2185 = vunpack.c.h.b16 %v2180
    %v2186 = vunpack.c.l.b16 %v2181
    %v2187 = vunpack.c.h.b16 %v2181
    %v2188 = vunpack.c.l.b16 %v2182
    %v2189 = vunpack.c.h.b16 %v2182
    %v2190 = vunpack.c.l.b16 %v2183
    %v2191 = vunpack.c.h.b16 %v2183
    %vm2192 = vcmp.ne.s32.totalorder %v2184, 0
    %vm2193 = vcmp.ne.s32.totalorder %v2185, 0
    %vm2194 = vcmp.ne.s32.totalorder %v2186, 0
    %vm2195 = vcmp.ne.s32.totalorder %v2187, 0
    %vm2196 = vcmp.ne.s32.totalorder %v2188, 0
    %vm2197 = vcmp.ne.s32.totalorder %v2189, 0
    %vm2198 = vcmp.ne.s32.totalorder %v2190, 0
    %vm2199 = vcmp.ne.s32.totalorder %v2191, 0
    %vm2200 = vmand %vm226, %vm2192
    %vm2201 = vmand %vm227, %vm2193
    %vm2202 = vmand %vm228, %vm2194
    %vm2203 = vmand %vm229, %vm2195
    %vm2204 = vmand %vm230, %vm2196
    %vm2205 = vmand %vm231, %vm2197
    %vm2206 = vmand %vm232, %vm2198
    %vm2207 = vmand %vm233, %vm2199
    %vm2208 = vmpackc.low %vm2204, %vm2200
    %vm2209 = vmpackc.low %vm2205, %vm2201
    %vm2210 = vmpackc.low %vm2206, %vm2202
    %vm2211 = vmpackc.low %vm2207, %vm2203
    %v2212 = vsel %vm2208, %v2152, 0
    %v2213 = vsel %vm2209, %v2153, 0
    %v2214 = vsel %vm2210, %v2154, 0
    %v2215 = vsel %vm2211, %v2155, 0
    %v2216 = vld [vmem:[#allocation8] sm:$0xff]
    %v2217 = vld [vmem:[#allocation8 + $0x8] sm:$0xff]
    %v2218 = vld [vmem:[#allocation8 + $0x10] sm:$0xff]
    %v2219 = vld [vmem:[#allocation8 + $0x18] sm:$0xff]
    %v2220 = vld [vmem:[#allocation8 + $0x20] sm:$0xff]
    %v2221 = vld [vmem:[#allocation8 + $0x28] sm:$0xff]
    %v2222 = vld [vmem:[#allocation8 + $0x30] sm:$0xff]
    %v2223 = vld [vmem:[#allocation8 + $0x38] sm:$0xff]
    %v2224 = vld [vmem:[#allocation8 + $0x40] sm:$0xff]
    %v2225 = vld [vmem:[#allocation8 + $0x48] sm:$0xff]
    %v2226 = vld [vmem:[#allocation8 + $0x50] sm:$0xff]
    %v2227 = vld [vmem:[#allocation8 + $0x58] sm:$0xff]
    %v2228 = vld [vmem:[#allocation8 + $0x60] sm:$0xff]
    %v2229 = vld [vmem:[#allocation8 + $0x68] sm:$0xff]
    %v2230 = vld [vmem:[#allocation8 + $0x70] sm:$0xff]
    %v2231 = vld [vmem:[#allocation8 + $0x78] sm:$0xff]
    %v2232 = vld [vmem:[#allocation8 + $0x80] sm:$0xff]
    %v2233 = vld [vmem:[#allocation8 + $0x88] sm:$0xff]
    %v2234 = vld [vmem:[#allocation8 + $0x90] sm:$0xff]
    %v2235 = vld [vmem:[#allocation8 + $0x98] sm:$0xff]
    %v2236 = vld [vmem:[#allocation8 + $0xa0] sm:$0xff]
    %v2237 = vld [vmem:[#allocation8 + $0xa8] sm:$0xff]
    %v2238 = vld [vmem:[#allocation8 + $0xb0] sm:$0xff]
    %v2239 = vld [vmem:[#allocation8 + $0xb8] sm:$0xff]
    %v2240 = vld [vmem:[#allocation8 + $0xc0] sm:$0xff]
    %v2241 = vld [vmem:[#allocation8 + $0xc8] sm:$0xff]
    %v2242 = vld [vmem:[#allocation8 + $0xd0] sm:$0xff]
    %v2243 = vld [vmem:[#allocation8 + $0xd8] sm:$0xff]
    %v2244 = vld [vmem:[#allocation8 + $0xe0] sm:$0xff]
    %v2245 = vld [vmem:[#allocation8 + $0xe8] sm:$0xff]
    %v2246 = vld [vmem:[#allocation8 + $0xf0] sm:$0xff]
    %v2247 = vld [vmem:[#allocation8 + $0xf8] sm:$0xff]
    %v2248 = vld [vmem:[#allocation8 + $0x100] sm:$0xff]
    %v2249 = vld [vmem:[#allocation8 + $0x108] sm:$0xff]
    %v2250 = vld [vmem:[#allocation8 + $0x110] sm:$0xff]
    %v2251 = vld [vmem:[#allocation8 + $0x118] sm:$0xff]
    %v2252 = vld [vmem:[#allocation8 + $0x120] sm:$0xff]
    %v2253 = vld [vmem:[#allocation8 + $0x128] sm:$0xff]
    %v2254 = vld [vmem:[#allocation8 + $0x130] sm:$0xff]
    %v2255 = vld [vmem:[#allocation8 + $0x138] sm:$0xff]
    %v2256 = vld [vmem:[#allocation8 + $0x140] sm:$0xff]
    %v2257 = vld [vmem:[#allocation8 + $0x148] sm:$0xff]
    %v2258 = vld [vmem:[#allocation8 + $0x150] sm:$0xff]
    %v2259 = vld [vmem:[#allocation8 + $0x158] sm:$0xff]
    %v2260 = vld [vmem:[#allocation8 + $0x160] sm:$0xff]
    %v2261 = vld [vmem:[#allocation8 + $0x168] sm:$0xff]
    %v2262 = vld [vmem:[#allocation8 + $0x170] sm:$0xff]
    %v2263 = vld [vmem:[#allocation8 + $0x178] sm:$0xff]
    %v2264 = vld [vmem:[#allocation8 + $0x180] sm:$0xff]
    %v2265 = vld [vmem:[#allocation8 + $0x188] sm:$0xff]
    %v2266 = vld [vmem:[#allocation8 + $0x190] sm:$0xff]
    %v2267 = vld [vmem:[#allocation8 + $0x198] sm:$0xff]
    %v2268 = vld [vmem:[#allocation8 + $0x1a0] sm:$0xff]
    %v2269 = vld [vmem:[#allocation8 + $0x1a8] sm:$0xff]
    %v2270 = vld [vmem:[#allocation8 + $0x1b0] sm:$0xff]
    %v2271 = vld [vmem:[#allocation8 + $0x1b8] sm:$0xff]
    %v2272 = vld [vmem:[#allocation8 + $0x1c0] sm:$0xff]
    %v2273 = vld [vmem:[#allocation8 + $0x1c8] sm:$0xff]
    %v2274 = vld [vmem:[#allocation8 + $0x1d0] sm:$0xff]
    %v2275 = vld [vmem:[#allocation8 + $0x1d8] sm:$0xff]
    %v2276 = vld [vmem:[#allocation8 + $0x1e0] sm:$0xff]
    %v2277 = vld [vmem:[#allocation8 + $0x1e8] sm:$0xff]
    %v2278 = vld [vmem:[#allocation8 + $0x1f0] sm:$0xff]
    %v2279 = vld [vmem:[#allocation8 + $0x1f8] sm:$0xff]
    %v2280 = vld [vmem:[#allocation8 + $0x200] sm:$0xff]
    %v2281 = vld [vmem:[#allocation8 + $0x208] sm:$0xff]
    %v2282 = vld [vmem:[#allocation8 + $0x210] sm:$0xff]
    %v2283 = vld [vmem:[#allocation8 + $0x218] sm:$0xff]
    %v2284 = vld [vmem:[#allocation8 + $0x220] sm:$0xff]
    %v2285 = vld [vmem:[#allocation8 + $0x228] sm:$0xff]
    %v2286 = vld [vmem:[#allocation8 + $0x230] sm:$0xff]
    %v2287 = vld [vmem:[#allocation8 + $0x238] sm:$0xff]
    %v2288 = vld [vmem:[#allocation8 + $0x240] sm:$0xff]
    %v2289 = vld [vmem:[#allocation8 + $0x248] sm:$0xff]
    %v2290 = vld [vmem:[#allocation8 + $0x250] sm:$0xff]
    %v2291 = vld [vmem:[#allocation8 + $0x258] sm:$0xff]
    %v2292 = vld [vmem:[#allocation8 + $0x260] sm:$0xff]
    %v2293 = vld [vmem:[#allocation8 + $0x268] sm:$0xff]
    %v2294 = vld [vmem:[#allocation8 + $0x270] sm:$0xff]
    %v2295 = vld [vmem:[#allocation8 + $0x278] sm:$0xff]
    %v2296 = vld [vmem:[#allocation8 + $0x280] sm:$0xff]
    %v2297 = vld [vmem:[#allocation8 + $0x288] sm:$0xff]
    %v2298 = vld [vmem:[#allocation8 + $0x290] sm:$0xff]
    %v2299 = vld [vmem:[#allocation8 + $0x298] sm:$0xff]
    %v2300 = vld [vmem:[#allocation8 + $0x2a0] sm:$0xff]
    %v2301 = vld [vmem:[#allocation8 + $0x2a8] sm:$0xff]
    %v2302 = vld [vmem:[#allocation8 + $0x2b0] sm:$0xff]
    %v2303 = vld [vmem:[#allocation8 + $0x2b8] sm:$0xff]
    %v2304 = vld [vmem:[#allocation8 + $0x2c0] sm:$0xff]
    %v2305 = vld [vmem:[#allocation8 + $0x2c8] sm:$0xff]
    %v2306 = vld [vmem:[#allocation8 + $0x2d0] sm:$0xff]
    %v2307 = vld [vmem:[#allocation8 + $0x2d8] sm:$0xff]
    %v2308 = vld [vmem:[#allocation8 + $0x2e0] sm:$0xff]
    %v2309 = vld [vmem:[#allocation8 + $0x2e8] sm:$0xff]
    %v2310 = vld [vmem:[#allocation8 + $0x2f0] sm:$0xff]
    %v2311 = vld [vmem:[#allocation8 + $0x2f8] sm:$0xff]
    %v2312 = vld [vmem:[#allocation8 + $0x300] sm:$0xff]
    %v2313 = vld [vmem:[#allocation8 + $0x308] sm:$0xff]
    %v2314 = vld [vmem:[#allocation8 + $0x310] sm:$0xff]
    %v2315 = vld [vmem:[#allocation8 + $0x318] sm:$0xff]
    %v2316 = vld [vmem:[#allocation8 + $0x320] sm:$0xff]
    %v2317 = vld [vmem:[#allocation8 + $0x328] sm:$0xff]
    %v2318 = vld [vmem:[#allocation8 + $0x330] sm:$0xff]
    %v2319 = vld [vmem:[#allocation8 + $0x338] sm:$0xff]
    %v2320 = vld [vmem:[#allocation8 + $0x340] sm:$0xff]
    %v2321 = vld [vmem:[#allocation8 + $0x348] sm:$0xff]
    %v2322 = vld [vmem:[#allocation8 + $0x350] sm:$0xff]
    %v2323 = vld [vmem:[#allocation8 + $0x358] sm:$0xff]
    %v2324 = vld [vmem:[#allocation8 + $0x360] sm:$0xff]
    %v2325 = vld [vmem:[#allocation8 + $0x368] sm:$0xff]
    %v2326 = vld [vmem:[#allocation8 + $0x370] sm:$0xff]
    %v2327 = vld [vmem:[#allocation8 + $0x378] sm:$0xff]
    %v2328 = vld [vmem:[#allocation8 + $0x380] sm:$0xff]
    %v2329 = vld [vmem:[#allocation8 + $0x388] sm:$0xff]
    %v2330 = vld [vmem:[#allocation8 + $0x390] sm:$0xff]
    %v2331 = vld [vmem:[#allocation8 + $0x398] sm:$0xff]
    %v2332 = vld [vmem:[#allocation8 + $0x3a0] sm:$0xff]
    %v2333 = vld [vmem:[#allocation8 + $0x3a8] sm:$0xff]
    %v2334 = vld [vmem:[#allocation8 + $0x3b0] sm:$0xff]
    %v2335 = vld [vmem:[#allocation8 + $0x3b8] sm:$0xff]
    %v2336 = vld [vmem:[#allocation8 + $0x3c0] sm:$0xff]
    %v2337 = vld [vmem:[#allocation8 + $0x3c8] sm:$0xff]
    %v2338 = vld [vmem:[#allocation8 + $0x3d0] sm:$0xff]
    %v2339 = vld [vmem:[#allocation8 + $0x3d8] sm:$0xff]
    %v2340 = vld [vmem:[#allocation8 + $0x3e0] sm:$0xff]
    %v2341 = vld [vmem:[#allocation8 + $0x3e8] sm:$0xff]
    %v2342 = vld [vmem:[#allocation8 + $0x3f0] sm:$0xff]
    %v2343 = vld [vmem:[#allocation8 + $0x3f8] sm:$0xff]
    %v2344 = vld [vmem:[%s5] sm:$0xf]
    %v2346 = vlaneseq
    %v2347 = vshrl.u32 %v2346, 7
    %v2348 = vsub.s32 0, %v2347
    %v2349 = vrot.slane %v2344, %v2348
    %v2350 = vlaneseq
    %v2351 = vshrl.u32 %v2350, 7
    %v2352 = vsub.s32 1, %v2351
    %v2353 = vrot.slane %v2344, %v2352
    %v2354 = vlaneseq
    %v2355 = vshrl.u32 %v2354, 7
    %v2356 = vsub.s32 2, %v2355
    %v2357 = vrot.slane %v2344, %v2356
    %v2358 = vlaneseq
    %v2359 = vshrl.u32 %v2358, 7
    %v2360 = vsub.s32 3, %v2359
    %v2361 = vrot.slane %v2344, %v2360
    %v2494 = vunpack.c.l.b16 %v2216
    %v2495 = vunpack.c.h.b16 %v2216
    %v2496 = vunpack.c.l.b16 %v2217
    %v2497 = vunpack.c.h.b16 %v2217
    %v2498 = vunpack.c.l.b16 %v2218
    %v2499 = vunpack.c.h.b16 %v2218
    %v2500 = vunpack.c.l.b16 %v2219
    %v2501 = vunpack.c.h.b16 %v2219
    %v2502 = vunpack.c.l.b16 %v2220
    %v2503 = vunpack.c.h.b16 %v2220
    %v2504 = vunpack.c.l.b16 %v2221
    %v2505 = vunpack.c.h.b16 %v2221
    %v2506 = vunpack.c.l.b16 %v2222
    %v2507 = vunpack.c.h.b16 %v2222
    %v2508 = vunpack.c.l.b16 %v2223
    %v2509 = vunpack.c.h.b16 %v2223
    %v2510 = vunpack.c.l.b16 %v2224
    %v2511 = vunpack.c.h.b16 %v2224
    %v2512 = vunpack.c.l.b16 %v2225
    %v2513 = vunpack.c.h.b16 %v2225
    %v2514 = vunpack.c.l.b16 %v2226
    %v2515 = vunpack.c.h.b16 %v2226
    %v2516 = vunpack.c.l.b16 %v2227
    %v2517 = vunpack.c.h.b16 %v2227
    %v2518 = vunpack.c.l.b16 %v2228
    %v2519 = vunpack.c.h.b16 %v2228
    %v2520 = vunpack.c.l.b16 %v2229
    %v2521 = vunpack.c.h.b16 %v2229
    %v2522 = vunpack.c.l.b16 %v2230
    %v2523 = vunpack.c.h.b16 %v2230
    %v2524 = vunpack.c.l.b16 %v2231
    %v2525 = vunpack.c.h.b16 %v2231
    %v2526 = vunpack.c.l.b16 %v2232
    %v2527 = vunpack.c.h.b16 %v2232
    %v2528 = vunpack.c.l.b16 %v2233
    %v2529 = vunpack.c.h.b16 %v2233
    %v2530 = vunpack.c.l.b16 %v2234
    %v2531 = vunpack.c.h.b16 %v2234
    %v2532 = vunpack.c.l.b16 %v2235
    %v2533 = vunpack.c.h.b16 %v2235
    %v2534 = vunpack.c.l.b16 %v2236
    %v2535 = vunpack.c.h.b16 %v2236
    %v2536 = vunpack.c.l.b16 %v2237
    %v2537 = vunpack.c.h.b16 %v2237
    %v2538 = vunpack.c.l.b16 %v2238
    %v2539 = vunpack.c.h.b16 %v2238
    %v2540 = vunpack.c.l.b16 %v2239
    %v2541 = vunpack.c.h.b16 %v2239
    %v2542 = vunpack.c.l.b16 %v2240
    %v2543 = vunpack.c.h.b16 %v2240
    %v2544 = vunpack.c.l.b16 %v2241
    %v2545 = vunpack.c.h.b16 %v2241
    %v2546 = vunpack.c.l.b16 %v2242
    %v2547 = vunpack.c.h.b16 %v2242
    %v2548 = vunpack.c.l.b16 %v2243
    %v2549 = vunpack.c.h.b16 %v2243
    %v2550 = vunpack.c.l.b16 %v2244
    %v2551 = vunpack.c.h.b16 %v2244
    %v2552 = vunpack.c.l.b16 %v2245
    %v2553 = vunpack.c.h.b16 %v2245
    %v2554 = vunpack.c.l.b16 %v2246
    %v2555 = vunpack.c.h.b16 %v2246
    %v2556 = vunpack.c.l.b16 %v2247
    %v2557 = vunpack.c.h.b16 %v2247
    %v2558 = vunpack.c.l.b16 %v2248
    %v2559 = vunpack.c.h.b16 %v2248
    %v2560 = vunpack.c.l.b16 %v2249
    %v2561 = vunpack.c.h.b16 %v2249
    %v2562 = vunpack.c.l.b16 %v2250
    %v2563 = vunpack.c.h.b16 %v2250
    %v2564 = vunpack.c.l.b16 %v2251
    %v2565 = vunpack.c.h.b16 %v2251
    %v2566 = vunpack.c.l.b16 %v2252
    %v2567 = vunpack.c.h.b16 %v2252
    %v2568 = vunpack.c.l.b16 %v2253
    %v2569 = vunpack.c.h.b16 %v2253
    %v2570 = vunpack.c.l.b16 %v2254
    %v2571 = vunpack.c.h.b16 %v2254
    %v2572 = vunpack.c.l.b16 %v2255
    %v2573 = vunpack.c.h.b16 %v2255
    %v2574 = vunpack.c.l.b16 %v2256
    %v2575 = vunpack.c.h.b16 %v2256
    %v2576 = vunpack.c.l.b16 %v2257
    %v2577 = vunpack.c.h.b16 %v2257
    %v2578 = vunpack.c.l.b16 %v2258
    %v2579 = vunpack.c.h.b16 %v2258
    %v2580 = vunpack.c.l.b16 %v2259
    %v2581 = vunpack.c.h.b16 %v2259
    %v2582 = vunpack.c.l.b16 %v2260
    %v2583 = vunpack.c.h.b16 %v2260
    %v2584 = vunpack.c.l.b16 %v2261
    %v2585 = vunpack.c.h.b16 %v2261
    %v2586 = vunpack.c.l.b16 %v2262
    %v2587 = vunpack.c.h.b16 %v2262
    %v2588 = vunpack.c.l.b16 %v2263
    %v2589 = vunpack.c.h.b16 %v2263
    %v2590 = vunpack.c.l.b16 %v2264
    %v2591 = vunpack.c.h.b16 %v2264
    %v2592 = vunpack.c.l.b16 %v2265
    %v2593 = vunpack.c.h.b16 %v2265
    %v2594 = vunpack.c.l.b16 %v2266
    %v2595 = vunpack.c.h.b16 %v2266
    %v2596 = vunpack.c.l.b16 %v2267
    %v2597 = vunpack.c.h.b16 %v2267
    %v2598 = vunpack.c.l.b16 %v2268
    %v2599 = vunpack.c.h.b16 %v2268
    %v2600 = vunpack.c.l.b16 %v2269
    %v2601 = vunpack.c.h.b16 %v2269
    %v2602 = vunpack.c.l.b16 %v2270
    %v2603 = vunpack.c.h.b16 %v2270
    %v2604 = vunpack.c.l.b16 %v2271
    %v2605 = vunpack.c.h.b16 %v2271
    %v2606 = vunpack.c.l.b16 %v2272
    %v2607 = vunpack.c.h.b16 %v2272
    %v2608 = vunpack.c.l.b16 %v2273
    %v2609 = vunpack.c.h.b16 %v2273
    %v2610 = vunpack.c.l.b16 %v2274
    %v2611 = vunpack.c.h.b16 %v2274
    %v2612 = vunpack.c.l.b16 %v2275
    %v2613 = vunpack.c.h.b16 %v2275
    %v2614 = vunpack.c.l.b16 %v2276
    %v2615 = vunpack.c.h.b16 %v2276
    %v2616 = vunpack.c.l.b16 %v2277
    %v2617 = vunpack.c.h.b16 %v2277
    %v2618 = vunpack.c.l.b16 %v2278
    %v2619 = vunpack.c.h.b16 %v2278
    %v2620 = vunpack.c.l.b16 %v2279
    %v2621 = vunpack.c.h.b16 %v2279
    %v2622 = vunpack.c.l.b16 %v2280
    %v2623 = vunpack.c.h.b16 %v2280
    %v2624 = vunpack.c.l.b16 %v2281
    %v2625 = vunpack.c.h.b16 %v2281
    %v2626 = vunpack.c.l.b16 %v2282
    %v2627 = vunpack.c.h.b16 %v2282
    %v2628 = vunpack.c.l.b16 %v2283
    %v2629 = vunpack.c.h.b16 %v2283
    %v2630 = vunpack.c.l.b16 %v2284
    %v2631 = vunpack.c.h.b16 %v2284
    %v2632 = vunpack.c.l.b16 %v2285
    %v2633 = vunpack.c.h.b16 %v2285
    %v2634 = vunpack.c.l.b16 %v2286
    %v2635 = vunpack.c.h.b16 %v2286
    %v2636 = vunpack.c.l.b16 %v2287
    %v2637 = vunpack.c.h.b16 %v2287
    %v2638 = vunpack.c.l.b16 %v2288
    %v2639 = vunpack.c.h.b16 %v2288
    %v2640 = vunpack.c.l.b16 %v2289
    %v2641 = vunpack.c.h.b16 %v2289
    %v2642 = vunpack.c.l.b16 %v2290
    %v2643 = vunpack.c.h.b16 %v2290
    %v2644 = vunpack.c.l.b16 %v2291
    %v2645 = vunpack.c.h.b16 %v2291
    %v2646 = vunpack.c.l.b16 %v2292
    %v2647 = vunpack.c.h.b16 %v2292
    %v2648 = vunpack.c.l.b16 %v2293
    %v2649 = vunpack.c.h.b16 %v2293
    %v2650 = vunpack.c.l.b16 %v2294
    %v2651 = vunpack.c.h.b16 %v2294
    %v2652 = vunpack.c.l.b16 %v2295
    %v2653 = vunpack.c.h.b16 %v2295
    %v2654 = vunpack.c.l.b16 %v2296
    %v2655 = vunpack.c.h.b16 %v2296
    %v2656 = vunpack.c.l.b16 %v2297
    %v2657 = vunpack.c.h.b16 %v2297
    %v2658 = vunpack.c.l.b16 %v2298
    %v2659 = vunpack.c.h.b16 %v2298
    %v2660 = vunpack.c.l.b16 %v2299
    %v2661 = vunpack.c.h.b16 %v2299
    %v2662 = vunpack.c.l.b16 %v2300
    %v2663 = vunpack.c.h.b16 %v2300
    %v2664 = vunpack.c.l.b16 %v2301
    %v2665 = vunpack.c.h.b16 %v2301
    %v2666 = vunpack.c.l.b16 %v2302
    %v2667 = vunpack.c.h.b16 %v2302
    %v2668 = vunpack.c.l.b16 %v2303
    %v2669 = vunpack.c.h.b16 %v2303
    %v2670 = vunpack.c.l.b16 %v2304
    %v2671 = vunpack.c.h.b16 %v2304
    %v2672 = vunpack.c.l.b16 %v2305
    %v2673 = vunpack.c.h.b16 %v2305
    %v2674 = vunpack.c.l.b16 %v2306
    %v2675 = vunpack.c.h.b16 %v2306
    %v2676 = vunpack.c.l.b16 %v2307
    %v2677 = vunpack.c.h.b16 %v2307
    %v2678 = vunpack.c.l.b16 %v2308
    %v2679 = vunpack.c.h.b16 %v2308
    %v2680 = vunpack.c.l.b16 %v2309
    %v2681 = vunpack.c.h.b16 %v2309
    %v2682 = vunpack.c.l.b16 %v2310
    %v2683 = vunpack.c.h.b16 %v2310
    %v2684 = vunpack.c.l.b16 %v2311
    %v2685 = vunpack.c.h.b16 %v2311
    %v2686 = vunpack.c.l.b16 %v2312
    %v2687 = vunpack.c.h.b16 %v2312
    %v2688 = vunpack.c.l.b16 %v2313
    %v2689 = vunpack.c.h.b16 %v2313
    %v2690 = vunpack.c.l.b16 %v2314
    %v2691 = vunpack.c.h.b16 %v2314
    %v2692 = vunpack.c.l.b16 %v2315
    %v2693 = vunpack.c.h.b16 %v2315
    %v2694 = vunpack.c.l.b16 %v2316
    %v2695 = vunpack.c.h.b16 %v2316
    %v2696 = vunpack.c.l.b16 %v2317
    %v2697 = vunpack.c.h.b16 %v2317
    %v2698 = vunpack.c.l.b16 %v2318
    %v2699 = vunpack.c.h.b16 %v2318
    %v2700 = vunpack.c.l.b16 %v2319
    %v2701 = vunpack.c.h.b16 %v2319
    %v2702 = vunpack.c.l.b16 %v2320
    %v2703 = vunpack.c.h.b16 %v2320
    %v2704 = vunpack.c.l.b16 %v2321
    %v2705 = vunpack.c.h.b16 %v2321
    %v2706 = vunpack.c.l.b16 %v2322
    %v2707 = vunpack.c.h.b16 %v2322
    %v2708 = vunpack.c.l.b16 %v2323
    %v2709 = vunpack.c.h.b16 %v2323
    %v2710 = vunpack.c.l.b16 %v2324
    %v2711 = vunpack.c.h.b16 %v2324
    %v2712 = vunpack.c.l.b16 %v2325
    %v2713 = vunpack.c.h.b16 %v2325
    %v2714 = vunpack.c.l.b16 %v2326
    %v2715 = vunpack.c.h.b16 %v2326
    %v2716 = vunpack.c.l.b16 %v2327
    %v2717 = vunpack.c.h.b16 %v2327
    %v2718 = vunpack.c.l.b16 %v2328
    %v2719 = vunpack.c.h.b16 %v2328
    %v2720 = vunpack.c.l.b16 %v2329
    %v2721 = vunpack.c.h.b16 %v2329
    %v2722 = vunpack.c.l.b16 %v2330
    %v2723 = vunpack.c.h.b16 %v2330
    %v2724 = vunpack.c.l.b16 %v2331
    %v2725 = vunpack.c.h.b16 %v2331
    %v2726 = vunpack.c.l.b16 %v2332
    %v2727 = vunpack.c.h.b16 %v2332
    %v2728 = vunpack.c.l.b16 %v2333
    %v2729 = vunpack.c.h.b16 %v2333
    %v2730 = vunpack.c.l.b16 %v2334
    %v2731 = vunpack.c.h.b16 %v2334
    %v2732 = vunpack.c.l.b16 %v2335
    %v2733 = vunpack.c.h.b16 %v2335
    %v2734 = vunpack.c.l.b16 %v2336
    %v2735 = vunpack.c.h.b16 %v2336
    %v2736 = vunpack.c.l.b16 %v2337
    %v2737 = vunpack.c.h.b16 %v2337
    %v2738 = vunpack.c.l.b16 %v2338
    %v2739 = vunpack.c.h.b16 %v2338
    %v2740 = vunpack.c.l.b16 %v2339
    %v2741 = vunpack.c.h.b16 %v2339
    %v2742 = vunpack.c.l.b16 %v2340
    %v2743 = vunpack.c.h.b16 %v2340
    %v2744 = vunpack.c.l.b16 %v2341
    %v2745 = vunpack.c.h.b16 %v2341
    %v2746 = vunpack.c.l.b16 %v2342
    %v2747 = vunpack.c.h.b16 %v2342
    %v2748 = vunpack.c.l.b16 %v2343
    %v2749 = vunpack.c.h.b16 %v2343
    %v2750 = vpack.c.b16 %v2498, %v2494
    %v2751 = vpack.c.b16 %v2499, %v2495
    %v2752 = vpack.c.b16 %v2500, %v2496
    %v2753 = vpack.c.b16 %v2501, %v2497
    %v2754 = vpack.c.b16 %v2506, %v2502
    %v2755 = vpack.c.b16 %v2507, %v2503
    %v2756 = vpack.c.b16 %v2508, %v2504
    %v2757 = vpack.c.b16 %v2509, %v2505
    %v2758 = vpack.c.b16 %v2514, %v2510
    %v2759 = vpack.c.b16 %v2515, %v2511
    %v2760 = vpack.c.b16 %v2516, %v2512
    %v2761 = vpack.c.b16 %v2517, %v2513
    %v2762 = vpack.c.b16 %v2522, %v2518
    %v2763 = vpack.c.b16 %v2523, %v2519
    %v2764 = vpack.c.b16 %v2524, %v2520
    %v2765 = vpack.c.b16 %v2525, %v2521
    %v2766 = vpack.c.b16 %v2530, %v2526
    %v2767 = vpack.c.b16 %v2531, %v2527
    %v2768 = vpack.c.b16 %v2532, %v2528
    %v2769 = vpack.c.b16 %v2533, %v2529
    %v2770 = vpack.c.b16 %v2538, %v2534
    %v2771 = vpack.c.b16 %v2539, %v2535
    %v2772 = vpack.c.b16 %v2540, %v2536
    %v2773 = vpack.c.b16 %v2541, %v2537
    %v2774 = vpack.c.b16 %v2546, %v2542
    %v2775 = vpack.c.b16 %v2547, %v2543
    %v2776 = vpack.c.b16 %v2548, %v2544
    %v2777 = vpack.c.b16 %v2549, %v2545
    %v2778 = vpack.c.b16 %v2554, %v2550
    %v2779 = vpack.c.b16 %v2555, %v2551
    %v2780 = vpack.c.b16 %v2556, %v2552
    %v2781 = vpack.c.b16 %v2557, %v2553
    %v2782 = vpack.c.b16 %v2562, %v2558
    %v2783 = vpack.c.b16 %v2563, %v2559
    %v2784 = vpack.c.b16 %v2564, %v2560
    %v2785 = vpack.c.b16 %v2565, %v2561
    %v2786 = vpack.c.b16 %v2570, %v2566
    %v2787 = vpack.c.b16 %v2571, %v2567
    %v2788 = vpack.c.b16 %v2572, %v2568
    %v2789 = vpack.c.b16 %v2573, %v2569
    %v2790 = vpack.c.b16 %v2578, %v2574
    %v2791 = vpack.c.b16 %v2579, %v2575
    %v2792 = vpack.c.b16 %v2580, %v2576
    %v2793 = vpack.c.b16 %v2581, %v2577
    %v2794 = vpack.c.b16 %v2586, %v2582
    %v2795 = vpack.c.b16 %v2587, %v2583
    %v2796 = vpack.c.b16 %v2588, %v2584
    %v2797 = vpack.c.b16 %v2589, %v2585
    %v2798 = vpack.c.b16 %v2594, %v2590
    %v2799 = vpack.c.b16 %v2595, %v2591
    %v2800 = vpack.c.b16 %v2596, %v2592
    %v2801 = vpack.c.b16 %v2597, %v2593
    %v2802 = vpack.c.b16 %v2602, %v2598
    %v2803 = vpack.c.b16 %v2603, %v2599
    %v2804 = vpack.c.b16 %v2604, %v2600
    %v2805 = vpack.c.b16 %v2605, %v2601
    %v2806 = vpack.c.b16 %v2610, %v2606
    %v2807 = vpack.c.b16 %v2611, %v2607
    %v2808 = vpack.c.b16 %v2612, %v2608
    %v2809 = vpack.c.b16 %v2613, %v2609
    %v2810 = vpack.c.b16 %v2618, %v2614
    %v2811 = vpack.c.b16 %v2619, %v2615
    %v2812 = vpack.c.b16 %v2620, %v2616
    %v2813 = vpack.c.b16 %v2621, %v2617
    %v2814 = vpack.c.b16 %v2626, %v2622
    %v2815 = vpack.c.b16 %v2627, %v2623
    %v2816 = vpack.c.b16 %v2628, %v2624
    %v2817 = vpack.c.b16 %v2629, %v2625
    %v2818 = vpack.c.b16 %v2634, %v2630
    %v2819 = vpack.c.b16 %v2635, %v2631
    %v2820 = vpack.c.b16 %v2636, %v2632
    %v2821 = vpack.c.b16 %v2637, %v2633
    %v2822 = vpack.c.b16 %v2642, %v2638
    %v2823 = vpack.c.b16 %v2643, %v2639
    %v2824 = vpack.c.b16 %v2644, %v2640
    %v2825 = vpack.c.b16 %v2645, %v2641
    %v2826 = vpack.c.b16 %v2650, %v2646
    %v2827 = vpack.c.b16 %v2651, %v2647
    %v2828 = vpack.c.b16 %v2652, %v2648
    %v2829 = vpack.c.b16 %v2653, %v2649
    %v2830 = vpack.c.b16 %v2658, %v2654
    %v2831 = vpack.c.b16 %v2659, %v2655
    %v2832 = vpack.c.b16 %v2660, %v2656
    %v2833 = vpack.c.b16 %v2661, %v2657
    %v2834 = vpack.c.b16 %v2666, %v2662
    %v2835 = vpack.c.b16 %v2667, %v2663
    %v2836 = vpack.c.b16 %v2668, %v2664
    %v2837 = vpack.c.b16 %v2669, %v2665
    %v2838 = vpack.c.b16 %v2674, %v2670
    %v2839 = vpack.c.b16 %v2675, %v2671
    %v2840 = vpack.c.b16 %v2676, %v2672
    %v2841 = vpack.c.b16 %v2677, %v2673
    %v2842 = vpack.c.b16 %v2682, %v2678
    %v2843 = vpack.c.b16 %v2683, %v2679
    %v2844 = vpack.c.b16 %v2684, %v2680
    %v2845 = vpack.c.b16 %v2685, %v2681
    %v2846 = vpack.c.b16 %v2690, %v2686
    %v2847 = vpack.c.b16 %v2691, %v2687
    %v2848 = vpack.c.b16 %v2692, %v2688
    %v2849 = vpack.c.b16 %v2693, %v2689
    %v2850 = vpack.c.b16 %v2698, %v2694
    %v2851 = vpack.c.b16 %v2699, %v2695
    %v2852 = vpack.c.b16 %v2700, %v2696
    %v2853 = vpack.c.b16 %v2701, %v2697
    %v2854 = vpack.c.b16 %v2706, %v2702
    %v2855 = vpack.c.b16 %v2707, %v2703
    %v2856 = vpack.c.b16 %v2708, %v2704
    %v2857 = vpack.c.b16 %v2709, %v2705
    %v2858 = vpack.c.b16 %v2714, %v2710
    %v2859 = vpack.c.b16 %v2715, %v2711
    %v2860 = vpack.c.b16 %v2716, %v2712
    %v2861 = vpack.c.b16 %v2717, %v2713
    %v2862 = vpack.c.b16 %v2722, %v2718
    %v2863 = vpack.c.b16 %v2723, %v2719
    %v2864 = vpack.c.b16 %v2724, %v2720
    %v2865 = vpack.c.b16 %v2725, %v2721
    %v2866 = vpack.c.b16 %v2730, %v2726
    %v2867 = vpack.c.b16 %v2731, %v2727
    %v2868 = vpack.c.b16 %v2732, %v2728
    %v2869 = vpack.c.b16 %v2733, %v2729
    %v2870 = vpack.c.b16 %v2738, %v2734
    %v2871 = vpack.c.b16 %v2739, %v2735
    %v2872 = vpack.c.b16 %v2740, %v2736
    %v2873 = vpack.c.b16 %v2741, %v2737
    %v2874 = vpack.c.b16 %v2746, %v2742
    %v2875 = vpack.c.b16 %v2747, %v2743
    %v2876 = vpack.c.b16 %v2748, %v2744
    %v2877 = vpack.c.b16 %v2749, %v2745
    %3006 = vmatprep.subr.bf16.mxu0 %v2751
    %3007 = vmatpush1.bf16.msra.mxu0 %v2750
    %3008 = vmatprep.subr.bf16.mxu0 %v2755
    %3009 = vmatpush1.bf16.msra.mxu0 %v2754
    %3010 = vmatprep.subr.bf16.mxu0 %v2759
    %3011 = vmatpush1.bf16.msra.mxu0 %v2758
    %3012 = vmatprep.subr.bf16.mxu0 %v2763
    %3013 = vmatpush1.bf16.msra.mxu0 %v2762
    %3014 = vmatprep.subr.bf16.mxu0 %v2767
    %3015 = vmatpush1.bf16.msra.mxu0 %v2766
    %3016 = vmatprep.subr.bf16.mxu0 %v2771
    %3017 = vmatpush1.bf16.msra.mxu0 %v2770
    %3018 = vmatprep.subr.bf16.mxu0 %v2775
    %3019 = vmatpush1.bf16.msra.mxu0 %v2774
    %3020 = vmatprep.subr.bf16.mxu0 %v2779
    %3021 = vmatpush1.bf16.msra.mxu0 %v2778
    %3022 = vmatprep.subr.bf16.mxu0 %v2783
    %3023 = vmatpush1.bf16.msra.mxu0 %v2782
    %3024 = vmatprep.subr.bf16.mxu0 %v2787
    %3025 = vmatpush1.bf16.msra.mxu0 %v2786
    %3026 = vmatprep.subr.bf16.mxu0 %v2791
    %3027 = vmatpush1.bf16.msra.mxu0 %v2790
    %3028 = vmatprep.subr.bf16.mxu0 %v2795
    %3029 = vmatpush1.bf16.msra.mxu0 %v2794
    %3030 = vmatprep.subr.bf16.mxu0 %v2799
    %3031 = vmatpush1.bf16.msra.mxu0 %v2798
    %3032 = vmatprep.subr.bf16.mxu0 %v2803
    %3033 = vmatpush1.bf16.msra.mxu0 %v2802
    %3034 = vmatprep.subr.bf16.mxu0 %v2807
    %3035 = vmatpush1.bf16.msra.mxu0 %v2806
    %3036 = vmatprep.subr.bf16.mxu0 %v2811
    %3037 = vmatpush1.bf16.msra.mxu0 %v2810
    %3038 = vmatprep.mubr.bf16.mxu0 %v2213
    %3039 = vmatmul.mubr.bf16.gmra.mrb[0].mxu0 %v2212
    %v3040 = vpop.f32.mrb[0].mxu0
    %v3041 = vadd.f32 %v2349, %v3040
    %v3042 = vpop.f32.mrb[0].mxu0
    %v3043 = vadd.f32 %v2353, %v3042
    %v3044 = vpop.f32.mrb[0].mxu0
    %v3045 = vadd.f32 %v2349, %v3044
    %v3046 = vpop.f32.mrb[0].mxu0
    %v3047 = vadd.f32 %v2353, %v3046
    %3048 = vdwg.mxu0
    %3049 = vmatprep.subr.bf16.mxu0 %v2815
    %3050 = vmatpush1.bf16.msra.mxu0 %v2814
    %3051 = vmatprep.subr.bf16.mxu0 %v2819
    %3052 = vmatpush1.bf16.msra.mxu0 %v2818
    %3053 = vmatprep.subr.bf16.mxu0 %v2823
    %3054 = vmatpush1.bf16.msra.mxu0 %v2822
    %3055 = vmatprep.subr.bf16.mxu0 %v2827
    %3056 = vmatpush1.bf16.msra.mxu0 %v2826
    %3057 = vmatprep.subr.bf16.mxu0 %v2831
    %3058 = vmatpush1.bf16.msra.mxu0 %v2830
    %3059 = vmatprep.subr.bf16.mxu0 %v2835
    %3060 = vmatpush1.bf16.msra.mxu0 %v2834
    %3061 = vmatprep.subr.bf16.mxu0 %v2839
    %3062 = vmatpush1.bf16.msra.mxu0 %v2838
    %3063 = vmatprep.subr.bf16.mxu0 %v2843
    %3064 = vmatpush1.bf16.msra.mxu0 %v2842
    %3065 = vmatprep.subr.bf16.mxu0 %v2847
    %3066 = vmatpush1.bf16.msra.mxu0 %v2846
    %3067 = vmatprep.subr.bf16.mxu0 %v2851
    %3068 = vmatpush1.bf16.msra.mxu0 %v2850
    %3069 = vmatprep.subr.bf16.mxu0 %v2855
    %3070 = vmatpush1.bf16.msra.mxu0 %v2854
    %3071 = vmatprep.subr.bf16.mxu0 %v2859
    %3072 = vmatpush1.bf16.msra.mxu0 %v2858
    %3073 = vmatprep.subr.bf16.mxu0 %v2863
    %3074 = vmatpush1.bf16.msra.mxu0 %v2862
    %3075 = vmatprep.subr.bf16.mxu0 %v2867
    %3076 = vmatpush1.bf16.msra.mxu0 %v2866
    %3077 = vmatprep.subr.bf16.mxu0 %v2871
    %3078 = vmatpush1.bf16.msra.mxu0 %v2870
    %3079 = vmatprep.subr.bf16.mxu0 %v2875
    %3080 = vmatpush1.bf16.msra.mxu0 %v2874
    %3081 = vmatprep.mubr.bf16.mxu0 %v2215
    %3082 = vmatmul.mubr.bf16.gmra.mrb[0].mxu0 %v2214
    %v3083 = vpop.f32.mrb[0].mxu0
    %v3084 = vadd.f32 %v3041, %v3083
    %v3085 = vpop.f32.mrb[0].mxu0
    %v3086 = vadd.f32 %v3043, %v3085
    %v3087 = vpop.f32.mrb[0].mxu0
    %v3088 = vadd.f32 %v3045, %v3087
    %v3089 = vpop.f32.mrb[0].mxu0
    %v3090 = vadd.f32 %v3047, %v3089
    %3091 = vdwg.mxu0
    %3092 = vmatprep.subr.bf16.mxu0 %v2753
    %3093 = vmatpush1.bf16.msra.mxu0 %v2752
    %3094 = vmatprep.subr.bf16.mxu0 %v2757
    %3095 = vmatpush1.bf16.msra.mxu0 %v2756
    %3096 = vmatprep.subr.bf16.mxu0 %v2761
    %3097 = vmatpush1.bf16.msra.mxu0 %v2760
    %3098 = vmatprep.subr.bf16.mxu0 %v2765
    %3099 = vmatpush1.bf16.msra.mxu0 %v2764
    %3100 = vmatprep.subr.bf16.mxu0 %v2769
    %3101 = vmatpush1.bf16.msra.mxu0 %v2768
    %3102 = vmatprep.subr.bf16.mxu0 %v2773
    %3103 = vmatpush1.bf16.msra.mxu0 %v2772
    %3104 = vmatprep.subr.bf16.mxu0 %v2777
    %3105 = vmatpush1.bf16.msra.mxu0 %v2776
    %3106 = vmatprep.subr.bf16.mxu0 %v2781
    %3107 = vmatpush1.bf16.msra.mxu0 %v2780
    %3108 = vmatprep.subr.bf16.mxu0 %v2785
    %3109 = vmatpush1.bf16.msra.mxu0 %v2784
    %3110 = vmatprep.subr.bf16.mxu0 %v2789
    %3111 = vmatpush1.bf16.msra.mxu0 %v2788
    %3112 = vmatprep.subr.bf16.mxu0 %v2793
    %3113 = vmatpush1.bf16.msra.mxu0 %v2792
    %3114 = vmatprep.subr.bf16.mxu0 %v2797
    %3115 = vmatpush1.bf16.msra.mxu0 %v2796
    %3116 = vmatprep.subr.bf16.mxu0 %v2801
    %3117 = vmatpush1.bf16.msra.mxu0 %v2800
    %3118 = vmatprep.subr.bf16.mxu0 %v2805
    %3119 = vmatpush1.bf16.msra.mxu0 %v2804
    %3120 = vmatprep.subr.bf16.mxu0 %v2809
    %3121 = vmatpush1.bf16.msra.mxu0 %v2808
    %3122 = vmatprep.subr.bf16.mxu0 %v2813
    %3123 = vmatpush1.bf16.msra.mxu0 %v2812
    %3124 = vmatprep.mubr.bf16.mxu0 %v2213
    %3125 = vmatmul.mubr.bf16.gmra.mrb[0].mxu0 %v2212
    %v3126 = vpop.f32.mrb[0].mxu0
    %v3127 = vadd.f32 %v2357, %v3126
    %v3128 = vpop.f32.mrb[0].mxu0
    %v3129 = vadd.f32 %v2361, %v3128
    %v3130 = vpop.f32.mrb[0].mxu0
    %v3131 = vadd.f32 %v2357, %v3130
    %v3132 = vpop.f32.mrb[0].mxu0
    %v3133 = vadd.f32 %v2361, %v3132
    %3134 = vdwg.mxu0
    %3135 = vmatprep.subr.bf16.mxu0 %v2817
    %3136 = vmatpush1.bf16.msra.mxu0 %v2816
    %3137 = vmatprep.subr.bf16.mxu0 %v2821
    %3138 = vmatpush1.bf16.msra.mxu0 %v2820
    %3139 = vmatprep.subr.bf16.mxu0 %v2825
    %3140 = vmatpush1.bf16.msra.mxu0 %v2824
    %3141 = vmatprep.subr.bf16.mxu0 %v2829
    %3142 = vmatpush1.bf16.msra.mxu0 %v2828
    %3143 = vmatprep.subr.bf16.mxu0 %v2833
    %3144 = vmatpush1.bf16.msra.mxu0 %v2832
    %3145 = vmatprep.subr.bf16.mxu0 %v2837
    %3146 = vmatpush1.bf16.msra.mxu0 %v2836
    %3147 = vmatprep.subr.bf16.mxu0 %v2841
    %3148 = vmatpush1.bf16.msra.mxu0 %v2840
    %3149 = vmatprep.subr.bf16.mxu0 %v2845
    %3150 = vmatpush1.bf16.msra.mxu0 %v2844
    %3151 = vmatprep.subr.bf16.mxu0 %v2849
    %3152 = vmatpush1.bf16.msra.mxu0 %v2848
    %3153 = vmatprep.subr.bf16.mxu0 %v2853
    %3154 = vmatpush1.bf16.msra.mxu0 %v2852
    %3155 = vmatprep.subr.bf16.mxu0 %v2857
    %3156 = vmatpush1.bf16.msra.mxu0 %v2856
    %3157 = vmatprep.subr.bf16.mxu0 %v2861
    %3158 = vmatpush1.bf16.msra.mxu0 %v2860
    %3159 = vmatprep.subr.bf16.mxu0 %v2865
    %3160 = vmatpush1.bf16.msra.mxu0 %v2864
    %3161 = vmatprep.subr.bf16.mxu0 %v2869
    %3162 = vmatpush1.bf16.msra.mxu0 %v2868
    %3163 = vmatprep.subr.bf16.mxu0 %v2873
    %3164 = vmatpush1.bf16.msra.mxu0 %v2872
    %3165 = vmatprep.subr.bf16.mxu0 %v2877
    %3166 = vmatpush1.bf16.msra.mxu0 %v2876
    %3167 = vmatprep.mubr.bf16.mxu0 %v2215
    %3168 = vmatmul.mubr.bf16.gmra.mrb[0].mxu0 %v2214
    %v3169 = vpop.f32.mrb[0].mxu0
    %v3170 = vadd.f32 %v3127, %v3169
    %v3171 = vpop.f32.mrb[0].mxu0
    %v3172 = vadd.f32 %v3129, %v3171
    %v3173 = vpop.f32.mrb[0].mxu0
    %v3174 = vadd.f32 %v3131, %v3173
    %v3175 = vpop.f32.mrb[0].mxu0
    %v3176 = vadd.f32 %v3133, %v3175
    %3177 = vdwg.mxu0
    %v3178 = vpack.c.bf16 %v3088, %v3084
    %v3179 = vpack.c.bf16 %v3090, %v3086
    %v3180 = vpack.c.bf16 %v3174, %v3170
    %v3181 = vpack.c.bf16 %v3176, %v3172
    %vm3182 = vcmp.gt.bf16.partialorder %v3178, 0
    %vm3183 = vcmp.gt.bf16.partialorder %v3179, 0
    %vm3184 = vcmp.gt.bf16.partialorder %v3180, 0
    %vm3185 = vcmp.gt.bf16.partialorder %v3181, 0
    %v3186 = vsel %vm3182, 65537, 0
    %v3187 = vsel %vm3183, 65537, 0
    %v3188 = vsel %vm3184, 65537, 0
    %v3189 = vsel %vm3185, 65537, 0
    %v3190 = vunpack.c.l.b16 %v3186
    %v3191 = vunpack.c.l.b16 %v3187
    %v3192 = vunpack.c.l.b16 %v3188
    %v3193 = vunpack.c.l.b16 %v3189
    %v3194 = vunpack.c.h.b16 %v3186
    %v3195 = vunpack.c.h.b16 %v3187
    %v3196 = vunpack.c.h.b16 %v3188
    %v3197 = vunpack.c.h.b16 %v3189
    %v3198 = vpack.c.b16 %v3191, %v3190
    %v3199 = vpack.c.b16 %v3193, %v3192
    %v3200 = vpack.c.b16 %v3195, %v3194
    %v3201 = vpack.c.b16 %v3197, %v3196
    %vm3202 = vcmp.ne.s16.totalorder %v3198, 0
    %vm3203 = vcmp.ne.s16.totalorder %v3199, 0
    %vm3204 = vcmp.ne.s16.totalorder %v3200, 0
    %vm3205 = vcmp.ne.s16.totalorder %v3201, 0
    %v3206 = vsel %vm3202, 65537, 0
    %v3207 = vsel %vm3203, 65537, 0
    %v3208 = vsel %vm3204, 65537, 0
    %v3209 = vsel %vm3205, 65537, 0
    %v3210 = vunpack.c.l.b16 %v3206
    %v3211 = vunpack.c.h.b16 %v3206
    %v3212 = vunpack.c.l.b16 %v3207
    %v3213 = vunpack.c.h.b16 %v3207
    %v3214 = vunpack.c.l.b16 %v3208
    %v3215 = vunpack.c.h.b16 %v3208
    %v3216 = vunpack.c.l.b16 %v3209
    %v3217 = vunpack.c.h.b16 %v3209
    %vm3218 = vcmp.ne.s32.totalorder %v3210, 0
    %vm3219 = vcmp.ne.s32.totalorder %v3211, 0
    %vm3220 = vcmp.ne.s32.totalorder %v3212, 0
    %vm3221 = vcmp.ne.s32.totalorder %v3213, 0
    %vm3222 = vcmp.ne.s32.totalorder %v3214, 0
    %vm3223 = vcmp.ne.s32.totalorder %v3215, 0
    %vm3224 = vcmp.ne.s32.totalorder %v3216, 0
    %vm3225 = vcmp.ne.s32.totalorder %v3217, 0
    %vm3226 = vmand %vm242, %vm3218
    %vm3227 = vmand %vm243, %vm3219
    %vm3228 = vmand %vm244, %vm3220
    %vm3229 = vmand %vm245, %vm3221
    %vm3230 = vmand %vm246, %vm3222
    %vm3231 = vmand %vm247, %vm3223
    %vm3232 = vmand %vm248, %vm3224
    %vm3233 = vmand %vm249, %vm3225
    %vm3234 = vmpackc.low %vm3230, %vm3226
    %vm3235 = vmpackc.low %vm3231, %vm3227
    %vm3236 = vmpackc.low %vm3232, %vm3228
    %vm3237 = vmpackc.low %vm3233, %vm3229
    %v3238 = vsel %vm3234, %v3178, 0
    %v3239 = vsel %vm3235, %v3179, 0
    %v3240 = vsel %vm3236, %v3180, 0
    %v3241 = vsel %vm3237, %v3181, 0
    %v3242 = vld [vmem:[#allocation9] sm:$0xf]
    %v3243 = vld [vmem:[#allocation9 + $0x4] sm:$0xf]
    %v3244 = vld [vmem:[#allocation9 + $0x8] sm:$0xf]
    %v3245 = vld [vmem:[#allocation9 + $0xc] sm:$0xf]
    %v3246 = vld [vmem:[#allocation9 + $0x10] sm:$0xf]
    %v3247 = vld [vmem:[#allocation9 + $0x14] sm:$0xf]
    %v3248 = vld [vmem:[#allocation9 + $0x18] sm:$0xf]
    %v3249 = vld [vmem:[#allocation9 + $0x1c] sm:$0xf]
    %v3250 = vld [vmem:[#allocation9 + $0x20] sm:$0xf]
    %v3251 = vld [vmem:[#allocation9 + $0x24] sm:$0xf]
    %v3252 = vld [vmem:[#allocation9 + $0x28] sm:$0xf]
    %v3253 = vld [vmem:[#allocation9 + $0x2c] sm:$0xf]
    %v3254 = vld [vmem:[#allocation9 + $0x30] sm:$0xf]
    %v3255 = vld [vmem:[#allocation9 + $0x34] sm:$0xf]
    %v3256 = vld [vmem:[#allocation9 + $0x38] sm:$0xf]
    %v3257 = vld [vmem:[#allocation9 + $0x3c] sm:$0xf]
    %v3258 = vld [vmem:[#allocation9 + $0x40] sm:$0xf]
    %v3259 = vld [vmem:[#allocation9 + $0x44] sm:$0xf]
    %v3260 = vld [vmem:[#allocation9 + $0x48] sm:$0xf]
    %v3261 = vld [vmem:[#allocation9 + $0x4c] sm:$0xf]
    %v3262 = vld [vmem:[#allocation9 + $0x50] sm:$0xf]
    %v3263 = vld [vmem:[#allocation9 + $0x54] sm:$0xf]
    %v3264 = vld [vmem:[#allocation9 + $0x58] sm:$0xf]
    %v3265 = vld [vmem:[#allocation9 + $0x5c] sm:$0xf]
    %v3266 = vld [vmem:[#allocation9 + $0x60] sm:$0xf]
    %v3267 = vld [vmem:[#allocation9 + $0x64] sm:$0xf]
    %v3268 = vld [vmem:[#allocation9 + $0x68] sm:$0xf]
    %v3269 = vld [vmem:[#allocation9 + $0x6c] sm:$0xf]
    %v3270 = vld [vmem:[#allocation9 + $0x70] sm:$0xf]
    %v3271 = vld [vmem:[#allocation9 + $0x74] sm:$0xf]
    %v3272 = vld [vmem:[#allocation9 + $0x78] sm:$0xf]
    %v3273 = vld [vmem:[#allocation9 + $0x7c] sm:$0xf]
    %v3274 = vld [vmem:[#allocation9 + $0x80] sm:$0xf]
    %v3275 = vld [vmem:[#allocation9 + $0x84] sm:$0xf]
    %v3276 = vld [vmem:[#allocation9 + $0x88] sm:$0xf]
    %v3277 = vld [vmem:[#allocation9 + $0x8c] sm:$0xf]
    %v3278 = vld [vmem:[#allocation9 + $0x90] sm:$0xf]
    %v3279 = vld [vmem:[#allocation9 + $0x94] sm:$0xf]
    %v3280 = vld [vmem:[#allocation9 + $0x98] sm:$0xf]
    %v3281 = vld [vmem:[#allocation9 + $0x9c] sm:$0xf]
    %v3282 = vld [vmem:[#allocation9 + $0xa0] sm:$0xf]
    %v3283 = vld [vmem:[#allocation9 + $0xa4] sm:$0xf]
    %v3284 = vld [vmem:[#allocation9 + $0xa8] sm:$0xf]
    %v3285 = vld [vmem:[#allocation9 + $0xac] sm:$0xf]
    %v3286 = vld [vmem:[#allocation9 + $0xb0] sm:$0xf]
    %v3287 = vld [vmem:[#allocation9 + $0xb4] sm:$0xf]
    %v3288 = vld [vmem:[#allocation9 + $0xb8] sm:$0xf]
    %v3289 = vld [vmem:[#allocation9 + $0xbc] sm:$0xf]
    %v3290 = vld [vmem:[#allocation9 + $0xc0] sm:$0xf]
    %v3291 = vld [vmem:[#allocation9 + $0xc4] sm:$0xf]
    %v3292 = vld [vmem:[#allocation9 + $0xc8] sm:$0xf]
    %v3293 = vld [vmem:[#allocation9 + $0xcc] sm:$0xf]
    %v3294 = vld [vmem:[#allocation9 + $0xd0] sm:$0xf]
    %v3295 = vld [vmem:[#allocation9 + $0xd4] sm:$0xf]
    %v3296 = vld [vmem:[#allocation9 + $0xd8] sm:$0xf]
    %v3297 = vld [vmem:[#allocation9 + $0xdc] sm:$0xf]
    %v3298 = vld [vmem:[#allocation9 + $0xe0] sm:$0xf]
    %v3299 = vld [vmem:[#allocation9 + $0xe4] sm:$0xf]
    %v3300 = vld [vmem:[#allocation9 + $0xe8] sm:$0xf]
    %v3301 = vld [vmem:[#allocation9 + $0xec] sm:$0xf]
    %v3302 = vld [vmem:[#allocation9 + $0xf0] sm:$0xf]
    %v3303 = vld [vmem:[#allocation9 + $0xf4] sm:$0xf]
    %v3304 = vld [vmem:[#allocation9 + $0xf8] sm:$0xf]
    %v3305 = vld [vmem:[#allocation9 + $0xfc] sm:$0xf]
    %v3306 = vld [vmem:[%s7] sm:$0x1]
    %v3308 = vlaneseq
    %v3309 = vshrl.u32 %v3308, 7
    %v3310 = vsub.s32 0, %v3309
    %v3311 = vrot.slane %v3306, %v3310
    %v3377 = vunpack.c.l.b16 %v3242
    %v3378 = vunpack.c.l.b16 %v3243
    %v3379 = vunpack.c.l.b16 %v3244
    %v3380 = vunpack.c.l.b16 %v3245
    %v3381 = vunpack.c.l.b16 %v3246
    %v3382 = vunpack.c.l.b16 %v3247
    %v3383 = vunpack.c.l.b16 %v3248
    %v3384 = vunpack.c.l.b16 %v3249
    %v3385 = vunpack.c.l.b16 %v3250
    %v3386 = vunpack.c.l.b16 %v3251
    %v3387 = vunpack.c.l.b16 %v3252
    %v3388 = vunpack.c.l.b16 %v3253
    %v3389 = vunpack.c.l.b16 %v3254
    %v3390 = vunpack.c.l.b16 %v3255
    %v3391 = vunpack.c.l.b16 %v3256
    %v3392 = vunpack.c.l.b16 %v3257
    %v3393 = vunpack.c.l.b16 %v3258
    %v3394 = vunpack.c.l.b16 %v3259
    %v3395 = vunpack.c.l.b16 %v3260
    %v3396 = vunpack.c.l.b16 %v3261
    %v3397 = vunpack.c.l.b16 %v3262
    %v3398 = vunpack.c.l.b16 %v3263
    %v3399 = vunpack.c.l.b16 %v3264
    %v3400 = vunpack.c.l.b16 %v3265
    %v3401 = vunpack.c.l.b16 %v3266
    %v3402 = vunpack.c.l.b16 %v3267
    %v3403 = vunpack.c.l.b16 %v3268
    %v3404 = vunpack.c.l.b16 %v3269
    %v3405 = vunpack.c.l.b16 %v3270
    %v3406 = vunpack.c.l.b16 %v3271
    %v3407 = vunpack.c.l.b16 %v3272
    %v3408 = vunpack.c.l.b16 %v3273
    %v3409 = vunpack.c.l.b16 %v3274
    %v3410 = vunpack.c.l.b16 %v3275
    %v3411 = vunpack.c.l.b16 %v3276
    %v3412 = vunpack.c.l.b16 %v3277
    %v3413 = vunpack.c.l.b16 %v3278
    %v3414 = vunpack.c.l.b16 %v3279
    %v3415 = vunpack.c.l.b16 %v3280
    %v3416 = vunpack.c.l.b16 %v3281
    %v3417 = vunpack.c.l.b16 %v3282
    %v3418 = vunpack.c.l.b16 %v3283
    %v3419 = vunpack.c.l.b16 %v3284
    %v3420 = vunpack.c.l.b16 %v3285
    %v3421 = vunpack.c.l.b16 %v3286
    %v3422 = vunpack.c.l.b16 %v3287
    %v3423 = vunpack.c.l.b16 %v3288
    %v3424 = vunpack.c.l.b16 %v3289
    %v3425 = vunpack.c.l.b16 %v3290
    %v3426 = vunpack.c.l.b16 %v3291
    %v3427 = vunpack.c.l.b16 %v3292
    %v3428 = vunpack.c.l.b16 %v3293
    %v3429 = vunpack.c.l.b16 %v3294
    %v3430 = vunpack.c.l.b16 %v3295
    %v3431 = vunpack.c.l.b16 %v3296
    %v3432 = vunpack.c.l.b16 %v3297
    %v3433 = vunpack.c.l.b16 %v3298
    %v3434 = vunpack.c.l.b16 %v3299
    %v3435 = vunpack.c.l.b16 %v3300
    %v3436 = vunpack.c.l.b16 %v3301
    %v3437 = vunpack.c.l.b16 %v3302
    %v3438 = vunpack.c.l.b16 %v3303
    %v3439 = vunpack.c.l.b16 %v3304
    %v3440 = vunpack.c.l.b16 %v3305
    %v3441 = vpack.c.b16 %v3378, %v3377
    %v3442 = vpack.c.b16 %v3380, %v3379
    %v3443 = vpack.c.b16 %v3382, %v3381
    %v3444 = vpack.c.b16 %v3384, %v3383
    %v3445 = vpack.c.b16 %v3386, %v3385
    %v3446 = vpack.c.b16 %v3388, %v3387
    %v3447 = vpack.c.b16 %v3390, %v3389
    %v3448 = vpack.c.b16 %v3392, %v3391
    %v3449 = vpack.c.b16 %v3394, %v3393
    %v3450 = vpack.c.b16 %v3396, %v3395
    %v3451 = vpack.c.b16 %v3398, %v3397
    %v3452 = vpack.c.b16 %v3400, %v3399
    %v3453 = vpack.c.b16 %v3402, %v3401
    %v3454 = vpack.c.b16 %v3404, %v3403
    %v3455 = vpack.c.b16 %v3406, %v3405
    %v3456 = vpack.c.b16 %v3408, %v3407
    %v3457 = vpack.c.b16 %v3410, %v3409
    %v3458 = vpack.c.b16 %v3412, %v3411
    %v3459 = vpack.c.b16 %v3414, %v3413
    %v3460 = vpack.c.b16 %v3416, %v3415
    %v3461 = vpack.c.b16 %v3418, %v3417
    %v3462 = vpack.c.b16 %v3420, %v3419
    %v3463 = vpack.c.b16 %v3422, %v3421
    %v3464 = vpack.c.b16 %v3424, %v3423
    %v3465 = vpack.c.b16 %v3426, %v3425
    %v3466 = vpack.c.b16 %v3428, %v3427
    %v3467 = vpack.c.b16 %v3430, %v3429
    %v3468 = vpack.c.b16 %v3432, %v3431
    %v3469 = vpack.c.b16 %v3434, %v3433
    %v3470 = vpack.c.b16 %v3436, %v3435
    %v3471 = vpack.c.b16 %v3438, %v3437
    %v3472 = vpack.c.b16 %v3440, %v3439
    %3505 = vmatprep.subr.bf16.mxu0 0
    %3506 = vmatpush1.bf16.msra.mxu0 %v3441
    %3507 = vmatprep.subr.bf16.mxu0 0
    %3508 = vmatpush1.bf16.msra.mxu0 %v3442
    %3509 = vmatprep.subr.bf16.mxu0 0
    %3510 = vmatpush1.bf16.msra.mxu0 %v3443
    %3511 = vmatprep.subr.bf16.mxu0 0
    %3512 = vmatpush1.bf16.msra.mxu0 %v3444
    %3513 = vmatprep.subr.bf16.mxu0 0
    %3514 = vmatpush1.bf16.msra.mxu0 %v3445
    %3515 = vmatprep.subr.bf16.mxu0 0
    %3516 = vmatpush1.bf16.msra.mxu0 %v3446
    %3517 = vmatprep.subr.bf16.mxu0 0
    %3518 = vmatpush1.bf16.msra.mxu0 %v3447
    %3519 = vmatprep.subr.bf16.mxu0 0
    %3520 = vmatpush1.bf16.msra.mxu0 %v3448
    %3521 = vmatprep.subr.bf16.mxu0 0
    %3522 = vmatpush1.bf16.msra.mxu0 %v3449
    %3523 = vmatprep.subr.bf16.mxu0 0
    %3524 = vmatpush1.bf16.msra.mxu0 %v3450
    %3525 = vmatprep.subr.bf16.mxu0 0
    %3526 = vmatpush1.bf16.msra.mxu0 %v3451
    %3527 = vmatprep.subr.bf16.mxu0 0
    %3528 = vmatpush1.bf16.msra.mxu0 %v3452
    %3529 = vmatprep.subr.bf16.mxu0 0
    %3530 = vmatpush1.bf16.msra.mxu0 %v3453
    %3531 = vmatprep.subr.bf16.mxu0 0
    %3532 = vmatpush1.bf16.msra.mxu0 %v3454
    %3533 = vmatprep.subr.bf16.mxu0 0
    %3534 = vmatpush1.bf16.msra.mxu0 %v3455
    %3535 = vmatprep.subr.bf16.mxu0 0
    %3536 = vmatpush1.bf16.msra.mxu0 %v3456
    %3537 = vmatprep.mubr.bf16.mxu0 %v3239
    %3538 = vmatmul.mubr.bf16.gmra.mrb[0].mxu0 %v3238
    %v3539 = vpop.f32.mrb[0].mxu0
    %v3540 = vadd.f32 %v3311, %v3539
    %v3541 = vpop.f32.mrb[0].mxu0
    %v3542 = vpop.f32.mrb[0].mxu0
    %v3543 = vadd.f32 %v3311, %v3542
    %v3544 = vpop.f32.mrb[0].mxu0
    %3545 = vdwg.mxu0
    %3546 = vmatprep.subr.bf16.mxu0 0
    %3547 = vmatpush1.bf16.msra.mxu0 %v3457
    %3548 = vmatprep.subr.bf16.mxu0 0
    %3549 = vmatpush1.bf16.msra.mxu0 %v3458
    %3550 = vmatprep.subr.bf16.mxu0 0
    %3551 = vmatpush1.bf16.msra.mxu0 %v3459
    %3552 = vmatprep.subr.bf16.mxu0 0
    %3553 = vmatpush1.bf16.msra.mxu0 %v3460
    %3554 = vmatprep.subr.bf16.mxu0 0
    %3555 = vmatpush1.bf16.msra.mxu0 %v3461
    %3556 = vmatprep.subr.bf16.mxu0 0
    %3557 = vmatpush1.bf16.msra.mxu0 %v3462
    %3558 = vmatprep.subr.bf16.mxu0 0
    %3559 = vmatpush1.bf16.msra.mxu0 %v3463
    %3560 = vmatprep.subr.bf16.mxu0 0
    %3561 = vmatpush1.bf16.msra.mxu0 %v3464
    %3562 = vmatprep.subr.bf16.mxu0 0
    %3563 = vmatpush1.bf16.msra.mxu0 %v3465
    %3564 = vmatprep.subr.bf16.mxu0 0
    %3565 = vmatpush1.bf16.msra.mxu0 %v3466
    %3566 = vmatprep.subr.bf16.mxu0 0
    %3567 = vmatpush1.bf16.msra.mxu0 %v3467
    %3568 = vmatprep.subr.bf16.mxu0 0
    %3569 = vmatpush1.bf16.msra.mxu0 %v3468
    %3570 = vmatprep.subr.bf16.mxu0 0
    %3571 = vmatpush1.bf16.msra.mxu0 %v3469
    %3572 = vmatprep.subr.bf16.mxu0 0
    %3573 = vmatpush1.bf16.msra.mxu0 %v3470
    %3574 = vmatprep.subr.bf16.mxu0 0
    %3575 = vmatpush1.bf16.msra.mxu0 %v3471
    %3576 = vmatprep.subr.bf16.mxu0 0
    %3577 = vmatpush1.bf16.msra.mxu0 %v3472
    %3578 = vmatprep.mubr.bf16.mxu0 %v3241
    %3579 = vmatmul.mubr.bf16.gmra.mrb[0].mxu0 %v3240
    %v3580 = vpop.f32.mrb[0].mxu0
    %v3581 = vadd.f32 %v3540, %v3580
    %v3582 = vpop.f32.mrb[0].mxu0
    %v3583 = vpop.f32.mrb[0].mxu0
    %v3584 = vadd.f32 %v3543, %v3583
    %v3585 = vpop.f32.mrb[0].mxu0
    %3586 = vdwg.mxu0
    %3587 = vmax.xlane.f32.xlu0 %v3581
    %v3588 = vpop.xlane.xlu0 %3587
    %3589 = vmax.xlane.f32.xlu0 %v3584
    %v3590 = vpop.xlane.xlu0 %3589
    %v3591 = vsub.f32 %v3581, %v3588
    %v3592 = vsub.f32 %v3584, %v3590
    %v3593 = vmul.f32 %v3591, 1.442695
    %v3594 = vpow.pop %v3593
    %v3595 = vmul.f32 %v3592, 1.442695
    %v3596 = vpow.pop %v3595
    %3597 = vadd.xlane.f32.xlu0 %v3594
    %v3598 = vpop.xlane.xlu0 %3597
    %3599 = vadd.xlane.f32.xlu0 %v3596
    %v3600 = vpop.xlane.xlu0 %3599
    %v3601 = vrcp.pop %v3598
    %v3602 = vmul.f32 %v3594, %v3601
    %v3603 = vrcp.pop %v3600
    %v3604 = vmul.f32 %v3596, %v3603
    %v3605 = vpack.c.bf16 %v3604, %v3602
    %v3607 = vunpack.c.l.b16 %v3605
    %v3608 = vunpack.c.h.b16 %v3605
    %v3609 = vpack.c.b16 %v3607, %v3607
    %v3610 = vpack.c.b16 %v3608, %v3608
    %3613 = vst [vmem:[#allocation11] sm:$0xf] %v3609
    %3614 = vst [vmem:[#allocation11 + $0x4] sm:$0xf] %v3610
    // Predicated region
    $region50: #{tpu_custom_call.1} parent=1 // pred_check
      _
    $region51: #{tpu_custom_call.1} parent=1 // pred_check_branch
      %3616 = sbr.rel (0) target = $region53
    $region52: #{tpu_custom_call.1} parent=1 // pred_region
      %s3618 = ssub.s32 128, 128
      %3619 = vsyncadd [#allocation5], %s3618
      %s3620 = sshll.u32 [#allocation11], 4
      %s3621 = int_to_ptr.vmem [resolvable:$true] %s3620
      %3626 = dma.vmem_to_hbm [thread:$0]  %s3621, 128, %s8, [#allocation5], 64, 64, 4
    $region53: #{tpu_custom_call.1} parent=1 // pred_fallthru
      _
    // Predicated region
    $region54: #{tpu_custom_call.1} parent=1 // pred_check
      _
    $region55: #{tpu_custom_call.1} parent=1 // pred_check_branch
      %3628 = sbr.rel (0) target = $region57
    $region56: #{tpu_custom_call.1} parent=1 // pred_region
      %3629 = dma.done [#allocation5], 128
    $region57: #{tpu_custom_call.1} parent=1 // pred_fallthru
      _
    %3630 = vsyncpa [#allocation4], 1
    %3631 = vsyncpa [#allocation7], 1
    %3632 = vsyncpa [#allocation10], 1
    %3633 = vsyncpa [#allocation5], 1

// kernel: tpu_custom_call.1
$region0: #{tpu_custom_call.1}
  #allocation0 [shape = 'u32[]', space=smem, size = 0x4, offset = 0x4, fixed_abs, tag = 'smem constant byte address 0x4 - core index']
  #allocation1 [shape = 'u32[144,128]{1,0:T(1,128)}', space=vmem, size = 0x12000, scoped, tag = 'internal scratch']
  #allocation2 [shape = 's32[1]{0:T(128)S(6)}', space=smem, size = 0x200, scoped, tag = 'scoped memory for tpu_custom_call.1']
  %s0 = inlined_call_operand.<no memory space> [shape: s32[1], index: 0, kind: input, shape index: {}]
  %s1 = inlined_call_operand.hbm [shape: f32[16,1024], index: 1, kind: input, shape index: {}]
  %s2 = inlined_call_operand.hbm [shape: bf16[1024,512], index: 2, kind: input, shape index: {}]
  %s3 = inlined_call_operand.vmem [shape: f32[1,512], index: 3, kind: input, shape index: {}]
  %s4 = inlined_call_operand.hbm [shape: bf16[512,512], index: 4, kind: input, shape index: {}]
  %s5 = inlined_call_operand.vmem [shape: f32[1,512], index: 5, kind: input, shape index: {}]
  %s6 = inlined_call_operand.hbm [shape: bf16[512,128], index: 6, kind: input, shape index: {}]
  %s7 = inlined_call_operand.vmem [shape: f32[1,128], index: 7, kind: input, shape index: {}]
  %s8 = inlined_call_operand.hbm [shape: bf16[16,128], index: 8, kind: output, shape index: {}]
  %s9 = sld [smem:[#allocation0]]
  $region58: #{tpu_custom_call.1} parent=0
    _
  %s11 = ssub.s32 1, %s9
  %s12 = scalar_select 0, %s11, %s9
  %13 = sst [smem:[#allocation2]] %s0
  $region1: #{tpu_custom_call.1} parent=0
    #allocation3 [shape = 'u8[65536]{0}', space=vmem, size = 0x10000, scoped, tag = 'input window, operand 1, single buffered']
    #allocation4 [shape = 's32[1]{0}', space=sflag, size = 0x4, scoped, tag = 'scoped memory for tpu_custom_call.1']
    #allocation5 [shape = 's32[1]{0}', space=sflag, size = 0x4, scoped, tag = 'scoped memory for tpu_custom_call.1']
    #allocation6 [shape = 'u8[1048576]{0}', space=vmem, size = 0x100000, scoped, tag = 'input window, operand 2, single buffered']
    #allocation7 [shape = 's32[1]{0}', space=sflag, size = 0x4, scoped, tag = 'scoped memory for tpu_custom_call.1']
    #allocation8 [shape = 'u8[524288]{0}', space=vmem, size = 0x80000, scoped, tag = 'input window, operand 4, single buffered']
    #allocation9 [shape = 'u8[131072]{0}', space=vmem, size = 0x20000, scoped, tag = 'input window, operand 6, single buffered']
    #allocation10 [shape = 's32[1]{0}', space=sflag, size = 0x4, scoped, tag = 'scoped memory for tpu_custom_call.1']
    #allocation11 [shape = 'u8[4096]{0}', space=vmem, size = 0x1000, scoped, tag = 'output window, operand 0, single buffered']
    %14 = vsyncpa [#allocation4], 0
    %15 = vsyncpa [#allocation7], 0
    %16 = vsyncpa [#allocation10], 0
    %17 = vsyncpa [#allocation5], 0
    // Predicated region
    $region2: #{tpu_custom_call.1} parent=1 // pred_check
      _
    $region3: #{tpu_custom_call.1} parent=1 // pred_check_branch
      %19 = sbr.rel (0) target = $region5
    $region4: #{tpu_custom_call.1} parent=1 // pred_region
      _
    $region5: #{tpu_custom_call.1} parent=1 // pred_fallthru
      _
    // Predicated region
    $region6: #{tpu_custom_call.1} parent=1 // pred_check
      _
    $region7: #{tpu_custom_call.1} parent=1 // pred_check_branch
      %21 = sbr.rel (0) target = $region9
    $region8: #{tpu_custom_call.1} parent=1 // pred_region
      %s23 = ssub.s32 2048, 2048
      %24 = vsyncadd [#allocation4], %s23
      %s25 = sshll.u32 [#allocation3], 4
      %s26 = int_to_ptr.vmem [resolvable:$true] %s25
      %31 = dma.hbm_to_vmem [thread:$0]  %s1, 2048, %s26, [#allocation4], 1024, 1024, 64
    $region9: #{tpu_custom_call.1} parent=1 // pred_fallthru
      _
    // Predicated region
    $region10: #{tpu_custom_call.1} parent=1 // pred_check
      _
    $region11: #{tpu_custom_call.1} parent=1 // pred_check_branch
      %33 = sbr.rel (0) target = $region13
    $region12: #{tpu_custom_call.1} parent=1 // pred_region
      %s35 = ssub.s32 32768, 32768
      %36 = vsyncadd [#allocation7], %s35
      %s37 = sshll.u32 [#allocation6], 4
      %s38 = int_to_ptr.vmem [resolvable:$true] %s37
      %43 = dma.hbm_to_vmem [thread:$0]  %s2, 32768, %s38, [#allocation7], 256, 256, 16
    $region13: #{tpu_custom_call.1} parent=1 // pred_fallthru
      _
    // Predicated region
    $region14: #{tpu_custom_call.1} parent=1 // pred_check
      _
    $region15: #{tpu_custom_call.1} parent=1 // pred_check_branch
      %45 = sbr.rel (0) target = $region17
    $region16: #{tpu_custom_call.1} parent=1 // pred_region
      _
    $region17: #{tpu_custom_call.1} parent=1 // pred_fallthru
      _
    // Predicated region
    $region18: #{tpu_custom_call.1} parent=1 // pred_check
      _
    $region19: #{tpu_custom_call.1} parent=1 // pred_check_branch
      %47 = sbr.rel (0) target = $region21
    $region20: #{tpu_custom_call.1} parent=1 // pred_region
      %s49 = ssub.s32 16384, 16384
      %50 = vsyncadd [#allocation7], %s49
      %s51 = sshll.u32 [#allocation8], 4
      %s52 = int_to_ptr.vmem [resolvable:$true] %s51
      %57 = dma.hbm_to_vmem [thread:$0]  %s4, 16384, %s52, [#allocation7], 256, 256, 16
    $region21: #{tpu_custom_call.1} parent=1 // pred_fallthru
      _
    // Predicated region
    $region22: #{tpu_custom_call.1} parent=1 // pred_check
      _
    $region23: #{tpu_custom_call.1} parent=1 // pred_check_branch
      %59 = sbr.rel (0) target = $region25
    $region24: #{tpu_custom_call.1} parent=1 // pred_region
      _
    $region25: #{tpu_custom_call.1} parent=1 // pred_fallthru
      _
    // Predicated region
    $region26: #{tpu_custom_call.1} parent=1 // pred_check
      _
    $region27: #{tpu_custom_call.1} parent=1 // pred_check_branch
      %61 = sbr.rel (0) target = $region29
    $region28: #{tpu_custom_call.1} parent=1 // pred_region
      %s63 = ssub.s32 4096, 4096
      %64 = vsyncadd [#allocation10], %s63
      %s65 = sshll.u32 [#allocation9], 4
      %s66 = int_to_ptr.vmem [resolvable:$true] %s65
      %71 = dma.hbm_to_vmem [thread:$0]  %s6, 4096, %s66, [#allocation10], 64, 64, 4
    $region29: #{tpu_custom_call.1} parent=1 // pred_fallthru
      _
    // Predicated region
    $region30: #{tpu_custom_call.1} parent=1 // pred_check
      _
    $region31: #{tpu_custom_call.1} parent=1 // pred_check_branch
      %73 = sbr.rel (0) target = $region33
    $region32: #{tpu_custom_call.1} parent=1 // pred_region
      _
    $region33: #{tpu_custom_call.1} parent=1 // pred_fallthru
      _
    // Predicated region
    $region34: #{tpu_custom_call.1} parent=1 // pred_check
      _
    $region35: #{tpu_custom_call.1} parent=1 // pred_check_branch
      %75 = sbr.rel (0) target = $region37
    $region36: #{tpu_custom_call.1} parent=1 // pred_region
      %76 = dma.done [#allocation4], 2048
    $region37: #{tpu_custom_call.1} parent=1 // pred_fallthru
      _
    // Predicated region
    $region38: #{tpu_custom_call.1} parent=1 // pred_check
      _
    $region39: #{tpu_custom_call.1} parent=1 // pred_check_branch
      %78 = sbr.rel (0) target = $region41
    $region40: #{tpu_custom_call.1} parent=1 // pred_region
      %79 = dma.done [#allocation7], 32768
    $region41: #{tpu_custom_call.1} parent=1 // pred_fallthru
      _
    // Predicated region
    $region42: #{tpu_custom_call.1} parent=1 // pred_check
      _
    $region43: #{tpu_custom_call.1} parent=1 // pred_check_branch
      %81 = sbr.rel (0) target = $region45
    $region44: #{tpu_custom_call.1} parent=1 // pred_region
      %82 = dma.done [#allocation7], 16384
    $region45: #{tpu_custom_call.1} parent=1 // pred_fallthru
      _
    // Predicated region
    $region46: #{tpu_custom_call.1} parent=1 // pred_check
      _
    $region47: #{tpu_custom_call.1} parent=1 // pred_check_branch
      %84 = sbr.rel (0) target = $region49
    $region48: #{tpu_custom_call.1} parent=1 // pred_region
      %85 = dma.done [#allocation10], 4096
    $region49: #{tpu_custom_call.1} parent=1 // pred_fallthru
      _
    %v89 = vld [vmem:[#allocation3] sm:$0xff]
    %v90 = vld [vmem:[#allocation3 + $0x8] sm:$0xff]
    %v91 = vld [vmem:[#allocation3 + $0x10] sm:$0xff]
    %v92 = vld [vmem:[#allocation3 + $0x18] sm:$0xff]
    %v93 = vld [vmem:[#allocation3 + $0x20] sm:$0xff]
    %v94 = vld [vmem:[#allocation3 + $0x28] sm:$0xff]
    %v95 = vld [vmem:[#allocation3 + $0x30] sm:$0xff]
    %v96 = vld [vmem:[#allocation3 + $0x38] sm:$0xff]
    %v97 = vld [vmem:[#allocation3 + $0x40] sm:$0xff]
    %v98 = vld [vmem:[#allocation3 + $0x48] sm:$0xff]
    %v99 = vld [vmem:[#allocation3 + $0x50] sm:$0xff]
    %v100 = vld [vmem:[#allocation3 + $0x58] sm:$0xff]
    %v101 = vld [vmem:[#allocation3 + $0x60] sm:$0xff]
    %v102 = vld [vmem:[#allocation3 + $0x68] sm:$0xff]
    %v103 = vld [vmem:[#allocation3 + $0x70] sm:$0xff]
    %v104 = vld [vmem:[#allocation3 + $0x78] sm:$0xff]
    %v105 = vpack.c.bf16 %v97, %v89
    %v106 = vpack.c.bf16 %v98, %v90
    %v107 = vpack.c.bf16 %v99, %v91
    %v108 = vpack.c.bf16 %v100, %v92
    %v109 = vpack.c.bf16 %v101, %v93
    %v110 = vpack.c.bf16 %v102, %v94
    %v111 = vpack.c.bf16 %v103, %v95
    %v112 = vpack.c.bf16 %v104, %v96
    %s113 = smul.u32 0, 16
    %s114 = sld [smem:[#allocation2]]
    %v115 = vlaneseq
    %v116 = vshrl.u32 %v115, 7
    %v117 = vadd.s32 %v116, 8
    %v118 = vstv %s113
    %v119 = vadd.s32 %v116, %v118
    %v120 = vadd.s32 %v117, %v118
    %v121 = vlaneseq
    %v122 = vand.u32 %v121, 127
    %v123 = vadd.s32 %v122, 128
    %v124 = vadd.s32 %v122, 256
    %v125 = vadd.s32 %v122, 384
    %v126 = vmul.u32 %v119, 512
    %v127 = vmul.u32 %v120, 512
    %v128 = vadd.s32 %v126, %v122
    %v129 = vadd.s32 %v126, %v123
    %v130 = vadd.s32 %v126, %v124
    %v131 = vadd.s32 %v126, %v125
    %v132 = vadd.s32 %v127, %v122
    %v133 = vadd.s32 %v127, %v123
    %v134 = vadd.s32 %v127, %v124
    %v135 = vadd.s32 %v127, %v125
    %s136 = smul.u32 %s114, 2654435769
    %v137 = vstv %s136
    %v138 = vxor.u32 %v128, %v137
    %v139 = vxor.u32 %v129, %v137
    %v140 = vxor.u32 %v130, %v137
    %v141 = vxor.u32 %v131, %v137
    %v142 = vxor.u32 %v132, %v137
    %v143 = vxor.u32 %v133, %v137
    %v144 = vxor.u32 %v134, %v137
    %v145 = vxor.u32 %v135, %v137
    %v146 = vxor.u32 %v138, 2135587861
    %v147 = vxor.u32 %v139, 2135587861
    %v148 = vxor.u32 %v140, 2135587861
    %v149 = vxor.u32 %v141, 2135587861
    %v150 = vxor.u32 %v142, 2135587861
    %v151 = vxor.u32 %v143, 2135587861
    %v152 = vxor.u32 %v144, 2135587861
    %v153 = vxor.u32 %v145, 2135587861
    %v154 = vshrl.u32 %v146, 16
    %v155 = vshrl.u32 %v147, 16
    %v156 = vshrl.u32 %v148, 16
    %v157 = vshrl.u32 %v149, 16
    %v158 = vshrl.u32 %v150, 16
    %v159 = vshrl.u32 %v151, 16
    %v160 = vshrl.u32 %v152, 16
    %v161 = vshrl.u32 %v153, 16
    %v162 = vxor.u32 %v146, %v154
    %v163 = vxor.u32 %v147, %v155
    %v164 = vxor.u32 %v148, %v156
    %v165 = vxor.u32 %v149, %v157
    %v166 = vxor.u32 %v150, %v158
    %v167 = vxor.u32 %v151, %v159
    %v168 = vxor.u32 %v152, %v160
    %v169 = vxor.u32 %v153, %v161
    %v170 = vmul.u32 %v162, 2246822507
    %v171 = vmul.u32 %v163, 2246822507
    %v172 = vmul.u32 %v164, 2246822507
    %v173 = vmul.u32 %v165, 2246822507
    %v174 = vmul.u32 %v166, 2246822507
    %v175 = vmul.u32 %v167, 2246822507
    %v176 = vmul.u32 %v168, 2246822507
    %v177 = vmul.u32 %v169, 2246822507
    %v178 = vshrl.u32 %v170, 13
    %v179 = vshrl.u32 %v171, 13
    %v180 = vshrl.u32 %v172, 13
    %v181 = vshrl.u32 %v173, 13
    %v182 = vshrl.u32 %v174, 13
    %v183 = vshrl.u32 %v175, 13
    %v184 = vshrl.u32 %v176, 13
    %v185 = vshrl.u32 %v177, 13
    %v186 = vxor.u32 %v170, %v178
    %v187 = vxor.u32 %v171, %v179
    %v188 = vxor.u32 %v172, %v180
    %v189 = vxor.u32 %v173, %v181
    %v190 = vxor.u32 %v174, %v182
    %v191 = vxor.u32 %v175, %v183
    %v192 = vxor.u32 %v176, %v184
    %v193 = vxor.u32 %v177, %v185
    %v194 = vmul.u32 %v186, 3266489909
    %v195 = vmul.u32 %v187, 3266489909
    %v196 = vmul.u32 %v188, 3266489909
    %v197 = vmul.u32 %v189, 3266489909
    %v198 = vmul.u32 %v190, 3266489909
    %v199 = vmul.u32 %v191, 3266489909
    %v200 = vmul.u32 %v192, 3266489909
    %v201 = vmul.u32 %v193, 3266489909
    %v202 = vshrl.u32 %v194, 16
    %v203 = vshrl.u32 %v195, 16
    %v204 = vshrl.u32 %v196, 16
    %v205 = vshrl.u32 %v197, 16
    %v206 = vshrl.u32 %v198, 16
    %v207 = vshrl.u32 %v199, 16
    %v208 = vshrl.u32 %v200, 16
    %v209 = vshrl.u32 %v201, 16
    %v210 = vxor.u32 %v194, %v202
    %v211 = vxor.u32 %v195, %v203
    %v212 = vxor.u32 %v196, %v204
    %v213 = vxor.u32 %v197, %v205
    %v214 = vxor.u32 %v198, %v206
    %v215 = vxor.u32 %v199, %v207
    %v216 = vxor.u32 %v200, %v208
    %v217 = vxor.u32 %v201, %v209
    %v218 = vand.u32 %v210, 2147483648
    %v219 = vand.u32 %v211, 2147483648
    %v220 = vand.u32 %v212, 2147483648
    %v221 = vand.u32 %v213, 2147483648
    %v222 = vand.u32 %v214, 2147483648
    %v223 = vand.u32 %v215, 2147483648
    %v224 = vand.u32 %v216, 2147483648
    %v225 = vand.u32 %v217, 2147483648
    %vm226 = vcmp.ne.s32.totalorder %v218, 0
    %vm227 = vcmp.ne.s32.totalorder %v219, 0
    %vm228 = vcmp.ne.s32.totalorder %v220, 0
    %vm229 = vcmp.ne.s32.totalorder %v221, 0
    %vm230 = vcmp.ne.s32.totalorder %v222, 0
    %vm231 = vcmp.ne.s32.totalorder %v223, 0
    %vm232 = vcmp.ne.s32.totalorder %v224, 0
    %vm233 = vcmp.ne.s32.totalorder %v225, 0
    %v234 = vand.u32 %v210, 32768
    %v235 = vand.u32 %v211, 32768
    %v236 = vand.u32 %v212, 32768
    %v237 = vand.u32 %v213, 32768
    %v238 = vand.u32 %v214, 32768
    %v239 = vand.u32 %v215, 32768
    %v240 = vand.u32 %v216, 32768
    %v241 = vand.u32 %v217, 32768
    %vm242 = vcmp.ne.s32.totalorder %v234, 0
    %vm243 = vcmp.ne.s32.totalorder %v235, 0
    %vm244 = vcmp.ne.s32.totalorder %v236, 0
    %vm245 = vcmp.ne.s32.totalorder %v237, 0
    %vm246 = vcmp.ne.s32.totalorder %v238, 0
    %vm247 = vcmp.ne.s32.totalorder %v239, 0
    %vm248 = vcmp.ne.s32.totalorder %v240, 0
    %vm249 = vcmp.ne.s32.totalorder %v241, 0
    %v250 = vld [vmem:[#allocation6] sm:$0xff]
    %v251 = vld [vmem:[#allocation6 + $0x8] sm:$0xff]
    %v252 = vld [vmem:[#allocation6 + $0x10] sm:$0xff]
    %v253 = vld [vmem:[#allocation6 + $0x18] sm:$0xff]
    %v254 = vld [vmem:[#allocation6 + $0x20] sm:$0xff]
    %v255 = vld [vmem:[#allocation6 + $0x28] sm:$0xff]
    %v256 = vld [vmem:[#allocation6 + $0x30] sm:$0xff]
    %v257 = vld [vmem:[#allocation6 + $0x38] sm:$0xff]
    %v258 = vld [vmem:[#allocation6 + $0x40] sm:$0xff]
    %v259 = vld [vmem:[#allocation6 + $0x48] sm:$0xff]
    %v260 = vld [vmem:[#allocation6 + $0x50] sm:$0xff]
    %v261 = vld [vmem:[#allocation6 + $0x58] sm:$0xff]
    %v262 = vld [vmem:[#allocation6 + $0x60] sm:$0xff]
    %v263 = vld [vmem:[#allocation6 + $0x68] sm:$0xff]
    %v264 = vld [vmem:[#allocation6 + $0x70] sm:$0xff]
    %v265 = vld [vmem:[#allocation6 + $0x78] sm:$0xff]
    %v266 = vld [vmem:[#allocation6 + $0x80] sm:$0xff]
    %v267 = vld [vmem:[#allocation6 + $0x88] sm:$0xff]
    %v268 = vld [vmem:[#allocation6 + $0x90] sm:$0xff]
    %v269 = vld [vmem:[#allocation6 + $0x98] sm:$0xff]
    %v270 = vld [vmem:[#allocation6 + $0xa0] sm:$0xff]
    %v271 = vld [vmem:[#allocation6 + $0xa8] sm:$0xff]
    %v272 = vld [vmem:[#allocation6 + $0xb0] sm:$0xff]
    %v273 = vld [vmem:[#allocation6 + $0xb8] sm:$0xff]
    %v274 = vld [vmem:[#allocation6 + $0xc0] sm:$0xff]
    %v275 = vld [vmem:[#allocation6 + $0xc8] sm:$0xff]
    %v276 = vld [vmem:[#allocation6 + $0xd0] sm:$0xff]
    %v277 = vld [vmem:[#allocation6 + $0xd8] sm:$0xff]
    %v278 = vld [vmem:[#allocation6 + $0xe0] sm:$0xff]
    %v279 = vld [vmem:[#allocation6 + $0xe8] sm:$0xff]
    %v280 = vld [vmem:[#allocation6 + $0xf0] sm:$0xff]
    %v281 = vld [vmem:[#allocation6 + $0xf8] sm:$0xff]
    %v282 = vld [vmem:[#allocation6 + $0x100] sm:$0xff]
    %v283 = vld [vmem:[#allocation6 + $0x108] sm:$0xff]
    %v284 = vld [vmem:[#allocation6 + $0x110] sm:$0xff]
    %v285 = vld [vmem:[#allocation6 + $0x118] sm:$0xff]
    %v286 = vld [vmem:[#allocation6 + $0x120] sm:$0xff]
    %v287 = vld [vmem:[#allocation6 + $0x128] sm:$0xff]
    %v288 = vld [vmem:[#allocation6 + $0x130] sm:$0xff]
    %v289 = vld [vmem:[#allocation6 + $0x138] sm:$0xff]
    %v290 = vld [vmem:[#allocation6 + $0x140] sm:$0xff]
    %v291 = vld [vmem:[#allocation6 + $0x148] sm:$0xff]
    %v292 = vld [vmem:[#allocation6 + $0x150] sm:$0xff]
    %v293 = vld [vmem:[#allocation6 + $0x158] sm:$0xff]
    %v294 = vld [vmem:[#allocation6 + $0x160] sm:$0xff]
    %v295 = vld [vmem:[#allocation6 + $0x168] sm:$0xff]
    %v296 = vld [vmem:[#allocation6 + $0x170] sm:$0xff]
    %v297 = vld [vmem:[#allocation6 + $0x178] sm:$0xff]
    %v298 = vld [vmem:[#allocation6 + $0x180] sm:$0xff]
    %v299 = vld [vmem:[#allocation6 + $0x188] sm:$0xff]
    %v300 = vld [vmem:[#allocation6 + $0x190] sm:$0xff]
    %v301 = vld [vmem:[#allocation6 + $0x198] sm:$0xff]
    %v302 = vld [vmem:[#allocation6 + $0x1a0] sm:$0xff]
    %v303 = vld [vmem:[#allocation6 + $0x1a8] sm:$0xff]
    %v304 = vld [vmem:[#allocation6 + $0x1b0] sm:$0xff]
    %v305 = vld [vmem:[#allocation6 + $0x1b8] sm:$0xff]
    %v306 = vld [vmem:[#allocation6 + $0x1c0] sm:$0xff]
    %v307 = vld [vmem:[#allocation6 + $0x1c8] sm:$0xff]
    %v308 = vld [vmem:[#allocation6 + $0x1d0] sm:$0xff]
    %v309 = vld [vmem:[#allocation6 + $0x1d8] sm:$0xff]
    %v310 = vld [vmem:[#allocation6 + $0x1e0] sm:$0xff]
    %v311 = vld [vmem:[#allocation6 + $0x1e8] sm:$0xff]
    %v312 = vld [vmem:[#allocation6 + $0x1f0] sm:$0xff]
    %v313 = vld [vmem:[#allocation6 + $0x1f8] sm:$0xff]
    %v314 = vld [vmem:[#allocation6 + $0x200] sm:$0xff]
    %v315 = vld [vmem:[#allocation6 + $0x208] sm:$0xff]
    %v316 = vld [vmem:[#allocation6 + $0x210] sm:$0xff]
    %v317 = vld [vmem:[#allocation6 + $0x218] sm:$0xff]
    %v318 = vld [vmem:[#allocation6 + $0x220] sm:$0xff]
    %v319 = vld [vmem:[#allocation6 + $0x228] sm:$0xff]
    %v320 = vld [vmem:[#allocation6 + $0x230] sm:$0xff]
    %v321 = vld [vmem:[#allocation6 + $0x238] sm:$0xff]
    %v322 = vld [vmem:[#allocation6 + $0x240] sm:$0xff]
    %v323 = vld [vmem:[#allocation6 + $0x248] sm:$0xff]
    %v324 = vld [vmem:[#allocation6 + $0x250] sm:$0xff]
    %v325 = vld [vmem:[#allocation6 + $0x258] sm:$0xff]
    %v326 = vld [vmem:[#allocation6 + $0x260] sm:$0xff]
    %v327 = vld [vmem:[#allocation6 + $0x268] sm:$0xff]
    %v328 = vld [vmem:[#allocation6 + $0x270] sm:$0xff]
    %v329 = vld [vmem:[#allocation6 + $0x278] sm:$0xff]
    %v330 = vld [vmem:[#allocation6 + $0x280] sm:$0xff]
    %v331 = vld [vmem:[#allocation6 + $0x288] sm:$0xff]
    %v332 = vld [vmem:[#allocation6 + $0x290] sm:$0xff]
    %v333 = vld [vmem:[#allocation6 + $0x298] sm:$0xff]
    %v334 = vld [vmem:[#allocation6 + $0x2a0] sm:$0xff]
    %v335 = vld [vmem:[#allocation6 + $0x2a8] sm:$0xff]
    %v336 = vld [vmem:[#allocation6 + $0x2b0] sm:$0xff]
    %v337 = vld [vmem:[#allocation6 + $0x2b8] sm:$0xff]
    %v338 = vld [vmem:[#allocation6 + $0x2c0] sm:$0xff]
    %v339 = vld [vmem:[#allocation6 + $0x2c8] sm:$0xff]
    %v340 = vld [vmem:[#allocation6 + $0x2d0] sm:$0xff]
    %v341 = vld [vmem:[#allocation6 + $0x2d8] sm:$0xff]
    %v342 = vld [vmem:[#allocation6 + $0x2e0] sm:$0xff]
    %v343 = vld [vmem:[#allocation6 + $0x2e8] sm:$0xff]
    %v344 = vld [vmem:[#allocation6 + $0x2f0] sm:$0xff]
    %v345 = vld [vmem:[#allocation6 + $0x2f8] sm:$0xff]
    %v346 = vld [vmem:[#allocation6 + $0x300] sm:$0xff]
    %v347 = vld [vmem:[#allocation6 + $0x308] sm:$0xff]
    %v348 = vld [vmem:[#allocation6 + $0x310] sm:$0xff]
    %v349 = vld [vmem:[#allocation6 + $0x318] sm:$0xff]
    %v350 = vld [vmem:[#allocation6 + $0x320] sm:$0xff]
    %v351 = vld [vmem:[#allocation6 + $0x328] sm:$0xff]
    %v352 = vld [vmem:[#allocation6 + $0x330] sm:$0xff]
    %v353 = vld [vmem:[#allocation6 + $0x338] sm:$0xff]
    %v354 = vld [vmem:[#allocation6 + $0x340] sm:$0xff]
    %v355 = vld [vmem:[#allocation6 + $0x348] sm:$0xff]
    %v356 = vld [vmem:[#allocation6 + $0x350] sm:$0xff]
    %v357 = vld [vmem:[#allocation6 + $0x358] sm:$0xff]
    %v358 = vld [vmem:[#allocation6 + $0x360] sm:$0xff]
    %v359 = vld [vmem:[#allocation6 + $0x368] sm:$0xff]
    %v360 = vld [vmem:[#allocation6 + $0x370] sm:$0xff]
    %v361 = vld [vmem:[#allocation6 + $0x378] sm:$0xff]
    %v362 = vld [vmem:[#allocation6 + $0x380] sm:$0xff]
    %v363 = vld [vmem:[#allocation6 + $0x388] sm:$0xff]
    %v364 = vld [vmem:[#allocation6 + $0x390] sm:$0xff]
    %v365 = vld [vmem:[#allocation6 + $0x398] sm:$0xff]
    %v366 = vld [vmem:[#allocation6 + $0x3a0] sm:$0xff]
    %v367 = vld [vmem:[#allocation6 + $0x3a8] sm:$0xff]
    %v368 = vld [vmem:[#allocation6 + $0x3b0] sm:$0xff]
    %v369 = vld [vmem:[#allocation6 + $0x3b8] sm:$0xff]
    %v370 = vld [vmem:[#allocation6 + $0x3c0] sm:$0xff]
    %v371 = vld [vmem:[#allocation6 + $0x3c8] sm:$0xff]
    %v372 = vld [vmem:[#allocation6 + $0x3d0] sm:$0xff]
    %v373 = vld [vmem:[#allocation6 + $0x3d8] sm:$0xff]
    %v374 = vld [vmem:[#allocation6 + $0x3e0] sm:$0xff]
    %v375 = vld [vmem:[#allocation6 + $0x3e8] sm:$0xff]
    %v376 = vld [vmem:[#allocation6 + $0x3f0] sm:$0xff]
    %v377 = vld [vmem:[#allocation6 + $0x3f8] sm:$0xff]
    %v378 = vld [vmem:[#allocation6 + $0x400] sm:$0xff]
    %v379 = vld [vmem:[#allocation6 + $0x408] sm:$0xff]
    %v380 = vld [vmem:[#allocation6 + $0x410] sm:$0xff]
    %v381 = vld [vmem:[#allocation6 + $0x418] sm:$0xff]
    %v382 = vld [vmem:[#allocation6 + $0x420] sm:$0xff]
    %v383 = vld [vmem:[#allocation6 + $0x428] sm:$0xff]
    %v384 = vld [vmem:[#allocation6 + $0x430] sm:$0xff]
    %v385 = vld [vmem:[#allocation6 + $0x438] sm:$0xff]
    %v386 = vld [vmem:[#allocation6 + $0x440] sm:$0xff]
    %v387 = vld [vmem:[#allocation6 + $0x448] sm:$0xff]
    %v388 = vld [vmem:[#allocation6 + $0x450] sm:$0xff]
    %v389 = vld [vmem:[#allocation6 + $0x458] sm:$0xff]
    %v390 = vld [vmem:[#allocation6 + $0x460] sm:$0xff]
    %v391 = vld [vmem:[#allocation6 + $0x468] sm:$0xff]
    %v392 = vld [vmem:[#allocation6 + $0x470] sm:$0xff]
    %v393 = vld [vmem:[#allocation6 + $0x478] sm:$0xff]
    %v394 = vld [vmem:[#allocation6 + $0x480] sm:$0xff]
    %v395 = vld [vmem:[#allocation6 + $0x488] sm:$0xff]
    %v396 = vld [vmem:[#allocation6 + $0x490] sm:$0xff]
    %v397 = vld [vmem:[#allocation6 + $0x498] sm:$0xff]
    %v398 = vld [vmem:[#allocation6 + $0x4a0] sm:$0xff]
    %v399 = vld [vmem:[#allocation6 + $0x4a8] sm:$0xff]
    %v400 = vld [vmem:[#allocation6 + $0x4b0] sm:$0xff]
    %v401 = vld [vmem:[#allocation6 + $0x4b8] sm:$0xff]
    %v402 = vld [vmem:[#allocation6 + $0x4c0] sm:$0xff]
    %v403 = vld [vmem:[#allocation6 + $0x4c8] sm:$0xff]
    %v404 = vld [vmem:[#allocation6 + $0x4d0] sm:$0xff]
    %v405 = vld [vmem:[#allocation6 + $0x4d8] sm:$0xff]
    %v406 = vld [vmem:[#allocation6 + $0x4e0] sm:$0xff]
    %v407 = vld [vmem:[#allocation6 + $0x4e8] sm:$0xff]
    %v408 = vld [vmem:[#allocation6 + $0x4f0] sm:$0xff]
    %v409 = vld [vmem:[#allocation6 + $0x4f8] sm:$0xff]
    %v410 = vld [vmem:[#allocation6 + $0x500] sm:$0xff]
    %v411 = vld [vmem:[#allocation6 + $0x508] sm:$0xff]
    %v412 = vld [vmem:[#allocation6 + $0x510] sm:$0xff]
    %v413 = vld [vmem:[#allocation6 + $0x518] sm:$0xff]
    %v414 = vld [vmem:[#allocation6 + $0x520] sm:$0xff]
    %v415 = vld [vmem:[#allocation6 + $0x528] sm:$0xff]
    %v416 = vld [vmem:[#allocation6 + $0x530] sm:$0xff]
    %v417 = vld [vmem:[#allocation6 + $0x538] sm:$0xff]
    %v418 = vld [vmem:[#allocation6 + $0x540] sm:$0xff]
    %v419 = vld [vmem:[#allocation6 + $0x548] sm:$0xff]
    %v420 = vld [vmem:[#allocation6 + $0x550] sm:$0xff]
    %v421 = vld [vmem:[#allocation6 + $0x558] sm:$0xff]
    %v422 = vld [vmem:[#allocation6 + $0x560] sm:$0xff]
    %v423 = vld [vmem:[#allocation6 + $0x568] sm:$0xff]
    %v424 = vld [vmem:[#allocation6 + $0x570] sm:$0xff]
    %v425 = vld [vmem:[#allocation6 + $0x578] sm:$0xff]
    %v426 = vld [vmem:[#allocation6 + $0x580] sm:$0xff]
    %v427 = vld [vmem:[#allocation6 + $0x588] sm:$0xff]
    %v428 = vld [vmem:[#allocation6 + $0x590] sm:$0xff]
    %v429 = vld [vmem:[#allocation6 + $0x598] sm:$0xff]
    %v430 = vld [vmem:[#allocation6 + $0x5a0] sm:$0xff]
    %v431 = vld [vmem:[#allocation6 + $0x5a8] sm:$0xff]
    %v432 = vld [vmem:[#allocation6 + $0x5b0] sm:$0xff]
    %v433 = vld [vmem:[#allocation6 + $0x5b8] sm:$0xff]
    %v434 = vld [vmem:[#allocation6 + $0x5c0] sm:$0xff]
    %v435 = vld [vmem:[#allocation6 + $0x5c8] sm:$0xff]
    %v436 = vld [vmem:[#allocation6 + $0x5d0] sm:$0xff]
    %v437 = vld [vmem:[#allocation6 + $0x5d8] sm:$0xff]
    %v438 = vld [vmem:[#allocation6 + $0x5e0] sm:$0xff]
    %v439 = vld [vmem:[#allocation6 + $0x5e8] sm:$0xff]
    %v440 = vld [vmem:[#allocation6 + $0x5f0] sm:$0xff]
    %v441 = vld [vmem:[#allocation6 + $0x5f8] sm:$0xff]
    %v442 = vld [vmem:[#allocation6 + $0x600] sm:$0xff]
    %v443 = vld [vmem:[#allocation6 + $0x608] sm:$0xff]
    %v444 = vld [vmem:[#allocation6 + $0x610] sm:$0xff]
    %v445 = vld [vmem:[#allocation6 + $0x618] sm:$0xff]
    %v446 = vld [vmem:[#allocation6 + $0x620] sm:$0xff]
    %v447 = vld [vmem:[#allocation6 + $0x628] sm:$0xff]
    %v448 = vld [vmem:[#allocation6 + $0x630] sm:$0xff]
    %v449 = vld [vmem:[#allocation6 + $0x638] sm:$0xff]
    %v450 = vld [vmem:[#allocation6 + $0x640] sm:$0xff]
    %v451 = vld [vmem:[#allocation6 + $0x648] sm:$0xff]
    %v452 = vld [vmem:[#allocation6 + $0x650] sm:$0xff]
    %v453 = vld [vmem:[#allocation6 + $0x658] sm:$0xff]
    %v454 = vld [vmem:[#allocation6 + $0x660] sm:$0xff]
    %v455 = vld [vmem:[#allocation6 + $0x668] sm:$0xff]
    %v456 = vld [vmem:[#allocation6 + $0x670] sm:$0xff]
    %v457 = vld [vmem:[#allocation6 + $0x678] sm:$0xff]
    %v458 = vld [vmem:[#allocation6 + $0x680] sm:$0xff]
    %v459 = vld [vmem:[#allocation6 + $0x688] sm:$0xff]
    %v460 = vld [vmem:[#allocation6 + $0x690] sm:$0xff]
    %v461 = vld [vmem:[#allocation6 + $0x698] sm:$0xff]
    %v462 = vld [vmem:[#allocation6 + $0x6a0] sm:$0xff]
    %v463 = vld [vmem:[#allocation6 + $0x6a8] sm:$0xff]
    %v464 = vld [vmem:[#allocation6 + $0x6b0] sm:$0xff]
    %v465 = vld [vmem:[#allocation6 + $0x6b8] sm:$0xff]
    %v466 = vld [vmem:[#allocation6 + $0x6c0] sm:$0xff]
    %v467 = vld [vmem:[#allocation6 + $0x6c8] sm:$0xff]
    %v468 = vld [vmem:[#allocation6 + $0x6d0] sm:$0xff]
    %v469 = vld [vmem:[#allocation6 + $0x6d8] sm:$0xff]
    %v470 = vld [vmem:[#allocation6 + $0x6e0] sm:$0xff]
    %v471 = vld [vmem:[#allocation6 + $0x6e8] sm:$0xff]
    %v472 = vld [vmem:[#allocation6 + $0x6f0] sm:$0xff]
    %v473 = vld [vmem:[#allocation6 + $0x6f8] sm:$0xff]
    %v474 = vld [vmem:[#allocation6 + $0x700] sm:$0xff]
    %v475 = vld [vmem:[#allocation6 + $0x708] sm:$0xff]
    %v476 = vld [vmem:[#allocation6 + $0x710] sm:$0xff]
    %v477 = vld [vmem:[#allocation6 + $0x718] sm:$0xff]
    %v478 = vld [vmem:[#allocation6 + $0x720] sm:$0xff]
    %v479 = vld [vmem:[#allocation6 + $0x728] sm:$0xff]
    %v480 = vld [vmem:[#allocation6 + $0x730] sm:$0xff]
    %v481 = vld [vmem:[#allocation6 + $0x738] sm:$0xff]
    %v482 = vld [vmem:[#allocation6 + $0x740] sm:$0xff]
    %v483 = vld [vmem:[#allocation6 + $0x748] sm:$0xff]
    %v484 = vld [vmem:[#allocation6 + $0x750] sm:$0xff]
    %v485 = vld [vmem:[#allocation6 + $0x758] sm:$0xff]
    %v486 = vld [vmem:[#allocation6 + $0x760] sm:$0xff]
    %v487 = vld [vmem:[#allocation6 + $0x768] sm:$0xff]
    %v488 = vld [vmem:[#allocation6 + $0x770] sm:$0xff]
    %v489 = vld [vmem:[#allocation6 + $0x778] sm:$0xff]
    %v490 = vld [vmem:[#allocation6 + $0x780] sm:$0xff]
    %v491 = vld [vmem:[#allocation6 + $0x788] sm:$0xff]
    %v492 = vld [vmem:[#allocation6 + $0x790] sm:$0xff]
    %v493 = vld [vmem:[#allocation6 + $0x798] sm:$0xff]
    %v494 = vld [vmem:[#allocation6 + $0x7a0] sm:$0xff]
    %v495 = vld [vmem:[#allocation6 + $0x7a8] sm:$0xff]
    %v496 = vld [vmem:[#allocation6 + $0x7b0] sm:$0xff]
    %v497 = vld [vmem:[#allocation6 + $0x7b8] sm:$0xff]
    %v498 = vld [vmem:[#allocation6 + $0x7c0] sm:$0xff]
    %v499 = vld [vmem:[#allocation6 + $0x7c8] sm:$0xff]
    %v500 = vld [vmem:[#allocation6 + $0x7d0] sm:$0xff]
    %v501 = vld [vmem:[#allocation6 + $0x7d8] sm:$0xff]
    %v502 = vld [vmem:[#allocation6 + $0x7e0] sm:$0xff]
    %v503 = vld [vmem:[#allocation6 + $0x7e8] sm:$0xff]
    %v504 = vld [vmem:[#allocation6 + $0x7f0] sm:$0xff]
    %v505 = vld [vmem:[#allocation6 + $0x7f8] sm:$0xff]
    %v506 = vld [vmem:[%s3] sm:$0xf]
    %v508 = vlaneseq
    %v509 = vshrl.u32 %v508, 7
    %v510 = vsub.s32 0, %v509
    %v511 = vrot.slane %v506, %v510
    %v512 = vlaneseq
    %v513 = vshrl.u32 %v512, 7
    %v514 = vsub.s32 1, %v513
    %v515 = vrot.slane %v506, %v514
    %v516 = vlaneseq
    %v517 = vshrl.u32 %v516, 7
    %v518 = vsub.s32 2, %v517
    %v519 = vrot.slane %v506, %v518
    %v520 = vlaneseq
    %v521 = vshrl.u32 %v520, 7
    %v522 = vsub.s32 3, %v521
    %v523 = vrot.slane %v506, %v522
    %v784 = vunpack.c.l.b16 %v250
    %v785 = vunpack.c.h.b16 %v250
    %v786 = vunpack.c.l.b16 %v251
    %v787 = vunpack.c.h.b16 %v251
    %v788 = vunpack.c.l.b16 %v252
    %v789 = vunpack.c.h.b16 %v252
    %v790 = vunpack.c.l.b16 %v253
    %v791 = vunpack.c.h.b16 %v253
    %v792 = vunpack.c.l.b16 %v254
    %v793 = vunpack.c.h.b16 %v254
    %v794 = vunpack.c.l.b16 %v255
    %v795 = vunpack.c.h.b16 %v255
    %v796 = vunpack.c.l.b16 %v256
    %v797 = vunpack.c.h.b16 %v256
    %v798 = vunpack.c.l.b16 %v257
    %v799 = vunpack.c.h.b16 %v257
    %v800 = vunpack.c.l.b16 %v258
    %v801 = vunpack.c.h.b16 %v258
    %v802 = vunpack.c.l.b16 %v259
    %v803 = vunpack.c.h.b16 %v259
    %v804 = vunpack.c.l.b16 %v260
    %v805 = vunpack.c.h.b16 %v260
    %v806 = vunpack.c.l.b16 %v261
    %v807 = vunpack.c.h.b16 %v261
    %v808 = vunpack.c.l.b16 %v262
    %v809 = vunpack.c.h.b16 %v262
    %v810 = vunpack.c.l.b16 %v263
    %v811 = vunpack.c.h.b16 %v263
    %v812 = vunpack.c.l.b16 %v264
    %v813 = vunpack.c.h.b16 %v264
    %v814 = vunpack.c.l.b16 %v265
    %v815 = vunpack.c.h.b16 %v265
    %v816 = vunpack.c.l.b16 %v266
    %v817 = vunpack.c.h.b16 %v266
    %v818 = vunpack.c.l.b16 %v267
    %v819 = vunpack.c.h.b16 %v267
    %v820 = vunpack.c.l.b16 %v268
    %v821 = vunpack.c.h.b16 %v268
    %v822 = vunpack.c.l.b16 %v269
    %v823 = vunpack.c.h.b16 %v269
    %v824 = vunpack.c.l.b16 %v270
    %v825 = vunpack.c.h.b16 %v270
    %v826 = vunpack.c.l.b16 %v271
    %v827 = vunpack.c.h.b16 %v271
    %v828 = vunpack.c.l.b16 %v272
    %v829 = vunpack.c.h.b16 %v272
    %v830 = vunpack.c.l.b16 %v273
    %v831 = vunpack.c.h.b16 %v273
    %v832 = vunpack.c.l.b16 %v274
    %v833 = vunpack.c.h.b16 %v274
    %v834 = vunpack.c.l.b16 %v275
    %v835 = vunpack.c.h.b16 %v275
    %v836 = vunpack.c.l.b16 %v276
    %v837 = vunpack.c.h.b16 %v276
    %v838 = vunpack.c.l.b16 %v277
    %v839 = vunpack.c.h.b16 %v277
    %v840 = vunpack.c.l.b16 %v278
    %v841 = vunpack.c.h.b16 %v278
    %v842 = vunpack.c.l.b16 %v279
    %v843 = vunpack.c.h.b16 %v279
    %v844 = vunpack.c.l.b16 %v280
    %v845 = vunpack.c.h.b16 %v280
    %v846 = vunpack.c.l.b16 %v281
    %v847 = vunpack.c.h.b16 %v281
    %v848 = vunpack.c.l.b16 %v282
    %v849 = vunpack.c.h.b16 %v282
    %v850 = vunpack.c.l.b16 %v283
    %v851 = vunpack.c.h.b16 %v283
    %v852 = vunpack.c.l.b16 %v284
    %v853 = vunpack.c.h.b16 %v284
    %v854 = vunpack.c.l.b16 %v285
    %v855 = vunpack.c.h.b16 %v285
    %v856 = vunpack.c.l.b16 %v286
    %v857 = vunpack.c.h.b16 %v286
    %v858 = vunpack.c.l.b16 %v287
    %v859 = vunpack.c.h.b16 %v287
    %v860 = vunpack.c.l.b16 %v288
    %v861 = vunpack.c.h.b16 %v288
    %v862 = vunpack.c.l.b16 %v289
    %v863 = vunpack.c.h.b16 %v289
    %v864 = vunpack.c.l.b16 %v290
    %v865 = vunpack.c.h.b16 %v290
    %v866 = vunpack.c.l.b16 %v291
    %v867 = vunpack.c.h.b16 %v291
    %v868 = vunpack.c.l.b16 %v292
    %v869 = vunpack.c.h.b16 %v292
    %v870 = vunpack.c.l.b16 %v293
    %v871 = vunpack.c.h.b16 %v293
    %v872 = vunpack.c.l.b16 %v294
    %v873 = vunpack.c.h.b16 %v294
    %v874 = vunpack.c.l.b16 %v295
    %v875 = vunpack.c.h.b16 %v295
    %v876 = vunpack.c.l.b16 %v296
    %v877 = vunpack.c.h.b16 %v296
    %v878 = vunpack.c.l.b16 %v297
    %v879 = vunpack.c.h.b16 %v297
    %v880 = vunpack.c.l.b16 %v298
    %v881 = vunpack.c.h.b16 %v298
    %v882 = vunpack.c.l.b16 %v299
    %v883 = vunpack.c.h.b16 %v299
    %v884 = vunpack.c.l.b16 %v300
    %v885 = vunpack.c.h.b16 %v300
    %v886 = vunpack.c.l.b16 %v301
    %v887 = vunpack.c.h.b16 %v301
    %v888 = vunpack.c.l.b16 %v302
    %v889 = vunpack.c.h.b16 %v302
    %v890 = vunpack.c.l.b16 %v303
    %v891 = vunpack.c.h.b16 %v303
    %v892 = vunpack.c.l.b16 %v304
    %v893 = vunpack.c.h.b16 %v304
    %v894 = vunpack.c.l.b16 %v305
    %v895 = vunpack.c.h.b16 %v305
    %v896 = vunpack.c.l.b16 %v306
    %v897 = vunpack.c.h.b16 %v306
    %v898 = vunpack.c.l.b16 %v307
    %v899 = vunpack.c.h.b16 %v307
    %v900 = vunpack.c.l.b16 %v308
    %v901 = vunpack.c.h.b16 %v308
    %v902 = vunpack.c.l.b16 %v309
    %v903 = vunpack.c.h.b16 %v309
    %v904 = vunpack.c.l.b16 %v310
    %v905 = vunpack.c.h.b16 %v310
    %v906 = vunpack.c.l.b16 %v311
    %v907 = vunpack.c.h.b16 %v311
    %v908 = vunpack.c.l.b16 %v312
    %v909 = vunpack.c.h.b16 %v312
    %v910 = vunpack.c.l.b16 %v313
    %v911 = vunpack.c.h.b16 %v313
    %v912 = vunpack.c.l.b16 %v314
    %v913 = vunpack.c.h.b16 %v314
    %v914 = vunpack.c.l.b16 %v315
    %v915 = vunpack.c.h.b16 %v315
    %v916 = vunpack.c.l.b16 %v316
    %v917 = vunpack.c.h.b16 %v316
    %v918 = vunpack.c.l.b16 %v317
    %v919 = vunpack.c.h.b16 %v317
    %v920 = vunpack.c.l.b16 %v318
    %v921 = vunpack.c.h.b16 %v318
    %v922 = vunpack.c.l.b16 %v319
    %v923 = vunpack.c.h.b16 %v319
    %v924 = vunpack.c.l.b16 %v320
    %v925 = vunpack.c.h.b16 %v320
    %v926 = vunpack.c.l.b16 %v321
    %v927 = vunpack.c.h.b16 %v321
    %v928 = vunpack.c.l.b16 %v322
    %v929 = vunpack.c.h.b16 %v322
    %v930 = vunpack.c.l.b16 %v323
    %v931 = vunpack.c.h.b16 %v323
    %v932 = vunpack.c.l.b16 %v324
    %v933 = vunpack.c.h.b16 %v324
    %v934 = vunpack.c.l.b16 %v325
    %v935 = vunpack.c.h.b16 %v325
    %v936 = vunpack.c.l.b16 %v326
    %v937 = vunpack.c.h.b16 %v326
    %v938 = vunpack.c.l.b16 %v327
    %v939 = vunpack.c.h.b16 %v327
    %v940 = vunpack.c.l.b16 %v328
    %v941 = vunpack.c.h.b16 %v328
    %v942 = vunpack.c.l.b16 %v329
    %v943 = vunpack.c.h.b16 %v329
    %v944 = vunpack.c.l.b16 %v330
    %v945 = vunpack.c.h.b16 %v330
    %v946 = vunpack.c.l.b16 %v331
    %v947 = vunpack.c.h.b16 %v331
    %v948 = vunpack.c.l.b16 %v332
    %v949 = vunpack.c.h.b16 %v332
    %v950 = vunpack.c.l.b16 %v333
    %v951 = vunpack.c.h.b16 %v333
    %v952 = vunpack.c.l.b16 %v334
    %v953 = vunpack.c.h.b16 %v334
    %v954 = vunpack.c.l.b16 %v335
    %v955 = vunpack.c.h.b16 %v335
    %v956 = vunpack.c.l.b16 %v336
    %v957 = vunpack.c.h.b16 %v336
    %v958 = vunpack.c.l.b16 %v337
    %v959 = vunpack.c.h.b16 %v337
    %v960 = vunpack.c.l.b16 %v338
    %v961 = vunpack.c.h.b16 %v338
    %v962 = vunpack.c.l.b16 %v339
    %v963 = vunpack.c.h.b16 %v339
    %v964 = vunpack.c.l.b16 %v340
    %v965 = vunpack.c.h.b16 %v340
    %v966 = vunpack.c.l.b16 %v341
    %v967 = vunpack.c.h.b16 %v341
    %v968 = vunpack.c.l.b16 %v342
    %v969 = vunpack.c.h.b16 %v342
    %v970 = vunpack.c.l.b16 %v343
    %v971 = vunpack.c.h.b16 %v343
    %v972 = vunpack.c.l.b16 %v344
    %v973 = vunpack.c.h.b16 %v344
    %v974 = vunpack.c.l.b16 %v345
    %v975 = vunpack.c.h.b16 %v345
    %v976 = vunpack.c.l.b16 %v346
    %v977 = vunpack.c.h.b16 %v346
    %v978 = vunpack.c.l.b16 %v347
    %v979 = vunpack.c.h.b16 %v347
    %v980 = vunpack.c.l.b16 %v348
    %v981 = vunpack.c.h.b16 %v348
    %v982 = vunpack.c.l.b16 %v349
    %v983 = vunpack.c.h.b16 %v349
    %v984 = vunpack.c.l.b16 %v350
    %v985 = vunpack.c.h.b16 %v350
    %v986 = vunpack.c.l.b16 %v351
    %v987 = vunpack.c.h.b16 %v351
    %v988 = vunpack.c.l.b16 %v352
    %v989 = vunpack.c.h.b16 %v352
    %v990 = vunpack.c.l.b16 %v353
    %v991 = vunpack.c.h.b16 %v353
    %v992 = vunpack.c.l.b16 %v354
    %v993 = vunpack.c.h.b16 %v354
    %v994 = vunpack.c.l.b16 %v355
    %v995 = vunpack.c.h.b16 %v355
    %v996 = vunpack.c.l.b16 %v356
    %v997 = vunpack.c.h.b16 %v356
    %v998 = vunpack.c.l.b16 %v357
    %v999 = vunpack.c.h.b16 %v357
    %v1000 = vunpack.c.l.b16 %v358
    %v1001 = vunpack.c.h.b16 %v358
    %v1002 = vunpack.c.l.b16 %v359
    %v1003 = vunpack.c.h.b16 %v359
    %v1004 = vunpack.c.l.b16 %v360
    %v1005 = vunpack.c.h.b16 %v360
    %v1006 = vunpack.c.l.b16 %v361
    %v1007 = vunpack.c.h.b16 %v361
    %v1008 = vunpack.c.l.b16 %v362
    %v1009 = vunpack.c.h.b16 %v362
    %v1010 = vunpack.c.l.b16 %v363
    %v1011 = vunpack.c.h.b16 %v363
    %v1012 = vunpack.c.l.b16 %v364
    %v1013 = vunpack.c.h.b16 %v364
    %v1014 = vunpack.c.l.b16 %v365
    %v1015 = vunpack.c.h.b16 %v365
    %v1016 = vunpack.c.l.b16 %v366
    %v1017 = vunpack.c.h.b16 %v366
    %v1018 = vunpack.c.l.b16 %v367
    %v1019 = vunpack.c.h.b16 %v367
    %v1020 = vunpack.c.l.b16 %v368
    %v1021 = vunpack.c.h.b16 %v368
    %v1022 = vunpack.c.l.b16 %v369
    %v1023 = vunpack.c.h.b16 %v369
    %v1024 = vunpack.c.l.b16 %v370
    %v1025 = vunpack.c.h.b16 %v370
    %v1026 = vunpack.c.l.b16 %v371
    %v1027 = vunpack.c.h.b16 %v371
    %v1028 = vunpack.c.l.b16 %v372
    %v1029 = vunpack.c.h.b16 %v372
    %v1030 = vunpack.c.l.b16 %v373
    %v1031 = vunpack.c.h.b16 %v373
    %v1032 = vunpack.c.l.b16 %v374
    %v1033 = vunpack.c.h.b16 %v374
    %v1034 = vunpack.c.l.b16 %v375
    %v1035 = vunpack.c.h.b16 %v375
    %v1036 = vunpack.c.l.b16 %v376
    %v1037 = vunpack.c.h.b16 %v376
    %v1038 = vunpack.c.l.b16 %v377
    %v1039 = vunpack.c.h.b16 %v377
    %v1040 = vunpack.c.l.b16 %v378
    %v1041 = vunpack.c.h.b16 %v378
    %v1042 = vunpack.c.l.b16 %v379
    %v1043 = vunpack.c.h.b16 %v379
    %v1044 = vunpack.c.l.b16 %v380
    %v1045 = vunpack.c.h.b16 %v380
    %v1046 = vunpack.c.l.b16 %v381
    %v1047 = vunpack.c.h.b16 %v381
    %v1048 = vunpack.c.l.b16 %v382
    %v1049 = vunpack.c.h.b16 %v382
    %v1050 = vunpack.c.l.b16 %v383
    %v1051 = vunpack.c.h.b16 %v383
    %v1052 = vunpack.c.l.b16 %v384
    %v1053 = vunpack.c.h.b16 %v384
    %v1054 = vunpack.c.l.b16 %v385
    %v1055 = vunpack.c.h.b16 %v385
    %v1056 = vunpack.c.l.b16 %v386
    %v1057 = vunpack.c.h.b16 %v386
    %v1058 = vunpack.c.l.b16 %v387
    %v1059 = vunpack.c.h.b16 %v387
    %v1060 = vunpack.c.l.b16 %v388
    %v1061 = vunpack.c.h.b16 %v388
    %v1062 = vunpack.c.l.b16 %v389
    %v1063 = vunpack.c.h.b16 %v389
    %v1064 = vunpack.c.l.b16 %v390
    %v1065 = vunpack.c.h.b16 %v390
    %v1066 = vunpack.c.l.b16 %v391
    %v1067 = vunpack.c.h.b16 %v391
    %v1068 = vunpack.c.l.b16 %v392
    %v1069 = vunpack.c.h.b16 %v392
    %v1070 = vunpack.c.l.b16 %v393
    %v1071 = vunpack.c.h.b16 %v393
    %v1072 = vunpack.c.l.b16 %v394
    %v1073 = vunpack.c.h.b16 %v394
    %v1074 = vunpack.c.l.b16 %v395
    %v1075 = vunpack.c.h.b16 %v395
    %v1076 = vunpack.c.l.b16 %v396
    %v1077 = vunpack.c.h.b16 %v396
    %v1078 = vunpack.c.l.b16 %v397
    %v1079 = vunpack.c.h.b16 %v397
    %v1080 = vunpack.c.l.b16 %v398
    %v1081 = vunpack.c.h.b16 %v398
    %v1082 = vunpack.c.l.b16 %v399
    %v1083 = vunpack.c.h.b16 %v399
    %v1084 = vunpack.c.l.b16 %v400
    %v1085 = vunpack.c.h.b16 %v400
    %v1086 = vunpack.c.l.b16 %v401
    %v1087 = vunpack.c.h.b16 %v401
    %v1088 = vunpack.c.l.b16 %v402
    %v1089 = vunpack.c.h.b16 %v402
    %v1090 = vunpack.c.l.b16 %v403
    %v1091 = vunpack.c.h.b16 %v403
    %v1092 = vunpack.c.l.b16 %v404
    %v1093 = vunpack.c.h.b16 %v404
    %v1094 = vunpack.c.l.b16 %v405
    %v1095 = vunpack.c.h.b16 %v405
    %v1096 = vunpack.c.l.b16 %v406
    %v1097 = vunpack.c.h.b16 %v406
    %v1098 = vunpack.c.l.b16 %v407
    %v1099 = vunpack.c.h.b16 %v407
    %v1100 = vunpack.c.l.b16 %v408
    %v1101 = vunpack.c.h.b16 %v408
    %v1102 = vunpack.c.l.b16 %v409
    %v1103 = vunpack.c.h.b16 %v409
    %v1104 = vunpack.c.l.b16 %v410
    %v1105 = vunpack.c.h.b16 %v410
    %v1106 = vunpack.c.l.b16 %v411
    %v1107 = vunpack.c.h.b16 %v411
    %v1108 = vunpack.c.l.b16 %v412
    %v1109 = vunpack.c.h.b16 %v412
    %v1110 = vunpack.c.l.b16 %v413
    %v1111 = vunpack.c.h.b16 %v413
    %v1112 = vunpack.c.l.b16 %v414
    %v1113 = vunpack.c.h.b16 %v414
    %v1114 = vunpack.c.l.b16 %v415
    %v1115 = vunpack.c.h.b16 %v415
    %v1116 = vunpack.c.l.b16 %v416
    %v1117 = vunpack.c.h.b16 %v416
    %v1118 = vunpack.c.l.b16 %v417
    %v1119 = vunpack.c.h.b16 %v417
    %v1120 = vunpack.c.l.b16 %v418
    %v1121 = vunpack.c.h.b16 %v418
    %v1122 = vunpack.c.l.b16 %v419
    %v1123 = vunpack.c.h.b16 %v419
    %v1124 = vunpack.c.l.b16 %v420
    %v1125 = vunpack.c.h.b16 %v420
    %v1126 = vunpack.c.l.b16 %v421
    %v1127 = vunpack.c.h.b16 %v421
    %v1128 = vunpack.c.l.b16 %v422
    %v1129 = vunpack.c.h.b16 %v422
    %v1130 = vunpack.c.l.b16 %v423
    %v1131 = vunpack.c.h.b16 %v423
    %v1132 = vunpack.c.l.b16 %v424
    %v1133 = vunpack.c.h.b16 %v424
    %v1134 = vunpack.c.l.b16 %v425
    %v1135 = vunpack.c.h.b16 %v425
    %v1136 = vunpack.c.l.b16 %v426
    %v1137 = vunpack.c.h.b16 %v426
    %v1138 = vunpack.c.l.b16 %v427
    %v1139 = vunpack.c.h.b16 %v427
    %v1140 = vunpack.c.l.b16 %v428
    %v1141 = vunpack.c.h.b16 %v428
    %v1142 = vunpack.c.l.b16 %v429
    %v1143 = vunpack.c.h.b16 %v429
    %v1144 = vunpack.c.l.b16 %v430
    %v1145 = vunpack.c.h.b16 %v430
    %v1146 = vunpack.c.l.b16 %v431
    %v1147 = vunpack.c.h.b16 %v431
    %v1148 = vunpack.c.l.b16 %v432
    %v1149 = vunpack.c.h.b16 %v432
    %v1150 = vunpack.c.l.b16 %v433
    %v1151 = vunpack.c.h.b16 %v433
    %v1152 = vunpack.c.l.b16 %v434
    %v1153 = vunpack.c.h.b16 %v434
    %v1154 = vunpack.c.l.b16 %v435
    %v1155 = vunpack.c.h.b16 %v435
    %v1156 = vunpack.c.l.b16 %v436
    %v1157 = vunpack.c.h.b16 %v436
    %v1158 = vunpack.c.l.b16 %v437
    %v1159 = vunpack.c.h.b16 %v437
    %v1160 = vunpack.c.l.b16 %v438
    %v1161 = vunpack.c.h.b16 %v438
    %v1162 = vunpack.c.l.b16 %v439
    %v1163 = vunpack.c.h.b16 %v439
    %v1164 = vunpack.c.l.b16 %v440
    %v1165 = vunpack.c.h.b16 %v440
    %v1166 = vunpack.c.l.b16 %v441
    %v1167 = vunpack.c.h.b16 %v441
    %v1168 = vunpack.c.l.b16 %v442
    %v1169 = vunpack.c.h.b16 %v442
    %v1170 = vunpack.c.l.b16 %v443
    %v1171 = vunpack.c.h.b16 %v443
    %v1172 = vunpack.c.l.b16 %v444
    %v1173 = vunpack.c.h.b16 %v444
    %v1174 = vunpack.c.l.b16 %v445
    %v1175 = vunpack.c.h.b16 %v445
    %v1176 = vunpack.c.l.b16 %v446
    %v1177 = vunpack.c.h.b16 %v446
    %v1178 = vunpack.c.l.b16 %v447
    %v1179 = vunpack.c.h.b16 %v447
    %v1180 = vunpack.c.l.b16 %v448
    %v1181 = vunpack.c.h.b16 %v448
    %v1182 = vunpack.c.l.b16 %v449
    %v1183 = vunpack.c.h.b16 %v449
    %v1184 = vunpack.c.l.b16 %v450
    %v1185 = vunpack.c.h.b16 %v450
    %v1186 = vunpack.c.l.b16 %v451
    %v1187 = vunpack.c.h.b16 %v451
    %v1188 = vunpack.c.l.b16 %v452
    %v1189 = vunpack.c.h.b16 %v452
    %v1190 = vunpack.c.l.b16 %v453
    %v1191 = vunpack.c.h.b16 %v453
    %v1192 = vunpack.c.l.b16 %v454
    %v1193 = vunpack.c.h.b16 %v454
    %v1194 = vunpack.c.l.b16 %v455
    %v1195 = vunpack.c.h.b16 %v455
    %v1196 = vunpack.c.l.b16 %v456
    %v1197 = vunpack.c.h.b16 %v456
    %v1198 = vunpack.c.l.b16 %v457
    %v1199 = vunpack.c.h.b16 %v457
    %v1200 = vunpack.c.l.b16 %v458
    %v1201 = vunpack.c.h.b16 %v458
    %v1202 = vunpack.c.l.b16 %v459
    %v1203 = vunpack.c.h.b16 %v459
    %v1204 = vunpack.c.l.b16 %v460
    %v1205 = vunpack.c.h.b16 %v460
    %v1206 = vunpack.c.l.b16 %v461
    %v1207 = vunpack.c.h.b16 %v461
    %v1208 = vunpack.c.l.b16 %v462
    %v1209 = vunpack.c.h.b16 %v462
    %v1210 = vunpack.c.l.b16 %v463
    %v1211 = vunpack.c.h.b16 %v463
    %v1212 = vunpack.c.l.b16 %v464
    %v1213 = vunpack.c.h.b16 %v464
    %v1214 = vunpack.c.l.b16 %v465
    %v1215 = vunpack.c.h.b16 %v465
    %v1216 = vunpack.c.l.b16 %v466
    %v1217 = vunpack.c.h.b16 %v466
    %v1218 = vunpack.c.l.b16 %v467
    %v1219 = vunpack.c.h.b16 %v467
    %v1220 = vunpack.c.l.b16 %v468
    %v1221 = vunpack.c.h.b16 %v468
    %v1222 = vunpack.c.l.b16 %v469
    %v1223 = vunpack.c.h.b16 %v469
    %v1224 = vunpack.c.l.b16 %v470
    %v1225 = vunpack.c.h.b16 %v470
    %v1226 = vunpack.c.l.b16 %v471
    %v1227 = vunpack.c.h.b16 %v471
    %v1228 = vunpack.c.l.b16 %v472
    %v1229 = vunpack.c.h.b16 %v472
    %v1230 = vunpack.c.l.b16 %v473
    %v1231 = vunpack.c.h.b16 %v473
    %v1232 = vunpack.c.l.b16 %v474
    %v1233 = vunpack.c.h.b16 %v474
    %v1234 = vunpack.c.l.b16 %v475
    %v1235 = vunpack.c.h.b16 %v475
    %v1236 = vunpack.c.l.b16 %v476
    %v1237 = vunpack.c.h.b16 %v476
    %v1238 = vunpack.c.l.b16 %v477
    %v1239 = vunpack.c.h.b16 %v477
    %v1240 = vunpack.c.l.b16 %v478
    %v1241 = vunpack.c.h.b16 %v478
    %v1242 = vunpack.c.l.b16 %v479
    %v1243 = vunpack.c.h.b16 %v479
    %v1244 = vunpack.c.l.b16 %v480
    %v1245 = vunpack.c.h.b16 %v480
    %v1246 = vunpack.c.l.b16 %v481
    %v1247 = vunpack.c.h.b16 %v481
    %v1248 = vunpack.c.l.b16 %v482
    %v1249 = vunpack.c.h.b16 %v482
    %v1250 = vunpack.c.l.b16 %v483
    %v1251 = vunpack.c.h.b16 %v483
    %v1252 = vunpack.c.l.b16 %v484
    %v1253 = vunpack.c.h.b16 %v484
    %v1254 = vunpack.c.l.b16 %v485
    %v1255 = vunpack.c.h.b16 %v485
    %v1256 = vunpack.c.l.b16 %v486
    %v1257 = vunpack.c.h.b16 %v486
    %v1258 = vunpack.c.l.b16 %v487
    %v1259 = vunpack.c.h.b16 %v487
    %v1260 = vunpack.c.l.b16 %v488
    %v1261 = vunpack.c.h.b16 %v488
    %v1262 = vunpack.c.l.b16 %v489
    %v1263 = vunpack.c.h.b16 %v489
    %v1264 = vunpack.c.l.b16 %v490
    %v1265 = vunpack.c.h.b16 %v490
    %v1266 = vunpack.c.l.b16 %v491
    %v1267 = vunpack.c.h.b16 %v491
    %v1268 = vunpack.c.l.b16 %v492
    %v1269 = vunpack.c.h.b16 %v492
    %v1270 = vunpack.c.l.b16 %v493
    %v1271 = vunpack.c.h.b16 %v493
    %v1272 = vunpack.c.l.b16 %v494
    %v1273 = vunpack.c.h.b16 %v494
    %v1274 = vunpack.c.l.b16 %v495
    %v1275 = vunpack.c.h.b16 %v495
    %v1276 = vunpack.c.l.b16 %v496
    %v1277 = vunpack.c.h.b16 %v496
    %v1278 = vunpack.c.l.b16 %v497
    %v1279 = vunpack.c.h.b16 %v497
    %v1280 = vunpack.c.l.b16 %v498
    %v1281 = vunpack.c.h.b16 %v498
    %v1282 = vunpack.c.l.b16 %v499
    %v1283 = vunpack.c.h.b16 %v499
    %v1284 = vunpack.c.l.b16 %v500
    %v1285 = vunpack.c.h.b16 %v500
    %v1286 = vunpack.c.l.b16 %v501
    %v1287 = vunpack.c.h.b16 %v501
    %v1288 = vunpack.c.l.b16 %v502
    %v1289 = vunpack.c.h.b16 %v502
    %v1290 = vunpack.c.l.b16 %v503
    %v1291 = vunpack.c.h.b16 %v503
    %v1292 = vunpack.c.l.b16 %v504
    %v1293 = vunpack.c.h.b16 %v504
    %v1294 = vunpack.c.l.b16 %v505
    %v1295 = vunpack.c.h.b16 %v505
    %v1296 = vpack.c.b16 %v788, %v784
    %v1297 = vpack.c.b16 %v789, %v785
    %v1298 = vpack.c.b16 %v790, %v786
    %v1299 = vpack.c.b16 %v791, %v787
    %v1300 = vpack.c.b16 %v796, %v792
    %v1301 = vpack.c.b16 %v797, %v793
    %v1302 = vpack.c.b16 %v798, %v794
    %v1303 = vpack.c.b16 %v799, %v795
    %v1304 = vpack.c.b16 %v804, %v800
    %v1305 = vpack.c.b16 %v805, %v801
    %v1306 = vpack.c.b16 %v806, %v802
    %v1307 = vpack.c.b16 %v807, %v803
    %v1308 = vpack.c.b16 %v812, %v808
    %v1309 = vpack.c.b16 %v813, %v809
    %v1310 = vpack.c.b16 %v814, %v810
    %v1311 = vpack.c.b16 %v815, %v811
    %v1312 = vpack.c.b16 %v820, %v816
    %v1313 = vpack.c.b16 %v821, %v817
    %v1314 = vpack.c.b16 %v822, %v818
    %v1315 = vpack.c.b16 %v823, %v819
    %v1316 = vpack.c.b16 %v828, %v824
    %v1317 = vpack.c.b16 %v829, %v825
    %v1318 = vpack.c.b16 %v830, %v826
    %v1319 = vpack.c.b16 %v831, %v827
    %v1320 = vpack.c.b16 %v836, %v832
    %v1321 = vpack.c.b16 %v837, %v833
    %v1322 = vpack.c.b16 %v838, %v834
    %v1323 = vpack.c.b16 %v839, %v835
    %v1324 = vpack.c.b16 %v844, %v840
    %v1325 = vpack.c.b16 %v845, %v841
    %v1326 = vpack.c.b16 %v846, %v842
    %v1327 = vpack.c.b16 %v847, %v843
    %v1328 = vpack.c.b16 %v852, %v848
    %v1329 = vpack.c.b16 %v853, %v849
    %v1330 = vpack.c.b16 %v854, %v850
    %v1331 = vpack.c.b16 %v855, %v851
    %v1332 = vpack.c.b16 %v860, %v856
    %v1333 = vpack.c.b16 %v861, %v857
    %v1334 = vpack.c.b16 %v862, %v858
    %v1335 = vpack.c.b16 %v863, %v859
    %v1336 = vpack.c.b16 %v868, %v864
    %v1337 = vpack.c.b16 %v869, %v865
    %v1338 = vpack.c.b16 %v870, %v866
    %v1339 = vpack.c.b16 %v871, %v867
    %v1340 = vpack.c.b16 %v876, %v872
    %v1341 = vpack.c.b16 %v877, %v873
    %v1342 = vpack.c.b16 %v878, %v874
    %v1343 = vpack.c.b16 %v879, %v875
    %v1344 = vpack.c.b16 %v884, %v880
    %v1345 = vpack.c.b16 %v885, %v881
    %v1346 = vpack.c.b16 %v886, %v882
    %v1347 = vpack.c.b16 %v887, %v883
    %v1348 = vpack.c.b16 %v892, %v888
    %v1349 = vpack.c.b16 %v893, %v889
    %v1350 = vpack.c.b16 %v894, %v890
    %v1351 = vpack.c.b16 %v895, %v891
    %v1352 = vpack.c.b16 %v900, %v896
    %v1353 = vpack.c.b16 %v901, %v897
    %v1354 = vpack.c.b16 %v902, %v898
    %v1355 = vpack.c.b16 %v903, %v899
    %v1356 = vpack.c.b16 %v908, %v904
    %v1357 = vpack.c.b16 %v909, %v905
    %v1358 = vpack.c.b16 %v910, %v906
    %v1359 = vpack.c.b16 %v911, %v907
    %v1360 = vpack.c.b16 %v916, %v912
    %v1361 = vpack.c.b16 %v917, %v913
    %v1362 = vpack.c.b16 %v918, %v914
    %v1363 = vpack.c.b16 %v919, %v915
    %v1364 = vpack.c.b16 %v924, %v920
    %v1365 = vpack.c.b16 %v925, %v921
    %v1366 = vpack.c.b16 %v926, %v922
    %v1367 = vpack.c.b16 %v927, %v923
    %v1368 = vpack.c.b16 %v932, %v928
    %v1369 = vpack.c.b16 %v933, %v929
    %v1370 = vpack.c.b16 %v934, %v930
    %v1371 = vpack.c.b16 %v935, %v931
    %v1372 = vpack.c.b16 %v940, %v936
    %v1373 = vpack.c.b16 %v941, %v937
    %v1374 = vpack.c.b16 %v942, %v938
    %v1375 = vpack.c.b16 %v943, %v939
    %v1376 = vpack.c.b16 %v948, %v944
    %v1377 = vpack.c.b16 %v949, %v945
    %v1378 = vpack.c.b16 %v950, %v946
    %v1379 = vpack.c.b16 %v951, %v947
    %v1380 = vpack.c.b16 %v956, %v952
    %v1381 = vpack.c.b16 %v957, %v953
    %v1382 = vpack.c.b16 %v958, %v954
    %v1383 = vpack.c.b16 %v959, %v955
    %v1384 = vpack.c.b16 %v964, %v960
    %v1385 = vpack.c.b16 %v965, %v961
    %v1386 = vpack.c.b16 %v966, %v962
    %v1387 = vpack.c.b16 %v967, %v963
    %v1388 = vpack.c.b16 %v972, %v968
    %v1389 = vpack.c.b16 %v973, %v969
    %v1390 = vpack.c.b16 %v974, %v970
    %v1391 = vpack.c.b16 %v975, %v971
    %v1392 = vpack.c.b16 %v980, %v976
    %v1393 = vpack.c.b16 %v981, %v977
    %v1394 = vpack.c.b16 %v982, %v978
    %v1395 = vpack.c.b16 %v983, %v979
    %v1396 = vpack.c.b16 %v988, %v984
    %v1397 = vpack.c.b16 %v989, %v985
    %v1398 = vpack.c.b16 %v990, %v986
    %v1399 = vpack.c.b16 %v991, %v987
    %v1400 = vpack.c.b16 %v996, %v992
    %v1401 = vpack.c.b16 %v997, %v993
    %v1402 = vpack.c.b16 %v998, %v994
    %v1403 = vpack.c.b16 %v999, %v995
    %v1404 = vpack.c.b16 %v1004, %v1000
    %v1405 = vpack.c.b16 %v1005, %v1001
    %v1406 = vpack.c.b16 %v1006, %v1002
    %v1407 = vpack.c.b16 %v1007, %v1003
    %v1408 = vpack.c.b16 %v1012, %v1008
    %v1409 = vpack.c.b16 %v1013, %v1009
    %v1410 = vpack.c.b16 %v1014, %v1010
    %v1411 = vpack.c.b16 %v1015, %v1011
    %v1412 = vpack.c.b16 %v1020, %v1016
    %v1413 = vpack.c.b16 %v1021, %v1017
    %v1414 = vpack.c.b16 %v1022, %v1018
    %v1415 = vpack.c.b16 %v1023, %v1019
    %v1416 = vpack.c.b16 %v1028, %v1024
    %v1417 = vpack.c.b16 %v1029, %v1025
    %v1418 = vpack.c.b16 %v1030, %v1026
    %v1419 = vpack.c.b16 %v1031, %v1027
    %v1420 = vpack.c.b16 %v1036, %v1032
    %v1421 = vpack.c.b16 %v1037, %v1033
    %v1422 = vpack.c.b16 %v1038, %v1034
    %v1423 = vpack.c.b16 %v1039, %v1035
    %v1424 = vpack.c.b16 %v1044, %v1040
    %v1425 = vpack.c.b16 %v1045, %v1041
    %v1426 = vpack.c.b16 %v1046, %v1042
    %v1427 = vpack.c.b16 %v1047, %v1043
    %v1428 = vpack.c.b16 %v1052, %v1048
    %v1429 = vpack.c.b16 %v1053, %v1049
    %v1430 = vpack.c.b16 %v1054, %v1050
    %v1431 = vpack.c.b16 %v1055, %v1051
    %v1432 = vpack.c.b16 %v1060, %v1056
    %v1433 = vpack.c.b16 %v1061, %v1057
    %v1434 = vpack.c.b16 %v1062, %v1058
    %v1435 = vpack.c.b16 %v1063, %v1059
    %v1436 = vpack.c.b16 %v1068, %v1064
    %v1437 = vpack.c.b16 %v1069, %v1065
    %v1438 = vpack.c.b16 %v1070, %v1066
    %v1439 = vpack.c.b16 %v1071, %v1067
    %v1440 = vpack.c.b16 %v1076, %v1072
    %v1441 = vpack.c.b16 %v1077, %v1073
    %v1442 = vpack.c.b16 %v1078, %v1074
    %v1443 = vpack.c.b16 %v1079, %v1075
    %v1444 = vpack.c.b16 %v1084, %v1080
    %v1445 = vpack.c.b16 %v1085, %v1081
    %v1446 = vpack.c.b16 %v1086, %v1082
    %v1447 = vpack.c.b16 %v1087, %v1083
    %v1448 = vpack.c.b16 %v1092, %v1088
    %v1449 = vpack.c.b16 %v1093, %v1089
    %v1450 = vpack.c.b16 %v1094, %v1090
    %v1451 = vpack.c.b16 %v1095, %v1091
    %v1452 = vpack.c.b16 %v1100, %v1096
    %v1453 = vpack.c.b16 %v1101, %v1097
    %v1454 = vpack.c.b16 %v1102, %v1098
    %v1455 = vpack.c.b16 %v1103, %v1099
    %v1456 = vpack.c.b16 %v1108, %v1104
    %v1457 = vpack.c.b16 %v1109, %v1105
    %v1458 = vpack.c.b16 %v1110, %v1106
    %v1459 = vpack.c.b16 %v1111, %v1107
    %v1460 = vpack.c.b16 %v1116, %v1112
    %v1461 = vpack.c.b16 %v1117, %v1113
    %v1462 = vpack.c.b16 %v1118, %v1114
    %v1463 = vpack.c.b16 %v1119, %v1115
    %v1464 = vpack.c.b16 %v1124, %v1120
    %v1465 = vpack.c.b16 %v1125, %v1121
    %v1466 = vpack.c.b16 %v1126, %v1122
    %v1467 = vpack.c.b16 %v1127, %v1123
    %v1468 = vpack.c.b16 %v1132, %v1128
    %v1469 = vpack.c.b16 %v1133, %v1129
    %v1470 = vpack.c.b16 %v1134, %v1130
    %v1471 = vpack.c.b16 %v1135, %v1131
    %v1472 = vpack.c.b16 %v1140, %v1136
    %v1473 = vpack.c.b16 %v1141, %v1137
    %v1474 = vpack.c.b16 %v1142, %v1138
    %v1475 = vpack.c.b16 %v1143, %v1139
    %v1476 = vpack.c.b16 %v1148, %v1144
    %v1477 = vpack.c.b16 %v1149, %v1145
    %v1478 = vpack.c.b16 %v1150, %v1146
    %v1479 = vpack.c.b16 %v1151, %v1147
    %v1480 = vpack.c.b16 %v1156, %v1152
    %v1481 = vpack.c.b16 %v1157, %v1153
    %v1482 = vpack.c.b16 %v1158, %v1154
    %v1483 = vpack.c.b16 %v1159, %v1155
    %v1484 = vpack.c.b16 %v1164, %v1160
    %v1485 = vpack.c.b16 %v1165, %v1161
    %v1486 = vpack.c.b16 %v1166, %v1162
    %v1487 = vpack.c.b16 %v1167, %v1163
    %v1488 = vpack.c.b16 %v1172, %v1168
    %v1489 = vpack.c.b16 %v1173, %v1169
    %v1490 = vpack.c.b16 %v1174, %v1170
    %v1491 = vpack.c.b16 %v1175, %v1171
    %v1492 = vpack.c.b16 %v1180, %v1176
    %v1493 = vpack.c.b16 %v1181, %v1177
    %v1494 = vpack.c.b16 %v1182, %v1178
    %v1495 = vpack.c.b16 %v1183, %v1179
    %v1496 = vpack.c.b16 %v1188, %v1184
    %v1497 = vpack.c.b16 %v1189, %v1185
    %v1498 = vpack.c.b16 %v1190, %v1186
    %v1499 = vpack.c.b16 %v1191, %v1187
    %v1500 = vpack.c.b16 %v1196, %v1192
    %v1501 = vpack.c.b16 %v1197, %v1193
    %v1502 = vpack.c.b16 %v1198, %v1194
    %v1503 = vpack.c.b16 %v1199, %v1195
    %v1504 = vpack.c.b16 %v1204, %v1200
    %v1505 = vpack.c.b16 %v1205, %v1201
    %v1506 = vpack.c.b16 %v1206, %v1202
    %v1507 = vpack.c.b16 %v1207, %v1203
    %v1508 = vpack.c.b16 %v1212, %v1208
    %v1509 = vpack.c.b16 %v1213, %v1209
    %v1510 = vpack.c.b16 %v1214, %v1210
    %v1511 = vpack.c.b16 %v1215, %v1211
    %v1512 = vpack.c.b16 %v1220, %v1216
    %v1513 = vpack.c.b16 %v1221, %v1217
    %v1514 = vpack.c.b16 %v1222, %v1218
    %v1515 = vpack.c.b16 %v1223, %v1219
    %v1516 = vpack.c.b16 %v1228, %v1224
    %v1517 = vpack.c.b16 %v1229, %v1225
    %v1518 = vpack.c.b16 %v1230, %v1226
    %v1519 = vpack.c.b16 %v1231, %v1227
    %v1520 = vpack.c.b16 %v1236, %v1232
    %v1521 = vpack.c.b16 %v1237, %v1233
    %v1522 = vpack.c.b16 %v1238, %v1234
    %v1523 = vpack.c.b16 %v1239, %v1235
    %v1524 = vpack.c.b16 %v1244, %v1240
    %v1525 = vpack.c.b16 %v1245, %v1241
    %v1526 = vpack.c.b16 %v1246, %v1242
    %v1527 = vpack.c.b16 %v1247, %v1243
    %v1528 = vpack.c.b16 %v1252, %v1248
    %v1529 = vpack.c.b16 %v1253, %v1249
    %v1530 = vpack.c.b16 %v1254, %v1250
    %v1531 = vpack.c.b16 %v1255, %v1251
    %v1532 = vpack.c.b16 %v1260, %v1256
    %v1533 = vpack.c.b16 %v1261, %v1257
    %v1534 = vpack.c.b16 %v1262, %v1258
    %v1535 = vpack.c.b16 %v1263, %v1259
    %v1536 = vpack.c.b16 %v1268, %v1264
    %v1537 = vpack.c.b16 %v1269, %v1265
    %v1538 = vpack.c.b16 %v1270, %v1266
    %v1539 = vpack.c.b16 %v1271, %v1267
    %v1540 = vpack.c.b16 %v1276, %v1272
    %v1541 = vpack.c.b16 %v1277, %v1273
    %v1542 = vpack.c.b16 %v1278, %v1274
    %v1543 = vpack.c.b16 %v1279, %v1275
    %v1544 = vpack.c.b16 %v1284, %v1280
    %v1545 = vpack.c.b16 %v1285, %v1281
    %v1546 = vpack.c.b16 %v1286, %v1282
    %v1547 = vpack.c.b16 %v1287, %v1283
    %v1548 = vpack.c.b16 %v1292, %v1288
    %v1549 = vpack.c.b16 %v1293, %v1289
    %v1550 = vpack.c.b16 %v1294, %v1290
    %v1551 = vpack.c.b16 %v1295, %v1291
    %1808 = vmatprep.subr.bf16.mxu0 %v1297
    %1809 = vmatpush1.bf16.msra.mxu0 %v1296
    %1810 = vmatprep.subr.bf16.mxu0 %v1301
    %1811 = vmatpush1.bf16.msra.mxu0 %v1300
    %1812 = vmatprep.subr.bf16.mxu0 %v1305
    %1813 = vmatpush1.bf16.msra.mxu0 %v1304
    %1814 = vmatprep.subr.bf16.mxu0 %v1309
    %1815 = vmatpush1.bf16.msra.mxu0 %v1308
    %1816 = vmatprep.subr.bf16.mxu0 %v1313
    %1817 = vmatpush1.bf16.msra.mxu0 %v1312
    %1818 = vmatprep.subr.bf16.mxu0 %v1317
    %1819 = vmatpush1.bf16.msra.mxu0 %v1316
    %1820 = vmatprep.subr.bf16.mxu0 %v1321
    %1821 = vmatpush1.bf16.msra.mxu0 %v1320
    %1822 = vmatprep.subr.bf16.mxu0 %v1325
    %1823 = vmatpush1.bf16.msra.mxu0 %v1324
    %1824 = vmatprep.subr.bf16.mxu0 %v1329
    %1825 = vmatpush1.bf16.msra.mxu0 %v1328
    %1826 = vmatprep.subr.bf16.mxu0 %v1333
    %1827 = vmatpush1.bf16.msra.mxu0 %v1332
    %1828 = vmatprep.subr.bf16.mxu0 %v1337
    %1829 = vmatpush1.bf16.msra.mxu0 %v1336
    %1830 = vmatprep.subr.bf16.mxu0 %v1341
    %1831 = vmatpush1.bf16.msra.mxu0 %v1340
    %1832 = vmatprep.subr.bf16.mxu0 %v1345
    %1833 = vmatpush1.bf16.msra.mxu0 %v1344
    %1834 = vmatprep.subr.bf16.mxu0 %v1349
    %1835 = vmatpush1.bf16.msra.mxu0 %v1348
    %1836 = vmatprep.subr.bf16.mxu0 %v1353
    %1837 = vmatpush1.bf16.msra.mxu0 %v1352
    %1838 = vmatprep.subr.bf16.mxu0 %v1357
    %1839 = vmatpush1.bf16.msra.mxu0 %v1356
    %1840 = vmatprep.mubr.bf16.mxu0 %v106
    %1841 = vmatmul.mubr.bf16.gmra.mrb[0].mxu0 %v105
    %v1842 = vpop.f32.mrb[0].mxu0
    %v1843 = vadd.f32 %v511, %v1842
    %v1844 = vpop.f32.mrb[0].mxu0
    %v1845 = vadd.f32 %v515, %v1844
    %v1846 = vpop.f32.mrb[0].mxu0
    %v1847 = vadd.f32 %v511, %v1846
    %v1848 = vpop.f32.mrb[0].mxu0
    %v1849 = vadd.f32 %v515, %v1848
    %1850 = vdwg.mxu0
    %1851 = vmatprep.subr.bf16.mxu0 %v1361
    %1852 = vmatpush1.bf16.msra.mxu0 %v1360
    %1853 = vmatprep.subr.bf16.mxu0 %v1365
    %1854 = vmatpush1.bf16.msra.mxu0 %v1364
    %1855 = vmatprep.subr.bf16.mxu0 %v1369
    %1856 = vmatpush1.bf16.msra.mxu0 %v1368
    %1857 = vmatprep.subr.bf16.mxu0 %v1373
    %1858 = vmatpush1.bf16.msra.mxu0 %v1372
    %1859 = vmatprep.subr.bf16.mxu0 %v1377
    %1860 = vmatpush1.bf16.msra.mxu0 %v1376
    %1861 = vmatprep.subr.bf16.mxu0 %v1381
    %1862 = vmatpush1.bf16.msra.mxu0 %v1380
    %1863 = vmatprep.subr.bf16.mxu0 %v1385
    %1864 = vmatpush1.bf16.msra.mxu0 %v1384
    %1865 = vmatprep.subr.bf16.mxu0 %v1389
    %1866 = vmatpush1.bf16.msra.mxu0 %v1388
    %1867 = vmatprep.subr.bf16.mxu0 %v1393
    %1868 = vmatpush1.bf16.msra.mxu0 %v1392
    %1869 = vmatprep.subr.bf16.mxu0 %v1397
    %1870 = vmatpush1.bf16.msra.mxu0 %v1396
    %1871 = vmatprep.subr.bf16.mxu0 %v1401
    %1872 = vmatpush1.bf16.msra.mxu0 %v1400
    %1873 = vmatprep.subr.bf16.mxu0 %v1405
    %1874 = vmatpush1.bf16.msra.mxu0 %v1404
    %1875 = vmatprep.subr.bf16.mxu0 %v1409
    %1876 = vmatpush1.bf16.msra.mxu0 %v1408
    %1877 = vmatprep.subr.bf16.mxu0 %v1413
    %1878 = vmatpush1.bf16.msra.mxu0 %v1412
    %1879 = vmatprep.subr.bf16.mxu0 %v1417
    %1880 = vmatpush1.bf16.msra.mxu0 %v1416
    %1881 = vmatprep.subr.bf16.mxu0 %v1421
    %1882 = vmatpush1.bf16.msra.mxu0 %v1420
    %1883 = vmatprep.mubr.bf16.mxu0 %v108
    %1884 = vmatmul.mubr.bf16.gmra.mrb[0].mxu0 %v107
    %v1885 = vpop.f32.mrb[0].mxu0
    %v1886 = vadd.f32 %v1843, %v1885
    %v1887 = vpop.f32.mrb[0].mxu0
    %v1888 = vadd.f32 %v1845, %v1887
    %v1889 = vpop.f32.mrb[0].mxu0
    %v1890 = vadd.f32 %v1847, %v1889
    %v1891 = vpop.f32.mrb[0].mxu0
    %v1892 = vadd.f32 %v1849, %v1891
    %1893 = vdwg.mxu0
    %1894 = vmatprep.subr.bf16.mxu0 %v1425
    %1895 = vmatpush1.bf16.msra.mxu0 %v1424
    %1896 = vmatprep.subr.bf16.mxu0 %v1429
    %1897 = vmatpush1.bf16.msra.mxu0 %v1428
    %1898 = vmatprep.subr.bf16.mxu0 %v1433
    %1899 = vmatpush1.bf16.msra.mxu0 %v1432
    %1900 = vmatprep.subr.bf16.mxu0 %v1437
    %1901 = vmatpush1.bf16.msra.mxu0 %v1436
    %1902 = vmatprep.subr.bf16.mxu0 %v1441
    %1903 = vmatpush1.bf16.msra.mxu0 %v1440
    %1904 = vmatprep.subr.bf16.mxu0 %v1445
    %1905 = vmatpush1.bf16.msra.mxu0 %v1444
    %1906 = vmatprep.subr.bf16.mxu0 %v1449
    %1907 = vmatpush1.bf16.msra.mxu0 %v1448
    %1908 = vmatprep.subr.bf16.mxu0 %v1453
    %1909 = vmatpush1.bf16.msra.mxu0 %v1452
    %1910 = vmatprep.subr.bf16.mxu0 %v1457
    %1911 = vmatpush1.bf16.msra.mxu0 %v1456
    %1912 = vmatprep.subr.bf16.mxu0 %v1461
    %1913 = vmatpush1.bf16.msra.mxu0 %v1460
    %1914 = vmatprep.subr.bf16.mxu0 %v1465
    %1915 = vmatpush1.bf16.msra.mxu0 %v1464
    %1916 = vmatprep.subr.bf16.mxu0 %v1469
    %1917 = vmatpush1.bf16.msra.mxu0 %v1468
    %1918 = vmatprep.subr.bf16.mxu0 %v1473
    %1919 = vmatpush1.bf16.msra.mxu0 %v1472
    %1920 = vmatprep.subr.bf16.mxu0 %v1477
    %1921 = vmatpush1.bf16.msra.mxu0 %v1476
    %1922 = vmatprep.subr.bf16.mxu0 %v1481
    %1923 = vmatpush1.bf16.msra.mxu0 %v1480
    %1924 = vmatprep.subr.bf16.mxu0 %v1485
    %1925 = vmatpush1.bf16.msra.mxu0 %v1484
    %1926 = vmatprep.mubr.bf16.mxu0 %v110
    %1927 = vmatmul.mubr.bf16.gmra.mrb[0].mxu0 %v109
    %v1928 = vpop.f32.mrb[0].mxu0
    %v1929 = vadd.f32 %v1886, %v1928
    %v1930 = vpop.f32.mrb[0].mxu0
    %v1931 = vadd.f32 %v1888, %v1930
    %v1932 = vpop.f32.mrb[0].mxu0
    %v1933 = vadd.f32 %v1890, %v1932
    %v1934 = vpop.f32.mrb[0].mxu0
    %v1935 = vadd.f32 %v1892, %v1934
    %1936 = vdwg.mxu0
    %1937 = vmatprep.subr.bf16.mxu0 %v1489
    %1938 = vmatpush1.bf16.msra.mxu0 %v1488
    %1939 = vmatprep.subr.bf16.mxu0 %v1493
    %1940 = vmatpush1.bf16.msra.mxu0 %v1492
    %1941 = vmatprep.subr.bf16.mxu0 %v1497
    %1942 = vmatpush1.bf16.msra.mxu0 %v1496
    %1943 = vmatprep.subr.bf16.mxu0 %v1501
    %1944 = vmatpush1.bf16.msra.mxu0 %v1500
    %1945 = vmatprep.subr.bf16.mxu0 %v1505
    %1946 = vmatpush1.bf16.msra.mxu0 %v1504
    %1947 = vmatprep.subr.bf16.mxu0 %v1509
    %1948 = vmatpush1.bf16.msra.mxu0 %v1508
    %1949 = vmatprep.subr.bf16.mxu0 %v1513
    %1950 = vmatpush1.bf16.msra.mxu0 %v1512
    %1951 = vmatprep.subr.bf16.mxu0 %v1517
    %1952 = vmatpush1.bf16.msra.mxu0 %v1516
    %1953 = vmatprep.subr.bf16.mxu0 %v1521
    %1954 = vmatpush1.bf16.msra.mxu0 %v1520
    %1955 = vmatprep.subr.bf16.mxu0 %v1525
    %1956 = vmatpush1.bf16.msra.mxu0 %v1524
    %1957 = vmatprep.subr.bf16.mxu0 %v1529
    %1958 = vmatpush1.bf16.msra.mxu0 %v1528
    %1959 = vmatprep.subr.bf16.mxu0 %v1533
    %1960 = vmatpush1.bf16.msra.mxu0 %v1532
    %1961 = vmatprep.subr.bf16.mxu0 %v1537
    %1962 = vmatpush1.bf16.msra.mxu0 %v1536
    %1963 = vmatprep.subr.bf16.mxu0 %v1541
    %1964 = vmatpush1.bf16.msra.mxu0 %v1540
    %1965 = vmatprep.subr.bf16.mxu0 %v1545
    %1966 = vmatpush1.bf16.msra.mxu0 %v1544
    %1967 = vmatprep.subr.bf16.mxu0 %v1549
    %1968 = vmatpush1.bf16.msra.mxu0 %v1548
    %1969 = vmatprep.mubr.bf16.mxu0 %v112
    %1970 = vmatmul.mubr.bf16.gmra.mrb[0].mxu0 %v111
    %v1971 = vpop.f32.mrb[0].mxu0
    %v1972 = vadd.f32 %v1929, %v1971
    %v1973 = vpop.f32.mrb[0].mxu0
    %v1974 = vadd.f32 %v1931, %v1973
    %v1975 = vpop.f32.mrb[0].mxu0
    %v1976 = vadd.f32 %v1933, %v1975
    %v1977 = vpop.f32.mrb[0].mxu0
    %v1978 = vadd.f32 %v1935, %v1977
    %1979 = vdwg.mxu0
    %1980 = vmatprep.subr.bf16.mxu0 %v1299
    %1981 = vmatpush1.bf16.msra.mxu0 %v1298
    %1982 = vmatprep.subr.bf16.mxu0 %v1303
    %1983 = vmatpush1.bf16.msra.mxu0 %v1302
    %1984 = vmatprep.subr.bf16.mxu0 %v1307
    %1985 = vmatpush1.bf16.msra.mxu0 %v1306
    %1986 = vmatprep.subr.bf16.mxu0 %v1311
    %1987 = vmatpush1.bf16.msra.mxu0 %v1310
    %1988 = vmatprep.subr.bf16.mxu0 %v1315
    %1989 = vmatpush1.bf16.msra.mxu0 %v1314
    %1990 = vmatprep.subr.bf16.mxu0 %v1319
    %1991 = vmatpush1.bf16.msra.mxu0 %v1318
    %1992 = vmatprep.subr.bf16.mxu0 %v1323
    %1993 = vmatpush1.bf16.msra.mxu0 %v1322
    %1994 = vmatprep.subr.bf16.mxu0 %v1327
    %1995 = vmatpush1.bf16.msra.mxu0 %v1326
    %1996 = vmatprep.subr.bf16.mxu0 %v1331
    %1997 = vmatpush1.bf16.msra.mxu0 %v1330
    %1998 = vmatprep.subr.bf16.mxu0 %v1335
    %1999 = vmatpush1.bf16.msra.mxu0 %v1334
    %2000 = vmatprep.subr.bf16.mxu0 %v1339
    %2001 = vmatpush1.bf16.msra.mxu0 %v1338
    %2002 = vmatprep.subr.bf16.mxu0 %v1343
    %2003 = vmatpush1.bf16.msra.mxu0 %v1342
    %2004 = vmatprep.subr.bf16.mxu0 %v1347
    %2005 = vmatpush1.bf16.msra.mxu0 %v1346
    %2006 = vmatprep.subr.bf16.mxu0 %v1351
    %2007 = vmatpush1.bf16.msra.mxu0 %v1350
    %2008 = vmatprep.subr.bf16.mxu0 %v1355
    %2009 = vmatpush1.bf16.msra.mxu0 %v1354
    %2010 = vmatprep.subr.bf16.mxu0 %v1359
    %2011 = vmatpush1.bf16.msra.mxu0 %v1358
    %2012 = vmatprep.mubr.bf16.mxu0 %v106
    %2013 = vmatmul.mubr.bf16.gmra.mrb[0].mxu0 %v105
    %v2014 = vpop.f32.mrb[0].mxu0
    %v2015 = vadd.f32 %v519, %v2014
    %v2016 = vpop.f32.mrb[0].mxu0
    %v2017 = vadd.f32 %v523, %v2016
    %v2018 = vpop.f32.mrb[0].mxu0
    %v2019 = vadd.f32 %v519, %v2018
    %v2020 = vpop.f32.mrb[0].mxu0
    %v2021 = vadd.f32 %v523, %v2020
    %2022 = vdwg.mxu0
    %2023 = vmatprep.subr.bf16.mxu0 %v1363
    %2024 = vmatpush1.bf16.msra.mxu0 %v1362
    %2025 = vmatprep.subr.bf16.mxu0 %v1367
    %2026 = vmatpush1.bf16.msra.mxu0 %v1366
    %2027 = vmatprep.subr.bf16.mxu0 %v1371
    %2028 = vmatpush1.bf16.msra.mxu0 %v1370
    %2029 = vmatprep.subr.bf16.mxu0 %v1375
    %2030 = vmatpush1.bf16.msra.mxu0 %v1374
    %2031 = vmatprep.subr.bf16.mxu0 %v1379
    %2032 = vmatpush1.bf16.msra.mxu0 %v1378
    %2033 = vmatprep.subr.bf16.mxu0 %v1383
    %2034 = vmatpush1.bf16.msra.mxu0 %v1382
    %2035 = vmatprep.subr.bf16.mxu0 %v1387
    %2036 = vmatpush1.bf16.msra.mxu0 %v1386
    %2037 = vmatprep.subr.bf16.mxu0 %v1391
    %2038 = vmatpush1.bf16.msra.mxu0 %v1390
    %2039 = vmatprep.subr.bf16.mxu0 %v1395
    %2040 = vmatpush1.bf16.msra.mxu0 %v1394
    %2041 = vmatprep.subr.bf16.mxu0 %v1399
    %2042 = vmatpush1.bf16.msra.mxu0 %v1398
    %2043 = vmatprep.subr.bf16.mxu0 %v1403
    %2044 = vmatpush1.bf16.msra.mxu0 %v1402
    %2045 = vmatprep.subr.bf16.mxu0 %v1407
    %2046 = vmatpush1.bf16.msra.mxu0 %v1406
    %2047 = vmatprep.subr.bf16.mxu0 %v1411
    %2048 = vmatpush1.bf16.msra.mxu0 %v1410
    %2049 = vmatprep.subr.bf16.mxu0 %v1415
    %2050 = vmatpush1.bf16.msra.mxu0 %v1414
    %2051 = vmatprep.subr.bf16.mxu0 %v1419
    %2052 = vmatpush1.bf16.msra.mxu0 %v1418
    %2053 = vmatprep.subr.bf16.mxu0 %v1423
    %2054 = vmatpush1.bf16.msra.mxu0 %v1422
    %2055 = vmatprep.mubr.bf16.mxu0 %v108
    %2056 = vmatmul.mubr.bf16.gmra.mrb[0].mxu0 %v107
    %v2057 = vpop.f32.mrb[0].mxu0
    %v2058 = vadd.f32 %v2015, %v2057
    %v2059 = vpop.f32.mrb[0].mxu0
    %v2060 = vadd.f32 %v2017, %v2059
    %v2061 = vpop.f32.mrb[0].mxu0
    %v2062 = vadd.f32 %v2019, %v2061
    %v2063 = vpop.f32.mrb[0].mxu0
    %v2064 = vadd.f32 %v2021, %v2063
    %2065 = vdwg.mxu0
    %2066 = vmatprep.subr.bf16.mxu0 %v1427
    %2067 = vmatpush1.bf16.msra.mxu0 %v1426
    %2068 = vmatprep.subr.bf16.mxu0 %v1431
    %2069 = vmatpush1.bf16.msra.mxu0 %v1430
    %2070 = vmatprep.subr.bf16.mxu0 %v1435
    %2071 = vmatpush1.bf16.msra.mxu0 %v1434
    %2072 = vmatprep.subr.bf16.mxu0 %v1439
    %2073 = vmatpush1.bf16.msra.mxu0 %v1438
    %2074 = vmatprep.subr.bf16.mxu0 %v1443
    %2075 = vmatpush1.bf16.msra.mxu0 %v1442
    %2076 = vmatprep.subr.bf16.mxu0 %v1447
    %2077 = vmatpush1.bf16.msra.mxu0 %v1446
    %2078 = vmatprep.subr.bf16.mxu0 %v1451
    %2079 = vmatpush1.bf16.msra.mxu0 %v1450
    %2080 = vmatprep.subr.bf16.mxu0 %v1455
    %2081 = vmatpush1.bf16.msra.mxu0 %v1454
    %2082 = vmatprep.subr.bf16.mxu0 %v1459
    %2083 = vmatpush1.bf16.msra.mxu0 %v1458
    %2084 = vmatprep.subr.bf16.mxu0 %v1463
    %2085 = vmatpush1.bf16.msra.mxu0 %v1462
    %2086 = vmatprep.subr.bf16.mxu0 %v1467
    %2087 = vmatpush1.bf16.msra.mxu0 %v1466
    %2088 = vmatprep.subr.bf16.mxu0 %v1471
    %2089 = vmatpush1.bf16.msra.mxu0 %v1470
    %2090 = vmatprep.subr.bf16.mxu0 %v1475
    %2091 = vmatpush1.bf16.msra.mxu0 %v1474
    %2092 = vmatprep.subr.bf16.mxu0 %v1479
    %2093 = vmatpush1.bf16.msra.mxu0 %v1478
    %2094 = vmatprep.subr.bf16.mxu0 %v1483
    %2095 = vmatpush1.bf16.msra.mxu0 %v1482
    %2096 = vmatprep.subr.bf16.mxu0 %v1487
    %2097 = vmatpush1.bf16.msra.mxu0 %v1486
    %2098 = vmatprep.mubr.bf16.mxu0 %v110
    %2099 = vmatmul.mubr.bf16.gmra.mrb[0].mxu0 %v109
    %v2100 = vpop.f32.mrb[0].mxu0
    %v2101 = vadd.f32 %v2058, %v2100
    %v2102 = vpop.f32.mrb[0].mxu0
    %v2103 = vadd.f32 %v2060, %v2102
    %v2104 = vpop.f32.mrb[0].mxu0
    %v2105 = vadd.f32 %v2062, %v2104
    %v2106 = vpop.f32.mrb[0].mxu0
    %v2107 = vadd.f32 %v2064, %v2106
    %2108 = vdwg.mxu0
    %2109 = vmatprep.subr.bf16.mxu0 %v1491
    %2110 = vmatpush1.bf16.msra.mxu0 %v1490
    %2111 = vmatprep.subr.bf16.mxu0 %v1495
    %2112 = vmatpush1.bf16.msra.mxu0 %v1494
    %2113 = vmatprep.subr.bf16.mxu0 %v1499
    %2114 = vmatpush1.bf16.msra.mxu0 %v1498
    %2115 = vmatprep.subr.bf16.mxu0 %v1503
    %2116 = vmatpush1.bf16.msra.mxu0 %v1502
    %2117 = vmatprep.subr.bf16.mxu0 %v1507
    %2118 = vmatpush1.bf16.msra.mxu0 %v1506
    %2119 = vmatprep.subr.bf16.mxu0 %v1511
    %2120 = vmatpush1.bf16.msra.mxu0 %v1510
    %2121 = vmatprep.subr.bf16.mxu0 %v1515
    %2122 = vmatpush1.bf16.msra.mxu0 %v1514
    %2123 = vmatprep.subr.bf16.mxu0 %v1519
    %2124 = vmatpush1.bf16.msra.mxu0 %v1518
    %2125 = vmatprep.subr.bf16.mxu0 %v1523
    %2126 = vmatpush1.bf16.msra.mxu0 %v1522
    %2127 = vmatprep.subr.bf16.mxu0 %v1527
    %2128 = vmatpush1.bf16.msra.mxu0 %v1526
    %2129 = vmatprep.subr.bf16.mxu0 %v1531
    %2130 = vmatpush1.bf16.msra.mxu0 %v1530
    %2131 = vmatprep.subr.bf16.mxu0 %v1535
    %2132 = vmatpush1.bf16.msra.mxu0 %v1534
    %2133 = vmatprep.subr.bf16.mxu0 %v1539
    %2134 = vmatpush1.bf16.msra.mxu0 %v1538
    %2135 = vmatprep.subr.bf16.mxu0 %v1543
    %2136 = vmatpush1.bf16.msra.mxu0 %v1542
    %2137 = vmatprep.subr.bf16.mxu0 %v1547
    %2138 = vmatpush1.bf16.msra.mxu0 %v1546
    %2139 = vmatprep.subr.bf16.mxu0 %v1551
    %2140 = vmatpush1.bf16.msra.mxu0 %v1550
    %2141 = vmatprep.mubr.bf16.mxu0 %v112
    %2142 = vmatmul.mubr.bf16.gmra.mrb[0].mxu0 %v111
    %v2143 = vpop.f32.mrb[0].mxu0
    %v2144 = vadd.f32 %v2101, %v2143
    %v2145 = vpop.f32.mrb[0].mxu0
    %v2146 = vadd.f32 %v2103, %v2145
    %v2147 = vpop.f32.mrb[0].mxu0
    %v2148 = vadd.f32 %v2105, %v2147
    %v2149 = vpop.f32.mrb[0].mxu0
    %v2150 = vadd.f32 %v2107, %v2149
    %2151 = vdwg.mxu0
    %v2152 = vpack.c.bf16 %v1976, %v1972
    %v2153 = vpack.c.bf16 %v1978, %v1974
    %v2154 = vpack.c.bf16 %v2148, %v2144
    %v2155 = vpack.c.bf16 %v2150, %v2146
    %vm2156 = vcmp.gt.bf16.partialorder %v2152, 0
    %vm2157 = vcmp.gt.bf16.partialorder %v2153, 0
    %vm2158 = vcmp.gt.bf16.partialorder %v2154, 0
    %vm2159 = vcmp.gt.bf16.partialorder %v2155, 0
    %v2160 = vsel %vm2156, 65537, 0
    %v2161 = vsel %vm2157, 65537, 0
    %v2162 = vsel %vm2158, 65537, 0
    %v2163 = vsel %vm2159, 65537, 0
    %v2164 = vunpack.c.l.b16 %v2160
    %v2165 = vunpack.c.l.b16 %v2161
    %v2166 = vunpack.c.l.b16 %v2162
    %v2167 = vunpack.c.l.b16 %v2163
    %v2168 = vunpack.c.h.b16 %v2160
    %v2169 = vunpack.c.h.b16 %v2161
    %v2170 = vunpack.c.h.b16 %v2162
    %v2171 = vunpack.c.h.b16 %v2163
    %v2172 = vpack.c.b16 %v2165, %v2164
    %v2173 = vpack.c.b16 %v2167, %v2166
    %v2174 = vpack.c.b16 %v2169, %v2168
    %v2175 = vpack.c.b16 %v2171, %v2170
    %vm2176 = vcmp.ne.s16.totalorder %v2172, 0
    %vm2177 = vcmp.ne.s16.totalorder %v2173, 0
    %vm2178 = vcmp.ne.s16.totalorder %v2174, 0
    %vm2179 = vcmp.ne.s16.totalorder %v2175, 0
    %v2180 = vsel %vm2176, 65537, 0
    %v2181 = vsel %vm2177, 65537, 0
    %v2182 = vsel %vm2178, 65537, 0
    %v2183 = vsel %vm2179, 65537, 0
    %v2184 = vunpack.c.l.b16 %v2180
    %v2185 = vunpack.c.h.b16 %v2180
    %v2186 = vunpack.c.l.b16 %v2181
    %v2187 = vunpack.c.h.b16 %v2181
    %v2188 = vunpack.c.l.b16 %v2182
    %v2189 = vunpack.c.h.b16 %v2182
    %v2190 = vunpack.c.l.b16 %v2183
    %v2191 = vunpack.c.h.b16 %v2183
    %vm2192 = vcmp.ne.s32.totalorder %v2184, 0
    %vm2193 = vcmp.ne.s32.totalorder %v2185, 0
    %vm2194 = vcmp.ne.s32.totalorder %v2186, 0
    %vm2195 = vcmp.ne.s32.totalorder %v2187, 0
    %vm2196 = vcmp.ne.s32.totalorder %v2188, 0
    %vm2197 = vcmp.ne.s32.totalorder %v2189, 0
    %vm2198 = vcmp.ne.s32.totalorder %v2190, 0
    %vm2199 = vcmp.ne.s32.totalorder %v2191, 0
    %vm2200 = vmand %vm226, %vm2192
    %vm2201 = vmand %vm227, %vm2193
    %vm2202 = vmand %vm228, %vm2194
    %vm2203 = vmand %vm229, %vm2195
    %vm2204 = vmand %vm230, %vm2196
    %vm2205 = vmand %vm231, %vm2197
    %vm2206 = vmand %vm232, %vm2198
    %vm2207 = vmand %vm233, %vm2199
    %vm2208 = vmpackc.low %vm2204, %vm2200
    %vm2209 = vmpackc.low %vm2205, %vm2201
    %vm2210 = vmpackc.low %vm2206, %vm2202
    %vm2211 = vmpackc.low %vm2207, %vm2203
    %v2212 = vsel %vm2208, %v2152, 0
    %v2213 = vsel %vm2209, %v2153, 0
    %v2214 = vsel %vm2210, %v2154, 0
    %v2215 = vsel %vm2211, %v2155, 0
    %v2216 = vld [vmem:[#allocation8] sm:$0xff]
    %v2217 = vld [vmem:[#allocation8 + $0x8] sm:$0xff]
    %v2218 = vld [vmem:[#allocation8 + $0x10] sm:$0xff]
    %v2219 = vld [vmem:[#allocation8 + $0x18] sm:$0xff]
    %v2220 = vld [vmem:[#allocation8 + $0x20] sm:$0xff]
    %v2221 = vld [vmem:[#allocation8 + $0x28] sm:$0xff]
    %v2222 = vld [vmem:[#allocation8 + $0x30] sm:$0xff]
    %v2223 = vld [vmem:[#allocation8 + $0x38] sm:$0xff]
    %v2224 = vld [vmem:[#allocation8 + $0x40] sm:$0xff]
    %v2225 = vld [vmem:[#allocation8 + $0x48] sm:$0xff]
    %v2226 = vld [vmem:[#allocation8 + $0x50] sm:$0xff]
    %v2227 = vld [vmem:[#allocation8 + $0x58] sm:$0xff]
    %v2228 = vld [vmem:[#allocation8 + $0x60] sm:$0xff]
    %v2229 = vld [vmem:[#allocation8 + $0x68] sm:$0xff]
    %v2230 = vld [vmem:[#allocation8 + $0x70] sm:$0xff]
    %v2231 = vld [vmem:[#allocation8 + $0x78] sm:$0xff]
    %v2232 = vld [vmem:[#allocation8 + $0x80] sm:$0xff]
    %v2233 = vld [vmem:[#allocation8 + $0x88] sm:$0xff]
    %v2234 = vld [vmem:[#allocation8 + $0x90] sm:$0xff]
    %v2235 = vld [vmem:[#allocation8 + $0x98] sm:$0xff]
    %v2236 = vld [vmem:[#allocation8 + $0xa0] sm:$0xff]
    %v2237 = vld [vmem:[#allocation8 + $0xa8] sm:$0xff]
    %v2238 = vld [vmem:[#allocation8 + $0xb0] sm:$0xff]
    %v2239 = vld [vmem:[#allocation8 + $0xb8] sm:$0xff]
    %v2240 = vld [vmem:[#allocation8 + $0xc0] sm:$0xff]
    %v2241 = vld [vmem:[#allocation8 + $0xc8] sm:$0xff]
    %v2242 = vld [vmem:[#allocation8 + $0xd0] sm:$0xff]
    %v2243 = vld [vmem:[#allocation8 + $0xd8] sm:$0xff]
    %v2244 = vld [vmem:[#allocation8 + $0xe0] sm:$0xff]
    %v2245 = vld [vmem:[#allocation8 + $0xe8] sm:$0xff]
    %v2246 = vld [vmem:[#allocation8 + $0xf0] sm:$0xff]
    %v2247 = vld [vmem:[#allocation8 + $0xf8] sm:$0xff]
    %v2248 = vld [vmem:[#allocation8 + $0x100] sm:$0xff]
    %v2249 = vld [vmem:[#allocation8 + $0x108] sm:$0xff]
    %v2250 = vld [vmem:[#allocation8 + $0x110] sm:$0xff]
    %v2251 = vld [vmem:[#allocation8 + $0x118] sm:$0xff]
    %v2252 = vld [vmem:[#allocation8 + $0x120] sm:$0xff]
    %v2253 = vld [vmem:[#allocation8 + $0x128] sm:$0xff]
    %v2254 = vld [vmem:[#allocation8 + $0x130] sm:$0xff]
    %v2255 = vld [vmem:[#allocation8 + $0x138] sm:$0xff]
    %v2256 = vld [vmem:[#allocation8 + $0x140] sm:$0xff]
    %v2257 = vld [vmem:[#allocation8 + $0x148] sm:$0xff]
    %v2258 = vld [vmem:[#allocation8 + $0x150] sm:$0xff]
    %v2259 = vld [vmem:[#allocation8 + $0x158] sm:$0xff]
    %v2260 = vld [vmem:[#allocation8 + $0x160] sm:$0xff]
    %v2261 = vld [vmem:[#allocation8 + $0x168] sm:$0xff]
    %v2262 = vld [vmem:[#allocation8 + $0x170] sm:$0xff]
    %v2263 = vld [vmem:[#allocation8 + $0x178] sm:$0xff]
    %v2264 = vld [vmem:[#allocation8 + $0x180] sm:$0xff]
    %v2265 = vld [vmem:[#allocation8 + $0x188] sm:$0xff]
    %v2266 = vld [vmem:[#allocation8 + $0x190] sm:$0xff]
    %v2267 = vld [vmem:[#allocation8 + $0x198] sm:$0xff]
    %v2268 = vld [vmem:[#allocation8 + $0x1a0] sm:$0xff]
    %v2269 = vld [vmem:[#allocation8 + $0x1a8] sm:$0xff]
    %v2270 = vld [vmem:[#allocation8 + $0x1b0] sm:$0xff]
    %v2271 = vld [vmem:[#allocation8 + $0x1b8] sm:$0xff]
    %v2272 = vld [vmem:[#allocation8 + $0x1c0] sm:$0xff]
    %v2273 = vld [vmem:[#allocation8 + $0x1c8] sm:$0xff]
    %v2274 = vld [vmem:[#allocation8 + $0x1d0] sm:$0xff]
    %v2275 = vld [vmem:[#allocation8 + $0x1d8] sm:$0xff]
    %v2276 = vld [vmem:[#allocation8 + $0x1e0] sm:$0xff]
    %v2277 = vld [vmem:[#allocation8 + $0x1e8] sm:$0xff]
    %v2278 = vld [vmem:[#allocation8 + $0x1f0] sm:$0xff]
    %v2279 = vld [vmem:[#allocation8 + $0x1f8] sm:$0xff]
    %v2280 = vld [vmem:[#allocation8 + $0x200] sm:$0xff]
    %v2281 = vld [vmem:[#allocation8 + $0x208] sm:$0xff]
    %v2282 = vld [vmem:[#allocation8 + $0x210] sm:$0xff]
    %v2283 = vld [vmem:[#allocation8 + $0x218] sm:$0xff]
    %v2284 = vld [vmem:[#allocation8 + $0x220] sm:$0xff]
    %v2285 = vld [vmem:[#allocation8 + $0x228] sm:$0xff]
    %v2286 = vld [vmem:[#allocation8 + $0x230] sm:$0xff]
    %v2287 = vld [vmem:[#allocation8 + $0x238] sm:$0xff]
    %v2288 = vld [vmem:[#allocation8 + $0x240] sm:$0xff]
    %v2289 = vld [vmem:[#allocation8 + $0x248] sm:$0xff]
    %v2290 = vld [vmem:[#allocation8 + $0x250] sm:$0xff]
    %v2291 = vld [vmem:[#allocation8 + $0x258] sm:$0xff]
    %v2292 = vld [vmem:[#allocation8 + $0x260] sm:$0xff]
    %v2293 = vld [vmem:[#allocation8 + $0x268] sm:$0xff]
    %v2294 = vld [vmem:[#allocation8 + $0x270] sm:$0xff]
    %v2295 = vld [vmem:[#allocation8 + $0x278] sm:$0xff]
    %v2296 = vld [vmem:[#allocation8 + $0x280] sm:$0xff]
    %v2297 = vld [vmem:[#allocation8 + $0x288] sm:$0xff]
    %v2298 = vld [vmem:[#allocation8 + $0x290] sm:$0xff]
    %v2299 = vld [vmem:[#allocation8 + $0x298] sm:$0xff]
    %v2300 = vld [vmem:[#allocation8 + $0x2a0] sm:$0xff]
    %v2301 = vld [vmem:[#allocation8 + $0x2a8] sm:$0xff]
    %v2302 = vld [vmem:[#allocation8 + $0x2b0] sm:$0xff]
    %v2303 = vld [vmem:[#allocation8 + $0x2b8] sm:$0xff]
    %v2304 = vld [vmem:[#allocation8 + $0x2c0] sm:$0xff]
    %v2305 = vld [vmem:[#allocation8 + $0x2c8] sm:$0xff]
    %v2306 = vld [vmem:[#allocation8 + $0x2d0] sm:$0xff]
    %v2307 = vld [vmem:[#allocation8 + $0x2d8] sm:$0xff]
    %v2308 = vld [vmem:[#allocation8 + $0x2e0] sm:$0xff]
    %v2309 = vld [vmem:[#allocation8 + $0x2e8] sm:$0xff]
    %v2310 = vld [vmem:[#allocation8 + $0x2f0] sm:$0xff]
    %v2311 = vld [vmem:[#allocation8 + $0x2f8] sm:$0xff]
    %v2312 = vld [vmem:[#allocation8 + $0x300] sm:$0xff]
    %v2313 = vld [vmem:[#allocation8 + $0x308] sm:$0xff]
    %v2314 = vld [vmem:[#allocation8 + $0x310] sm:$0xff]
    %v2315 = vld [vmem:[#allocation8 + $0x318] sm:$0xff]
    %v2316 = vld [vmem:[#allocation8 + $0x320] sm:$0xff]
    %v2317 = vld [vmem:[#allocation8 + $0x328] sm:$0xff]
    %v2318 = vld [vmem:[#allocation8 + $0x330] sm:$0xff]
    %v2319 = vld [vmem:[#allocation8 + $0x338] sm:$0xff]
    %v2320 = vld [vmem:[#allocation8 + $0x340] sm:$0xff]
    %v2321 = vld [vmem:[#allocation8 + $0x348] sm:$0xff]
    %v2322 = vld [vmem:[#allocation8 + $0x350] sm:$0xff]
    %v2323 = vld [vmem:[#allocation8 + $0x358] sm:$0xff]
    %v2324 = vld [vmem:[#allocation8 + $0x360] sm:$0xff]
    %v2325 = vld [vmem:[#allocation8 + $0x368] sm:$0xff]
    %v2326 = vld [vmem:[#allocation8 + $0x370] sm:$0xff]
    %v2327 = vld [vmem:[#allocation8 + $0x378] sm:$0xff]
    %v2328 = vld [vmem:[#allocation8 + $0x380] sm:$0xff]
    %v2329 = vld [vmem:[#allocation8 + $0x388] sm:$0xff]
    %v2330 = vld [vmem:[#allocation8 + $0x390] sm:$0xff]
    %v2331 = vld [vmem:[#allocation8 + $0x398] sm:$0xff]
    %v2332 = vld [vmem:[#allocation8 + $0x3a0] sm:$0xff]
    %v2333 = vld [vmem:[#allocation8 + $0x3a8] sm:$0xff]
    %v2334 = vld [vmem:[#allocation8 + $0x3b0] sm:$0xff]
    %v2335 = vld [vmem:[#allocation8 + $0x3b8] sm:$0xff]
    %v2336 = vld [vmem:[#allocation8 + $0x3c0] sm:$0xff]
    %v2337 = vld [vmem:[#allocation8 + $0x3c8] sm:$0xff]
    %v2338 = vld [vmem:[#allocation8 + $0x3d0] sm:$0xff]
    %v2339 = vld [vmem:[#allocation8 + $0x3d8] sm:$0xff]
    %v2340 = vld [vmem:[#allocation8 + $0x3e0] sm:$0xff]
    %v2341 = vld [vmem:[#allocation8 + $0x3e8] sm:$0xff]
    %v2342 = vld [vmem:[#allocation8 + $0x3f0] sm:$0xff]
    %v2343 = vld [vmem:[#allocation8 + $0x3f8] sm:$0xff]
    %v2344 = vld [vmem:[%s5] sm:$0xf]
    %v2346 = vlaneseq
    %v2347 = vshrl.u32 %v2346, 7
    %v2348 = vsub.s32 0, %v2347
    %v2349 = vrot.slane %v2344, %v2348
    %v2350 = vlaneseq
    %v2351 = vshrl.u32 %v2350, 7
    %v2352 = vsub.s32 1, %v2351
    %v2353 = vrot.slane %v2344, %v2352
    %v2354 = vlaneseq
    %v2355 = vshrl.u32 %v2354, 7
    %v2356 = vsub.s32 2, %v2355
    %v2357 = vrot.slane %v2344, %v2356
    %v2358 = vlaneseq
    %v2359 = vshrl.u32 %v2358, 7
    %v2360 = vsub.s32 3, %v2359
    %v2361 = vrot.slane %v2344, %v2360
    %v2494 = vunpack.c.l.b16 %v2216
    %v2495 = vunpack.c.h.b16 %v2216
    %v2496 = vunpack.c.l.b16 %v2217
    %v2497 = vunpack.c.h.b16 %v2217
    %v2498 = vunpack.c.l.b16 %v2218
    %v2499 = vunpack.c.h.b16 %v2218
    %v2500 = vunpack.c.l.b16 %v2219
    %v2501 = vunpack.c.h.b16 %v2219
    %v2502 = vunpack.c.l.b16 %v2220
    %v2503 = vunpack.c.h.b16 %v2220
    %v2504 = vunpack.c.l.b16 %v2221
    %v2505 = vunpack.c.h.b16 %v2221
    %v2506 = vunpack.c.l.b16 %v2222
    %v2507 = vunpack.c.h.b16 %v2222
    %v2508 = vunpack.c.l.b16 %v2223
    %v2509 = vunpack.c.h.b16 %v2223
    %v2510 = vunpack.c.l.b16 %v2224
    %v2511 = vunpack.c.h.b16 %v2224
    %v2512 = vunpack.c.l.b16 %v2225
    %v2513 = vunpack.c.h.b16 %v2225
    %v2514 = vunpack.c.l.b16 %v2226
    %v2515 = vunpack.c.h.b16 %v2226
    %v2516 = vunpack.c.l.b16 %v2227
    %v2517 = vunpack.c.h.b16 %v2227
    %v2518 = vunpack.c.l.b16 %v2228
    %v2519 = vunpack.c.h.b16 %v2228
    %v2520 = vunpack.c.l.b16 %v2229
    %v2521 = vunpack.c.h.b16 %v2229
    %v2522 = vunpack.c.l.b16 %v2230
    %v2523 = vunpack.c.h.b16 %v2230
    %v2524 = vunpack.c.l.b16 %v2231
    %v2525 = vunpack.c.h.b16 %v2231
    %v2526 = vunpack.c.l.b16 %v2232
    %v2527 = vunpack.c.h.b16 %v2232
    %v2528 = vunpack.c.l.b16 %v2233
    %v2529 = vunpack.c.h.b16 %v2233
    %v2530 = vunpack.c.l.b16 %v2234
    %v2531 = vunpack.c.h.b16 %v2234
    %v2532 = vunpack.c.l.b16 %v2235
    %v2533 = vunpack.c.h.b16 %v2235
    %v2534 = vunpack.c.l.b16 %v2236
    %v2535 = vunpack.c.h.b16 %v2236
    %v2536 = vunpack.c.l.b16 %v2237
    %v2537 = vunpack.c.h.b16 %v2237
    %v2538 = vunpack.c.l.b16 %v2238
    %v2539 = vunpack.c.h.b16 %v2238
    %v2540 = vunpack.c.l.b16 %v2239
    %v2541 = vunpack.c.h.b16 %v2239
    %v2542 = vunpack.c.l.b16 %v2240
    %v2543 = vunpack.c.h.b16 %v2240
    %v2544 = vunpack.c.l.b16 %v2241
    %v2545 = vunpack.c.h.b16 %v2241
    %v2546 = vunpack.c.l.b16 %v2242
    %v2547 = vunpack.c.h.b16 %v2242
    %v2548 = vunpack.c.l.b16 %v2243
    %v2549 = vunpack.c.h.b16 %v2243
    %v2550 = vunpack.c.l.b16 %v2244
    %v2551 = vunpack.c.h.b16 %v2244
    %v2552 = vunpack.c.l.b16 %v2245
    %v2553 = vunpack.c.h.b16 %v2245
    %v2554 = vunpack.c.l.b16 %v2246
    %v2555 = vunpack.c.h.b16 %v2246
    %v2556 = vunpack.c.l.b16 %v2247
    %v2557 = vunpack.c.h.b16 %v2247
    %v2558 = vunpack.c.l.b16 %v2248
    %v2559 = vunpack.c.h.b16 %v2248
    %v2560 = vunpack.c.l.b16 %v2249
    %v2561 = vunpack.c.h.b16 %v2249
    %v2562 = vunpack.c.l.b16 %v2250
    %v2563 = vunpack.c.h.b16 %v2250
    %v2564 = vunpack.c.l.b16 %v2251
    %v2565 = vunpack.c.h.b16 %v2251
    %v2566 = vunpack.c.l.b16 %v2252
    %v2567 = vunpack.c.h.b16 %v2252
    %v2568 = vunpack.c.l.b16 %v2253
    %v2569 = vunpack.c.h.b16 %v2253
    %v2570 = vunpack.c.l.b16 %v2254
    %v2571 = vunpack.c.h.b16 %v2254
    %v2572 = vunpack.c.l.b16 %v2255
    %v2573 = vunpack.c.h.b16 %v2255
    %v2574 = vunpack.c.l.b16 %v2256
    %v2575 = vunpack.c.h.b16 %v2256
    %v2576 = vunpack.c.l.b16 %v2257
    %v2577 = vunpack.c.h.b16 %v2257
    %v2578 = vunpack.c.l.b16 %v2258
    %v2579 = vunpack.c.h.b16 %v2258
    %v2580 = vunpack.c.l.b16 %v2259
    %v2581 = vunpack.c.h.b16 %v2259
    %v2582 = vunpack.c.l.b16 %v2260
    %v2583 = vunpack.c.h.b16 %v2260
    %v2584 = vunpack.c.l.b16 %v2261
    %v2585 = vunpack.c.h.b16 %v2261
    %v2586 = vunpack.c.l.b16 %v2262
    %v2587 = vunpack.c.h.b16 %v2262
    %v2588 = vunpack.c.l.b16 %v2263
    %v2589 = vunpack.c.h.b16 %v2263
    %v2590 = vunpack.c.l.b16 %v2264
    %v2591 = vunpack.c.h.b16 %v2264
    %v2592 = vunpack.c.l.b16 %v2265
    %v2593 = vunpack.c.h.b16 %v2265
    %v2594 = vunpack.c.l.b16 %v2266
    %v2595 = vunpack.c.h.b16 %v2266
    %v2596 = vunpack.c.l.b16 %v2267
    %v2597 = vunpack.c.h.b16 %v2267
    %v2598 = vunpack.c.l.b16 %v2268
    %v2599 = vunpack.c.h.b16 %v2268
    %v2600 = vunpack.c.l.b16 %v2269
    %v2601 = vunpack.c.h.b16 %v2269
    %v2602 = vunpack.c.l.b16 %v2270
    %v2603 = vunpack.c.h.b16 %v2270
    %v2604 = vunpack.c.l.b16 %v2271
    %v2605 = vunpack.c.h.b16 %v2271
    %v2606 = vunpack.c.l.b16 %v2272
    %v2607 = vunpack.c.h.b16 %v2272
    %v2608 = vunpack.c.l.b16 %v2273
    %v2609 = vunpack.c.h.b16 %v2273
    %v2610 = vunpack.c.l.b16 %v2274
    %v2611 = vunpack.c.h.b16 %v2274
    %v2612 = vunpack.c.l.b16 %v2275
    %v2613 = vunpack.c.h.b16 %v2275
    %v2614 = vunpack.c.l.b16 %v2276
    %v2615 = vunpack.c.h.b16 %v2276
    %v2616 = vunpack.c.l.b16 %v2277
    %v2617 = vunpack.c.h.b16 %v2277
    %v2618 = vunpack.c.l.b16 %v2278
    %v2619 = vunpack.c.h.b16 %v2278
    %v2620 = vunpack.c.l.b16 %v2279
    %v2621 = vunpack.c.h.b16 %v2279
    %v2622 = vunpack.c.l.b16 %v2280
    %v2623 = vunpack.c.h.b16 %v2280
    %v2624 = vunpack.c.l.b16 %v2281
    %v2625 = vunpack.c.h.b16 %v2281
    %v2626 = vunpack.c.l.b16 %v2282
    %v2627 = vunpack.c.h.b16 %v2282
    %v2628 = vunpack.c.l.b16 %v2283
    %v2629 = vunpack.c.h.b16 %v2283
    %v2630 = vunpack.c.l.b16 %v2284
    %v2631 = vunpack.c.h.b16 %v2284
    %v2632 = vunpack.c.l.b16 %v2285
    %v2633 = vunpack.c.h.b16 %v2285
    %v2634 = vunpack.c.l.b16 %v2286
    %v2635 = vunpack.c.h.b16 %v2286
    %v2636 = vunpack.c.l.b16 %v2287
    %v2637 = vunpack.c.h.b16 %v2287
    %v2638 = vunpack.c.l.b16 %v2288
    %v2639 = vunpack.c.h.b16 %v2288
    %v2640 = vunpack.c.l.b16 %v2289
    %v2641 = vunpack.c.h.b16 %v2289
    %v2642 = vunpack.c.l.b16 %v2290
    %v2643 = vunpack.c.h.b16 %v2290
    %v2644 = vunpack.c.l.b16 %v2291
    %v2645 = vunpack.c.h.b16 %v2291
    %v2646 = vunpack.c.l.b16 %v2292
    %v2647 = vunpack.c.h.b16 %v2292
    %v2648 = vunpack.c.l.b16 %v2293
    %v2649 = vunpack.c.h.b16 %v2293
    %v2650 = vunpack.c.l.b16 %v2294
    %v2651 = vunpack.c.h.b16 %v2294
    %v2652 = vunpack.c.l.b16 %v2295
    %v2653 = vunpack.c.h.b16 %v2295
    %v2654 = vunpack.c.l.b16 %v2296
    %v2655 = vunpack.c.h.b16 %v2296
    %v2656 = vunpack.c.l.b16 %v2297
    %v2657 = vunpack.c.h.b16 %v2297
    %v2658 = vunpack.c.l.b16 %v2298
    %v2659 = vunpack.c.h.b16 %v2298
    %v2660 = vunpack.c.l.b16 %v2299
    %v2661 = vunpack.c.h.b16 %v2299
    %v2662 = vunpack.c.l.b16 %v2300
    %v2663 = vunpack.c.h.b16 %v2300
    %v2664 = vunpack.c.l.b16 %v2301
    %v2665 = vunpack.c.h.b16 %v2301
    %v2666 = vunpack.c.l.b16 %v2302
    %v2667 = vunpack.c.h.b16 %v2302
    %v2668 = vunpack.c.l.b16 %v2303
    %v2669 = vunpack.c.h.b16 %v2303
    %v2670 = vunpack.c.l.b16 %v2304
    %v2671 = vunpack.c.h.b16 %v2304
    %v2672 = vunpack.c.l.b16 %v2305
    %v2673 = vunpack.c.h.b16 %v2305
    %v2674 = vunpack.c.l.b16 %v2306
    %v2675 = vunpack.c.h.b16 %v2306
    %v2676 = vunpack.c.l.b16 %v2307
    %v2677 = vunpack.c.h.b16 %v2307
    %v2678 = vunpack.c.l.b16 %v2308
    %v2679 = vunpack.c.h.b16 %v2308
    %v2680 = vunpack.c.l.b16 %v2309
    %v2681 = vunpack.c.h.b16 %v2309
    %v2682 = vunpack.c.l.b16 %v2310
    %v2683 = vunpack.c.h.b16 %v2310
    %v2684 = vunpack.c.l.b16 %v2311
    %v2685 = vunpack.c.h.b16 %v2311
    %v2686 = vunpack.c.l.b16 %v2312
    %v2687 = vunpack.c.h.b16 %v2312
    %v2688 = vunpack.c.l.b16 %v2313
    %v2689 = vunpack.c.h.b16 %v2313
    %v2690 = vunpack.c.l.b16 %v2314
    %v2691 = vunpack.c.h.b16 %v2314
    %v2692 = vunpack.c.l.b16 %v2315
    %v2693 = vunpack.c.h.b16 %v2315
    %v2694 = vunpack.c.l.b16 %v2316
    %v2695 = vunpack.c.h.b16 %v2316
    %v2696 = vunpack.c.l.b16 %v2317
    %v2697 = vunpack.c.h.b16 %v2317
    %v2698 = vunpack.c.l.b16 %v2318
    %v2699 = vunpack.c.h.b16 %v2318
    %v2700 = vunpack.c.l.b16 %v2319
    %v2701 = vunpack.c.h.b16 %v2319
    %v2702 = vunpack.c.l.b16 %v2320
    %v2703 = vunpack.c.h.b16 %v2320
    %v2704 = vunpack.c.l.b16 %v2321
    %v2705 = vunpack.c.h.b16 %v2321
    %v2706 = vunpack.c.l.b16 %v2322
    %v2707 = vunpack.c.h.b16 %v2322
    %v2708 = vunpack.c.l.b16 %v2323
    %v2709 = vunpack.c.h.b16 %v2323
    %v2710 = vunpack.c.l.b16 %v2324
    %v2711 = vunpack.c.h.b16 %v2324
    %v2712 = vunpack.c.l.b16 %v2325
    %v2713 = vunpack.c.h.b16 %v2325
    %v2714 = vunpack.c.l.b16 %v2326
    %v2715 = vunpack.c.h.b16 %v2326
    %v2716 = vunpack.c.l.b16 %v2327
    %v2717 = vunpack.c.h.b16 %v2327
    %v2718 = vunpack.c.l.b16 %v2328
    %v2719 = vunpack.c.h.b16 %v2328
    %v2720 = vunpack.c.l.b16 %v2329
    %v2721 = vunpack.c.h.b16 %v2329
    %v2722 = vunpack.c.l.b16 %v2330
    %v2723 = vunpack.c.h.b16 %v2330
    %v2724 = vunpack.c.l.b16 %v2331
    %v2725 = vunpack.c.h.b16 %v2331
    %v2726 = vunpack.c.l.b16 %v2332
    %v2727 = vunpack.c.h.b16 %v2332
    %v2728 = vunpack.c.l.b16 %v2333
    %v2729 = vunpack.c.h.b16 %v2333
    %v2730 = vunpack.c.l.b16 %v2334
    %v2731 = vunpack.c.h.b16 %v2334
    %v2732 = vunpack.c.l.b16 %v2335
    %v2733 = vunpack.c.h.b16 %v2335
    %v2734 = vunpack.c.l.b16 %v2336
    %v2735 = vunpack.c.h.b16 %v2336
    %v2736 = vunpack.c.l.b16 %v2337
    %v2737 = vunpack.c.h.b16 %v2337
    %v2738 = vunpack.c.l.b16 %v2338
    %v2739 = vunpack.c.h.b16 %v2338
    %v2740 = vunpack.c.l.b16 %v2339
    %v2741 = vunpack.c.h.b16 %v2339
    %v2742 = vunpack.c.l.b16 %v2340
    %v2743 = vunpack.c.h.b16 %v2340
    %v2744 = vunpack.c.l.b16 %v2341
    %v2745 = vunpack.c.h.b16 %v2341
    %v2746 = vunpack.c.l.b16 %v2342
    %v2747 = vunpack.c.h.b16 %v2342
    %v2748 = vunpack.c.l.b16 %v2343
    %v2749 = vunpack.c.h.b16 %v2343
    %v2750 = vpack.c.b16 %v2498, %v2494
    %v2751 = vpack.c.b16 %v2499, %v2495
    %v2752 = vpack.c.b16 %v2500, %v2496
    %v2753 = vpack.c.b16 %v2501, %v2497
    %v2754 = vpack.c.b16 %v2506, %v2502
    %v2755 = vpack.c.b16 %v2507, %v2503
    %v2756 = vpack.c.b16 %v2508, %v2504
    %v2757 = vpack.c.b16 %v2509, %v2505
    %v2758 = vpack.c.b16 %v2514, %v2510
    %v2759 = vpack.c.b16 %v2515, %v2511
    %v2760 = vpack.c.b16 %v2516, %v2512
    %v2761 = vpack.c.b16 %v2517, %v2513
    %v2762 = vpack.c.b16 %v2522, %v2518
    %v2763 = vpack.c.b16 %v2523, %v2519
    %v2764 = vpack.c.b16 %v2524, %v2520
    %v2765 = vpack.c.b16 %v2525, %v2521
    %v2766 = vpack.c.b16 %v2530, %v2526
    %v2767 = vpack.c.b16 %v2531, %v2527
    %v2768 = vpack.c.b16 %v2532, %v2528
    %v2769 = vpack.c.b16 %v2533, %v2529
    %v2770 = vpack.c.b16 %v2538, %v2534
    %v2771 = vpack.c.b16 %v2539, %v2535
    %v2772 = vpack.c.b16 %v2540, %v2536
    %v2773 = vpack.c.b16 %v2541, %v2537
    %v2774 = vpack.c.b16 %v2546, %v2542
    %v2775 = vpack.c.b16 %v2547, %v2543
    %v2776 = vpack.c.b16 %v2548, %v2544
    %v2777 = vpack.c.b16 %v2549, %v2545
    %v2778 = vpack.c.b16 %v2554, %v2550
    %v2779 = vpack.c.b16 %v2555, %v2551
    %v2780 = vpack.c.b16 %v2556, %v2552
    %v2781 = vpack.c.b16 %v2557, %v2553
    %v2782 = vpack.c.b16 %v2562, %v2558
    %v2783 = vpack.c.b16 %v2563, %v2559
    %v2784 = vpack.c.b16 %v2564, %v2560
    %v2785 = vpack.c.b16 %v2565, %v2561
    %v2786 = vpack.c.b16 %v2570, %v2566
    %v2787 = vpack.c.b16 %v2571, %v2567
    %v2788 = vpack.c.b16 %v2572, %v2568
    %v2789 = vpack.c.b16 %v2573, %v2569
    %v2790 = vpack.c.b16 %v2578, %v2574
    %v2791 = vpack.c.b16 %v2579, %v2575
    %v2792 = vpack.c.b16 %v2580, %v2576
    %v2793 = vpack.c.b16 %v2581, %v2577
    %v2794 = vpack.c.b16 %v2586, %v2582
    %v2795 = vpack.c.b16 %v2587, %v2583
    %v2796 = vpack.c.b16 %v2588, %v2584
    %v2797 = vpack.c.b16 %v2589, %v2585
    %v2798 = vpack.c.b16 %v2594, %v2590
    %v2799 = vpack.c.b16 %v2595, %v2591
    %v2800 = vpack.c.b16 %v2596, %v2592
    %v2801 = vpack.c.b16 %v2597, %v2593
    %v2802 = vpack.c.b16 %v2602, %v2598
    %v2803 = vpack.c.b16 %v2603, %v2599
    %v2804 = vpack.c.b16 %v2604, %v2600
    %v2805 = vpack.c.b16 %v2605, %v2601
    %v2806 = vpack.c.b16 %v2610, %v2606
    %v2807 = vpack.c.b16 %v2611, %v2607
    %v2808 = vpack.c.b16 %v2612, %v2608
    %v2809 = vpack.c.b16 %v2613, %v2609
    %v2810 = vpack.c.b16 %v2618, %v2614
    %v2811 = vpack.c.b16 %v2619, %v2615
    %v2812 = vpack.c.b16 %v2620, %v2616
    %v2813 = vpack.c.b16 %v2621, %v2617
    %v2814 = vpack.c.b16 %v2626, %v2622
    %v2815 = vpack.c.b16 %v2627, %v2623
    %v2816 = vpack.c.b16 %v2628, %v2624
    %v2817 = vpack.c.b16 %v2629, %v2625
    %v2818 = vpack.c.b16 %v2634, %v2630
    %v2819 = vpack.c.b16 %v2635, %v2631
    %v2820 = vpack.c.b16 %v2636, %v2632
    %v2821 = vpack.c.b16 %v2637, %v2633
    %v2822 = vpack.c.b16 %v2642, %v2638
    %v2823 = vpack.c.b16 %v2643, %v2639
    %v2824 = vpack.c.b16 %v2644, %v2640
    %v2825 = vpack.c.b16 %v2645, %v2641
    %v2826 = vpack.c.b16 %v2650, %v2646
    %v2827 = vpack.c.b16 %v2651, %v2647
    %v2828 = vpack.c.b16 %v2652, %v2648
    %v2829 = vpack.c.b16 %v2653, %v2649
    %v2830 = vpack.c.b16 %v2658, %v2654
    %v2831 = vpack.c.b16 %v2659, %v2655
    %v2832 = vpack.c.b16 %v2660, %v2656
    %v2833 = vpack.c.b16 %v2661, %v2657
    %v2834 = vpack.c.b16 %v2666, %v2662
    %v2835 = vpack.c.b16 %v2667, %v2663
    %v2836 = vpack.c.b16 %v2668, %v2664
    %v2837 = vpack.c.b16 %v2669, %v2665
    %v2838 = vpack.c.b16 %v2674, %v2670
    %v2839 = vpack.c.b16 %v2675, %v2671
    %v2840 = vpack.c.b16 %v2676, %v2672
    %v2841 = vpack.c.b16 %v2677, %v2673
    %v2842 = vpack.c.b16 %v2682, %v2678
    %v2843 = vpack.c.b16 %v2683, %v2679
    %v2844 = vpack.c.b16 %v2684, %v2680
    %v2845 = vpack.c.b16 %v2685, %v2681
    %v2846 = vpack.c.b16 %v2690, %v2686
    %v2847 = vpack.c.b16 %v2691, %v2687
    %v2848 = vpack.c.b16 %v2692, %v2688
    %v2849 = vpack.c.b16 %v2693, %v2689
    %v2850 = vpack.c.b16 %v2698, %v2694
    %v2851 = vpack.c.b16 %v2699, %v2695
    %v2852 = vpack.c.b16 %v2700, %v2696
    %v2853 = vpack.c.b16 %v2701, %v2697
    %v2854 = vpack.c.b16 %v2706, %v2702
    %v2855 = vpack.c.b16 %v2707, %v2703
    %v2856 = vpack.c.b16 %v2708, %v2704
    %v2857 = vpack.c.b16 %v2709, %v2705
    %v2858 = vpack.c.b16 %v2714, %v2710
    %v2859 = vpack.c.b16 %v2715, %v2711
    %v2860 = vpack.c.b16 %v2716, %v2712
    %v2861 = vpack.c.b16 %v2717, %v2713
    %v2862 = vpack.c.b16 %v2722, %v2718
    %v2863 = vpack.c.b16 %v2723, %v2719
    %v2864 = vpack.c.b16 %v2724, %v2720
    %v2865 = vpack.c.b16 %v2725, %v2721
    %v2866 = vpack.c.b16 %v2730, %v2726
    %v2867 = vpack.c.b16 %v2731, %v2727
    %v2868 = vpack.c.b16 %v2732, %v2728
    %v2869 = vpack.c.b16 %v2733, %v2729
    %v2870 = vpack.c.b16 %v2738, %v2734
    %v2871 = vpack.c.b16 %v2739, %v2735
    %v2872 = vpack.c.b16 %v2740, %v2736
    %v2873 = vpack.c.b16 %v2741, %v2737
    %v2874 = vpack.c.b16 %v2746, %v2742
    %v2875 = vpack.c.b16 %v2747, %v2743
    %v2876 = vpack.c.b16 %v2748, %v2744
    %v2877 = vpack.c.b16 %v2749, %v2745
    %3006 = vmatprep.subr.bf16.mxu0 %v2751
    %3007 = vmatpush1.bf16.msra.mxu0 %v2750
    %3008 = vmatprep.subr.bf16.mxu0 %v2755
    %3009 = vmatpush1.bf16.msra.mxu0 %v2754
    %3010 = vmatprep.subr.bf16.mxu0 %v2759
    %3011 = vmatpush1.bf16.msra.mxu0 %v2758
    %3012 = vmatprep.subr.bf16.mxu0 %v2763
    %3013 = vmatpush1.bf16.msra.mxu0 %v2762
    %3014 = vmatprep.subr.bf16.mxu0 %v2767
    %3015 = vmatpush1.bf16.msra.mxu0 %v2766
    %3016 = vmatprep.subr.bf16.mxu0 %v2771
    %3017 = vmatpush1.bf16.msra.mxu0 %v2770
    %3018 = vmatprep.subr.bf16.mxu0 %v2775
    %3019 = vmatpush1.bf16.msra.mxu0 %v2774
    %3020 = vmatprep.subr.bf16.mxu0 %v2779
    %3021 = vmatpush1.bf16.msra.mxu0 %v2778
    %3022 = vmatprep.subr.bf16.mxu0 %v2783
    %3023 = vmatpush1.bf16.msra.mxu0 %v2782
    %3024 = vmatprep.subr.bf16.mxu0 %v2787
    %3025 = vmatpush1.bf16.msra.mxu0 %v2786
    %3026 = vmatprep.subr.bf16.mxu0 %v2791
    %3027 = vmatpush1.bf16.msra.mxu0 %v2790
    %3028 = vmatprep.subr.bf16.mxu0 %v2795
    %3029 = vmatpush1.bf16.msra.mxu0 %v2794
    %3030 = vmatprep.subr.bf16.mxu0 %v2799
    %3031 = vmatpush1.bf16.msra.mxu0 %v2798
    %3032 = vmatprep.subr.bf16.mxu0 %v2803
    %3033 = vmatpush1.bf16.msra.mxu0 %v2802
    %3034 = vmatprep.subr.bf16.mxu0 %v2807
    %3035 = vmatpush1.bf16.msra.mxu0 %v2806
    %3036 = vmatprep.subr.bf16.mxu0 %v2811
    %3037 = vmatpush1.bf16.msra.mxu0 %v2810
    %3038 = vmatprep.mubr.bf16.mxu0 %v2213
    %3039 = vmatmul.mubr.bf16.gmra.mrb[0].mxu0 %v2212
    %v3040 = vpop.f32.mrb[0].mxu0
    %v3041 = vadd.f32 %v2349, %v3040
    %v3042 = vpop.f32.mrb[0].mxu0
    %v3043 = vadd.f32 %v2353, %v3042
    %v3044 = vpop.f32.mrb[0].mxu0
    %v3045 = vadd.f32 %v2349, %v3044
    %v3046 = vpop.f32.mrb[0].mxu0
    %v3047 = vadd.f32 %v2353, %v3046
    %3048 = vdwg.mxu0
    %3049 = vmatprep.subr.bf16.mxu0 %v2815
    %3050 = vmatpush1.bf16.msra.mxu0 %v2814
    %3051 = vmatprep.subr.bf16.mxu0 %v2819
    %3052 = vmatpush1.bf16.msra.mxu0 %v2818
    %3053 = vmatprep.subr.bf16.mxu0 %v2823
    %3054 = vmatpush1.bf16.msra.mxu0 %v2822
    %3055 = vmatprep.subr.bf16.mxu0 %v2827
    %3056 = vmatpush1.bf16.msra.mxu0 %v2826
    %3057 = vmatprep.subr.bf16.mxu0 %v2831
    %3058 = vmatpush1.bf16.msra.mxu0 %v2830
    %3059 = vmatprep.subr.bf16.mxu0 %v2835
    %3060 = vmatpush1.bf16.msra.mxu0 %v2834
    %3061 = vmatprep.subr.bf16.mxu0 %v2839
    %3062 = vmatpush1.bf16.msra.mxu0 %v2838
    %3063 = vmatprep.subr.bf16.mxu0 %v2843
    %3064 = vmatpush1.bf16.msra.mxu0 %v2842
    %3065 = vmatprep.subr.bf16.mxu0 %v2847
    %3066 = vmatpush1.bf16.msra.mxu0 %v2846
    %3067 = vmatprep.subr.bf16.mxu0 %v2851
    %3068 = vmatpush1.bf16.msra.mxu0 %v2850
    %3069 = vmatprep.subr.bf16.mxu0 %v2855
    %3070 = vmatpush1.bf16.msra.mxu0 %v2854
    %3071 = vmatprep.subr.bf16.mxu0 %v2859
    %3072 = vmatpush1.bf16.msra.mxu0 %v2858
    %3073 = vmatprep.subr.bf16.mxu0 %v2863
    %3074 = vmatpush1.bf16.msra.mxu0 %v2862
    %3075 = vmatprep.subr.bf16.mxu0 %v2867
    %3076 = vmatpush1.bf16.msra.mxu0 %v2866
    %3077 = vmatprep.subr.bf16.mxu0 %v2871
    %3078 = vmatpush1.bf16.msra.mxu0 %v2870
    %3079 = vmatprep.subr.bf16.mxu0 %v2875
    %3080 = vmatpush1.bf16.msra.mxu0 %v2874
    %3081 = vmatprep.mubr.bf16.mxu0 %v2215
    %3082 = vmatmul.mubr.bf16.gmra.mrb[0].mxu0 %v2214
    %v3083 = vpop.f32.mrb[0].mxu0
    %v3084 = vadd.f32 %v3041, %v3083
    %v3085 = vpop.f32.mrb[0].mxu0
    %v3086 = vadd.f32 %v3043, %v3085
    %v3087 = vpop.f32.mrb[0].mxu0
    %v3088 = vadd.f32 %v3045, %v3087
    %v3089 = vpop.f32.mrb[0].mxu0
    %v3090 = vadd.f32 %v3047, %v3089
    %3091 = vdwg.mxu0
    %3092 = vmatprep.subr.bf16.mxu0 %v2753
    %3093 = vmatpush1.bf16.msra.mxu0 %v2752
    %3094 = vmatprep.subr.bf16.mxu0 %v2757
    %3095 = vmatpush1.bf16.msra.mxu0 %v2756
    %3096 = vmatprep.subr.bf16.mxu0 %v2761
    %3097 = vmatpush1.bf16.msra.mxu0 %v2760
    %3098 = vmatprep.subr.bf16.mxu0 %v2765
    %3099 = vmatpush1.bf16.msra.mxu0 %v2764
    %3100 = vmatprep.subr.bf16.mxu0 %v2769
    %3101 = vmatpush1.bf16.msra.mxu0 %v2768
    %3102 = vmatprep.subr.bf16.mxu0 %v2773
    %3103 = vmatpush1.bf16.msra.mxu0 %v2772
    %3104 = vmatprep.subr.bf16.mxu0 %v2777
    %3105 = vmatpush1.bf16.msra.mxu0 %v2776
    %3106 = vmatprep.subr.bf16.mxu0 %v2781
    %3107 = vmatpush1.bf16.msra.mxu0 %v2780
    %3108 = vmatprep.subr.bf16.mxu0 %v2785
    %3109 = vmatpush1.bf16.msra.mxu0 %v2784
    %3110 = vmatprep.subr.bf16.mxu0 %v2789
    %3111 = vmatpush1.bf16.msra.mxu0 %v2788
    %3112 = vmatprep.subr.bf16.mxu0 %v2793
    %3113 = vmatpush1.bf16.msra.mxu0 %v2792
    %3114 = vmatprep.subr.bf16.mxu0 %v2797
    %3115 = vmatpush1.bf16.msra.mxu0 %v2796
    %3116 = vmatprep.subr.bf16.mxu0 %v2801
    %3117 = vmatpush1.bf16.msra.mxu0 %v2800
    %3118 = vmatprep.subr.bf16.mxu0 %v2805
    %3119 = vmatpush1.bf16.msra.mxu0 %v2804
    %3120 = vmatprep.subr.bf16.mxu0 %v2809
    %3121 = vmatpush1.bf16.msra.mxu0 %v2808
    %3122 = vmatprep.subr.bf16.mxu0 %v2813
    %3123 = vmatpush1.bf16.msra.mxu0 %v2812
    %3124 = vmatprep.mubr.bf16.mxu0 %v2213
    %3125 = vmatmul.mubr.bf16.gmra.mrb[0].mxu0 %v2212
    %v3126 = vpop.f32.mrb[0].mxu0
    %v3127 = vadd.f32 %v2357, %v3126
    %v3128 = vpop.f32.mrb[0].mxu0
    %v3129 = vadd.f32 %v2361, %v3128
    %v3130 = vpop.f32.mrb[0].mxu0
    %v3131 = vadd.f32 %v2357, %v3130
    %v3132 = vpop.f32.mrb[0].mxu0
    %v3133 = vadd.f32 %v2361, %v3132
    %3134 = vdwg.mxu0
    %3135 = vmatprep.subr.bf16.mxu0 %v2817
    %3136 = vmatpush1.bf16.msra.mxu0 %v2816
    %3137 = vmatprep.subr.bf16.mxu0 %v2821
    %3138 = vmatpush1.bf16.msra.mxu0 %v2820
    %3139 = vmatprep.subr.bf16.mxu0 %v2825
    %3140 = vmatpush1.bf16.msra.mxu0 %v2824
    %3141 = vmatprep.subr.bf16.mxu0 %v2829
    %3142 = vmatpush1.bf16.msra.mxu0 %v2828
    %3143 = vmatprep.subr.bf16.mxu0 %v2833
    %3144 = vmatpush1.bf16.msra.mxu0 %v2832
    %3145 = vmatprep.subr.bf16.mxu0 %v2837
    %3146 = vmatpush1.bf16.msra.mxu0 %v2836
    %3147 = vmatprep.subr.bf16.mxu0 %v2841
    %3148 = vmatpush1.bf16.msra.mxu0 %v2840
    %3149 = vmatprep.subr.bf16.mxu0 %v2845
    %3150 = vmatpush1.bf16.msra.mxu0 %v2844
    %3151 = vmatprep.subr.bf16.mxu0 %v2849
    %3152 = vmatpush1.bf16.msra.mxu0 %v2848
    %3153 = vmatprep.subr.bf16.mxu0 %v2853
    %3154 = vmatpush1.bf16.msra.mxu0 %v2852
    %3155 = vmatprep.subr.bf16.mxu0 %v2857
    %3156 = vmatpush1.bf16.msra.mxu0 %v2856
    %3157 = vmatprep.subr.bf16.mxu0 %v2861
    %3158 = vmatpush1.bf16.msra.mxu0 %v2860
    %3159 = vmatprep.subr.bf16.mxu0 %v2865
    %3160 = vmatpush1.bf16.msra.mxu0 %v2864
    %3161 = vmatprep.subr.bf16.mxu0 %v2869
    %3162 = vmatpush1.bf16.msra.mxu0 %v2868
    %3163 = vmatprep.subr.bf16.mxu0 %v2873
    %3164 = vmatpush1.bf16.msra.mxu0 %v2872
    %3165 = vmatprep.subr.bf16.mxu0 %v2877
    %3166 = vmatpush1.bf16.msra.mxu0 %v2876
    %3167 = vmatprep.mubr.bf16.mxu0 %v2215
    %3168 = vmatmul.mubr.bf16.gmra.mrb[0].mxu0 %v2214
    %v3169 = vpop.f32.mrb[0].mxu0
    %v3170 = vadd.f32 %v3127, %v3169
    %v3171 = vpop.f32.mrb[0].mxu0
    %v3172 = vadd.f32 %v3129, %v3171
    %v3173 = vpop.f32.mrb[0].mxu0
    %v3174 = vadd.f32 %v3131, %v3173
    %v3175 = vpop.f32.mrb[0].mxu0
    %v3176 = vadd.f32 %v3133, %v3175
    %3177 = vdwg.mxu0
    %v3178 = vpack.c.bf16 %v3088, %v3084
    %v3179 = vpack.c.bf16 %v3090, %v3086
    %v3180 = vpack.c.bf16 %v3174, %v3170
    %v3181 = vpack.c.bf16 %v3176, %v3172
    %vm3182 = vcmp.gt.bf16.partialorder %v3178, 0
    %vm3183 = vcmp.gt.bf16.partialorder %v3179, 0
    %vm3184 = vcmp.gt.bf16.partialorder %v3180, 0
    %vm3185 = vcmp.gt.bf16.partialorder %v3181, 0
    %v3186 = vsel %vm3182, 65537, 0
    %v3187 = vsel %vm3183, 65537, 0
    %v3188 = vsel %vm3184, 65537, 0
    %v3189 = vsel %vm3185, 65537, 0
    %v3190 = vunpack.c.l.b16 %v3186
    %v3191 = vunpack.c.l.b16 %v3187
    %v3192 = vunpack.c.l.b16 %v3188
    %v3193 = vunpack.c.l.b16 %v3189
    %v3194 = vunpack.c.h.b16 %v3186
    %v3195 = vunpack.c.h.b16 %v3187
    %v3196 = vunpack.c.h.b16 %v3188
    %v3197 = vunpack.c.h.b16 %v3189
    %v3198 = vpack.c.b16 %v3191, %v3190
    %v3199 = vpack.c.b16 %v3193, %v3192
    %v3200 = vpack.c.b16 %v3195, %v3194
    %v3201 = vpack.c.b16 %v3197, %v3196
    %vm3202 = vcmp.ne.s16.totalorder %v3198, 0
    %vm3203 = vcmp.ne.s16.totalorder %v3199, 0
    %vm3204 = vcmp.ne.s16.totalorder %v3200, 0
    %vm3205 = vcmp.ne.s16.totalorder %v3201, 0
    %v3206 = vsel %vm3202, 65537, 0
    %v3207 = vsel %vm3203, 65537, 0
    %v3208 = vsel %vm3204, 65537, 0
    %v3209 = vsel %vm3205, 65537, 0
    %v3210 = vunpack.c.l.b16 %v3206
    %v3211 = vunpack.c.h.b16 %v3206
    %v3212 = vunpack.c.l.b16 %v3207
    %v3213 = vunpack.c.h.b16 %v3207
    %v3214 = vunpack.c.l.b16 %v3208
    %v3215 = vunpack.c.h.b16 %v3208
    %v3216 = vunpack.c.l.b16 %v3209
    %v3217 = vunpack.c.h.b16 %v3209
    %vm3218 = vcmp.ne.s32.totalorder %v3210, 0
    %vm3219 = vcmp.ne.s32.totalorder %v3211, 0
    %vm3220 = vcmp.ne.s32.totalorder %v3212, 0
    %vm3221 = vcmp.ne.s32.totalorder %v3213, 0
    %vm3222 = vcmp.ne.s32.totalorder %v3214, 0
    %vm3223 = vcmp.ne.s32.totalorder %v3215, 0
    %vm3224 = vcmp.ne.s32.totalorder %v3216, 0
    %vm3225 = vcmp.ne.s32.totalorder %v3217, 0
    %vm3226 = vmand %vm242, %vm3218
    %vm3227 = vmand %vm243, %vm3219
    %vm3228 = vmand %vm244, %vm3220
    %vm3229 = vmand %vm245, %vm3221
    %vm3230 = vmand %vm246, %vm3222
    %vm3231 = vmand %vm247, %vm3223
    %vm3232 = vmand %vm248, %vm3224
    %vm3233 = vmand %vm249, %vm3225
    %vm3234 = vmpackc.low %vm3230, %vm3226
    %vm3235 = vmpackc.low %vm3231, %vm3227
    %vm3236 = vmpackc.low %vm3232, %vm3228
    %vm3237 = vmpackc.low %vm3233, %vm3229
    %v3238 = vsel %vm3234, %v3178, 0
    %v3239 = vsel %vm3235, %v3179, 0
    %v3240 = vsel %vm3236, %v3180, 0
    %v3241 = vsel %vm3237, %v3181, 0
    %v3242 = vld [vmem:[#allocation9] sm:$0xf]
    %v3243 = vld [vmem:[#allocation9 + $0x4] sm:$0xf]
    %v3244 = vld [vmem:[#allocation9 + $0x8] sm:$0xf]
    %v3245 = vld [vmem:[#allocation9 + $0xc] sm:$0xf]
    %v3246 = vld [vmem:[#allocation9 + $0x10] sm:$0xf]
    %v3247 = vld [vmem:[#allocation9 + $0x14] sm:$0xf]
    %v3248 = vld [vmem:[#allocation9 + $0x18] sm:$0xf]
    %v3249 = vld [vmem:[#allocation9 + $0x1c] sm:$0xf]
    %v3250 = vld [vmem:[#allocation9 + $0x20] sm:$0xf]
    %v3251 = vld [vmem:[#allocation9 + $0x24] sm:$0xf]
    %v3252 = vld [vmem:[#allocation9 + $0x28] sm:$0xf]
    %v3253 = vld [vmem:[#allocation9 + $0x2c] sm:$0xf]
    %v3254 = vld [vmem:[#allocation9 + $0x30] sm:$0xf]
    %v3255 = vld [vmem:[#allocation9 + $0x34] sm:$0xf]
    %v3256 = vld [vmem:[#allocation9 + $0x38] sm:$0xf]
    %v3257 = vld [vmem:[#allocation9 + $0x3c] sm:$0xf]
    %v3258 = vld [vmem:[#allocation9 + $0x40] sm:$0xf]
    %v3259 = vld [vmem:[#allocation9 + $0x44] sm:$0xf]
    %v3260 = vld [vmem:[#allocation9 + $0x48] sm:$0xf]
    %v3261 = vld [vmem:[#allocation9 + $0x4c] sm:$0xf]
    %v3262 = vld [vmem:[#allocation9 + $0x50] sm:$0xf]
    %v3263 = vld [vmem:[#allocation9 + $0x54] sm:$0xf]
    %v3264 = vld [vmem:[#allocation9 + $0x58] sm:$0xf]
    %v3265 = vld [vmem:[#allocation9 + $0x5c] sm:$0xf]
    %v3266 = vld [vmem:[#allocation9 + $0x60] sm:$0xf]
    %v3267 = vld [vmem:[#allocation9 + $0x64] sm:$0xf]
    %v3268 = vld [vmem:[#allocation9 + $0x68] sm:$0xf]
    %v3269 = vld [vmem:[#allocation9 + $0x6c] sm:$0xf]
    %v3270 = vld [vmem:[#allocation9 + $0x70] sm:$0xf]
    %v3271 = vld [vmem:[#allocation9 + $0x74] sm:$0xf]
    %v3272 = vld [vmem:[#allocation9 + $0x78] sm:$0xf]
    %v3273 = vld [vmem:[#allocation9 + $0x7c] sm:$0xf]
    %v3274 = vld [vmem:[#allocation9 + $0x80] sm:$0xf]
    %v3275 = vld [vmem:[#allocation9 + $0x84] sm:$0xf]
    %v3276 = vld [vmem:[#allocation9 + $0x88] sm:$0xf]
    %v3277 = vld [vmem:[#allocation9 + $0x8c] sm:$0xf]
    %v3278 = vld [vmem:[#allocation9 + $0x90] sm:$0xf]
    %v3279 = vld [vmem:[#allocation9 + $0x94] sm:$0xf]
    %v3280 = vld [vmem:[#allocation9 + $0x98] sm:$0xf]
    %v3281 = vld [vmem:[#allocation9 + $0x9c] sm:$0xf]
    %v3282 = vld [vmem:[#allocation9 + $0xa0] sm:$0xf]
    %v3283 = vld [vmem:[#allocation9 + $0xa4] sm:$0xf]
    %v3284 = vld [vmem:[#allocation9 + $0xa8] sm:$0xf]
    %v3285 = vld [vmem:[#allocation9 + $0xac] sm:$0xf]
    %v3286 = vld [vmem:[#allocation9 + $0xb0] sm:$0xf]
    %v3287 = vld [vmem:[#allocation9 + $0xb4] sm:$0xf]
    %v3288 = vld [vmem:[#allocation9 + $0xb8] sm:$0xf]
    %v3289 = vld [vmem:[#allocation9 + $0xbc] sm:$0xf]
    %v3290 = vld [vmem:[#allocation9 + $0xc0] sm:$0xf]
    %v3291 = vld [vmem:[#allocation9 + $0xc4] sm:$0xf]
    %v3292 = vld [vmem:[#allocation9 + $0xc8] sm:$0xf]
    %v3293 = vld [vmem:[#allocation9 + $0xcc] sm:$0xf]
    %v3294 = vld [vmem:[#allocation9 + $0xd0] sm:$0xf]
    %v3295 = vld [vmem:[#allocation9 + $0xd4] sm:$0xf]
    %v3296 = vld [vmem:[#allocation9 + $0xd8] sm:$0xf]
    %v3297 = vld [vmem:[#allocation9 + $0xdc] sm:$0xf]
    %v3298 = vld [vmem:[#allocation9 + $0xe0] sm:$0xf]
    %v3299 = vld [vmem:[#allocation9 + $0xe4] sm:$0xf]
    %v3300 = vld [vmem:[#allocation9 + $0xe8] sm:$0xf]
    %v3301 = vld [vmem:[#allocation9 + $0xec] sm:$0xf]
    %v3302 = vld [vmem:[#allocation9 + $0xf0] sm:$0xf]
    %v3303 = vld [vmem:[#allocation9 + $0xf4] sm:$0xf]
    %v3304 = vld [vmem:[#allocation9 + $0xf8] sm:$0xf]
    %v3305 = vld [vmem:[#allocation9 + $0xfc] sm:$0xf]
    %v3306 = vld [vmem:[%s7] sm:$0x1]
    %v3308 = vlaneseq
    %v3309 = vshrl.u32 %v3308, 7
    %v3310 = vsub.s32 0, %v3309
    %v3311 = vrot.slane %v3306, %v3310
    %v3377 = vunpack.c.l.b16 %v3242
    %v3378 = vunpack.c.l.b16 %v3243
    %v3379 = vunpack.c.l.b16 %v3244
    %v3380 = vunpack.c.l.b16 %v3245
    %v3381 = vunpack.c.l.b16 %v3246
    %v3382 = vunpack.c.l.b16 %v3247
    %v3383 = vunpack.c.l.b16 %v3248
    %v3384 = vunpack.c.l.b16 %v3249
    %v3385 = vunpack.c.l.b16 %v3250
    %v3386 = vunpack.c.l.b16 %v3251
    %v3387 = vunpack.c.l.b16 %v3252
    %v3388 = vunpack.c.l.b16 %v3253
    %v3389 = vunpack.c.l.b16 %v3254
    %v3390 = vunpack.c.l.b16 %v3255
    %v3391 = vunpack.c.l.b16 %v3256
    %v3392 = vunpack.c.l.b16 %v3257
    %v3393 = vunpack.c.l.b16 %v3258
    %v3394 = vunpack.c.l.b16 %v3259
    %v3395 = vunpack.c.l.b16 %v3260
    %v3396 = vunpack.c.l.b16 %v3261
    %v3397 = vunpack.c.l.b16 %v3262
    %v3398 = vunpack.c.l.b16 %v3263
    %v3399 = vunpack.c.l.b16 %v3264
    %v3400 = vunpack.c.l.b16 %v3265
    %v3401 = vunpack.c.l.b16 %v3266
    %v3402 = vunpack.c.l.b16 %v3267
    %v3403 = vunpack.c.l.b16 %v3268
    %v3404 = vunpack.c.l.b16 %v3269
    %v3405 = vunpack.c.l.b16 %v3270
    %v3406 = vunpack.c.l.b16 %v3271
    %v3407 = vunpack.c.l.b16 %v3272
    %v3408 = vunpack.c.l.b16 %v3273
    %v3409 = vunpack.c.l.b16 %v3274
    %v3410 = vunpack.c.l.b16 %v3275
    %v3411 = vunpack.c.l.b16 %v3276
    %v3412 = vunpack.c.l.b16 %v3277
    %v3413 = vunpack.c.l.b16 %v3278
    %v3414 = vunpack.c.l.b16 %v3279
    %v3415 = vunpack.c.l.b16 %v3280
    %v3416 = vunpack.c.l.b16 %v3281
    %v3417 = vunpack.c.l.b16 %v3282
    %v3418 = vunpack.c.l.b16 %v3283
    %v3419 = vunpack.c.l.b16 %v3284
    %v3420 = vunpack.c.l.b16 %v3285
    %v3421 = vunpack.c.l.b16 %v3286
    %v3422 = vunpack.c.l.b16 %v3287
    %v3423 = vunpack.c.l.b16 %v3288
    %v3424 = vunpack.c.l.b16 %v3289
    %v3425 = vunpack.c.l.b16 %v3290
    %v3426 = vunpack.c.l.b16 %v3291
    %v3427 = vunpack.c.l.b16 %v3292
    %v3428 = vunpack.c.l.b16 %v3293
    %v3429 = vunpack.c.l.b16 %v3294
    %v3430 = vunpack.c.l.b16 %v3295
    %v3431 = vunpack.c.l.b16 %v3296
    %v3432 = vunpack.c.l.b16 %v3297
    %v3433 = vunpack.c.l.b16 %v3298
    %v3434 = vunpack.c.l.b16 %v3299
    %v3435 = vunpack.c.l.b16 %v3300
    %v3436 = vunpack.c.l.b16 %v3301
    %v3437 = vunpack.c.l.b16 %v3302
    %v3438 = vunpack.c.l.b16 %v3303
    %v3439 = vunpack.c.l.b16 %v3304
    %v3440 = vunpack.c.l.b16 %v3305
    %v3441 = vpack.c.b16 %v3378, %v3377
    %v3442 = vpack.c.b16 %v3380, %v3379
    %v3443 = vpack.c.b16 %v3382, %v3381
    %v3444 = vpack.c.b16 %v3384, %v3383
    %v3445 = vpack.c.b16 %v3386, %v3385
    %v3446 = vpack.c.b16 %v3388, %v3387
    %v3447 = vpack.c.b16 %v3390, %v3389
    %v3448 = vpack.c.b16 %v3392, %v3391
    %v3449 = vpack.c.b16 %v3394, %v3393
    %v3450 = vpack.c.b16 %v3396, %v3395
    %v3451 = vpack.c.b16 %v3398, %v3397
    %v3452 = vpack.c.b16 %v3400, %v3399
    %v3453 = vpack.c.b16 %v3402, %v3401
    %v3454 = vpack.c.b16 %v3404, %v3403
    %v3455 = vpack.c.b16 %v3406, %v3405
    %v3456 = vpack.c.b16 %v3408, %v3407
    %v3457 = vpack.c.b16 %v3410, %v3409
    %v3458 = vpack.c.b16 %v3412, %v3411
    %v3459 = vpack.c.b16 %v3414, %v3413
    %v3460 = vpack.c.b16 %v3416, %v3415
    %v3461 = vpack.c.b16 %v3418, %v3417
    %v3462 = vpack.c.b16 %v3420, %v3419
    %v3463 = vpack.c.b16 %v3422, %v3421
    %v3464 = vpack.c.b16 %v3424, %v3423
    %v3465 = vpack.c.b16 %v3426, %v3425
    %v3466 = vpack.c.b16 %v3428, %v3427
    %v3467 = vpack.c.b16 %v3430, %v3429
    %v3468 = vpack.c.b16 %v3432, %v3431
    %v3469 = vpack.c.b16 %v3434, %v3433
    %v3470 = vpack.c.b16 %v3436, %v3435
    %v3471 = vpack.c.b16 %v3438, %v3437
    %v3472 = vpack.c.b16 %v3440, %v3439
    %3505 = vmatprep.subr.bf16.mxu0 0
    %3506 = vmatpush1.bf16.msra.mxu0 %v3441
    %3507 = vmatprep.subr.bf16.mxu0 0
    %3508 = vmatpush1.bf16.msra.mxu0 %v3442
    %3509 = vmatprep.subr.bf16.mxu0 0
    %3510 = vmatpush1.bf16.msra.mxu0 %v3443
    %3511 = vmatprep.subr.bf16.mxu0 0
    %3512 = vmatpush1.bf16.msra.mxu0 %v3444
    %3513 = vmatprep.subr.bf16.mxu0 0
    %3514 = vmatpush1.bf16.msra.mxu0 %v3445
    %3515 = vmatprep.subr.bf16.mxu0 0
    %3516 = vmatpush1.bf16.msra.mxu0 %v3446
    %3517 = vmatprep.subr.bf16.mxu0 0
    %3518 = vmatpush1.bf16.msra.mxu0 %v3447
    %3519 = vmatprep.subr.bf16.mxu0 0
    %3520 = vmatpush1.bf16.msra.mxu0 %v3448
    %3521 = vmatprep.subr.bf16.mxu0 0
    %3522 = vmatpush1.bf16.msra.mxu0 %v3449
    %3523 = vmatprep.subr.bf16.mxu0 0
    %3524 = vmatpush1.bf16.msra.mxu0 %v3450
    %3525 = vmatprep.subr.bf16.mxu0 0
    %3526 = vmatpush1.bf16.msra.mxu0 %v3451
    %3527 = vmatprep.subr.bf16.mxu0 0
    %3528 = vmatpush1.bf16.msra.mxu0 %v3452
    %3529 = vmatprep.subr.bf16.mxu0 0
    %3530 = vmatpush1.bf16.msra.mxu0 %v3453
    %3531 = vmatprep.subr.bf16.mxu0 0
    %3532 = vmatpush1.bf16.msra.mxu0 %v3454
    %3533 = vmatprep.subr.bf16.mxu0 0
    %3534 = vmatpush1.bf16.msra.mxu0 %v3455
    %3535 = vmatprep.subr.bf16.mxu0 0
    %3536 = vmatpush1.bf16.msra.mxu0 %v3456
    %3537 = vmatprep.mubr.bf16.mxu0 %v3239
    %3538 = vmatmul.mubr.bf16.gmra.mrb[0].mxu0 %v3238
    %v3539 = vpop.f32.mrb[0].mxu0
    %v3540 = vadd.f32 %v3311, %v3539
    %v3541 = vpop.f32.mrb[0].mxu0
    %v3542 = vpop.f32.mrb[0].mxu0
    %v3543 = vadd.f32 %v3311, %v3542
    %v3544 = vpop.f32.mrb[0].mxu0
    %3545 = vdwg.mxu0
    %3546 = vmatprep.subr.bf16.mxu0 0
    %3547 = vmatpush1.bf16.msra.mxu0 %v3457
    %3548 = vmatprep.subr.bf16.mxu0 0
    %3549 = vmatpush1.bf16.msra.mxu0 %v3458
    %3550 = vmatprep.subr.bf16.mxu0 0
    %3551 = vmatpush1.bf16.msra.mxu0 %v3459
    %3552 = vmatprep.subr.bf16.mxu0 0
    %3553 = vmatpush1.bf16.msra.mxu0 %v3460
    %3554 = vmatprep.subr.bf16.mxu0 0
    %3555 = vmatpush1.bf16.msra.mxu0 %v3461
    %3556 = vmatprep.subr.bf16.mxu0 0
    %3557 = vmatpush1.bf16.msra.mxu0 %v3462
    %3558 = vmatprep.subr.bf16.mxu0 0
    %3559 = vmatpush1.bf16.msra.mxu0 %v3463
    %3560 = vmatprep.subr.bf16.mxu0 0
    %3561 = vmatpush1.bf16.msra.mxu0 %v3464
    %3562 = vmatprep.subr.bf16.mxu0 0
    %3563 = vmatpush1.bf16.msra.mxu0 %v3465
    %3564 = vmatprep.subr.bf16.mxu0 0
    %3565 = vmatpush1.bf16.msra.mxu0 %v3466
    %3566 = vmatprep.subr.bf16.mxu0 0
    %3567 = vmatpush1.bf16.msra.mxu0 %v3467
    %3568 = vmatprep.subr.bf16.mxu0 0
    %3569 = vmatpush1.bf16.msra.mxu0 %v3468
    %3570 = vmatprep.subr.bf16.mxu0 0
    %3571 = vmatpush1.bf16.msra.mxu0 %v3469
    %3572 = vmatprep.subr.bf16.mxu0 0
    %3573 = vmatpush1.bf16.msra.mxu0 %v3470
    %3574 = vmatprep.subr.bf16.mxu0 0
    %3575 = vmatpush1.bf16.msra.mxu0 %v3471
    %3576 = vmatprep.subr.bf16.mxu0 0
    %3577 = vmatpush1.bf16.msra.mxu0 %v3472
    %3578 = vmatprep.mubr.bf16.mxu0 %v3241
    %3579 = vmatmul.mubr.bf16.gmra.mrb[0].mxu0 %v3240
    %v3580 = vpop.f32.mrb[0].mxu0
    %v3581 = vadd.f32 %v3540, %v3580
    %v3582 = vpop.f32.mrb[0].mxu0
    %v3583 = vpop.f32.mrb[0].mxu0
    %v3584 = vadd.f32 %v3543, %v3583
    %v3585 = vpop.f32.mrb[0].mxu0
    %3586 = vdwg.mxu0
    %3587 = vmax.xlane.f32.xlu0 %v3581
    %v3588 = vpop.xlane.xlu0 %3587
    %3589 = vmax.xlane.f32.xlu0 %v3584
    %v3590 = vpop.xlane.xlu0 %3589
    %v3591 = vsub.f32 %v3581, %v3588
    %v3592 = vsub.f32 %v3584, %v3590
    %v3593 = vmul.f32 %v3591, 1.442695
    %v3594 = vpow.pop %v3593
    %v3595 = vmul.f32 %v3592, 1.442695
    %v3596 = vpow.pop %v3595
    %3597 = vadd.xlane.f32.xlu0 %v3594
    %v3598 = vpop.xlane.xlu0 %3597
    %3599 = vadd.xlane.f32.xlu0 %v3596
    %v3600 = vpop.xlane.xlu0 %3599
    %v3601 = vrcp.pop %v3598
    %v3602 = vmul.f32 %v3594, %v3601
    %v3603 = vrcp.pop %v3600
    %v3604 = vmul.f32 %v3596, %v3603
    %v3605 = vpack.c.bf16 %v3604, %v3602
    %v3607 = vunpack.c.l.b16 %v3605
    %v3608 = vunpack.c.h.b16 %v3605
    %v3609 = vpack.c.b16 %v3607, %v3607
    %v3610 = vpack.c.b16 %v3608, %v3608
    %3613 = vst [vmem:[#allocation11] sm:$0xf] %v3609
    %3614 = vst [vmem:[#allocation11 + $0x4] sm:$0xf] %v3610
    // Predicated region
    $region50: #{tpu_custom_call.1} parent=1 // pred_check
      _
    $region51: #{tpu_custom_call.1} parent=1 // pred_check_branch
      %3616 = sbr.rel (0) target = $region53
    $region52: #{tpu_custom_call.1} parent=1 // pred_region
      %s3618 = ssub.s32 128, 128
      %3619 = vsyncadd [#allocation5], %s3618
      %s3620 = sshll.u32 [#allocation11], 4
      %s3621 = int_to_ptr.vmem [resolvable:$true] %s3620
      %3626 = dma.vmem_to_hbm [thread:$0]  %s3621, 128, %s8, [#allocation5], 64, 64, 4
    $region53: #{tpu_custom_call.1} parent=1 // pred_fallthru
      _
    // Predicated region
    $region54: #{tpu_custom_call.1} parent=1 // pred_check
      _
    $region55: #{tpu_custom_call.1} parent=1 // pred_check_branch
      %3628 = sbr.rel (0) target = $region57
    $region56: #{tpu_custom_call.1} parent=1 // pred_region
      %3629 = dma.done [#allocation5], 128
    $region57: #{tpu_custom_call.1} parent=1 // pred_fallthru
      _
    %3630 = vsyncpa [#allocation4], 1
    %3631 = vsyncpa [#allocation7], 1
    %3632 = vsyncpa [#allocation10], 1
    %3633 = vsyncpa [#allocation5], 1

</llo_original>
